<compile_context>
chip_gen: v7x
topology: tpu7x:2x2x1
jax: 0.10.0
libtpu: 0.0.40
codegen_flags: <defaults>
</compile_context>

<pallas_src>
import functools

import jax
import jax.numpy as jnp
from jax.experimental import pallas as pl
from jax.experimental.pallas import tpu as pltpu

# Logical layer sizes (PyTorch module) and lane-padded kernel sizes.
D_IN, D_H1, D_H2, D_H3, D_OUT = 352, 1024, 1024, 100, 4
D_H3_PAD, D_OUT_PAD = 128, 128

TB = 256  # batch-tile rows per grid step (fills MXU rows on all chips)


def _mlp_kernel(x_ref, w1_ref, b1_ref, w2_ref, b2_ref,
                w3_ref, b3_ref, w4_ref, b4_ref, o_ref):
    """Fused 4-layer MLP forward for one (TB, D_IN) batch tile.

    x and weights are bf16 (MXU native), biases/activations f32 (VPU-safe on
    v5e), accumulation f32 via preferred_element_type.
    """
    x = x_ref[...]  # (TB, 352) bf16

    h = jnp.dot(x, w1_ref[...], preferred_element_type=jnp.float32) + b1_ref[...]
    h = jnp.maximum(h, 0.0)

    h = jnp.dot(h.astype(jnp.bfloat16), w2_ref[...],
                preferred_element_type=jnp.float32) + b2_ref[...]
    h = jnp.maximum(h, 0.0)

    h = jnp.dot(h.astype(jnp.bfloat16), w3_ref[...],
                preferred_element_type=jnp.float32) + b3_ref[...]
    h = jnp.maximum(h, 0.0)

    o_ref[...] = (jnp.dot(h.astype(jnp.bfloat16), w4_ref[...],
                          preferred_element_type=jnp.float32) + b4_ref[...])


@jax.jit
def big_chi_player_forward(x, params):
    """x: (B, 352) float32 -> (B, 4) float32."""
    w1, b1, w2, b2, w3, b3, w4, b4 = params
    B = x.shape[0]
    Bp = ((B + TB - 1) // TB) * TB

    x_bf = x.astype(jnp.bfloat16)
    if Bp != B:
        x_bf = jnp.pad(x_bf, ((0, Bp - B), (0, 0)))

    n_tiles = Bp // TB

    # Advisory cost hint: per-call FLOPs + bytes moved.
    flops = 2 * Bp * (D_IN * D_H1 + D_H1 * D_H2 + D_H2 * D_H3_PAD
                      + D_H3_PAD * D_OUT_PAD)
    param_bytes = sum(int(a.size) * a.dtype.itemsize for a in params)
    bytes_accessed = (param_bytes + int(x_bf.size) * 2 + Bp * D_OUT_PAD * 4)

    # Weights/biases: full blocks with constant index maps -> DMA'd once,
    # resident in VMEM across the batch grid.  x / out tiles pipeline.
    def const_spec(arr):
        return pl.BlockSpec(arr.shape, lambda i: (0, 0))

    out = pl.pallas_call(
        _mlp_kernel,
        out_shape=jax.ShapeDtypeStruct((Bp, D_OUT_PAD), jnp.float32),
        grid_spec=pltpu.PrefetchScalarGridSpec(
            num_scalar_prefetch=0,
            grid=(n_tiles,),
            in_specs=[
                pl.BlockSpec((TB, D_IN), lambda i: (i, 0)),   # x tile
                const_spec(w1), const_spec(b1),
                const_spec(w2), const_spec(b2),
                const_spec(w3), const_spec(b3),
                const_spec(w4), const_spec(b4),
            ],
            out_specs=pl.BlockSpec((TB, D_OUT_PAD), lambda i: (i, 0)),
        ),
        compiler_params=pltpu.CompilerParams(
            dimension_semantics=("parallel",),
            vmem_limit_bytes=32 << 20,
        ),
        cost_estimate=pl.CostEstimate(
            flops=flops, transcendentals=0, bytes_accessed=bytes_accessed),
    )(x_bf, w1, b1, w2, b2, w3, b3, w4, b4)

    return out[:B, :D_OUT]


def init_params(key):
    """nn.Linear-style init (uniform +/- 1/sqrt(fan_in)).

    Weights stored transposed (in, out), cast to bf16, lane-padded with zeros
    for fc3/fc4.  Biases kept f32, shape (1, out_padded)."""
    dims = [(D_IN, D_H1), (D_H1, D_H2), (D_H2, D_H3), (D_H3, D_OUT)]
    pads = [(D_H1, None), (D_H2, None), (D_H3_PAD, None), (D_OUT_PAD, D_H3_PAD)]
    params = []
    keys = jax.random.split(key, 2 * len(dims))
    for i, ((fan_in, fan_out), (out_pad, in_pad)) in enumerate(zip(dims, pads)):
        bound = 1.0 / jnp.sqrt(float(fan_in))
        w = jax.random.uniform(keys[2 * i], (fan_in, fan_out),
                               minval=-bound, maxval=bound, dtype=jnp.float32)
        b = jax.random.uniform(keys[2 * i + 1], (1, fan_out),
                               minval=-bound, maxval=bound, dtype=jnp.float32)
        # Zero-pad output lanes (and fc4 input sublanes) up to 128 multiples.
        if out_pad is not None and out_pad != fan_out:
            w = jnp.pad(w, ((0, 0), (0, out_pad - fan_out)))
            b = jnp.pad(b, ((0, 0), (0, out_pad - fan_out)))
        if in_pad is not None and in_pad != fan_in:
            w = jnp.pad(w, ((0, in_pad - fan_in), (0, 0)))
        params += [w.astype(jnp.bfloat16), b]
    return tuple(params)


def reference_forward_bf16(x, params):
    """Pure-JAX reference mirroring the kernel's bf16 matmul / f32-accum math."""
    w1, b1, w2, b2, w3, b3, w4, b4 = params
    f32 = jnp.float32
    h = jnp.maximum(
        jnp.dot(x.astype(jnp.bfloat16), w1, preferred_element_type=f32) + b1, 0.0)
    h = jnp.maximum(
        jnp.dot(h.astype(jnp.bfloat16), w2, preferred_element_type=f32) + b2, 0.0)
    h = jnp.maximum(
        jnp.dot(h.astype(jnp.bfloat16), w3, preferred_element_type=f32) + b3, 0.0)
    out = jnp.dot(h.astype(jnp.bfloat16), w4, preferred_element_type=f32) + b4
    return out[:, :D_OUT]


def reference_forward_f32(x, params):
    """Full-f32 reference of the original PyTorch forward (same weights)."""
    w1, b1, w2, b2, w3, b3, w4, b4 = (p.astype(jnp.float32) for p in params)
    h = jnp.maximum(x @ w1 + b1, 0.0)
    h = jnp.maximum(h @ w2 + b2, 0.0)
    h = jnp.maximum(h @ w3 + b3, 0.0)
    return (h @ w4 + b4)[:, :D_OUT]


if __name__ == "__main__":
    key = jax.random.PRNGKey(0)
    pkey, xkey = jax.random.split(key)

    params = init_params(pkey)
    x = jax.random.normal(xkey, (2, D_IN), dtype=jnp.float32)  # batch=2 hands

    out = big_chi_player_forward(x, params)
    out = jax.block_until_ready(out)
    assert out.shape == (2, D_OUT), out.shape

    # Tight check vs. a reference with identical bf16 quantization.
    ref_bf16 = reference_forward_bf16(x, params)
    err_bf16 = float(jnp.max(jnp.abs(out - ref_bf16)))
    assert jnp.allclose(out, ref_bf16, atol=1e-2, rtol=1e-2), (
        f"mismatch vs bf16 reference: max abs err {err_bf16}")

    # Loose sanity check vs. the full-f32 forward (bf16 rounding error only).
    ref_f32 = reference_forward_f32(x, params)
    err_f32 = float(jnp.max(jnp.abs(out - ref_f32)))
    assert jnp.allclose(out, ref_f32, atol=5e-2, rtol=5e-2), (
        f"mismatch vs f32 reference: max abs err {err_f32}")

    print("KERNEL_OK")
</pallas_src>

<mosaic_0001>
module attributes {stable_mosaic.version = 11 : i64} {
  func.func @_mlp_kernel(%arg0: i32, %arg1: memref<256x352xbf16, #tpu.memory_space<vmem>>, %arg2: memref<352x1024xbf16, #tpu.memory_space<vmem>>, %arg3: memref<1x1024xf32, #tpu.memory_space<vmem>>, %arg4: memref<1024x1024xbf16, #tpu.memory_space<vmem>>, %arg5: memref<1x1024xf32, #tpu.memory_space<vmem>>, %arg6: memref<1024x128xbf16, #tpu.memory_space<vmem>>, %arg7: memref<1x128xf32, #tpu.memory_space<vmem>>, %arg8: memref<128x128xbf16, #tpu.memory_space<vmem>>, %arg9: memref<1x128xf32, #tpu.memory_space<vmem>>, %arg10: memref<256x128xf32, #tpu.memory_space<vmem>>) attributes {dimension_semantics = [#tpu.dimension_semantics<parallel>], iteration_bounds = array<i64: 1>, scalar_prefetch = 0 : i64, scratch_operands = 0 : i64, tpu.core_type = #tpu.core_type<tc>, window_params = [{transform_indices = @transform_0, window_bounds = array<i64: 256, 352>}, {pipeline_mode = #tpu.pipeline_mode<synchronous>, transform_indices = @transform_1, window_bounds = array<i64: 352, 1024>}, {pipeline_mode = #tpu.pipeline_mode<synchronous>, transform_indices = @transform_2, window_bounds = array<i64: 1, 1024>}, {pipeline_mode = #tpu.pipeline_mode<synchronous>, transform_indices = @transform_3, window_bounds = array<i64: 1024, 1024>}, {pipeline_mode = #tpu.pipeline_mode<synchronous>, transform_indices = @transform_4, window_bounds = array<i64: 1, 1024>}, {pipeline_mode = #tpu.pipeline_mode<synchronous>, transform_indices = @transform_5, window_bounds = array<i64: 1024, 128>}, {pipeline_mode = #tpu.pipeline_mode<synchronous>, transform_indices = @transform_6, window_bounds = array<i64: 1, 128>}, {pipeline_mode = #tpu.pipeline_mode<synchronous>, transform_indices = @transform_7, window_bounds = array<i64: 128, 128>}, {pipeline_mode = #tpu.pipeline_mode<synchronous>, transform_indices = @transform_8, window_bounds = array<i64: 1, 128>}, {transform_indices = @transform_9, window_bounds = array<i64: 256, 128>}]} {
    %c0 = arith.constant 0 : index
    %c0_0 = arith.constant 0 : index
    %0 = vector.load %arg1[%c0, %c0_0] : memref<256x352xbf16, #tpu.memory_space<vmem>>, vector<256x352xbf16>
    %c0_1 = arith.constant 0 : index
    %c0_2 = arith.constant 0 : index
    %1 = vector.load %arg2[%c0_1, %c0_2] : memref<352x1024xbf16, #tpu.memory_space<vmem>>, vector<352x1024xbf16>
    %cst = arith.constant dense<0.000000e+00> : vector<256x1024xf32>
    %2 = tpu.matmul %0, %1, %cst {dimension_numbers = #tpu.dot_dimension_numbers<[1], [0], [0], [1], [0, 0, 1, 1], [], []>} : vector<256x352xbf16>, vector<352x1024xbf16>, vector<256x1024xf32> -> vector<256x1024xf32>
    %c0_3 = arith.constant 0 : index
    %c0_4 = arith.constant 0 : index
    %3 = vector.load %arg3[%c0_3, %c0_4] : memref<1x1024xf32, #tpu.memory_space<vmem>>, vector<1x1024xf32>
    %4 = vector.broadcast %3 : vector<1x1024xf32> to vector<256x1024xf32>
    %5 = arith.addf %2, %4 : vector<256x1024xf32>
    %cst_5 = arith.constant 0.000000e+00 : f32
    %6 = vector.broadcast %cst_5 : f32 to vector<256x1024xf32>
    %7 = arith.maximumf %5, %6 : vector<256x1024xf32>
    %8 = arith.truncf %7 : vector<256x1024xf32> to vector<256x1024xbf16>
    %c0_6 = arith.constant 0 : index
    %c0_7 = arith.constant 0 : index
    %9 = vector.load %arg4[%c0_6, %c0_7] : memref<1024x1024xbf16, #tpu.memory_space<vmem>>, vector<1024x1024xbf16>
    %cst_8 = arith.constant dense<0.000000e+00> : vector<256x1024xf32>
    %10 = tpu.matmul %8, %9, %cst_8 {dimension_numbers = #tpu.dot_dimension_numbers<[1], [0], [0], [1], [0, 0, 1, 1], [], []>} : vector<256x1024xbf16>, vector<1024x1024xbf16>, vector<256x1024xf32> -> vector<256x1024xf32>
    %c0_9 = arith.constant 0 : index
    %c0_10 = arith.constant 0 : index
    %11 = vector.load %arg5[%c0_9, %c0_10] : memref<1x1024xf32, #tpu.memory_space<vmem>>, vector<1x1024xf32>
    %12 = vector.broadcast %11 : vector<1x1024xf32> to vector<256x1024xf32>
    %13 = arith.addf %10, %12 : vector<256x1024xf32>
    %cst_11 = arith.constant 0.000000e+00 : f32
    %14 = vector.broadcast %cst_11 : f32 to vector<256x1024xf32>
    %15 = arith.maximumf %13, %14 : vector<256x1024xf32>
    %16 = arith.truncf %15 : vector<256x1024xf32> to vector<256x1024xbf16>
    %c0_12 = arith.constant 0 : index
    %c0_13 = arith.constant 0 : index
    %17 = vector.load %arg6[%c0_12, %c0_13] : memref<1024x128xbf16, #tpu.memory_space<vmem>>, vector<1024x128xbf16>
    %cst_14 = arith.constant dense<0.000000e+00> : vector<256x128xf32>
    %18 = tpu.matmul %16, %17, %cst_14 {dimension_numbers = #tpu.dot_dimension_numbers<[1], [0], [0], [1], [0, 0, 1, 1], [], []>} : vector<256x1024xbf16>, vector<1024x128xbf16>, vector<256x128xf32> -> vector<256x128xf32>
    %c0_15 = arith.constant 0 : index
    %c0_16 = arith.constant 0 : index
    %19 = vector.load %arg7[%c0_15, %c0_16] : memref<1x128xf32, #tpu.memory_space<vmem>>, vector<1x128xf32>
    %20 = vector.broadcast %19 : vector<1x128xf32> to vector<256x128xf32>
    %21 = arith.addf %18, %20 : vector<256x128xf32>
    %cst_17 = arith.constant 0.000000e+00 : f32
    %22 = vector.broadcast %cst_17 : f32 to vector<256x128xf32>
    %23 = arith.maximumf %21, %22 : vector<256x128xf32>
    %24 = arith.truncf %23 : vector<256x128xf32> to vector<256x128xbf16>
    %c0_18 = arith.constant 0 : index
    %c0_19 = arith.constant 0 : index
    %25 = vector.load %arg8[%c0_18, %c0_19] : memref<128x128xbf16, #tpu.memory_space<vmem>>, vector<128x128xbf16>
    %cst_20 = arith.constant dense<0.000000e+00> : vector<256x128xf32>
    %26 = tpu.matmul %24, %25, %cst_20 {dimension_numbers = #tpu.dot_dimension_numbers<[1], [0], [0], [1], [0, 0, 1, 1], [], []>} : vector<256x128xbf16>, vector<128x128xbf16>, vector<256x128xf32> -> vector<256x128xf32>
    %c0_21 = arith.constant 0 : index
    %c0_22 = arith.constant 0 : index
    %27 = vector.load %arg9[%c0_21, %c0_22] : memref<1x128xf32, #tpu.memory_space<vmem>>, vector<1x128xf32>
    %28 = vector.broadcast %27 : vector<1x128xf32> to vector<256x128xf32>
    %29 = arith.addf %26, %28 : vector<256x128xf32>
    %c0_23 = arith.constant 0 : index
    %c0_24 = arith.constant 0 : index
    %30 = vector.load %arg10[%c0_23, %c0_24] : memref<256x128xf32, #tpu.memory_space<vmem>>, vector<256x128xf32>
    tpu.vector_store %arg10[%c0_23, %c0_24], %29 {strides = array<i32>} : memref<256x128xf32, #tpu.memory_space<vmem>>, vector<256x128xf32>,
    return
  }
  func.func @transform_0(%arg0: i32) -> (i32, i32) {
    %c0_i32 = arith.constant 0 : i32
    %c0_i32_0 = arith.constant 0 : i32
    return %arg0, %c0_i32 : i32, i32
  }
  func.func @transform_1(%arg0: i32) -> (i32, i32) {
    %c0_i32 = arith.constant 0 : i32
    %c0_i32_0 = arith.constant 0 : i32
    %c0_i32_1 = arith.constant 0 : i32
    return %c0_i32, %c0_i32_0 : i32, i32
  }
  func.func @transform_2(%arg0: i32) -> (i32, i32) {
    %c0_i32 = arith.constant 0 : i32
    %c0_i32_0 = arith.constant 0 : i32
    %c0_i32_1 = arith.constant 0 : i32
    return %c0_i32, %c0_i32_0 : i32, i32
  }
  func.func @transform_3(%arg0: i32) -> (i32, i32) {
    %c0_i32 = arith.constant 0 : i32
    %c0_i32_0 = arith.constant 0 : i32
    %c0_i32_1 = arith.constant 0 : i32
    return %c0_i32, %c0_i32_0 : i32, i32
  }
  func.func @transform_4(%arg0: i32) -> (i32, i32) {
    %c0_i32 = arith.constant 0 : i32
    %c0_i32_0 = arith.constant 0 : i32
    %c0_i32_1 = arith.constant 0 : i32
    return %c0_i32, %c0_i32_0 : i32, i32
  }
  func.func @transform_5(%arg0: i32) -> (i32, i32) {
    %c0_i32 = arith.constant 0 : i32
    %c0_i32_0 = arith.constant 0 : i32
    %c0_i32_1 = arith.constant 0 : i32
    return %c0_i32, %c0_i32_0 : i32, i32
  }
  func.func @transform_6(%arg0: i32) -> (i32, i32) {
    %c0_i32 = arith.constant 0 : i32
    %c0_i32_0 = arith.constant 0 : i32
    %c0_i32_1 = arith.constant 0 : i32
    return %c0_i32, %c0_i32_0 : i32, i32
  }
  func.func @transform_7(%arg0: i32) -> (i32, i32) {
    %c0_i32 = arith.constant 0 : i32
    %c0_i32_0 = arith.constant 0 : i32
    %c0_i32_1 = arith.constant 0 : i32
    return %c0_i32, %c0_i32_0 : i32, i32
  }
  func.func @transform_8(%arg0: i32) -> (i32, i32) {
    %c0_i32 = arith.constant 0 : i32
    %c0_i32_0 = arith.constant 0 : i32
    %c0_i32_1 = arith.constant 0 : i32
    return %c0_i32, %c0_i32_0 : i32, i32
  }
  func.func @transform_9(%arg0: i32) -> (i32, i32) {
    %c0_i32 = arith.constant 0 : i32
    %c0_i32_0 = arith.constant 0 : i32
    return %arg0, %c0_i32 : i32, i32
  }
}

</mosaic_0001>

<llo_original>
// kernel: big_chi_player_forward.1
$region0: #{big_chi_player_forward.1}
  #allocation0 [shape = 'u32[]', space=smem, size = 0x4, offset = 0x4, fixed_abs, tag = 'smem constant byte address 0x4 - core index']
  #allocation1 [shape = 'u32[144,128]{1,0:T(1,128)}', space=vmem, size = 0x12000, scoped, tag = 'internal scratch']
  %s0 = inlined_call_operand.vmem [shape: bf16[256,352], index: 0, kind: input, shape index: {}]
  %s1 = inlined_call_operand.hbm [shape: bf16[352,1024], index: 1, kind: input, shape index: {}]
  %s2 = inlined_call_operand.hbm [shape: f32[1,1024], index: 2, kind: input, shape index: {}]
  %s3 = inlined_call_operand.hbm [shape: bf16[1024,1024], index: 3, kind: input, shape index: {}]
  %s4 = inlined_call_operand.hbm [shape: f32[1,1024], index: 4, kind: input, shape index: {}]
  %s5 = inlined_call_operand.hbm [shape: bf16[1024,128], index: 5, kind: input, shape index: {}]
  %s6 = inlined_call_operand.hbm [shape: f32[1,128], index: 6, kind: input, shape index: {}]
  %s7 = inlined_call_operand.hbm [shape: bf16[128,128], index: 7, kind: input, shape index: {}]
  %s8 = inlined_call_operand.hbm [shape: f32[1,128], index: 8, kind: input, shape index: {}]
  %s9 = inlined_call_operand.vmem [shape: f32[256,128], index: 9, kind: output, shape index: {}]
  %s10 = sld [smem:[#allocation0]]
  $region78: #{big_chi_player_forward.1} parent=0
    _
  %s12 = ssub.s32 1, %s10
  %s13 = scalar_select 0, %s12, %s10
  $region1: #{big_chi_player_forward.1} parent=0
    #allocation2 [shape = 'u8[720896]{0}', space=vmem, size = 0xb0000, scoped, tag = 'input window, operand 1, single buffered']
    #allocation3 [shape = 's32[1]{0}', space=sflag, size = 0x4, scoped, tag = 'scoped memory for big_chi_player_forward.1']
    #allocation4 [shape = 'u8[4096]{0}', space=vmem, size = 0x1000, scoped, tag = 'input window, operand 2, single buffered']
    #allocation5 [shape = 's32[1]{0}', space=sflag, size = 0x4, scoped, tag = 'scoped memory for big_chi_player_forward.1']
    #allocation6 [shape = 'u8[2097152]{0}', space=vmem, size = 0x200000, scoped, tag = 'input window, operand 3, single buffered']
    #allocation7 [shape = 'u8[4096]{0}', space=vmem, size = 0x1000, scoped, tag = 'input window, operand 4, single buffered']
    #allocation8 [shape = 's32[1]{0}', space=sflag, size = 0x4, scoped, tag = 'scoped memory for big_chi_player_forward.1']
    #allocation9 [shape = 'u8[262144]{0}', space=vmem, size = 0x40000, scoped, tag = 'input window, operand 5, single buffered']
    #allocation10 [shape = 'u8[512]{0}', space=vmem, size = 0x400, scoped, tag = 'input window, operand 6, single buffered']
    #allocation11 [shape = 's32[1]{0}', space=sflag, size = 0x4, scoped, tag = 'scoped memory for big_chi_player_forward.1']
    #allocation12 [shape = 'u8[32768]{0}', space=vmem, size = 0x8000, scoped, tag = 'input window, operand 7, single buffered']
    #allocation13 [shape = 'u8[512]{0}', space=vmem, size = 0x400, scoped, tag = 'input window, operand 8, single buffered']
    #allocation14 [shape = 's32[1]{0}', space=sflag, size = 0x4, scoped, tag = 'scoped memory for big_chi_player_forward.1']
    %14 = vsyncpa [#allocation3], 0
    %15 = vsyncpa [#allocation5], 0
    %16 = vsyncpa [#allocation8], 0
    %17 = vsyncpa [#allocation11], 0
    %18 = vsyncpa [#allocation14], 0
    // Predicated region
    $region2: #{big_chi_player_forward.1} parent=1 // pred_check
      _
    $region3: #{big_chi_player_forward.1} parent=1 // pred_check_branch
      %20 = sbr.rel (0) target = $region5
    $region4: #{big_chi_player_forward.1} parent=1 // pred_region
      _
    $region5: #{big_chi_player_forward.1} parent=1 // pred_fallthru
      _
    // Predicated region
    $region6: #{big_chi_player_forward.1} parent=1 // pred_check
      _
    $region7: #{big_chi_player_forward.1} parent=1 // pred_check_branch
      %22 = sbr.rel (0) target = $region9
    $region8: #{big_chi_player_forward.1} parent=1 // pred_region
      %s24 = ssub.s32 22528, 22528
      %25 = vsyncadd [#allocation3], %s24
      %s26 = sshll.u32 [#allocation2], 4
      %s27 = int_to_ptr.vmem [resolvable:$true] %s26
      %32 = dma.hbm_to_vmem [thread:$0]  %s1, 22528, %s27, [#allocation3], 512, 512, 32
    $region9: #{big_chi_player_forward.1} parent=1 // pred_fallthru
      _
    // Predicated region
    $region10: #{big_chi_player_forward.1} parent=1 // pred_check
      _
    $region11: #{big_chi_player_forward.1} parent=1 // pred_check_branch
      %34 = sbr.rel (0) target = $region13
    $region12: #{big_chi_player_forward.1} parent=1 // pred_region
      %s36 = ssub.s32 128, 128
      %37 = vsyncadd [#allocation5], %s36
      %s39 = sshll.u32 [#allocation4], 4
      %s40 = int_to_ptr.vmem [resolvable:$true] %s39
      %42 = dma.hbm_to_vmem [thread:$0]  %s2, 128, %s40, [#allocation5]
    $region13: #{big_chi_player_forward.1} parent=1 // pred_fallthru
      _
    // Predicated region
    $region14: #{big_chi_player_forward.1} parent=1 // pred_check
      _
    $region15: #{big_chi_player_forward.1} parent=1 // pred_check_branch
      %44 = sbr.rel (0) target = $region17
    $region16: #{big_chi_player_forward.1} parent=1 // pred_region
      %s46 = ssub.s32 65536, 65536
      %47 = vsyncadd [#allocation5], %s46
      %s48 = sshll.u32 [#allocation6], 4
      %s49 = int_to_ptr.vmem [resolvable:$true] %s48
      %54 = dma.hbm_to_vmem [thread:$0]  %s3, 65536, %s49, [#allocation5], 512, 512, 32
    $region17: #{big_chi_player_forward.1} parent=1 // pred_fallthru
      _
    // Predicated region
    $region18: #{big_chi_player_forward.1} parent=1 // pred_check
      _
    $region19: #{big_chi_player_forward.1} parent=1 // pred_check_branch
      %56 = sbr.rel (0) target = $region21
    $region20: #{big_chi_player_forward.1} parent=1 // pred_region
      %s58 = ssub.s32 128, 128
      %59 = vsyncadd [#allocation8], %s58
      %s61 = sshll.u32 [#allocation7], 4
      %s62 = int_to_ptr.vmem [resolvable:$true] %s61
      %64 = dma.hbm_to_vmem [thread:$0]  %s4, 128, %s62, [#allocation8]
    $region21: #{big_chi_player_forward.1} parent=1 // pred_fallthru
      _
    // Predicated region
    $region22: #{big_chi_player_forward.1} parent=1 // pred_check
      _
    $region23: #{big_chi_player_forward.1} parent=1 // pred_check_branch
      %66 = sbr.rel (0) target = $region25
    $region24: #{big_chi_player_forward.1} parent=1 // pred_region
      %s68 = ssub.s32 8192, 8192
      %69 = vsyncadd [#allocation8], %s68
      %s70 = sshll.u32 [#allocation9], 4
      %s71 = int_to_ptr.vmem [resolvable:$true] %s70
      %76 = dma.hbm_to_vmem [thread:$0]  %s5, 8192, %s71, [#allocation8], 64, 64, 4
    $region25: #{big_chi_player_forward.1} parent=1 // pred_fallthru
      _
    // Predicated region
    $region26: #{big_chi_player_forward.1} parent=1 // pred_check
      _
    $region27: #{big_chi_player_forward.1} parent=1 // pred_check_branch
      %78 = sbr.rel (0) target = $region29
    $region28: #{big_chi_player_forward.1} parent=1 // pred_region
      %s80 = ssub.s32 16, 16
      %81 = vsyncadd [#allocation11], %s80
      %s83 = sshll.u32 [#allocation10], 4
      %s84 = int_to_ptr.vmem [resolvable:$true] %s83
      %86 = dma.hbm_to_vmem [thread:$0]  %s6, 16, %s84, [#allocation11]
    $region29: #{big_chi_player_forward.1} parent=1 // pred_fallthru
      _
    // Predicated region
    $region30: #{big_chi_player_forward.1} parent=1 // pred_check
      _
    $region31: #{big_chi_player_forward.1} parent=1 // pred_check_branch
      %88 = sbr.rel (0) target = $region33
    $region32: #{big_chi_player_forward.1} parent=1 // pred_region
      %s90 = ssub.s32 1024, 1024
      %91 = vsyncadd [#allocation11], %s90
      %s92 = sshll.u32 [#allocation12], 4
      %s93 = int_to_ptr.vmem [resolvable:$true] %s92
      %98 = dma.hbm_to_vmem [thread:$0]  %s7, 1024, %s93, [#allocation11], 64, 64, 4
    $region33: #{big_chi_player_forward.1} parent=1 // pred_fallthru
      _
    // Predicated region
    $region34: #{big_chi_player_forward.1} parent=1 // pred_check
      _
    $region35: #{big_chi_player_forward.1} parent=1 // pred_check_branch
      %100 = sbr.rel (0) target = $region37
    $region36: #{big_chi_player_forward.1} parent=1 // pred_region
      %s102 = ssub.s32 16, 16
      %103 = vsyncadd [#allocation14], %s102
      %s105 = sshll.u32 [#allocation13], 4
      %s106 = int_to_ptr.vmem [resolvable:$true] %s105
      %108 = dma.hbm_to_vmem [thread:$0]  %s8, 16, %s106, [#allocation14]
    $region37: #{big_chi_player_forward.1} parent=1 // pred_fallthru
      _
    // Predicated region
    $region38: #{big_chi_player_forward.1} parent=1 // pred_check
      _
    $region39: #{big_chi_player_forward.1} parent=1 // pred_check_branch
      %110 = sbr.rel (0) target = $region41
    $region40: #{big_chi_player_forward.1} parent=1 // pred_region
      %111 = dma.done [#allocation3], 22528
    $region41: #{big_chi_player_forward.1} parent=1 // pred_fallthru
      _
    // Predicated region
    $region42: #{big_chi_player_forward.1} parent=1 // pred_check
      _
    $region43: #{big_chi_player_forward.1} parent=1 // pred_check_branch
      %113 = sbr.rel (0) target = $region45
    $region44: #{big_chi_player_forward.1} parent=1 // pred_region
      %114 = dma.done [#allocation5], 128
    $region45: #{big_chi_player_forward.1} parent=1 // pred_fallthru
      _
    // Predicated region
    $region46: #{big_chi_player_forward.1} parent=1 // pred_check
      _
    $region47: #{big_chi_player_forward.1} parent=1 // pred_check_branch
      %116 = sbr.rel (0) target = $region49
    $region48: #{big_chi_player_forward.1} parent=1 // pred_region
      %117 = dma.done [#allocation5], 65536
    $region49: #{big_chi_player_forward.1} parent=1 // pred_fallthru
      _
    // Predicated region
    $region50: #{big_chi_player_forward.1} parent=1 // pred_check
      _
    $region51: #{big_chi_player_forward.1} parent=1 // pred_check_branch
      %119 = sbr.rel (0) target = $region53
    $region52: #{big_chi_player_forward.1} parent=1 // pred_region
      %120 = dma.done [#allocation8], 128
    $region53: #{big_chi_player_forward.1} parent=1 // pred_fallthru
      _
    // Predicated region
    $region54: #{big_chi_player_forward.1} parent=1 // pred_check
      _
    $region55: #{big_chi_player_forward.1} parent=1 // pred_check_branch
      %122 = sbr.rel (0) target = $region57
    $region56: #{big_chi_player_forward.1} parent=1 // pred_region
      %123 = dma.done [#allocation8], 8192
    $region57: #{big_chi_player_forward.1} parent=1 // pred_fallthru
      _
    // Predicated region
    $region58: #{big_chi_player_forward.1} parent=1 // pred_check
      _
    $region59: #{big_chi_player_forward.1} parent=1 // pred_check_branch
      %125 = sbr.rel (0) target = $region61
    $region60: #{big_chi_player_forward.1} parent=1 // pred_region
      %126 = dma.done [#allocation11], 16
    $region61: #{big_chi_player_forward.1} parent=1 // pred_fallthru
      _
    // Predicated region
    $region62: #{big_chi_player_forward.1} parent=1 // pred_check
      _
    $region63: #{big_chi_player_forward.1} parent=1 // pred_check_branch
      %128 = sbr.rel (0) target = $region65
    $region64: #{big_chi_player_forward.1} parent=1 // pred_region
      %129 = dma.done [#allocation11], 1024
    $region65: #{big_chi_player_forward.1} parent=1 // pred_fallthru
      _
    // Predicated region
    $region66: #{big_chi_player_forward.1} parent=1 // pred_check
      _
    $region67: #{big_chi_player_forward.1} parent=1 // pred_check_branch
      %131 = sbr.rel (0) target = $region69
    $region68: #{big_chi_player_forward.1} parent=1 // pred_region
      %132 = dma.done [#allocation14], 16
    $region69: #{big_chi_player_forward.1} parent=1 // pred_fallthru
      _
    %v134 = vld [vmem:[%s0] sm:$0xff]
    %v135 = vld [vmem:[%s0 + $0x8] sm:$0xf]
    %v136 = vld [vmem:[%s0 + $0xc] sm:$0xff]
    %v137 = vld [vmem:[%s0 + $0x14] sm:$0xf]
    %v138 = vld [vmem:[%s0 + $0x18] sm:$0xff]
    %v139 = vld [vmem:[%s0 + $0x20] sm:$0xf]
    %v140 = vld [vmem:[%s0 + $0x24] sm:$0xff]
    %v141 = vld [vmem:[%s0 + $0x2c] sm:$0xf]
    %v142 = vld [vmem:[%s0 + $0x30] sm:$0xff]
    %v143 = vld [vmem:[%s0 + $0x38] sm:$0xf]
    %v144 = vld [vmem:[%s0 + $0x3c] sm:$0xff]
    %v145 = vld [vmem:[%s0 + $0x44] sm:$0xf]
    %v146 = vld [vmem:[%s0 + $0x48] sm:$0xff]
    %v147 = vld [vmem:[%s0 + $0x50] sm:$0xf]
    %v148 = vld [vmem:[%s0 + $0x54] sm:$0xff]
    %v149 = vld [vmem:[%s0 + $0x5c] sm:$0xf]
    %v150 = vld [vmem:[%s0 + $0x60] sm:$0xff]
    %v151 = vld [vmem:[%s0 + $0x68] sm:$0xf]
    %v152 = vld [vmem:[%s0 + $0x6c] sm:$0xff]
    %v153 = vld [vmem:[%s0 + $0x74] sm:$0xf]
    %v154 = vld [vmem:[%s0 + $0x78] sm:$0xff]
    %v155 = vld [vmem:[%s0 + $0x80] sm:$0xf]
    %v156 = vld [vmem:[%s0 + $0x84] sm:$0xff]
    %v157 = vld [vmem:[%s0 + $0x8c] sm:$0xf]
    %v158 = vld [vmem:[%s0 + $0x90] sm:$0xff]
    %v159 = vld [vmem:[%s0 + $0x98] sm:$0xf]
    %v160 = vld [vmem:[%s0 + $0x9c] sm:$0xff]
    %v161 = vld [vmem:[%s0 + $0xa4] sm:$0xf]
    %v162 = vld [vmem:[%s0 + $0xa8] sm:$0xff]
    %v163 = vld [vmem:[%s0 + $0xb0] sm:$0xf]
    %v164 = vld [vmem:[%s0 + $0xb4] sm:$0xff]
    %v165 = vld [vmem:[%s0 + $0xbc] sm:$0xf]
    %v166 = vld [vmem:[%s0 + $0xc0] sm:$0xff]
    %v167 = vld [vmem:[%s0 + $0xc8] sm:$0xf]
    %v168 = vld [vmem:[%s0 + $0xcc] sm:$0xff]
    %v169 = vld [vmem:[%s0 + $0xd4] sm:$0xf]
    %v170 = vld [vmem:[%s0 + $0xd8] sm:$0xff]
    %v171 = vld [vmem:[%s0 + $0xe0] sm:$0xf]
    %v172 = vld [vmem:[%s0 + $0xe4] sm:$0xff]
    %v173 = vld [vmem:[%s0 + $0xec] sm:$0xf]
    %v174 = vld [vmem:[%s0 + $0xf0] sm:$0xff]
    %v175 = vld [vmem:[%s0 + $0xf8] sm:$0xf]
    %v176 = vld [vmem:[%s0 + $0xfc] sm:$0xff]
    %v177 = vld [vmem:[%s0 + $0x104] sm:$0xf]
    %v178 = vld [vmem:[%s0 + $0x108] sm:$0xff]
    %v179 = vld [vmem:[%s0 + $0x110] sm:$0xf]
    %v180 = vld [vmem:[%s0 + $0x114] sm:$0xff]
    %v181 = vld [vmem:[%s0 + $0x11c] sm:$0xf]
    %v182 = vld [vmem:[%s0 + $0x120] sm:$0xff]
    %v183 = vld [vmem:[%s0 + $0x128] sm:$0xf]
    %v184 = vld [vmem:[%s0 + $0x12c] sm:$0xff]
    %v185 = vld [vmem:[%s0 + $0x134] sm:$0xf]
    %v186 = vld [vmem:[%s0 + $0x138] sm:$0xff]
    %v187 = vld [vmem:[%s0 + $0x140] sm:$0xf]
    %v188 = vld [vmem:[%s0 + $0x144] sm:$0xff]
    %v189 = vld [vmem:[%s0 + $0x14c] sm:$0xf]
    %v190 = vld [vmem:[%s0 + $0x150] sm:$0xff]
    %v191 = vld [vmem:[%s0 + $0x158] sm:$0xf]
    %v192 = vld [vmem:[%s0 + $0x15c] sm:$0xff]
    %v193 = vld [vmem:[%s0 + $0x164] sm:$0xf]
    %v194 = vld [vmem:[%s0 + $0x168] sm:$0xff]
    %v195 = vld [vmem:[%s0 + $0x170] sm:$0xf]
    %v196 = vld [vmem:[%s0 + $0x174] sm:$0xff]
    %v197 = vld [vmem:[%s0 + $0x17c] sm:$0xf]
    %v198 = vld [vmem:[#allocation2] sm:$0xff]
    %v199 = vld [vmem:[#allocation2 + $0x8] sm:$0xff]
    %v200 = vld [vmem:[#allocation2 + $0x10] sm:$0xff]
    %v201 = vld [vmem:[#allocation2 + $0x18] sm:$0xff]
    %v202 = vld [vmem:[#allocation2 + $0x20] sm:$0xff]
    %v203 = vld [vmem:[#allocation2 + $0x28] sm:$0xff]
    %v204 = vld [vmem:[#allocation2 + $0x30] sm:$0xff]
    %v205 = vld [vmem:[#allocation2 + $0x38] sm:$0xff]
    %v206 = vld [vmem:[#allocation2 + $0x40] sm:$0xff]
    %v207 = vld [vmem:[#allocation2 + $0x48] sm:$0xff]
    %v208 = vld [vmem:[#allocation2 + $0x50] sm:$0xff]
    %v209 = vld [vmem:[#allocation2 + $0x58] sm:$0xff]
    %v210 = vld [vmem:[#allocation2 + $0x60] sm:$0xff]
    %v211 = vld [vmem:[#allocation2 + $0x68] sm:$0xff]
    %v212 = vld [vmem:[#allocation2 + $0x70] sm:$0xff]
    %v213 = vld [vmem:[#allocation2 + $0x78] sm:$0xff]
    %v214 = vld [vmem:[#allocation2 + $0x80] sm:$0xff]
    %v215 = vld [vmem:[#allocation2 + $0x88] sm:$0xff]
    %v216 = vld [vmem:[#allocation2 + $0x90] sm:$0xff]
    %v217 = vld [vmem:[#allocation2 + $0x98] sm:$0xff]
    %v218 = vld [vmem:[#allocation2 + $0xa0] sm:$0xff]
    %v219 = vld [vmem:[#allocation2 + $0xa8] sm:$0xff]
    %v220 = vld [vmem:[#allocation2 + $0xb0] sm:$0xff]
    %v221 = vld [vmem:[#allocation2 + $0xb8] sm:$0xff]
    %v222 = vld [vmem:[#allocation2 + $0xc0] sm:$0xff]
    %v223 = vld [vmem:[#allocation2 + $0xc8] sm:$0xff]
    %v224 = vld [vmem:[#allocation2 + $0xd0] sm:$0xff]
    %v225 = vld [vmem:[#allocation2 + $0xd8] sm:$0xff]
    %v226 = vld [vmem:[#allocation2 + $0xe0] sm:$0xff]
    %v227 = vld [vmem:[#allocation2 + $0xe8] sm:$0xff]
    %v228 = vld [vmem:[#allocation2 + $0xf0] sm:$0xff]
    %v229 = vld [vmem:[#allocation2 + $0xf8] sm:$0xff]
    %v230 = vld [vmem:[#allocation2 + $0x100] sm:$0xff]
    %v231 = vld [vmem:[#allocation2 + $0x108] sm:$0xff]
    %v232 = vld [vmem:[#allocation2 + $0x110] sm:$0xff]
    %v233 = vld [vmem:[#allocation2 + $0x118] sm:$0xff]
    %v234 = vld [vmem:[#allocation2 + $0x120] sm:$0xff]
    %v235 = vld [vmem:[#allocation2 + $0x128] sm:$0xff]
    %v236 = vld [vmem:[#allocation2 + $0x130] sm:$0xff]
    %v237 = vld [vmem:[#allocation2 + $0x138] sm:$0xff]
    %v238 = vld [vmem:[#allocation2 + $0x140] sm:$0xff]
    %v239 = vld [vmem:[#allocation2 + $0x148] sm:$0xff]
    %v240 = vld [vmem:[#allocation2 + $0x150] sm:$0xff]
    %v241 = vld [vmem:[#allocation2 + $0x158] sm:$0xff]
    %v242 = vld [vmem:[#allocation2 + $0x160] sm:$0xff]
    %v243 = vld [vmem:[#allocation2 + $0x168] sm:$0xff]
    %v244 = vld [vmem:[#allocation2 + $0x170] sm:$0xff]
    %v245 = vld [vmem:[#allocation2 + $0x178] sm:$0xff]
    %v246 = vld [vmem:[#allocation2 + $0x180] sm:$0xff]
    %v247 = vld [vmem:[#allocation2 + $0x188] sm:$0xff]
    %v248 = vld [vmem:[#allocation2 + $0x190] sm:$0xff]
    %v249 = vld [vmem:[#allocation2 + $0x198] sm:$0xff]
    %v250 = vld [vmem:[#allocation2 + $0x1a0] sm:$0xff]
    %v251 = vld [vmem:[#allocation2 + $0x1a8] sm:$0xff]
    %v252 = vld [vmem:[#allocation2 + $0x1b0] sm:$0xff]
    %v253 = vld [vmem:[#allocation2 + $0x1b8] sm:$0xff]
    %v254 = vld [vmem:[#allocation2 + $0x1c0] sm:$0xff]
    %v255 = vld [vmem:[#allocation2 + $0x1c8] sm:$0xff]
    %v256 = vld [vmem:[#allocation2 + $0x1d0] sm:$0xff]
    %v257 = vld [vmem:[#allocation2 + $0x1d8] sm:$0xff]
    %v258 = vld [vmem:[#allocation2 + $0x1e0] sm:$0xff]
    %v259 = vld [vmem:[#allocation2 + $0x1e8] sm:$0xff]
    %v260 = vld [vmem:[#allocation2 + $0x1f0] sm:$0xff]
    %v261 = vld [vmem:[#allocation2 + $0x1f8] sm:$0xff]
    %v262 = vld [vmem:[#allocation2 + $0x200] sm:$0xff]
    %v263 = vld [vmem:[#allocation2 + $0x208] sm:$0xff]
    %v264 = vld [vmem:[#allocation2 + $0x210] sm:$0xff]
    %v265 = vld [vmem:[#allocation2 + $0x218] sm:$0xff]
    %v266 = vld [vmem:[#allocation2 + $0x220] sm:$0xff]
    %v267 = vld [vmem:[#allocation2 + $0x228] sm:$0xff]
    %v268 = vld [vmem:[#allocation2 + $0x230] sm:$0xff]
    %v269 = vld [vmem:[#allocation2 + $0x238] sm:$0xff]
    %v270 = vld [vmem:[#allocation2 + $0x240] sm:$0xff]
    %v271 = vld [vmem:[#allocation2 + $0x248] sm:$0xff]
    %v272 = vld [vmem:[#allocation2 + $0x250] sm:$0xff]
    %v273 = vld [vmem:[#allocation2 + $0x258] sm:$0xff]
    %v274 = vld [vmem:[#allocation2 + $0x260] sm:$0xff]
    %v275 = vld [vmem:[#allocation2 + $0x268] sm:$0xff]
    %v276 = vld [vmem:[#allocation2 + $0x270] sm:$0xff]
    %v277 = vld [vmem:[#allocation2 + $0x278] sm:$0xff]
    %v278 = vld [vmem:[#allocation2 + $0x280] sm:$0xff]
    %v279 = vld [vmem:[#allocation2 + $0x288] sm:$0xff]
    %v280 = vld [vmem:[#allocation2 + $0x290] sm:$0xff]
    %v281 = vld [vmem:[#allocation2 + $0x298] sm:$0xff]
    %v282 = vld [vmem:[#allocation2 + $0x2a0] sm:$0xff]
    %v283 = vld [vmem:[#allocation2 + $0x2a8] sm:$0xff]
    %v284 = vld [vmem:[#allocation2 + $0x2b0] sm:$0xff]
    %v285 = vld [vmem:[#allocation2 + $0x2b8] sm:$0xff]
    %v286 = vld [vmem:[#allocation2 + $0x2c0] sm:$0xff]
    %v287 = vld [vmem:[#allocation2 + $0x2c8] sm:$0xff]
    %v288 = vld [vmem:[#allocation2 + $0x2d0] sm:$0xff]
    %v289 = vld [vmem:[#allocation2 + $0x2d8] sm:$0xff]
    %v290 = vld [vmem:[#allocation2 + $0x2e0] sm:$0xff]
    %v291 = vld [vmem:[#allocation2 + $0x2e8] sm:$0xff]
    %v292 = vld [vmem:[#allocation2 + $0x2f0] sm:$0xff]
    %v293 = vld [vmem:[#allocation2 + $0x2f8] sm:$0xff]
    %v294 = vld [vmem:[#allocation2 + $0x300] sm:$0xff]
    %v295 = vld [vmem:[#allocation2 + $0x308] sm:$0xff]
    %v296 = vld [vmem:[#allocation2 + $0x310] sm:$0xff]
    %v297 = vld [vmem:[#allocation2 + $0x318] sm:$0xff]
    %v298 = vld [vmem:[#allocation2 + $0x320] sm:$0xff]
    %v299 = vld [vmem:[#allocation2 + $0x328] sm:$0xff]
    %v300 = vld [vmem:[#allocation2 + $0x330] sm:$0xff]
    %v301 = vld [vmem:[#allocation2 + $0x338] sm:$0xff]
    %v302 = vld [vmem:[#allocation2 + $0x340] sm:$0xff]
    %v303 = vld [vmem:[#allocation2 + $0x348] sm:$0xff]
    %v304 = vld [vmem:[#allocation2 + $0x350] sm:$0xff]
    %v305 = vld [vmem:[#allocation2 + $0x358] sm:$0xff]
    %v306 = vld [vmem:[#allocation2 + $0x360] sm:$0xff]
    %v307 = vld [vmem:[#allocation2 + $0x368] sm:$0xff]
    %v308 = vld [vmem:[#allocation2 + $0x370] sm:$0xff]
    %v309 = vld [vmem:[#allocation2 + $0x378] sm:$0xff]
    %v310 = vld [vmem:[#allocation2 + $0x380] sm:$0xff]
    %v311 = vld [vmem:[#allocation2 + $0x388] sm:$0xff]
    %v312 = vld [vmem:[#allocation2 + $0x390] sm:$0xff]
    %v313 = vld [vmem:[#allocation2 + $0x398] sm:$0xff]
    %v314 = vld [vmem:[#allocation2 + $0x3a0] sm:$0xff]
    %v315 = vld [vmem:[#allocation2 + $0x3a8] sm:$0xff]
    %v316 = vld [vmem:[#allocation2 + $0x3b0] sm:$0xff]
    %v317 = vld [vmem:[#allocation2 + $0x3b8] sm:$0xff]
    %v318 = vld [vmem:[#allocation2 + $0x3c0] sm:$0xff]
    %v319 = vld [vmem:[#allocation2 + $0x3c8] sm:$0xff]
    %v320 = vld [vmem:[#allocation2 + $0x3d0] sm:$0xff]
    %v321 = vld [vmem:[#allocation2 + $0x3d8] sm:$0xff]
    %v322 = vld [vmem:[#allocation2 + $0x3e0] sm:$0xff]
    %v323 = vld [vmem:[#allocation2 + $0x3e8] sm:$0xff]
    %v324 = vld [vmem:[#allocation2 + $0x3f0] sm:$0xff]
    %v325 = vld [vmem:[#allocation2 + $0x3f8] sm:$0xff]
    %v326 = vld [vmem:[#allocation2 + $0x400] sm:$0xff]
    %v327 = vld [vmem:[#allocation2 + $0x408] sm:$0xff]
    %v328 = vld [vmem:[#allocation2 + $0x410] sm:$0xff]
    %v329 = vld [vmem:[#allocation2 + $0x418] sm:$0xff]
    %v330 = vld [vmem:[#allocation2 + $0x420] sm:$0xff]
    %v331 = vld [vmem:[#allocation2 + $0x428] sm:$0xff]
    %v332 = vld [vmem:[#allocation2 + $0x430] sm:$0xff]
    %v333 = vld [vmem:[#allocation2 + $0x438] sm:$0xff]
    %v334 = vld [vmem:[#allocation2 + $0x440] sm:$0xff]
    %v335 = vld [vmem:[#allocation2 + $0x448] sm:$0xff]
    %v336 = vld [vmem:[#allocation2 + $0x450] sm:$0xff]
    %v337 = vld [vmem:[#allocation2 + $0x458] sm:$0xff]
    %v338 = vld [vmem:[#allocation2 + $0x460] sm:$0xff]
    %v339 = vld [vmem:[#allocation2 + $0x468] sm:$0xff]
    %v340 = vld [vmem:[#allocation2 + $0x470] sm:$0xff]
    %v341 = vld [vmem:[#allocation2 + $0x478] sm:$0xff]
    %v342 = vld [vmem:[#allocation2 + $0x480] sm:$0xff]
    %v343 = vld [vmem:[#allocation2 + $0x488] sm:$0xff]
    %v344 = vld [vmem:[#allocation2 + $0x490] sm:$0xff]
    %v345 = vld [vmem:[#allocation2 + $0x498] sm:$0xff]
    %v346 = vld [vmem:[#allocation2 + $0x4a0] sm:$0xff]
    %v347 = vld [vmem:[#allocation2 + $0x4a8] sm:$0xff]
    %v348 = vld [vmem:[#allocation2 + $0x4b0] sm:$0xff]
    %v349 = vld [vmem:[#allocation2 + $0x4b8] sm:$0xff]
    %v350 = vld [vmem:[#allocation2 + $0x4c0] sm:$0xff]
    %v351 = vld [vmem:[#allocation2 + $0x4c8] sm:$0xff]
    %v352 = vld [vmem:[#allocation2 + $0x4d0] sm:$0xff]
    %v353 = vld [vmem:[#allocation2 + $0x4d8] sm:$0xff]
    %v354 = vld [vmem:[#allocation2 + $0x4e0] sm:$0xff]
    %v355 = vld [vmem:[#allocation2 + $0x4e8] sm:$0xff]
    %v356 = vld [vmem:[#allocation2 + $0x4f0] sm:$0xff]
    %v357 = vld [vmem:[#allocation2 + $0x4f8] sm:$0xff]
    %v358 = vld [vmem:[#allocation2 + $0x500] sm:$0xff]
    %v359 = vld [vmem:[#allocation2 + $0x508] sm:$0xff]
    %v360 = vld [vmem:[#allocation2 + $0x510] sm:$0xff]
    %v361 = vld [vmem:[#allocation2 + $0x518] sm:$0xff]
    %v362 = vld [vmem:[#allocation2 + $0x520] sm:$0xff]
    %v363 = vld [vmem:[#allocation2 + $0x528] sm:$0xff]
    %v364 = vld [vmem:[#allocation2 + $0x530] sm:$0xff]
    %v365 = vld [vmem:[#allocation2 + $0x538] sm:$0xff]
    %v366 = vld [vmem:[#allocation2 + $0x540] sm:$0xff]
    %v367 = vld [vmem:[#allocation2 + $0x548] sm:$0xff]
    %v368 = vld [vmem:[#allocation2 + $0x550] sm:$0xff]
    %v369 = vld [vmem:[#allocation2 + $0x558] sm:$0xff]
    %v370 = vld [vmem:[#allocation2 + $0x560] sm:$0xff]
    %v371 = vld [vmem:[#allocation2 + $0x568] sm:$0xff]
    %v372 = vld [vmem:[#allocation2 + $0x570] sm:$0xff]
    %v373 = vld [vmem:[#allocation2 + $0x578] sm:$0xff]
    %v374 = vld [vmem:[#allocation4] sm:$0xff]
    %v376 = vlaneseq
    %v377 = vshrl.u32 %v376, 7
    %v378 = vsub.s32 0, %v377
    %v379 = vrot.slane %v374, %v378
    %v380 = vlaneseq
    %v381 = vshrl.u32 %v380, 7
    %v382 = vsub.s32 1, %v381
    %v383 = vrot.slane %v374, %v382
    %v384 = vlaneseq
    %v385 = vshrl.u32 %v384, 7
    %v386 = vsub.s32 2, %v385
    %v387 = vrot.slane %v374, %v386
    %v388 = vlaneseq
    %v389 = vshrl.u32 %v388, 7
    %v390 = vsub.s32 3, %v389
    %v391 = vrot.slane %v374, %v390
    %v392 = vlaneseq
    %v393 = vshrl.u32 %v392, 7
    %v394 = vsub.s32 4, %v393
    %v395 = vrot.slane %v374, %v394
    %v396 = vlaneseq
    %v397 = vshrl.u32 %v396, 7
    %v398 = vsub.s32 5, %v397
    %v399 = vrot.slane %v374, %v398
    %v400 = vlaneseq
    %v401 = vshrl.u32 %v400, 7
    %v402 = vsub.s32 6, %v401
    %v403 = vrot.slane %v374, %v402
    %v404 = vlaneseq
    %v405 = vshrl.u32 %v404, 7
    %v406 = vsub.s32 7, %v405
    %v407 = vrot.slane %v374, %v406
    %v480 = vunpack.c.l.b16 %v134
    %v481 = vunpack.c.h.b16 %v134
    %v482 = vunpack.c.l.b16 %v135
    %v483 = vunpack.c.l.b16 %v136
    %v484 = vunpack.c.h.b16 %v136
    %v485 = vunpack.c.l.b16 %v137
    %v486 = vunpack.c.l.b16 %v138
    %v487 = vunpack.c.h.b16 %v138
    %v488 = vunpack.c.l.b16 %v139
    %v489 = vunpack.c.l.b16 %v140
    %v490 = vunpack.c.h.b16 %v140
    %v491 = vunpack.c.l.b16 %v141
    %v492 = vunpack.c.l.b16 %v142
    %v493 = vunpack.c.h.b16 %v142
    %v494 = vunpack.c.l.b16 %v143
    %v495 = vunpack.c.l.b16 %v144
    %v496 = vunpack.c.h.b16 %v144
    %v497 = vunpack.c.l.b16 %v145
    %v498 = vunpack.c.l.b16 %v146
    %v499 = vunpack.c.h.b16 %v146
    %v500 = vunpack.c.l.b16 %v147
    %v501 = vunpack.c.l.b16 %v148
    %v502 = vunpack.c.h.b16 %v148
    %v503 = vunpack.c.l.b16 %v149
    %v504 = vunpack.c.l.b16 %v150
    %v505 = vunpack.c.h.b16 %v150
    %v506 = vunpack.c.l.b16 %v151
    %v507 = vunpack.c.l.b16 %v152
    %v508 = vunpack.c.h.b16 %v152
    %v509 = vunpack.c.l.b16 %v153
    %v510 = vunpack.c.l.b16 %v154
    %v511 = vunpack.c.h.b16 %v154
    %v512 = vunpack.c.l.b16 %v155
    %v513 = vunpack.c.l.b16 %v156
    %v514 = vunpack.c.h.b16 %v156
    %v515 = vunpack.c.l.b16 %v157
    %v516 = vunpack.c.l.b16 %v158
    %v517 = vunpack.c.h.b16 %v158
    %v518 = vunpack.c.l.b16 %v159
    %v519 = vunpack.c.l.b16 %v160
    %v520 = vunpack.c.h.b16 %v160
    %v521 = vunpack.c.l.b16 %v161
    %v522 = vunpack.c.l.b16 %v162
    %v523 = vunpack.c.h.b16 %v162
    %v524 = vunpack.c.l.b16 %v163
    %v525 = vunpack.c.l.b16 %v164
    %v526 = vunpack.c.h.b16 %v164
    %v527 = vunpack.c.l.b16 %v165
    %v528 = vunpack.c.l.b16 %v166
    %v529 = vunpack.c.h.b16 %v166
    %v530 = vunpack.c.l.b16 %v167
    %v531 = vunpack.c.l.b16 %v168
    %v532 = vunpack.c.h.b16 %v168
    %v533 = vunpack.c.l.b16 %v169
    %v534 = vunpack.c.l.b16 %v170
    %v535 = vunpack.c.h.b16 %v170
    %v536 = vunpack.c.l.b16 %v171
    %v537 = vunpack.c.l.b16 %v172
    %v538 = vunpack.c.h.b16 %v172
    %v539 = vunpack.c.l.b16 %v173
    %v540 = vunpack.c.l.b16 %v174
    %v541 = vunpack.c.h.b16 %v174
    %v542 = vunpack.c.l.b16 %v175
    %v543 = vunpack.c.l.b16 %v176
    %v544 = vunpack.c.h.b16 %v176
    %v545 = vunpack.c.l.b16 %v177
    %v546 = vunpack.c.l.b16 %v178
    %v547 = vunpack.c.h.b16 %v178
    %v548 = vunpack.c.l.b16 %v179
    %v549 = vunpack.c.l.b16 %v180
    %v550 = vunpack.c.h.b16 %v180
    %v551 = vunpack.c.l.b16 %v181
    %v552 = vunpack.c.l.b16 %v182
    %v553 = vunpack.c.h.b16 %v182
    %v554 = vunpack.c.l.b16 %v183
    %v555 = vunpack.c.l.b16 %v184
    %v556 = vunpack.c.h.b16 %v184
    %v557 = vunpack.c.l.b16 %v185
    %v558 = vunpack.c.l.b16 %v186
    %v559 = vunpack.c.h.b16 %v186
    %v560 = vunpack.c.l.b16 %v187
    %v561 = vunpack.c.l.b16 %v188
    %v562 = vunpack.c.h.b16 %v188
    %v563 = vunpack.c.l.b16 %v189
    %v564 = vunpack.c.l.b16 %v190
    %v565 = vunpack.c.h.b16 %v190
    %v566 = vunpack.c.l.b16 %v191
    %v567 = vunpack.c.l.b16 %v192
    %v568 = vunpack.c.h.b16 %v192
    %v569 = vunpack.c.l.b16 %v193
    %v570 = vunpack.c.l.b16 %v194
    %v571 = vunpack.c.h.b16 %v194
    %v572 = vunpack.c.l.b16 %v195
    %v573 = vunpack.c.l.b16 %v196
    %v574 = vunpack.c.h.b16 %v196
    %v575 = vunpack.c.l.b16 %v197
    %v576 = vpack.c.b16 %v483, %v480
    %v577 = vpack.c.b16 %v484, %v481
    %v578 = vpack.c.b16 %v485, %v482
    %v579 = vpack.c.b16 %v489, %v486
    %v580 = vpack.c.b16 %v490, %v487
    %v581 = vpack.c.b16 %v491, %v488
    %v582 = vpack.c.b16 %v495, %v492
    %v583 = vpack.c.b16 %v496, %v493
    %v584 = vpack.c.b16 %v497, %v494
    %v585 = vpack.c.b16 %v501, %v498
    %v586 = vpack.c.b16 %v502, %v499
    %v587 = vpack.c.b16 %v503, %v500
    %v588 = vpack.c.b16 %v507, %v504
    %v589 = vpack.c.b16 %v508, %v505
    %v590 = vpack.c.b16 %v509, %v506
    %v591 = vpack.c.b16 %v513, %v510
    %v592 = vpack.c.b16 %v514, %v511
    %v593 = vpack.c.b16 %v515, %v512
    %v594 = vpack.c.b16 %v519, %v516
    %v595 = vpack.c.b16 %v520, %v517
    %v596 = vpack.c.b16 %v521, %v518
    %v597 = vpack.c.b16 %v525, %v522
    %v598 = vpack.c.b16 %v526, %v523
    %v599 = vpack.c.b16 %v527, %v524
    %v600 = vpack.c.b16 %v531, %v528
    %v601 = vpack.c.b16 %v532, %v529
    %v602 = vpack.c.b16 %v533, %v530
    %v603 = vpack.c.b16 %v537, %v534
    %v604 = vpack.c.b16 %v538, %v535
    %v605 = vpack.c.b16 %v539, %v536
    %v606 = vpack.c.b16 %v543, %v540
    %v607 = vpack.c.b16 %v544, %v541
    %v608 = vpack.c.b16 %v545, %v542
    %v609 = vpack.c.b16 %v549, %v546
    %v610 = vpack.c.b16 %v550, %v547
    %v611 = vpack.c.b16 %v551, %v548
    %v612 = vpack.c.b16 %v555, %v552
    %v613 = vpack.c.b16 %v556, %v553
    %v614 = vpack.c.b16 %v557, %v554
    %v615 = vpack.c.b16 %v561, %v558
    %v616 = vpack.c.b16 %v562, %v559
    %v617 = vpack.c.b16 %v563, %v560
    %v618 = vpack.c.b16 %v567, %v564
    %v619 = vpack.c.b16 %v568, %v565
    %v620 = vpack.c.b16 %v569, %v566
    %v621 = vpack.c.b16 %v573, %v570
    %v622 = vpack.c.b16 %v574, %v571
    %v623 = vpack.c.b16 %v575, %v572
    %v832 = vunpack.c.l.b16 %v198
    %v833 = vunpack.c.h.b16 %v198
    %v834 = vunpack.c.l.b16 %v199
    %v835 = vunpack.c.h.b16 %v199
    %v836 = vunpack.c.l.b16 %v200
    %v837 = vunpack.c.h.b16 %v200
    %v838 = vunpack.c.l.b16 %v201
    %v839 = vunpack.c.h.b16 %v201
    %v840 = vunpack.c.l.b16 %v202
    %v841 = vunpack.c.h.b16 %v202
    %v842 = vunpack.c.l.b16 %v203
    %v843 = vunpack.c.h.b16 %v203
    %v844 = vunpack.c.l.b16 %v204
    %v845 = vunpack.c.h.b16 %v204
    %v846 = vunpack.c.l.b16 %v205
    %v847 = vunpack.c.h.b16 %v205
    %v848 = vunpack.c.l.b16 %v206
    %v849 = vunpack.c.h.b16 %v206
    %v850 = vunpack.c.l.b16 %v207
    %v851 = vunpack.c.h.b16 %v207
    %v852 = vunpack.c.l.b16 %v208
    %v853 = vunpack.c.h.b16 %v208
    %v854 = vunpack.c.l.b16 %v209
    %v855 = vunpack.c.h.b16 %v209
    %v856 = vunpack.c.l.b16 %v210
    %v857 = vunpack.c.h.b16 %v210
    %v858 = vunpack.c.l.b16 %v211
    %v859 = vunpack.c.h.b16 %v211
    %v860 = vunpack.c.l.b16 %v212
    %v861 = vunpack.c.h.b16 %v212
    %v862 = vunpack.c.l.b16 %v213
    %v863 = vunpack.c.h.b16 %v213
    %v864 = vunpack.c.l.b16 %v214
    %v865 = vunpack.c.h.b16 %v214
    %v866 = vunpack.c.l.b16 %v215
    %v867 = vunpack.c.h.b16 %v215
    %v868 = vunpack.c.l.b16 %v216
    %v869 = vunpack.c.h.b16 %v216
    %v870 = vunpack.c.l.b16 %v217
    %v871 = vunpack.c.h.b16 %v217
    %v872 = vunpack.c.l.b16 %v218
    %v873 = vunpack.c.h.b16 %v218
    %v874 = vunpack.c.l.b16 %v219
    %v875 = vunpack.c.h.b16 %v219
    %v876 = vunpack.c.l.b16 %v220
    %v877 = vunpack.c.h.b16 %v220
    %v878 = vunpack.c.l.b16 %v221
    %v879 = vunpack.c.h.b16 %v221
    %v880 = vunpack.c.l.b16 %v222
    %v881 = vunpack.c.h.b16 %v222
    %v882 = vunpack.c.l.b16 %v223
    %v883 = vunpack.c.h.b16 %v223
    %v884 = vunpack.c.l.b16 %v224
    %v885 = vunpack.c.h.b16 %v224
    %v886 = vunpack.c.l.b16 %v225
    %v887 = vunpack.c.h.b16 %v225
    %v888 = vunpack.c.l.b16 %v226
    %v889 = vunpack.c.h.b16 %v226
    %v890 = vunpack.c.l.b16 %v227
    %v891 = vunpack.c.h.b16 %v227
    %v892 = vunpack.c.l.b16 %v228
    %v893 = vunpack.c.h.b16 %v228
    %v894 = vunpack.c.l.b16 %v229
    %v895 = vunpack.c.h.b16 %v229
    %v896 = vunpack.c.l.b16 %v230
    %v897 = vunpack.c.h.b16 %v230
    %v898 = vunpack.c.l.b16 %v231
    %v899 = vunpack.c.h.b16 %v231
    %v900 = vunpack.c.l.b16 %v232
    %v901 = vunpack.c.h.b16 %v232
    %v902 = vunpack.c.l.b16 %v233
    %v903 = vunpack.c.h.b16 %v233
    %v904 = vunpack.c.l.b16 %v234
    %v905 = vunpack.c.h.b16 %v234
    %v906 = vunpack.c.l.b16 %v235
    %v907 = vunpack.c.h.b16 %v235
    %v908 = vunpack.c.l.b16 %v236
    %v909 = vunpack.c.h.b16 %v236
    %v910 = vunpack.c.l.b16 %v237
    %v911 = vunpack.c.h.b16 %v237
    %v912 = vunpack.c.l.b16 %v238
    %v913 = vunpack.c.h.b16 %v238
    %v914 = vunpack.c.l.b16 %v239
    %v915 = vunpack.c.h.b16 %v239
    %v916 = vunpack.c.l.b16 %v240
    %v917 = vunpack.c.h.b16 %v240
    %v918 = vunpack.c.l.b16 %v241
    %v919 = vunpack.c.h.b16 %v241
    %v920 = vunpack.c.l.b16 %v242
    %v921 = vunpack.c.h.b16 %v242
    %v922 = vunpack.c.l.b16 %v243
    %v923 = vunpack.c.h.b16 %v243
    %v924 = vunpack.c.l.b16 %v244
    %v925 = vunpack.c.h.b16 %v244
    %v926 = vunpack.c.l.b16 %v245
    %v927 = vunpack.c.h.b16 %v245
    %v928 = vunpack.c.l.b16 %v246
    %v929 = vunpack.c.h.b16 %v246
    %v930 = vunpack.c.l.b16 %v247
    %v931 = vunpack.c.h.b16 %v247
    %v932 = vunpack.c.l.b16 %v248
    %v933 = vunpack.c.h.b16 %v248
    %v934 = vunpack.c.l.b16 %v249
    %v935 = vunpack.c.h.b16 %v249
    %v936 = vunpack.c.l.b16 %v250
    %v937 = vunpack.c.h.b16 %v250
    %v938 = vunpack.c.l.b16 %v251
    %v939 = vunpack.c.h.b16 %v251
    %v940 = vunpack.c.l.b16 %v252
    %v941 = vunpack.c.h.b16 %v252
    %v942 = vunpack.c.l.b16 %v253
    %v943 = vunpack.c.h.b16 %v253
    %v944 = vunpack.c.l.b16 %v254
    %v945 = vunpack.c.h.b16 %v254
    %v946 = vunpack.c.l.b16 %v255
    %v947 = vunpack.c.h.b16 %v255
    %v948 = vunpack.c.l.b16 %v256
    %v949 = vunpack.c.h.b16 %v256
    %v950 = vunpack.c.l.b16 %v257
    %v951 = vunpack.c.h.b16 %v257
    %v952 = vunpack.c.l.b16 %v258
    %v953 = vunpack.c.h.b16 %v258
    %v954 = vunpack.c.l.b16 %v259
    %v955 = vunpack.c.h.b16 %v259
    %v956 = vunpack.c.l.b16 %v260
    %v957 = vunpack.c.h.b16 %v260
    %v958 = vunpack.c.l.b16 %v261
    %v959 = vunpack.c.h.b16 %v261
    %v960 = vunpack.c.l.b16 %v262
    %v961 = vunpack.c.h.b16 %v262
    %v962 = vunpack.c.l.b16 %v263
    %v963 = vunpack.c.h.b16 %v263
    %v964 = vunpack.c.l.b16 %v264
    %v965 = vunpack.c.h.b16 %v264
    %v966 = vunpack.c.l.b16 %v265
    %v967 = vunpack.c.h.b16 %v265
    %v968 = vunpack.c.l.b16 %v266
    %v969 = vunpack.c.h.b16 %v266
    %v970 = vunpack.c.l.b16 %v267
    %v971 = vunpack.c.h.b16 %v267
    %v972 = vunpack.c.l.b16 %v268
    %v973 = vunpack.c.h.b16 %v268
    %v974 = vunpack.c.l.b16 %v269
    %v975 = vunpack.c.h.b16 %v269
    %v976 = vunpack.c.l.b16 %v270
    %v977 = vunpack.c.h.b16 %v270
    %v978 = vunpack.c.l.b16 %v271
    %v979 = vunpack.c.h.b16 %v271
    %v980 = vunpack.c.l.b16 %v272
    %v981 = vunpack.c.h.b16 %v272
    %v982 = vunpack.c.l.b16 %v273
    %v983 = vunpack.c.h.b16 %v273
    %v984 = vunpack.c.l.b16 %v274
    %v985 = vunpack.c.h.b16 %v274
    %v986 = vunpack.c.l.b16 %v275
    %v987 = vunpack.c.h.b16 %v275
    %v988 = vunpack.c.l.b16 %v276
    %v989 = vunpack.c.h.b16 %v276
    %v990 = vunpack.c.l.b16 %v277
    %v991 = vunpack.c.h.b16 %v277
    %v992 = vunpack.c.l.b16 %v278
    %v993 = vunpack.c.h.b16 %v278
    %v994 = vunpack.c.l.b16 %v279
    %v995 = vunpack.c.h.b16 %v279
    %v996 = vunpack.c.l.b16 %v280
    %v997 = vunpack.c.h.b16 %v280
    %v998 = vunpack.c.l.b16 %v281
    %v999 = vunpack.c.h.b16 %v281
    %v1000 = vunpack.c.l.b16 %v282
    %v1001 = vunpack.c.h.b16 %v282
    %v1002 = vunpack.c.l.b16 %v283
    %v1003 = vunpack.c.h.b16 %v283
    %v1004 = vunpack.c.l.b16 %v284
    %v1005 = vunpack.c.h.b16 %v284
    %v1006 = vunpack.c.l.b16 %v285
    %v1007 = vunpack.c.h.b16 %v285
    %v1008 = vunpack.c.l.b16 %v286
    %v1009 = vunpack.c.h.b16 %v286
    %v1010 = vunpack.c.l.b16 %v287
    %v1011 = vunpack.c.h.b16 %v287
    %v1012 = vunpack.c.l.b16 %v288
    %v1013 = vunpack.c.h.b16 %v288
    %v1014 = vunpack.c.l.b16 %v289
    %v1015 = vunpack.c.h.b16 %v289
    %v1016 = vunpack.c.l.b16 %v290
    %v1017 = vunpack.c.h.b16 %v290
    %v1018 = vunpack.c.l.b16 %v291
    %v1019 = vunpack.c.h.b16 %v291
    %v1020 = vunpack.c.l.b16 %v292
    %v1021 = vunpack.c.h.b16 %v292
    %v1022 = vunpack.c.l.b16 %v293
    %v1023 = vunpack.c.h.b16 %v293
    %v1024 = vunpack.c.l.b16 %v294
    %v1025 = vunpack.c.h.b16 %v294
    %v1026 = vunpack.c.l.b16 %v295
    %v1027 = vunpack.c.h.b16 %v295
    %v1028 = vunpack.c.l.b16 %v296
    %v1029 = vunpack.c.h.b16 %v296
    %v1030 = vunpack.c.l.b16 %v297
    %v1031 = vunpack.c.h.b16 %v297
    %v1032 = vunpack.c.l.b16 %v298
    %v1033 = vunpack.c.h.b16 %v298
    %v1034 = vunpack.c.l.b16 %v299
    %v1035 = vunpack.c.h.b16 %v299
    %v1036 = vunpack.c.l.b16 %v300
    %v1037 = vunpack.c.h.b16 %v300
    %v1038 = vunpack.c.l.b16 %v301
    %v1039 = vunpack.c.h.b16 %v301
    %v1040 = vunpack.c.l.b16 %v302
    %v1041 = vunpack.c.h.b16 %v302
    %v1042 = vunpack.c.l.b16 %v303
    %v1043 = vunpack.c.h.b16 %v303
    %v1044 = vunpack.c.l.b16 %v304
    %v1045 = vunpack.c.h.b16 %v304
    %v1046 = vunpack.c.l.b16 %v305
    %v1047 = vunpack.c.h.b16 %v305
    %v1048 = vunpack.c.l.b16 %v306
    %v1049 = vunpack.c.h.b16 %v306
    %v1050 = vunpack.c.l.b16 %v307
    %v1051 = vunpack.c.h.b16 %v307
    %v1052 = vunpack.c.l.b16 %v308
    %v1053 = vunpack.c.h.b16 %v308
    %v1054 = vunpack.c.l.b16 %v309
    %v1055 = vunpack.c.h.b16 %v309
    %v1056 = vunpack.c.l.b16 %v310
    %v1057 = vunpack.c.h.b16 %v310
    %v1058 = vunpack.c.l.b16 %v311
    %v1059 = vunpack.c.h.b16 %v311
    %v1060 = vunpack.c.l.b16 %v312
    %v1061 = vunpack.c.h.b16 %v312
    %v1062 = vunpack.c.l.b16 %v313
    %v1063 = vunpack.c.h.b16 %v313
    %v1064 = vunpack.c.l.b16 %v314
    %v1065 = vunpack.c.h.b16 %v314
    %v1066 = vunpack.c.l.b16 %v315
    %v1067 = vunpack.c.h.b16 %v315
    %v1068 = vunpack.c.l.b16 %v316
    %v1069 = vunpack.c.h.b16 %v316
    %v1070 = vunpack.c.l.b16 %v317
    %v1071 = vunpack.c.h.b16 %v317
    %v1072 = vunpack.c.l.b16 %v318
    %v1073 = vunpack.c.h.b16 %v318
    %v1074 = vunpack.c.l.b16 %v319
    %v1075 = vunpack.c.h.b16 %v319
    %v1076 = vunpack.c.l.b16 %v320
    %v1077 = vunpack.c.h.b16 %v320
    %v1078 = vunpack.c.l.b16 %v321
    %v1079 = vunpack.c.h.b16 %v321
    %v1080 = vunpack.c.l.b16 %v322
    %v1081 = vunpack.c.h.b16 %v322
    %v1082 = vunpack.c.l.b16 %v323
    %v1083 = vunpack.c.h.b16 %v323
    %v1084 = vunpack.c.l.b16 %v324
    %v1085 = vunpack.c.h.b16 %v324
    %v1086 = vunpack.c.l.b16 %v325
    %v1087 = vunpack.c.h.b16 %v325
    %v1088 = vunpack.c.l.b16 %v326
    %v1089 = vunpack.c.h.b16 %v326
    %v1090 = vunpack.c.l.b16 %v327
    %v1091 = vunpack.c.h.b16 %v327
    %v1092 = vunpack.c.l.b16 %v328
    %v1093 = vunpack.c.h.b16 %v328
    %v1094 = vunpack.c.l.b16 %v329
    %v1095 = vunpack.c.h.b16 %v329
    %v1096 = vunpack.c.l.b16 %v330
    %v1097 = vunpack.c.h.b16 %v330
    %v1098 = vunpack.c.l.b16 %v331
    %v1099 = vunpack.c.h.b16 %v331
    %v1100 = vunpack.c.l.b16 %v332
    %v1101 = vunpack.c.h.b16 %v332
    %v1102 = vunpack.c.l.b16 %v333
    %v1103 = vunpack.c.h.b16 %v333
    %v1104 = vunpack.c.l.b16 %v334
    %v1105 = vunpack.c.h.b16 %v334
    %v1106 = vunpack.c.l.b16 %v335
    %v1107 = vunpack.c.h.b16 %v335
    %v1108 = vunpack.c.l.b16 %v336
    %v1109 = vunpack.c.h.b16 %v336
    %v1110 = vunpack.c.l.b16 %v337
    %v1111 = vunpack.c.h.b16 %v337
    %v1112 = vunpack.c.l.b16 %v338
    %v1113 = vunpack.c.h.b16 %v338
    %v1114 = vunpack.c.l.b16 %v339
    %v1115 = vunpack.c.h.b16 %v339
    %v1116 = vunpack.c.l.b16 %v340
    %v1117 = vunpack.c.h.b16 %v340
    %v1118 = vunpack.c.l.b16 %v341
    %v1119 = vunpack.c.h.b16 %v341
    %v1120 = vunpack.c.l.b16 %v342
    %v1121 = vunpack.c.h.b16 %v342
    %v1122 = vunpack.c.l.b16 %v343
    %v1123 = vunpack.c.h.b16 %v343
    %v1124 = vunpack.c.l.b16 %v344
    %v1125 = vunpack.c.h.b16 %v344
    %v1126 = vunpack.c.l.b16 %v345
    %v1127 = vunpack.c.h.b16 %v345
    %v1128 = vunpack.c.l.b16 %v346
    %v1129 = vunpack.c.h.b16 %v346
    %v1130 = vunpack.c.l.b16 %v347
    %v1131 = vunpack.c.h.b16 %v347
    %v1132 = vunpack.c.l.b16 %v348
    %v1133 = vunpack.c.h.b16 %v348
    %v1134 = vunpack.c.l.b16 %v349
    %v1135 = vunpack.c.h.b16 %v349
    %v1136 = vunpack.c.l.b16 %v350
    %v1137 = vunpack.c.h.b16 %v350
    %v1138 = vunpack.c.l.b16 %v351
    %v1139 = vunpack.c.h.b16 %v351
    %v1140 = vunpack.c.l.b16 %v352
    %v1141 = vunpack.c.h.b16 %v352
    %v1142 = vunpack.c.l.b16 %v353
    %v1143 = vunpack.c.h.b16 %v353
    %v1144 = vunpack.c.l.b16 %v354
    %v1145 = vunpack.c.h.b16 %v354
    %v1146 = vunpack.c.l.b16 %v355
    %v1147 = vunpack.c.h.b16 %v355
    %v1148 = vunpack.c.l.b16 %v356
    %v1149 = vunpack.c.h.b16 %v356
    %v1150 = vunpack.c.l.b16 %v357
    %v1151 = vunpack.c.h.b16 %v357
    %v1152 = vunpack.c.l.b16 %v358
    %v1153 = vunpack.c.h.b16 %v358
    %v1154 = vunpack.c.l.b16 %v359
    %v1155 = vunpack.c.h.b16 %v359
    %v1156 = vunpack.c.l.b16 %v360
    %v1157 = vunpack.c.h.b16 %v360
    %v1158 = vunpack.c.l.b16 %v361
    %v1159 = vunpack.c.h.b16 %v361
    %v1160 = vunpack.c.l.b16 %v362
    %v1161 = vunpack.c.h.b16 %v362
    %v1162 = vunpack.c.l.b16 %v363
    %v1163 = vunpack.c.h.b16 %v363
    %v1164 = vunpack.c.l.b16 %v364
    %v1165 = vunpack.c.h.b16 %v364
    %v1166 = vunpack.c.l.b16 %v365
    %v1167 = vunpack.c.h.b16 %v365
    %v1168 = vunpack.c.l.b16 %v366
    %v1169 = vunpack.c.h.b16 %v366
    %v1170 = vunpack.c.l.b16 %v367
    %v1171 = vunpack.c.h.b16 %v367
    %v1172 = vunpack.c.l.b16 %v368
    %v1173 = vunpack.c.h.b16 %v368
    %v1174 = vunpack.c.l.b16 %v369
    %v1175 = vunpack.c.h.b16 %v369
    %v1176 = vunpack.c.l.b16 %v370
    %v1177 = vunpack.c.h.b16 %v370
    %v1178 = vunpack.c.l.b16 %v371
    %v1179 = vunpack.c.h.b16 %v371
    %v1180 = vunpack.c.l.b16 %v372
    %v1181 = vunpack.c.h.b16 %v372
    %v1182 = vunpack.c.l.b16 %v373
    %v1183 = vunpack.c.h.b16 %v373
    %v1184 = vpack.c.b16 %v840, %v832
    %v1185 = vpack.c.b16 %v841, %v833
    %v1186 = vpack.c.b16 %v842, %v834
    %v1187 = vpack.c.b16 %v843, %v835
    %v1188 = vpack.c.b16 %v844, %v836
    %v1189 = vpack.c.b16 %v845, %v837
    %v1190 = vpack.c.b16 %v846, %v838
    %v1191 = vpack.c.b16 %v847, %v839
    %v1192 = vpack.c.b16 %v856, %v848
    %v1193 = vpack.c.b16 %v857, %v849
    %v1194 = vpack.c.b16 %v858, %v850
    %v1195 = vpack.c.b16 %v859, %v851
    %v1196 = vpack.c.b16 %v860, %v852
    %v1197 = vpack.c.b16 %v861, %v853
    %v1198 = vpack.c.b16 %v862, %v854
    %v1199 = vpack.c.b16 %v863, %v855
    %v1200 = vpack.c.b16 %v872, %v864
    %v1201 = vpack.c.b16 %v873, %v865
    %v1202 = vpack.c.b16 %v874, %v866
    %v1203 = vpack.c.b16 %v875, %v867
    %v1204 = vpack.c.b16 %v876, %v868
    %v1205 = vpack.c.b16 %v877, %v869
    %v1206 = vpack.c.b16 %v878, %v870
    %v1207 = vpack.c.b16 %v879, %v871
    %v1208 = vpack.c.b16 %v888, %v880
    %v1209 = vpack.c.b16 %v889, %v881
    %v1210 = vpack.c.b16 %v890, %v882
    %v1211 = vpack.c.b16 %v891, %v883
    %v1212 = vpack.c.b16 %v892, %v884
    %v1213 = vpack.c.b16 %v893, %v885
    %v1214 = vpack.c.b16 %v894, %v886
    %v1215 = vpack.c.b16 %v895, %v887
    %v1216 = vpack.c.b16 %v904, %v896
    %v1217 = vpack.c.b16 %v905, %v897
    %v1218 = vpack.c.b16 %v906, %v898
    %v1219 = vpack.c.b16 %v907, %v899
    %v1220 = vpack.c.b16 %v908, %v900
    %v1221 = vpack.c.b16 %v909, %v901
    %v1222 = vpack.c.b16 %v910, %v902
    %v1223 = vpack.c.b16 %v911, %v903
    %v1224 = vpack.c.b16 %v920, %v912
    %v1225 = vpack.c.b16 %v921, %v913
    %v1226 = vpack.c.b16 %v922, %v914
    %v1227 = vpack.c.b16 %v923, %v915
    %v1228 = vpack.c.b16 %v924, %v916
    %v1229 = vpack.c.b16 %v925, %v917
    %v1230 = vpack.c.b16 %v926, %v918
    %v1231 = vpack.c.b16 %v927, %v919
    %v1232 = vpack.c.b16 %v936, %v928
    %v1233 = vpack.c.b16 %v937, %v929
    %v1234 = vpack.c.b16 %v938, %v930
    %v1235 = vpack.c.b16 %v939, %v931
    %v1236 = vpack.c.b16 %v940, %v932
    %v1237 = vpack.c.b16 %v941, %v933
    %v1238 = vpack.c.b16 %v942, %v934
    %v1239 = vpack.c.b16 %v943, %v935
    %v1240 = vpack.c.b16 %v952, %v944
    %v1241 = vpack.c.b16 %v953, %v945
    %v1242 = vpack.c.b16 %v954, %v946
    %v1243 = vpack.c.b16 %v955, %v947
    %v1244 = vpack.c.b16 %v956, %v948
    %v1245 = vpack.c.b16 %v957, %v949
    %v1246 = vpack.c.b16 %v958, %v950
    %v1247 = vpack.c.b16 %v959, %v951
    %v1248 = vpack.c.b16 %v968, %v960
    %v1249 = vpack.c.b16 %v969, %v961
    %v1250 = vpack.c.b16 %v970, %v962
    %v1251 = vpack.c.b16 %v971, %v963
    %v1252 = vpack.c.b16 %v972, %v964
    %v1253 = vpack.c.b16 %v973, %v965
    %v1254 = vpack.c.b16 %v974, %v966
    %v1255 = vpack.c.b16 %v975, %v967
    %v1256 = vpack.c.b16 %v984, %v976
    %v1257 = vpack.c.b16 %v985, %v977
    %v1258 = vpack.c.b16 %v986, %v978
    %v1259 = vpack.c.b16 %v987, %v979
    %v1260 = vpack.c.b16 %v988, %v980
    %v1261 = vpack.c.b16 %v989, %v981
    %v1262 = vpack.c.b16 %v990, %v982
    %v1263 = vpack.c.b16 %v991, %v983
    %v1264 = vpack.c.b16 %v1000, %v992
    %v1265 = vpack.c.b16 %v1001, %v993
    %v1266 = vpack.c.b16 %v1002, %v994
    %v1267 = vpack.c.b16 %v1003, %v995
    %v1268 = vpack.c.b16 %v1004, %v996
    %v1269 = vpack.c.b16 %v1005, %v997
    %v1270 = vpack.c.b16 %v1006, %v998
    %v1271 = vpack.c.b16 %v1007, %v999
    %v1272 = vpack.c.b16 %v1016, %v1008
    %v1273 = vpack.c.b16 %v1017, %v1009
    %v1274 = vpack.c.b16 %v1018, %v1010
    %v1275 = vpack.c.b16 %v1019, %v1011
    %v1276 = vpack.c.b16 %v1020, %v1012
    %v1277 = vpack.c.b16 %v1021, %v1013
    %v1278 = vpack.c.b16 %v1022, %v1014
    %v1279 = vpack.c.b16 %v1023, %v1015
    %v1280 = vpack.c.b16 %v1032, %v1024
    %v1281 = vpack.c.b16 %v1033, %v1025
    %v1282 = vpack.c.b16 %v1034, %v1026
    %v1283 = vpack.c.b16 %v1035, %v1027
    %v1284 = vpack.c.b16 %v1036, %v1028
    %v1285 = vpack.c.b16 %v1037, %v1029
    %v1286 = vpack.c.b16 %v1038, %v1030
    %v1287 = vpack.c.b16 %v1039, %v1031
    %v1288 = vpack.c.b16 %v1048, %v1040
    %v1289 = vpack.c.b16 %v1049, %v1041
    %v1290 = vpack.c.b16 %v1050, %v1042
    %v1291 = vpack.c.b16 %v1051, %v1043
    %v1292 = vpack.c.b16 %v1052, %v1044
    %v1293 = vpack.c.b16 %v1053, %v1045
    %v1294 = vpack.c.b16 %v1054, %v1046
    %v1295 = vpack.c.b16 %v1055, %v1047
    %v1296 = vpack.c.b16 %v1064, %v1056
    %v1297 = vpack.c.b16 %v1065, %v1057
    %v1298 = vpack.c.b16 %v1066, %v1058
    %v1299 = vpack.c.b16 %v1067, %v1059
    %v1300 = vpack.c.b16 %v1068, %v1060
    %v1301 = vpack.c.b16 %v1069, %v1061
    %v1302 = vpack.c.b16 %v1070, %v1062
    %v1303 = vpack.c.b16 %v1071, %v1063
    %v1304 = vpack.c.b16 %v1080, %v1072
    %v1305 = vpack.c.b16 %v1081, %v1073
    %v1306 = vpack.c.b16 %v1082, %v1074
    %v1307 = vpack.c.b16 %v1083, %v1075
    %v1308 = vpack.c.b16 %v1084, %v1076
    %v1309 = vpack.c.b16 %v1085, %v1077
    %v1310 = vpack.c.b16 %v1086, %v1078
    %v1311 = vpack.c.b16 %v1087, %v1079
    %v1312 = vpack.c.b16 %v1096, %v1088
    %v1313 = vpack.c.b16 %v1097, %v1089
    %v1314 = vpack.c.b16 %v1098, %v1090
    %v1315 = vpack.c.b16 %v1099, %v1091
    %v1316 = vpack.c.b16 %v1100, %v1092
    %v1317 = vpack.c.b16 %v1101, %v1093
    %v1318 = vpack.c.b16 %v1102, %v1094
    %v1319 = vpack.c.b16 %v1103, %v1095
    %v1320 = vpack.c.b16 %v1112, %v1104
    %v1321 = vpack.c.b16 %v1113, %v1105
    %v1322 = vpack.c.b16 %v1114, %v1106
    %v1323 = vpack.c.b16 %v1115, %v1107
    %v1324 = vpack.c.b16 %v1116, %v1108
    %v1325 = vpack.c.b16 %v1117, %v1109
    %v1326 = vpack.c.b16 %v1118, %v1110
    %v1327 = vpack.c.b16 %v1119, %v1111
    %v1328 = vpack.c.b16 %v1128, %v1120
    %v1329 = vpack.c.b16 %v1129, %v1121
    %v1330 = vpack.c.b16 %v1130, %v1122
    %v1331 = vpack.c.b16 %v1131, %v1123
    %v1332 = vpack.c.b16 %v1132, %v1124
    %v1333 = vpack.c.b16 %v1133, %v1125
    %v1334 = vpack.c.b16 %v1134, %v1126
    %v1335 = vpack.c.b16 %v1135, %v1127
    %v1336 = vpack.c.b16 %v1144, %v1136
    %v1337 = vpack.c.b16 %v1145, %v1137
    %v1338 = vpack.c.b16 %v1146, %v1138
    %v1339 = vpack.c.b16 %v1147, %v1139
    %v1340 = vpack.c.b16 %v1148, %v1140
    %v1341 = vpack.c.b16 %v1149, %v1141
    %v1342 = vpack.c.b16 %v1150, %v1142
    %v1343 = vpack.c.b16 %v1151, %v1143
    %v1344 = vpack.c.b16 %v1160, %v1152
    %v1345 = vpack.c.b16 %v1161, %v1153
    %v1346 = vpack.c.b16 %v1162, %v1154
    %v1347 = vpack.c.b16 %v1163, %v1155
    %v1348 = vpack.c.b16 %v1164, %v1156
    %v1349 = vpack.c.b16 %v1165, %v1157
    %v1350 = vpack.c.b16 %v1166, %v1158
    %v1351 = vpack.c.b16 %v1167, %v1159
    %v1352 = vpack.c.b16 %v1176, %v1168
    %v1353 = vpack.c.b16 %v1177, %v1169
    %v1354 = vpack.c.b16 %v1178, %v1170
    %v1355 = vpack.c.b16 %v1179, %v1171
    %v1356 = vpack.c.b16 %v1180, %v1172
    %v1357 = vpack.c.b16 %v1181, %v1173
    %v1358 = vpack.c.b16 %v1182, %v1174
    %v1359 = vpack.c.b16 %v1183, %v1175
    %vm1536 = vcmask 785408
    %v1538 = vsel %vm1536, %v578, 0
    %v1541 = vsel %vm1536, %v581, 0
    %v1544 = vsel %vm1536, %v584, 0
    %v1547 = vsel %vm1536, %v587, 0
    %v1550 = vsel %vm1536, %v590, 0
    %v1553 = vsel %vm1536, %v593, 0
    %v1556 = vsel %vm1536, %v596, 0
    %v1559 = vsel %vm1536, %v599, 0
    %v1562 = vsel %vm1536, %v602, 0
    %v1565 = vsel %vm1536, %v605, 0
    %v1568 = vsel %vm1536, %v608, 0
    %v1571 = vsel %vm1536, %v611, 0
    %v1574 = vsel %vm1536, %v614, 0
    %v1577 = vsel %vm1536, %v617, 0
    %v1580 = vsel %vm1536, %v620, 0
    %v1583 = vsel %vm1536, %v623, 0
    %1585 = vmatprep.subr.bf16.mxu0 %v1185
    %1586 = vmatpush1.bf16.msra.mxu0 %v1184
    %1587 = vmatprep.subr.bf16.mxu0 %v1193
    %1588 = vmatpush1.bf16.msra.mxu0 %v1192
    %1589 = vmatprep.subr.bf16.mxu0 %v1201
    %1590 = vmatpush1.bf16.msra.mxu0 %v1200
    %1591 = vmatprep.subr.bf16.mxu0 %v1209
    %1592 = vmatpush1.bf16.msra.mxu0 %v1208
    %1593 = vmatprep.subr.bf16.mxu0 %v1217
    %1594 = vmatpush1.bf16.msra.mxu0 %v1216
    %1595 = vmatprep.subr.bf16.mxu0 %v1225
    %1596 = vmatpush1.bf16.msra.mxu0 %v1224
    %1597 = vmatprep.subr.bf16.mxu0 %v1233
    %1598 = vmatpush1.bf16.msra.mxu0 %v1232
    %1599 = vmatprep.subr.bf16.mxu0 %v1241
    %1600 = vmatpush1.bf16.msra.mxu0 %v1240
    %1601 = vmatprep.subr.bf16.mxu0 %v1249
    %1602 = vmatpush1.bf16.msra.mxu0 %v1248
    %1603 = vmatprep.subr.bf16.mxu0 %v1257
    %1604 = vmatpush1.bf16.msra.mxu0 %v1256
    %1605 = vmatprep.subr.bf16.mxu0 %v1265
    %1606 = vmatpush1.bf16.msra.mxu0 %v1264
    %1607 = vmatprep.subr.bf16.mxu0 %v1273
    %1608 = vmatpush1.bf16.msra.mxu0 %v1272
    %1609 = vmatprep.subr.bf16.mxu0 %v1281
    %1610 = vmatpush1.bf16.msra.mxu0 %v1280
    %1611 = vmatprep.subr.bf16.mxu0 %v1289
    %1612 = vmatpush1.bf16.msra.mxu0 %v1288
    %1613 = vmatprep.subr.bf16.mxu0 %v1297
    %1614 = vmatpush1.bf16.msra.mxu0 %v1296
    %1615 = vmatprep.subr.bf16.mxu0 %v1305
    %1616 = vmatpush1.bf16.msra.mxu0 %v1304
    %1617 = vmatprep.mubr.bf16.mxu0 %v577
    %1618 = vmatmul.mubr.bf16.gmra.mrb[0].mxu0 %v576
    %v1619 = vpop.f32.mrb[0].mxu0
    %v1620 = vadd.f32 %v379, %v1619
    %v1621 = vpop.f32.mrb[0].mxu0
    %v1622 = vadd.f32 %v383, %v1621
    %v1623 = vpop.f32.mrb[0].mxu0
    %v1624 = vadd.f32 %v379, %v1623
    %v1625 = vpop.f32.mrb[0].mxu0
    %v1626 = vadd.f32 %v383, %v1625
    %1627 = vmatprep.mubr.bf16.mxu0 %v580
    %1628 = vmatmul.mubr.bf16.gmra.mrb[0].mxu0 %v579
    %v1629 = vpop.f32.mrb[0].mxu0
    %v1630 = vadd.f32 %v379, %v1629
    %v1631 = vpop.f32.mrb[0].mxu0
    %v1632 = vadd.f32 %v383, %v1631
    %v1633 = vpop.f32.mrb[0].mxu0
    %v1634 = vadd.f32 %v379, %v1633
    %v1635 = vpop.f32.mrb[0].mxu0
    %v1636 = vadd.f32 %v383, %v1635
    %1637 = vmatprep.mubr.bf16.mxu0 %v583
    %1638 = vmatmul.mubr.bf16.gmra.mrb[0].mxu0 %v582
    %v1639 = vpop.f32.mrb[0].mxu0
    %v1640 = vadd.f32 %v379, %v1639
    %v1641 = vpop.f32.mrb[0].mxu0
    %v1642 = vadd.f32 %v383, %v1641
    %v1643 = vpop.f32.mrb[0].mxu0
    %v1644 = vadd.f32 %v379, %v1643
    %v1645 = vpop.f32.mrb[0].mxu0
    %v1646 = vadd.f32 %v383, %v1645
    %1647 = vmatprep.mubr.bf16.mxu0 %v586
    %1648 = vmatmul.mubr.bf16.gmra.mrb[0].mxu0 %v585
    %v1649 = vpop.f32.mrb[0].mxu0
    %v1650 = vadd.f32 %v379, %v1649
    %v1651 = vpop.f32.mrb[0].mxu0
    %v1652 = vadd.f32 %v383, %v1651
    %v1653 = vpop.f32.mrb[0].mxu0
    %v1654 = vadd.f32 %v379, %v1653
    %v1655 = vpop.f32.mrb[0].mxu0
    %v1656 = vadd.f32 %v383, %v1655
    %1657 = vmatprep.mubr.bf16.mxu0 %v589
    %1658 = vmatmul.mubr.bf16.gmra.mrb[0].mxu0 %v588
    %v1659 = vpop.f32.mrb[0].mxu0
    %v1660 = vadd.f32 %v379, %v1659
    %v1661 = vpop.f32.mrb[0].mxu0
    %v1662 = vadd.f32 %v383, %v1661
    %v1663 = vpop.f32.mrb[0].mxu0
    %v1664 = vadd.f32 %v379, %v1663
    %v1665 = vpop.f32.mrb[0].mxu0
    %v1666 = vadd.f32 %v383, %v1665
    %1667 = vmatprep.mubr.bf16.mxu0 %v592
    %1668 = vmatmul.mubr.bf16.gmra.mrb[0].mxu0 %v591
    %v1669 = vpop.f32.mrb[0].mxu0
    %v1670 = vadd.f32 %v379, %v1669
    %v1671 = vpop.f32.mrb[0].mxu0
    %v1672 = vadd.f32 %v383, %v1671
    %v1673 = vpop.f32.mrb[0].mxu0
    %v1674 = vadd.f32 %v379, %v1673
    %v1675 = vpop.f32.mrb[0].mxu0
    %v1676 = vadd.f32 %v383, %v1675
    %1677 = vmatprep.mubr.bf16.mxu0 %v595
    %1678 = vmatmul.mubr.bf16.gmra.mrb[0].mxu0 %v594
    %v1679 = vpop.f32.mrb[0].mxu0
    %v1680 = vadd.f32 %v379, %v1679
    %v1681 = vpop.f32.mrb[0].mxu0
    %v1682 = vadd.f32 %v383, %v1681
    %v1683 = vpop.f32.mrb[0].mxu0
    %v1684 = vadd.f32 %v379, %v1683
    %v1685 = vpop.f32.mrb[0].mxu0
    %v1686 = vadd.f32 %v383, %v1685
    %1687 = vmatprep.mubr.bf16.mxu0 %v598
    %1688 = vmatmul.mubr.bf16.gmra.mrb[0].mxu0 %v597
    %v1689 = vpop.f32.mrb[0].mxu0
    %v1690 = vadd.f32 %v379, %v1689
    %v1691 = vpop.f32.mrb[0].mxu0
    %v1692 = vadd.f32 %v383, %v1691
    %v1693 = vpop.f32.mrb[0].mxu0
    %v1694 = vadd.f32 %v379, %v1693
    %v1695 = vpop.f32.mrb[0].mxu0
    %v1696 = vadd.f32 %v383, %v1695
    %1697 = vmatprep.mubr.bf16.mxu0 %v601
    %1698 = vmatmul.mubr.bf16.gmra.mrb[0].mxu0 %v600
    %v1699 = vpop.f32.mrb[0].mxu0
    %v1700 = vadd.f32 %v379, %v1699
    %v1701 = vpop.f32.mrb[0].mxu0
    %v1702 = vadd.f32 %v383, %v1701
    %v1703 = vpop.f32.mrb[0].mxu0
    %v1704 = vadd.f32 %v379, %v1703
    %v1705 = vpop.f32.mrb[0].mxu0
    %v1706 = vadd.f32 %v383, %v1705
    %1707 = vmatprep.mubr.bf16.mxu0 %v604
    %1708 = vmatmul.mubr.bf16.gmra.mrb[0].mxu0 %v603
    %v1709 = vpop.f32.mrb[0].mxu0
    %v1710 = vadd.f32 %v379, %v1709
    %v1711 = vpop.f32.mrb[0].mxu0
    %v1712 = vadd.f32 %v383, %v1711
    %v1713 = vpop.f32.mrb[0].mxu0
    %v1714 = vadd.f32 %v379, %v1713
    %v1715 = vpop.f32.mrb[0].mxu0
    %v1716 = vadd.f32 %v383, %v1715
    %1717 = vmatprep.mubr.bf16.mxu0 %v607
    %1718 = vmatmul.mubr.bf16.gmra.mrb[0].mxu0 %v606
    %v1719 = vpop.f32.mrb[0].mxu0
    %v1720 = vadd.f32 %v379, %v1719
    %v1721 = vpop.f32.mrb[0].mxu0
    %v1722 = vadd.f32 %v383, %v1721
    %v1723 = vpop.f32.mrb[0].mxu0
    %v1724 = vadd.f32 %v379, %v1723
    %v1725 = vpop.f32.mrb[0].mxu0
    %v1726 = vadd.f32 %v383, %v1725
    %1727 = vmatprep.mubr.bf16.mxu0 %v610
    %1728 = vmatmul.mubr.bf16.gmra.mrb[0].mxu0 %v609
    %v1729 = vpop.f32.mrb[0].mxu0
    %v1730 = vadd.f32 %v379, %v1729
    %v1731 = vpop.f32.mrb[0].mxu0
    %v1732 = vadd.f32 %v383, %v1731
    %v1733 = vpop.f32.mrb[0].mxu0
    %v1734 = vadd.f32 %v379, %v1733
    %v1735 = vpop.f32.mrb[0].mxu0
    %v1736 = vadd.f32 %v383, %v1735
    %1737 = vmatprep.mubr.bf16.mxu0 %v613
    %1738 = vmatmul.mubr.bf16.gmra.mrb[0].mxu0 %v612
    %v1739 = vpop.f32.mrb[0].mxu0
    %v1740 = vadd.f32 %v379, %v1739
    %v1741 = vpop.f32.mrb[0].mxu0
    %v1742 = vadd.f32 %v383, %v1741
    %v1743 = vpop.f32.mrb[0].mxu0
    %v1744 = vadd.f32 %v379, %v1743
    %v1745 = vpop.f32.mrb[0].mxu0
    %v1746 = vadd.f32 %v383, %v1745
    %1747 = vmatprep.mubr.bf16.mxu0 %v616
    %1748 = vmatmul.mubr.bf16.gmra.mrb[0].mxu0 %v615
    %v1749 = vpop.f32.mrb[0].mxu0
    %v1750 = vadd.f32 %v379, %v1749
    %v1751 = vpop.f32.mrb[0].mxu0
    %v1752 = vadd.f32 %v383, %v1751
    %v1753 = vpop.f32.mrb[0].mxu0
    %v1754 = vadd.f32 %v379, %v1753
    %v1755 = vpop.f32.mrb[0].mxu0
    %v1756 = vadd.f32 %v383, %v1755
    %1757 = vmatprep.mubr.bf16.mxu0 %v619
    %1758 = vmatmul.mubr.bf16.gmra.mrb[0].mxu0 %v618
    %v1759 = vpop.f32.mrb[0].mxu0
    %v1760 = vadd.f32 %v379, %v1759
    %v1761 = vpop.f32.mrb[0].mxu0
    %v1762 = vadd.f32 %v383, %v1761
    %v1763 = vpop.f32.mrb[0].mxu0
    %v1764 = vadd.f32 %v379, %v1763
    %v1765 = vpop.f32.mrb[0].mxu0
    %v1766 = vadd.f32 %v383, %v1765
    %1767 = vmatprep.mubr.bf16.mxu0 %v622
    %1768 = vmatmul.mubr.bf16.gmra.mrb[0].mxu0 %v621
    %v1769 = vpop.f32.mrb[0].mxu0
    %v1770 = vadd.f32 %v379, %v1769
    %v1771 = vpop.f32.mrb[0].mxu0
    %v1772 = vadd.f32 %v383, %v1771
    %v1773 = vpop.f32.mrb[0].mxu0
    %v1774 = vadd.f32 %v379, %v1773
    %v1775 = vpop.f32.mrb[0].mxu0
    %v1776 = vadd.f32 %v383, %v1775
    %1777 = vdwg.mxu0
    %1778 = vmatprep.subr.bf16.mxu0 %v1313
    %1779 = vmatpush1.bf16.msra.mxu0 %v1312
    %1780 = vmatprep.subr.bf16.mxu0 %v1321
    %1781 = vmatpush1.bf16.msra.mxu0 %v1320
    %1782 = vmatprep.subr.bf16.mxu0 %v1329
    %1783 = vmatpush1.bf16.msra.mxu0 %v1328
    %1784 = vmatprep.subr.bf16.mxu0 %v1337
    %1785 = vmatpush1.bf16.msra.mxu0 %v1336
    %1786 = vmatprep.subr.bf16.mxu0 %v1345
    %1787 = vmatpush1.bf16.msra.mxu0 %v1344
    %1788 = vmatprep.subr.bf16.mxu0 %v1353
    %1789 = vmatpush1.bf16.msra.mxu0 %v1352
    %1790 = vmatprep.subr.bf16.mxu0 0
    %1791 = vmatpush1.bf16.msra.mxu0 0
    %1792 = vmatprep.subr.bf16.mxu0 0
    %1793 = vmatpush1.bf16.msra.mxu0 0
    %1794 = vmatprep.subr.bf16.mxu0 0
    %1795 = vmatpush1.bf16.msra.mxu0 0
    %1796 = vmatprep.subr.bf16.mxu0 0
    %1797 = vmatpush1.bf16.msra.mxu0 0
    %1798 = vmatprep.subr.bf16.mxu0 0
    %1799 = vmatpush1.bf16.msra.mxu0 0
    %1800 = vmatprep.subr.bf16.mxu0 0
    %1801 = vmatpush1.bf16.msra.mxu0 0
    %1802 = vmatprep.subr.bf16.mxu0 0
    %1803 = vmatpush1.bf16.msra.mxu0 0
    %1804 = vmatprep.subr.bf16.mxu0 0
    %1805 = vmatpush1.bf16.msra.mxu0 0
    %1806 = vmatprep.subr.bf16.mxu0 0
    %1807 = vmatpush1.bf16.msra.mxu0 0
    %1808 = vmatprep.subr.bf16.mxu0 0
    %1809 = vmatpush1.bf16.msra.mxu0 0
    %1810 = vmatprep.mubr.bf16.mxu0 0
    %1811 = vmatmul.mubr.bf16.gmra.mrb[0].mxu0 %v1538
    %v1812 = vpop.f32.mrb[0].mxu0
    %v1813 = vadd.f32 %v1620, %v1812
    %v1814 = vpop.f32.mrb[0].mxu0
    %v1815 = vadd.f32 %v1622, %v1814
    %v1816 = vpop.f32.mrb[0].mxu0
    %v1817 = vadd.f32 %v1624, %v1816
    %v1818 = vpop.f32.mrb[0].mxu0
    %v1819 = vadd.f32 %v1626, %v1818
    %1820 = vmatprep.mubr.bf16.mxu0 0
    %1821 = vmatmul.mubr.bf16.gmra.mrb[0].mxu0 %v1541
    %v1822 = vpop.f32.mrb[0].mxu0
    %v1823 = vadd.f32 %v1630, %v1822
    %v1824 = vpop.f32.mrb[0].mxu0
    %v1825 = vadd.f32 %v1632, %v1824
    %v1826 = vpop.f32.mrb[0].mxu0
    %v1827 = vadd.f32 %v1634, %v1826
    %v1828 = vpop.f32.mrb[0].mxu0
    %v1829 = vadd.f32 %v1636, %v1828
    %1830 = vmatprep.mubr.bf16.mxu0 0
    %1831 = vmatmul.mubr.bf16.gmra.mrb[0].mxu0 %v1544
    %v1832 = vpop.f32.mrb[0].mxu0
    %v1833 = vadd.f32 %v1640, %v1832
    %v1834 = vpop.f32.mrb[0].mxu0
    %v1835 = vadd.f32 %v1642, %v1834
    %v1836 = vpop.f32.mrb[0].mxu0
    %v1837 = vadd.f32 %v1644, %v1836
    %v1838 = vpop.f32.mrb[0].mxu0
    %v1839 = vadd.f32 %v1646, %v1838
    %1840 = vmatprep.mubr.bf16.mxu0 0
    %1841 = vmatmul.mubr.bf16.gmra.mrb[0].mxu0 %v1547
    %v1842 = vpop.f32.mrb[0].mxu0
    %v1843 = vadd.f32 %v1650, %v1842
    %v1844 = vpop.f32.mrb[0].mxu0
    %v1845 = vadd.f32 %v1652, %v1844
    %v1846 = vpop.f32.mrb[0].mxu0
    %v1847 = vadd.f32 %v1654, %v1846
    %v1848 = vpop.f32.mrb[0].mxu0
    %v1849 = vadd.f32 %v1656, %v1848
    %1850 = vmatprep.mubr.bf16.mxu0 0
    %1851 = vmatmul.mubr.bf16.gmra.mrb[0].mxu0 %v1550
    %v1852 = vpop.f32.mrb[0].mxu0
    %v1853 = vadd.f32 %v1660, %v1852
    %v1854 = vpop.f32.mrb[0].mxu0
    %v1855 = vadd.f32 %v1662, %v1854
    %v1856 = vpop.f32.mrb[0].mxu0
    %v1857 = vadd.f32 %v1664, %v1856
    %v1858 = vpop.f32.mrb[0].mxu0
    %v1859 = vadd.f32 %v1666, %v1858
    %1860 = vmatprep.mubr.bf16.mxu0 0
    %1861 = vmatmul.mubr.bf16.gmra.mrb[0].mxu0 %v1553
    %v1862 = vpop.f32.mrb[0].mxu0
    %v1863 = vadd.f32 %v1670, %v1862
    %v1864 = vpop.f32.mrb[0].mxu0
    %v1865 = vadd.f32 %v1672, %v1864
    %v1866 = vpop.f32.mrb[0].mxu0
    %v1867 = vadd.f32 %v1674, %v1866
    %v1868 = vpop.f32.mrb[0].mxu0
    %v1869 = vadd.f32 %v1676, %v1868
    %1870 = vmatprep.mubr.bf16.mxu0 0
    %1871 = vmatmul.mubr.bf16.gmra.mrb[0].mxu0 %v1556
    %v1872 = vpop.f32.mrb[0].mxu0
    %v1873 = vadd.f32 %v1680, %v1872
    %v1874 = vpop.f32.mrb[0].mxu0
    %v1875 = vadd.f32 %v1682, %v1874
    %v1876 = vpop.f32.mrb[0].mxu0
    %v1877 = vadd.f32 %v1684, %v1876
    %v1878 = vpop.f32.mrb[0].mxu0
    %v1879 = vadd.f32 %v1686, %v1878
    %1880 = vmatprep.mubr.bf16.mxu0 0
    %1881 = vmatmul.mubr.bf16.gmra.mrb[0].mxu0 %v1559
    %v1882 = vpop.f32.mrb[0].mxu0
    %v1883 = vadd.f32 %v1690, %v1882
    %v1884 = vpop.f32.mrb[0].mxu0
    %v1885 = vadd.f32 %v1692, %v1884
    %v1886 = vpop.f32.mrb[0].mxu0
    %v1887 = vadd.f32 %v1694, %v1886
    %v1888 = vpop.f32.mrb[0].mxu0
    %v1889 = vadd.f32 %v1696, %v1888
    %1890 = vmatprep.mubr.bf16.mxu0 0
    %1891 = vmatmul.mubr.bf16.gmra.mrb[0].mxu0 %v1562
    %v1892 = vpop.f32.mrb[0].mxu0
    %v1893 = vadd.f32 %v1700, %v1892
    %v1894 = vpop.f32.mrb[0].mxu0
    %v1895 = vadd.f32 %v1702, %v1894
    %v1896 = vpop.f32.mrb[0].mxu0
    %v1897 = vadd.f32 %v1704, %v1896
    %v1898 = vpop.f32.mrb[0].mxu0
    %v1899 = vadd.f32 %v1706, %v1898
    %1900 = vmatprep.mubr.bf16.mxu0 0
    %1901 = vmatmul.mubr.bf16.gmra.mrb[0].mxu0 %v1565
    %v1902 = vpop.f32.mrb[0].mxu0
    %v1903 = vadd.f32 %v1710, %v1902
    %v1904 = vpop.f32.mrb[0].mxu0
    %v1905 = vadd.f32 %v1712, %v1904
    %v1906 = vpop.f32.mrb[0].mxu0
    %v1907 = vadd.f32 %v1714, %v1906
    %v1908 = vpop.f32.mrb[0].mxu0
    %v1909 = vadd.f32 %v1716, %v1908
    %1910 = vmatprep.mubr.bf16.mxu0 0
    %1911 = vmatmul.mubr.bf16.gmra.mrb[0].mxu0 %v1568
    %v1912 = vpop.f32.mrb[0].mxu0
    %v1913 = vadd.f32 %v1720, %v1912
    %v1914 = vpop.f32.mrb[0].mxu0
    %v1915 = vadd.f32 %v1722, %v1914
    %v1916 = vpop.f32.mrb[0].mxu0
    %v1917 = vadd.f32 %v1724, %v1916
    %v1918 = vpop.f32.mrb[0].mxu0
    %v1919 = vadd.f32 %v1726, %v1918
    %1920 = vmatprep.mubr.bf16.mxu0 0
    %1921 = vmatmul.mubr.bf16.gmra.mrb[0].mxu0 %v1571
    %v1922 = vpop.f32.mrb[0].mxu0
    %v1923 = vadd.f32 %v1730, %v1922
    %v1924 = vpop.f32.mrb[0].mxu0
    %v1925 = vadd.f32 %v1732, %v1924
    %v1926 = vpop.f32.mrb[0].mxu0
    %v1927 = vadd.f32 %v1734, %v1926
    %v1928 = vpop.f32.mrb[0].mxu0
    %v1929 = vadd.f32 %v1736, %v1928
    %1930 = vmatprep.mubr.bf16.mxu0 0
    %1931 = vmatmul.mubr.bf16.gmra.mrb[0].mxu0 %v1574
    %v1932 = vpop.f32.mrb[0].mxu0
    %v1933 = vadd.f32 %v1740, %v1932
    %v1934 = vpop.f32.mrb[0].mxu0
    %v1935 = vadd.f32 %v1742, %v1934
    %v1936 = vpop.f32.mrb[0].mxu0
    %v1937 = vadd.f32 %v1744, %v1936
    %v1938 = vpop.f32.mrb[0].mxu0
    %v1939 = vadd.f32 %v1746, %v1938
    %1940 = vmatprep.mubr.bf16.mxu0 0
    %1941 = vmatmul.mubr.bf16.gmra.mrb[0].mxu0 %v1577
    %v1942 = vpop.f32.mrb[0].mxu0
    %v1943 = vadd.f32 %v1750, %v1942
    %v1944 = vpop.f32.mrb[0].mxu0
    %v1945 = vadd.f32 %v1752, %v1944
    %v1946 = vpop.f32.mrb[0].mxu0
    %v1947 = vadd.f32 %v1754, %v1946
    %v1948 = vpop.f32.mrb[0].mxu0
    %v1949 = vadd.f32 %v1756, %v1948
    %1950 = vmatprep.mubr.bf16.mxu0 0
    %1951 = vmatmul.mubr.bf16.gmra.mrb[0].mxu0 %v1580
    %v1952 = vpop.f32.mrb[0].mxu0
    %v1953 = vadd.f32 %v1760, %v1952
    %v1954 = vpop.f32.mrb[0].mxu0
    %v1955 = vadd.f32 %v1762, %v1954
    %v1956 = vpop.f32.mrb[0].mxu0
    %v1957 = vadd.f32 %v1764, %v1956
    %v1958 = vpop.f32.mrb[0].mxu0
    %v1959 = vadd.f32 %v1766, %v1958
    %1960 = vmatprep.mubr.bf16.mxu0 0
    %1961 = vmatmul.mubr.bf16.gmra.mrb[0].mxu0 %v1583
    %v1962 = vpop.f32.mrb[0].mxu0
    %v1963 = vadd.f32 %v1770, %v1962
    %v1964 = vpop.f32.mrb[0].mxu0
    %v1965 = vadd.f32 %v1772, %v1964
    %v1966 = vpop.f32.mrb[0].mxu0
    %v1967 = vadd.f32 %v1774, %v1966
    %v1968 = vpop.f32.mrb[0].mxu0
    %v1969 = vadd.f32 %v1776, %v1968
    %1970 = vdwg.mxu0
    %1971 = vmatprep.subr.bf16.mxu0 %v1187
    %1972 = vmatpush1.bf16.msra.mxu0 %v1186
    %1973 = vmatprep.subr.bf16.mxu0 %v1195
    %1974 = vmatpush1.bf16.msra.mxu0 %v1194
    %1975 = vmatprep.subr.bf16.mxu0 %v1203
    %1976 = vmatpush1.bf16.msra.mxu0 %v1202
    %1977 = vmatprep.subr.bf16.mxu0 %v1211
    %1978 = vmatpush1.bf16.msra.mxu0 %v1210
    %1979 = vmatprep.subr.bf16.mxu0 %v1219
    %1980 = vmatpush1.bf16.msra.mxu0 %v1218
    %1981 = vmatprep.subr.bf16.mxu0 %v1227
    %1982 = vmatpush1.bf16.msra.mxu0 %v1226
    %1983 = vmatprep.subr.bf16.mxu0 %v1235
    %1984 = vmatpush1.bf16.msra.mxu0 %v1234
    %1985 = vmatprep.subr.bf16.mxu0 %v1243
    %1986 = vmatpush1.bf16.msra.mxu0 %v1242
    %1987 = vmatprep.subr.bf16.mxu0 %v1251
    %1988 = vmatpush1.bf16.msra.mxu0 %v1250
    %1989 = vmatprep.subr.bf16.mxu0 %v1259
    %1990 = vmatpush1.bf16.msra.mxu0 %v1258
    %1991 = vmatprep.subr.bf16.mxu0 %v1267
    %1992 = vmatpush1.bf16.msra.mxu0 %v1266
    %1993 = vmatprep.subr.bf16.mxu0 %v1275
    %1994 = vmatpush1.bf16.msra.mxu0 %v1274
    %1995 = vmatprep.subr.bf16.mxu0 %v1283
    %1996 = vmatpush1.bf16.msra.mxu0 %v1282
    %1997 = vmatprep.subr.bf16.mxu0 %v1291
    %1998 = vmatpush1.bf16.msra.mxu0 %v1290
    %1999 = vmatprep.subr.bf16.mxu0 %v1299
    %2000 = vmatpush1.bf16.msra.mxu0 %v1298
    %2001 = vmatprep.subr.bf16.mxu0 %v1307
    %2002 = vmatpush1.bf16.msra.mxu0 %v1306
    %2003 = vmatprep.mubr.bf16.mxu0 %v577
    %2004 = vmatmul.mubr.bf16.gmra.mrb[0].mxu0 %v576
    %v2005 = vpop.f32.mrb[0].mxu0
    %v2006 = vadd.f32 %v387, %v2005
    %v2007 = vpop.f32.mrb[0].mxu0
    %v2008 = vadd.f32 %v391, %v2007
    %v2009 = vpop.f32.mrb[0].mxu0
    %v2010 = vadd.f32 %v387, %v2009
    %v2011 = vpop.f32.mrb[0].mxu0
    %v2012 = vadd.f32 %v391, %v2011
    %2013 = vmatprep.mubr.bf16.mxu0 %v580
    %2014 = vmatmul.mubr.bf16.gmra.mrb[0].mxu0 %v579
    %v2015 = vpop.f32.mrb[0].mxu0
    %v2016 = vadd.f32 %v387, %v2015
    %v2017 = vpop.f32.mrb[0].mxu0
    %v2018 = vadd.f32 %v391, %v2017
    %v2019 = vpop.f32.mrb[0].mxu0
    %v2020 = vadd.f32 %v387, %v2019
    %v2021 = vpop.f32.mrb[0].mxu0
    %v2022 = vadd.f32 %v391, %v2021
    %2023 = vmatprep.mubr.bf16.mxu0 %v583
    %2024 = vmatmul.mubr.bf16.gmra.mrb[0].mxu0 %v582
    %v2025 = vpop.f32.mrb[0].mxu0
    %v2026 = vadd.f32 %v387, %v2025
    %v2027 = vpop.f32.mrb[0].mxu0
    %v2028 = vadd.f32 %v391, %v2027
    %v2029 = vpop.f32.mrb[0].mxu0
    %v2030 = vadd.f32 %v387, %v2029
    %v2031 = vpop.f32.mrb[0].mxu0
    %v2032 = vadd.f32 %v391, %v2031
    %2033 = vmatprep.mubr.bf16.mxu0 %v586
    %2034 = vmatmul.mubr.bf16.gmra.mrb[0].mxu0 %v585
    %v2035 = vpop.f32.mrb[0].mxu0
    %v2036 = vadd.f32 %v387, %v2035
    %v2037 = vpop.f32.mrb[0].mxu0
    %v2038 = vadd.f32 %v391, %v2037
    %v2039 = vpop.f32.mrb[0].mxu0
    %v2040 = vadd.f32 %v387, %v2039
    %v2041 = vpop.f32.mrb[0].mxu0
    %v2042 = vadd.f32 %v391, %v2041
    %2043 = vmatprep.mubr.bf16.mxu0 %v589
    %2044 = vmatmul.mubr.bf16.gmra.mrb[0].mxu0 %v588
    %v2045 = vpop.f32.mrb[0].mxu0
    %v2046 = vadd.f32 %v387, %v2045
    %v2047 = vpop.f32.mrb[0].mxu0
    %v2048 = vadd.f32 %v391, %v2047
    %v2049 = vpop.f32.mrb[0].mxu0
    %v2050 = vadd.f32 %v387, %v2049
    %v2051 = vpop.f32.mrb[0].mxu0
    %v2052 = vadd.f32 %v391, %v2051
    %2053 = vmatprep.mubr.bf16.mxu0 %v592
    %2054 = vmatmul.mubr.bf16.gmra.mrb[0].mxu0 %v591
    %v2055 = vpop.f32.mrb[0].mxu0
    %v2056 = vadd.f32 %v387, %v2055
    %v2057 = vpop.f32.mrb[0].mxu0
    %v2058 = vadd.f32 %v391, %v2057
    %v2059 = vpop.f32.mrb[0].mxu0
    %v2060 = vadd.f32 %v387, %v2059
    %v2061 = vpop.f32.mrb[0].mxu0
    %v2062 = vadd.f32 %v391, %v2061
    %2063 = vmatprep.mubr.bf16.mxu0 %v595
    %2064 = vmatmul.mubr.bf16.gmra.mrb[0].mxu0 %v594
    %v2065 = vpop.f32.mrb[0].mxu0
    %v2066 = vadd.f32 %v387, %v2065
    %v2067 = vpop.f32.mrb[0].mxu0
    %v2068 = vadd.f32 %v391, %v2067
    %v2069 = vpop.f32.mrb[0].mxu0
    %v2070 = vadd.f32 %v387, %v2069
    %v2071 = vpop.f32.mrb[0].mxu0
    %v2072 = vadd.f32 %v391, %v2071
    %2073 = vmatprep.mubr.bf16.mxu0 %v598
    %2074 = vmatmul.mubr.bf16.gmra.mrb[0].mxu0 %v597
    %v2075 = vpop.f32.mrb[0].mxu0
    %v2076 = vadd.f32 %v387, %v2075
    %v2077 = vpop.f32.mrb[0].mxu0
    %v2078 = vadd.f32 %v391, %v2077
    %v2079 = vpop.f32.mrb[0].mxu0
    %v2080 = vadd.f32 %v387, %v2079
    %v2081 = vpop.f32.mrb[0].mxu0
    %v2082 = vadd.f32 %v391, %v2081
    %2083 = vmatprep.mubr.bf16.mxu0 %v601
    %2084 = vmatmul.mubr.bf16.gmra.mrb[0].mxu0 %v600
    %v2085 = vpop.f32.mrb[0].mxu0
    %v2086 = vadd.f32 %v387, %v2085
    %v2087 = vpop.f32.mrb[0].mxu0
    %v2088 = vadd.f32 %v391, %v2087
    %v2089 = vpop.f32.mrb[0].mxu0
    %v2090 = vadd.f32 %v387, %v2089
    %v2091 = vpop.f32.mrb[0].mxu0
    %v2092 = vadd.f32 %v391, %v2091
    %2093 = vmatprep.mubr.bf16.mxu0 %v604
    %2094 = vmatmul.mubr.bf16.gmra.mrb[0].mxu0 %v603
    %v2095 = vpop.f32.mrb[0].mxu0
    %v2096 = vadd.f32 %v387, %v2095
    %v2097 = vpop.f32.mrb[0].mxu0
    %v2098 = vadd.f32 %v391, %v2097
    %v2099 = vpop.f32.mrb[0].mxu0
    %v2100 = vadd.f32 %v387, %v2099
    %v2101 = vpop.f32.mrb[0].mxu0
    %v2102 = vadd.f32 %v391, %v2101
    %2103 = vmatprep.mubr.bf16.mxu0 %v607
    %2104 = vmatmul.mubr.bf16.gmra.mrb[0].mxu0 %v606
    %v2105 = vpop.f32.mrb[0].mxu0
    %v2106 = vadd.f32 %v387, %v2105
    %v2107 = vpop.f32.mrb[0].mxu0
    %v2108 = vadd.f32 %v391, %v2107
    %v2109 = vpop.f32.mrb[0].mxu0
    %v2110 = vadd.f32 %v387, %v2109
    %v2111 = vpop.f32.mrb[0].mxu0
    %v2112 = vadd.f32 %v391, %v2111
    %2113 = vmatprep.mubr.bf16.mxu0 %v610
    %2114 = vmatmul.mubr.bf16.gmra.mrb[0].mxu0 %v609
    %v2115 = vpop.f32.mrb[0].mxu0
    %v2116 = vadd.f32 %v387, %v2115
    %v2117 = vpop.f32.mrb[0].mxu0
    %v2118 = vadd.f32 %v391, %v2117
    %v2119 = vpop.f32.mrb[0].mxu0
    %v2120 = vadd.f32 %v387, %v2119
    %v2121 = vpop.f32.mrb[0].mxu0
    %v2122 = vadd.f32 %v391, %v2121
    %2123 = vmatprep.mubr.bf16.mxu0 %v613
    %2124 = vmatmul.mubr.bf16.gmra.mrb[0].mxu0 %v612
    %v2125 = vpop.f32.mrb[0].mxu0
    %v2126 = vadd.f32 %v387, %v2125
    %v2127 = vpop.f32.mrb[0].mxu0
    %v2128 = vadd.f32 %v391, %v2127
    %v2129 = vpop.f32.mrb[0].mxu0
    %v2130 = vadd.f32 %v387, %v2129
    %v2131 = vpop.f32.mrb[0].mxu0
    %v2132 = vadd.f32 %v391, %v2131
    %2133 = vmatprep.mubr.bf16.mxu0 %v616
    %2134 = vmatmul.mubr.bf16.gmra.mrb[0].mxu0 %v615
    %v2135 = vpop.f32.mrb[0].mxu0
    %v2136 = vadd.f32 %v387, %v2135
    %v2137 = vpop.f32.mrb[0].mxu0
    %v2138 = vadd.f32 %v391, %v2137
    %v2139 = vpop.f32.mrb[0].mxu0
    %v2140 = vadd.f32 %v387, %v2139
    %v2141 = vpop.f32.mrb[0].mxu0
    %v2142 = vadd.f32 %v391, %v2141
    %2143 = vmatprep.mubr.bf16.mxu0 %v619
    %2144 = vmatmul.mubr.bf16.gmra.mrb[0].mxu0 %v618
    %v2145 = vpop.f32.mrb[0].mxu0
    %v2146 = vadd.f32 %v387, %v2145
    %v2147 = vpop.f32.mrb[0].mxu0
    %v2148 = vadd.f32 %v391, %v2147
    %v2149 = vpop.f32.mrb[0].mxu0
    %v2150 = vadd.f32 %v387, %v2149
    %v2151 = vpop.f32.mrb[0].mxu0
    %v2152 = vadd.f32 %v391, %v2151
    %2153 = vmatprep.mubr.bf16.mxu0 %v622
    %2154 = vmatmul.mubr.bf16.gmra.mrb[0].mxu0 %v621
    %v2155 = vpop.f32.mrb[0].mxu0
    %v2156 = vadd.f32 %v387, %v2155
    %v2157 = vpop.f32.mrb[0].mxu0
    %v2158 = vadd.f32 %v391, %v2157
    %v2159 = vpop.f32.mrb[0].mxu0
    %v2160 = vadd.f32 %v387, %v2159
    %v2161 = vpop.f32.mrb[0].mxu0
    %v2162 = vadd.f32 %v391, %v2161
    %2163 = vdwg.mxu0
    %2164 = vmatprep.subr.bf16.mxu0 %v1315
    %2165 = vmatpush1.bf16.msra.mxu0 %v1314
    %2166 = vmatprep.subr.bf16.mxu0 %v1323
    %2167 = vmatpush1.bf16.msra.mxu0 %v1322
    %2168 = vmatprep.subr.bf16.mxu0 %v1331
    %2169 = vmatpush1.bf16.msra.mxu0 %v1330
    %2170 = vmatprep.subr.bf16.mxu0 %v1339
    %2171 = vmatpush1.bf16.msra.mxu0 %v1338
    %2172 = vmatprep.subr.bf16.mxu0 %v1347
    %2173 = vmatpush1.bf16.msra.mxu0 %v1346
    %2174 = vmatprep.subr.bf16.mxu0 %v1355
    %2175 = vmatpush1.bf16.msra.mxu0 %v1354
    %2176 = vmatprep.subr.bf16.mxu0 0
    %2177 = vmatpush1.bf16.msra.mxu0 0
    %2178 = vmatprep.subr.bf16.mxu0 0
    %2179 = vmatpush1.bf16.msra.mxu0 0
    %2180 = vmatprep.subr.bf16.mxu0 0
    %2181 = vmatpush1.bf16.msra.mxu0 0
    %2182 = vmatprep.subr.bf16.mxu0 0
    %2183 = vmatpush1.bf16.msra.mxu0 0
    %2184 = vmatprep.subr.bf16.mxu0 0
    %2185 = vmatpush1.bf16.msra.mxu0 0
    %2186 = vmatprep.subr.bf16.mxu0 0
    %2187 = vmatpush1.bf16.msra.mxu0 0
    %2188 = vmatprep.subr.bf16.mxu0 0
    %2189 = vmatpush1.bf16.msra.mxu0 0
    %2190 = vmatprep.subr.bf16.mxu0 0
    %2191 = vmatpush1.bf16.msra.mxu0 0
    %2192 = vmatprep.subr.bf16.mxu0 0
    %2193 = vmatpush1.bf16.msra.mxu0 0
    %2194 = vmatprep.subr.bf16.mxu0 0
    %2195 = vmatpush1.bf16.msra.mxu0 0
    %2196 = vmatprep.mubr.bf16.mxu0 0
    %2197 = vmatmul.mubr.bf16.gmra.mrb[0].mxu0 %v1538
    %v2198 = vpop.f32.mrb[0].mxu0
    %v2199 = vadd.f32 %v2006, %v2198
    %v2200 = vpop.f32.mrb[0].mxu0
    %v2201 = vadd.f32 %v2008, %v2200
    %v2202 = vpop.f32.mrb[0].mxu0
    %v2203 = vadd.f32 %v2010, %v2202
    %v2204 = vpop.f32.mrb[0].mxu0
    %v2205 = vadd.f32 %v2012, %v2204
    %2206 = vmatprep.mubr.bf16.mxu0 0
    %2207 = vmatmul.mubr.bf16.gmra.mrb[0].mxu0 %v1541
    %v2208 = vpop.f32.mrb[0].mxu0
    %v2209 = vadd.f32 %v2016, %v2208
    %v2210 = vpop.f32.mrb[0].mxu0
    %v2211 = vadd.f32 %v2018, %v2210
    %v2212 = vpop.f32.mrb[0].mxu0
    %v2213 = vadd.f32 %v2020, %v2212
    %v2214 = vpop.f32.mrb[0].mxu0
    %v2215 = vadd.f32 %v2022, %v2214
    %2216 = vmatprep.mubr.bf16.mxu0 0
    %2217 = vmatmul.mubr.bf16.gmra.mrb[0].mxu0 %v1544
    %v2218 = vpop.f32.mrb[0].mxu0
    %v2219 = vadd.f32 %v2026, %v2218
    %v2220 = vpop.f32.mrb[0].mxu0
    %v2221 = vadd.f32 %v2028, %v2220
    %v2222 = vpop.f32.mrb[0].mxu0
    %v2223 = vadd.f32 %v2030, %v2222
    %v2224 = vpop.f32.mrb[0].mxu0
    %v2225 = vadd.f32 %v2032, %v2224
    %2226 = vmatprep.mubr.bf16.mxu0 0
    %2227 = vmatmul.mubr.bf16.gmra.mrb[0].mxu0 %v1547
    %v2228 = vpop.f32.mrb[0].mxu0
    %v2229 = vadd.f32 %v2036, %v2228
    %v2230 = vpop.f32.mrb[0].mxu0
    %v2231 = vadd.f32 %v2038, %v2230
    %v2232 = vpop.f32.mrb[0].mxu0
    %v2233 = vadd.f32 %v2040, %v2232
    %v2234 = vpop.f32.mrb[0].mxu0
    %v2235 = vadd.f32 %v2042, %v2234
    %2236 = vmatprep.mubr.bf16.mxu0 0
    %2237 = vmatmul.mubr.bf16.gmra.mrb[0].mxu0 %v1550
    %v2238 = vpop.f32.mrb[0].mxu0
    %v2239 = vadd.f32 %v2046, %v2238
    %v2240 = vpop.f32.mrb[0].mxu0
    %v2241 = vadd.f32 %v2048, %v2240
    %v2242 = vpop.f32.mrb[0].mxu0
    %v2243 = vadd.f32 %v2050, %v2242
    %v2244 = vpop.f32.mrb[0].mxu0
    %v2245 = vadd.f32 %v2052, %v2244
    %2246 = vmatprep.mubr.bf16.mxu0 0
    %2247 = vmatmul.mubr.bf16.gmra.mrb[0].mxu0 %v1553
    %v2248 = vpop.f32.mrb[0].mxu0
    %v2249 = vadd.f32 %v2056, %v2248
    %v2250 = vpop.f32.mrb[0].mxu0
    %v2251 = vadd.f32 %v2058, %v2250
    %v2252 = vpop.f32.mrb[0].mxu0
    %v2253 = vadd.f32 %v2060, %v2252
    %v2254 = vpop.f32.mrb[0].mxu0
    %v2255 = vadd.f32 %v2062, %v2254
    %2256 = vmatprep.mubr.bf16.mxu0 0
    %2257 = vmatmul.mubr.bf16.gmra.mrb[0].mxu0 %v1556
    %v2258 = vpop.f32.mrb[0].mxu0
    %v2259 = vadd.f32 %v2066, %v2258
    %v2260 = vpop.f32.mrb[0].mxu0
    %v2261 = vadd.f32 %v2068, %v2260
    %v2262 = vpop.f32.mrb[0].mxu0
    %v2263 = vadd.f32 %v2070, %v2262
    %v2264 = vpop.f32.mrb[0].mxu0
    %v2265 = vadd.f32 %v2072, %v2264
    %2266 = vmatprep.mubr.bf16.mxu0 0
    %2267 = vmatmul.mubr.bf16.gmra.mrb[0].mxu0 %v1559
    %v2268 = vpop.f32.mrb[0].mxu0
    %v2269 = vadd.f32 %v2076, %v2268
    %v2270 = vpop.f32.mrb[0].mxu0
    %v2271 = vadd.f32 %v2078, %v2270
    %v2272 = vpop.f32.mrb[0].mxu0
    %v2273 = vadd.f32 %v2080, %v2272
    %v2274 = vpop.f32.mrb[0].mxu0
    %v2275 = vadd.f32 %v2082, %v2274
    %2276 = vmatprep.mubr.bf16.mxu0 0
    %2277 = vmatmul.mubr.bf16.gmra.mrb[0].mxu0 %v1562
    %v2278 = vpop.f32.mrb[0].mxu0
    %v2279 = vadd.f32 %v2086, %v2278
    %v2280 = vpop.f32.mrb[0].mxu0
    %v2281 = vadd.f32 %v2088, %v2280
    %v2282 = vpop.f32.mrb[0].mxu0
    %v2283 = vadd.f32 %v2090, %v2282
    %v2284 = vpop.f32.mrb[0].mxu0
    %v2285 = vadd.f32 %v2092, %v2284
    %2286 = vmatprep.mubr.bf16.mxu0 0
    %2287 = vmatmul.mubr.bf16.gmra.mrb[0].mxu0 %v1565
    %v2288 = vpop.f32.mrb[0].mxu0
    %v2289 = vadd.f32 %v2096, %v2288
    %v2290 = vpop.f32.mrb[0].mxu0
    %v2291 = vadd.f32 %v2098, %v2290
    %v2292 = vpop.f32.mrb[0].mxu0
    %v2293 = vadd.f32 %v2100, %v2292
    %v2294 = vpop.f32.mrb[0].mxu0
    %v2295 = vadd.f32 %v2102, %v2294
    %2296 = vmatprep.mubr.bf16.mxu0 0
    %2297 = vmatmul.mubr.bf16.gmra.mrb[0].mxu0 %v1568
    %v2298 = vpop.f32.mrb[0].mxu0
    %v2299 = vadd.f32 %v2106, %v2298
    %v2300 = vpop.f32.mrb[0].mxu0
    %v2301 = vadd.f32 %v2108, %v2300
    %v2302 = vpop.f32.mrb[0].mxu0
    %v2303 = vadd.f32 %v2110, %v2302
    %v2304 = vpop.f32.mrb[0].mxu0
    %v2305 = vadd.f32 %v2112, %v2304
    %2306 = vmatprep.mubr.bf16.mxu0 0
    %2307 = vmatmul.mubr.bf16.gmra.mrb[0].mxu0 %v1571
    %v2308 = vpop.f32.mrb[0].mxu0
    %v2309 = vadd.f32 %v2116, %v2308
    %v2310 = vpop.f32.mrb[0].mxu0
    %v2311 = vadd.f32 %v2118, %v2310
    %v2312 = vpop.f32.mrb[0].mxu0
    %v2313 = vadd.f32 %v2120, %v2312
    %v2314 = vpop.f32.mrb[0].mxu0
    %v2315 = vadd.f32 %v2122, %v2314
    %2316 = vmatprep.mubr.bf16.mxu0 0
    %2317 = vmatmul.mubr.bf16.gmra.mrb[0].mxu0 %v1574
    %v2318 = vpop.f32.mrb[0].mxu0
    %v2319 = vadd.f32 %v2126, %v2318
    %v2320 = vpop.f32.mrb[0].mxu0
    %v2321 = vadd.f32 %v2128, %v2320
    %v2322 = vpop.f32.mrb[0].mxu0
    %v2323 = vadd.f32 %v2130, %v2322
    %v2324 = vpop.f32.mrb[0].mxu0
    %v2325 = vadd.f32 %v2132, %v2324
    %2326 = vmatprep.mubr.bf16.mxu0 0
    %2327 = vmatmul.mubr.bf16.gmra.mrb[0].mxu0 %v1577
    %v2328 = vpop.f32.mrb[0].mxu0
    %v2329 = vadd.f32 %v2136, %v2328
    %v2330 = vpop.f32.mrb[0].mxu0
    %v2331 = vadd.f32 %v2138, %v2330
    %v2332 = vpop.f32.mrb[0].mxu0
    %v2333 = vadd.f32 %v2140, %v2332
    %v2334 = vpop.f32.mrb[0].mxu0
    %v2335 = vadd.f32 %v2142, %v2334
    %2336 = vmatprep.mubr.bf16.mxu0 0
    %2337 = vmatmul.mubr.bf16.gmra.mrb[0].mxu0 %v1580
    %v2338 = vpop.f32.mrb[0].mxu0
    %v2339 = vadd.f32 %v2146, %v2338
    %v2340 = vpop.f32.mrb[0].mxu0
    %v2341 = vadd.f32 %v2148, %v2340
    %v2342 = vpop.f32.mrb[0].mxu0
    %v2343 = vadd.f32 %v2150, %v2342
    %v2344 = vpop.f32.mrb[0].mxu0
    %v2345 = vadd.f32 %v2152, %v2344
    %2346 = vmatprep.mubr.bf16.mxu0 0
    %2347 = vmatmul.mubr.bf16.gmra.mrb[0].mxu0 %v1583
    %v2348 = vpop.f32.mrb[0].mxu0
    %v2349 = vadd.f32 %v2156, %v2348
    %v2350 = vpop.f32.mrb[0].mxu0
    %v2351 = vadd.f32 %v2158, %v2350
    %v2352 = vpop.f32.mrb[0].mxu0
    %v2353 = vadd.f32 %v2160, %v2352
    %v2354 = vpop.f32.mrb[0].mxu0
    %v2355 = vadd.f32 %v2162, %v2354
    %2356 = vdwg.mxu0
    %2357 = vmatprep.subr.bf16.mxu0 %v1189
    %2358 = vmatpush1.bf16.msra.mxu0 %v1188
    %2359 = vmatprep.subr.bf16.mxu0 %v1197
    %2360 = vmatpush1.bf16.msra.mxu0 %v1196
    %2361 = vmatprep.subr.bf16.mxu0 %v1205
    %2362 = vmatpush1.bf16.msra.mxu0 %v1204
    %2363 = vmatprep.subr.bf16.mxu0 %v1213
    %2364 = vmatpush1.bf16.msra.mxu0 %v1212
    %2365 = vmatprep.subr.bf16.mxu0 %v1221
    %2366 = vmatpush1.bf16.msra.mxu0 %v1220
    %2367 = vmatprep.subr.bf16.mxu0 %v1229
    %2368 = vmatpush1.bf16.msra.mxu0 %v1228
    %2369 = vmatprep.subr.bf16.mxu0 %v1237
    %2370 = vmatpush1.bf16.msra.mxu0 %v1236
    %2371 = vmatprep.subr.bf16.mxu0 %v1245
    %2372 = vmatpush1.bf16.msra.mxu0 %v1244
    %2373 = vmatprep.subr.bf16.mxu0 %v1253
    %2374 = vmatpush1.bf16.msra.mxu0 %v1252
    %2375 = vmatprep.subr.bf16.mxu0 %v1261
    %2376 = vmatpush1.bf16.msra.mxu0 %v1260
    %2377 = vmatprep.subr.bf16.mxu0 %v1269
    %2378 = vmatpush1.bf16.msra.mxu0 %v1268
    %2379 = vmatprep.subr.bf16.mxu0 %v1277
    %2380 = vmatpush1.bf16.msra.mxu0 %v1276
    %2381 = vmatprep.subr.bf16.mxu0 %v1285
    %2382 = vmatpush1.bf16.msra.mxu0 %v1284
    %2383 = vmatprep.subr.bf16.mxu0 %v1293
    %2384 = vmatpush1.bf16.msra.mxu0 %v1292
    %2385 = vmatprep.subr.bf16.mxu0 %v1301
    %2386 = vmatpush1.bf16.msra.mxu0 %v1300
    %2387 = vmatprep.subr.bf16.mxu0 %v1309
    %2388 = vmatpush1.bf16.msra.mxu0 %v1308
    %2389 = vmatprep.mubr.bf16.mxu0 %v577
    %2390 = vmatmul.mubr.bf16.gmra.mrb[0].mxu0 %v576
    %v2391 = vpop.f32.mrb[0].mxu0
    %v2392 = vadd.f32 %v395, %v2391
    %v2393 = vpop.f32.mrb[0].mxu0
    %v2394 = vadd.f32 %v399, %v2393
    %v2395 = vpop.f32.mrb[0].mxu0
    %v2396 = vadd.f32 %v395, %v2395
    %v2397 = vpop.f32.mrb[0].mxu0
    %v2398 = vadd.f32 %v399, %v2397
    %2399 = vmatprep.mubr.bf16.mxu0 %v580
    %2400 = vmatmul.mubr.bf16.gmra.mrb[0].mxu0 %v579
    %v2401 = vpop.f32.mrb[0].mxu0
    %v2402 = vadd.f32 %v395, %v2401
    %v2403 = vpop.f32.mrb[0].mxu0
    %v2404 = vadd.f32 %v399, %v2403
    %v2405 = vpop.f32.mrb[0].mxu0
    %v2406 = vadd.f32 %v395, %v2405
    %v2407 = vpop.f32.mrb[0].mxu0
    %v2408 = vadd.f32 %v399, %v2407
    %2409 = vmatprep.mubr.bf16.mxu0 %v583
    %2410 = vmatmul.mubr.bf16.gmra.mrb[0].mxu0 %v582
    %v2411 = vpop.f32.mrb[0].mxu0
    %v2412 = vadd.f32 %v395, %v2411
    %v2413 = vpop.f32.mrb[0].mxu0
    %v2414 = vadd.f32 %v399, %v2413
    %v2415 = vpop.f32.mrb[0].mxu0
    %v2416 = vadd.f32 %v395, %v2415
    %v2417 = vpop.f32.mrb[0].mxu0
    %v2418 = vadd.f32 %v399, %v2417
    %2419 = vmatprep.mubr.bf16.mxu0 %v586
    %2420 = vmatmul.mubr.bf16.gmra.mrb[0].mxu0 %v585
    %v2421 = vpop.f32.mrb[0].mxu0
    %v2422 = vadd.f32 %v395, %v2421
    %v2423 = vpop.f32.mrb[0].mxu0
    %v2424 = vadd.f32 %v399, %v2423
    %v2425 = vpop.f32.mrb[0].mxu0
    %v2426 = vadd.f32 %v395, %v2425
    %v2427 = vpop.f32.mrb[0].mxu0
    %v2428 = vadd.f32 %v399, %v2427
    %2429 = vmatprep.mubr.bf16.mxu0 %v589
    %2430 = vmatmul.mubr.bf16.gmra.mrb[0].mxu0 %v588
    %v2431 = vpop.f32.mrb[0].mxu0
    %v2432 = vadd.f32 %v395, %v2431
    %v2433 = vpop.f32.mrb[0].mxu0
    %v2434 = vadd.f32 %v399, %v2433
    %v2435 = vpop.f32.mrb[0].mxu0
    %v2436 = vadd.f32 %v395, %v2435
    %v2437 = vpop.f32.mrb[0].mxu0
    %v2438 = vadd.f32 %v399, %v2437
    %2439 = vmatprep.mubr.bf16.mxu0 %v592
    %2440 = vmatmul.mubr.bf16.gmra.mrb[0].mxu0 %v591
    %v2441 = vpop.f32.mrb[0].mxu0
    %v2442 = vadd.f32 %v395, %v2441
    %v2443 = vpop.f32.mrb[0].mxu0
    %v2444 = vadd.f32 %v399, %v2443
    %v2445 = vpop.f32.mrb[0].mxu0
    %v2446 = vadd.f32 %v395, %v2445
    %v2447 = vpop.f32.mrb[0].mxu0
    %v2448 = vadd.f32 %v399, %v2447
    %2449 = vmatprep.mubr.bf16.mxu0 %v595
    %2450 = vmatmul.mubr.bf16.gmra.mrb[0].mxu0 %v594
    %v2451 = vpop.f32.mrb[0].mxu0
    %v2452 = vadd.f32 %v395, %v2451
    %v2453 = vpop.f32.mrb[0].mxu0
    %v2454 = vadd.f32 %v399, %v2453
    %v2455 = vpop.f32.mrb[0].mxu0
    %v2456 = vadd.f32 %v395, %v2455
    %v2457 = vpop.f32.mrb[0].mxu0
    %v2458 = vadd.f32 %v399, %v2457
    %2459 = vmatprep.mubr.bf16.mxu0 %v598
    %2460 = vmatmul.mubr.bf16.gmra.mrb[0].mxu0 %v597
    %v2461 = vpop.f32.mrb[0].mxu0
    %v2462 = vadd.f32 %v395, %v2461
    %v2463 = vpop.f32.mrb[0].mxu0
    %v2464 = vadd.f32 %v399, %v2463
    %v2465 = vpop.f32.mrb[0].mxu0
    %v2466 = vadd.f32 %v395, %v2465
    %v2467 = vpop.f32.mrb[0].mxu0
    %v2468 = vadd.f32 %v399, %v2467
    %2469 = vmatprep.mubr.bf16.mxu0 %v601
    %2470 = vmatmul.mubr.bf16.gmra.mrb[0].mxu0 %v600
    %v2471 = vpop.f32.mrb[0].mxu0
    %v2472 = vadd.f32 %v395, %v2471
    %v2473 = vpop.f32.mrb[0].mxu0
    %v2474 = vadd.f32 %v399, %v2473
    %v2475 = vpop.f32.mrb[0].mxu0
    %v2476 = vadd.f32 %v395, %v2475
    %v2477 = vpop.f32.mrb[0].mxu0
    %v2478 = vadd.f32 %v399, %v2477
    %2479 = vmatprep.mubr.bf16.mxu0 %v604
    %2480 = vmatmul.mubr.bf16.gmra.mrb[0].mxu0 %v603
    %v2481 = vpop.f32.mrb[0].mxu0
    %v2482 = vadd.f32 %v395, %v2481
    %v2483 = vpop.f32.mrb[0].mxu0
    %v2484 = vadd.f32 %v399, %v2483
    %v2485 = vpop.f32.mrb[0].mxu0
    %v2486 = vadd.f32 %v395, %v2485
    %v2487 = vpop.f32.mrb[0].mxu0
    %v2488 = vadd.f32 %v399, %v2487
    %2489 = vmatprep.mubr.bf16.mxu0 %v607
    %2490 = vmatmul.mubr.bf16.gmra.mrb[0].mxu0 %v606
    %v2491 = vpop.f32.mrb[0].mxu0
    %v2492 = vadd.f32 %v395, %v2491
    %v2493 = vpop.f32.mrb[0].mxu0
    %v2494 = vadd.f32 %v399, %v2493
    %v2495 = vpop.f32.mrb[0].mxu0
    %v2496 = vadd.f32 %v395, %v2495
    %v2497 = vpop.f32.mrb[0].mxu0
    %v2498 = vadd.f32 %v399, %v2497
    %2499 = vmatprep.mubr.bf16.mxu0 %v610
    %2500 = vmatmul.mubr.bf16.gmra.mrb[0].mxu0 %v609
    %v2501 = vpop.f32.mrb[0].mxu0
    %v2502 = vadd.f32 %v395, %v2501
    %v2503 = vpop.f32.mrb[0].mxu0
    %v2504 = vadd.f32 %v399, %v2503
    %v2505 = vpop.f32.mrb[0].mxu0
    %v2506 = vadd.f32 %v395, %v2505
    %v2507 = vpop.f32.mrb[0].mxu0
    %v2508 = vadd.f32 %v399, %v2507
    %2509 = vmatprep.mubr.bf16.mxu0 %v613
    %2510 = vmatmul.mubr.bf16.gmra.mrb[0].mxu0 %v612
    %v2511 = vpop.f32.mrb[0].mxu0
    %v2512 = vadd.f32 %v395, %v2511
    %v2513 = vpop.f32.mrb[0].mxu0
    %v2514 = vadd.f32 %v399, %v2513
    %v2515 = vpop.f32.mrb[0].mxu0
    %v2516 = vadd.f32 %v395, %v2515
    %v2517 = vpop.f32.mrb[0].mxu0
    %v2518 = vadd.f32 %v399, %v2517
    %2519 = vmatprep.mubr.bf16.mxu0 %v616
    %2520 = vmatmul.mubr.bf16.gmra.mrb[0].mxu0 %v615
    %v2521 = vpop.f32.mrb[0].mxu0
    %v2522 = vadd.f32 %v395, %v2521
    %v2523 = vpop.f32.mrb[0].mxu0
    %v2524 = vadd.f32 %v399, %v2523
    %v2525 = vpop.f32.mrb[0].mxu0
    %v2526 = vadd.f32 %v395, %v2525
    %v2527 = vpop.f32.mrb[0].mxu0
    %v2528 = vadd.f32 %v399, %v2527
    %2529 = vmatprep.mubr.bf16.mxu0 %v619
    %2530 = vmatmul.mubr.bf16.gmra.mrb[0].mxu0 %v618
    %v2531 = vpop.f32.mrb[0].mxu0
    %v2532 = vadd.f32 %v395, %v2531
    %v2533 = vpop.f32.mrb[0].mxu0
    %v2534 = vadd.f32 %v399, %v2533
    %v2535 = vpop.f32.mrb[0].mxu0
    %v2536 = vadd.f32 %v395, %v2535
    %v2537 = vpop.f32.mrb[0].mxu0
    %v2538 = vadd.f32 %v399, %v2537
    %2539 = vmatprep.mubr.bf16.mxu0 %v622
    %2540 = vmatmul.mubr.bf16.gmra.mrb[0].mxu0 %v621
    %v2541 = vpop.f32.mrb[0].mxu0
    %v2542 = vadd.f32 %v395, %v2541
    %v2543 = vpop.f32.mrb[0].mxu0
    %v2544 = vadd.f32 %v399, %v2543
    %v2545 = vpop.f32.mrb[0].mxu0
    %v2546 = vadd.f32 %v395, %v2545
    %v2547 = vpop.f32.mrb[0].mxu0
    %v2548 = vadd.f32 %v399, %v2547
    %2549 = vdwg.mxu0
    %2550 = vmatprep.subr.bf16.mxu0 %v1317
    %2551 = vmatpush1.bf16.msra.mxu0 %v1316
    %2552 = vmatprep.subr.bf16.mxu0 %v1325
    %2553 = vmatpush1.bf16.msra.mxu0 %v1324
    %2554 = vmatprep.subr.bf16.mxu0 %v1333
    %2555 = vmatpush1.bf16.msra.mxu0 %v1332
    %2556 = vmatprep.subr.bf16.mxu0 %v1341
    %2557 = vmatpush1.bf16.msra.mxu0 %v1340
    %2558 = vmatprep.subr.bf16.mxu0 %v1349
    %2559 = vmatpush1.bf16.msra.mxu0 %v1348
    %2560 = vmatprep.subr.bf16.mxu0 %v1357
    %2561 = vmatpush1.bf16.msra.mxu0 %v1356
    %2562 = vmatprep.subr.bf16.mxu0 0
    %2563 = vmatpush1.bf16.msra.mxu0 0
    %2564 = vmatprep.subr.bf16.mxu0 0
    %2565 = vmatpush1.bf16.msra.mxu0 0
    %2566 = vmatprep.subr.bf16.mxu0 0
    %2567 = vmatpush1.bf16.msra.mxu0 0
    %2568 = vmatprep.subr.bf16.mxu0 0
    %2569 = vmatpush1.bf16.msra.mxu0 0
    %2570 = vmatprep.subr.bf16.mxu0 0
    %2571 = vmatpush1.bf16.msra.mxu0 0
    %2572 = vmatprep.subr.bf16.mxu0 0
    %2573 = vmatpush1.bf16.msra.mxu0 0
    %2574 = vmatprep.subr.bf16.mxu0 0
    %2575 = vmatpush1.bf16.msra.mxu0 0
    %2576 = vmatprep.subr.bf16.mxu0 0
    %2577 = vmatpush1.bf16.msra.mxu0 0
    %2578 = vmatprep.subr.bf16.mxu0 0
    %2579 = vmatpush1.bf16.msra.mxu0 0
    %2580 = vmatprep.subr.bf16.mxu0 0
    %2581 = vmatpush1.bf16.msra.mxu0 0
    %2582 = vmatprep.mubr.bf16.mxu0 0
    %2583 = vmatmul.mubr.bf16.gmra.mrb[0].mxu0 %v1538
    %v2584 = vpop.f32.mrb[0].mxu0
    %v2585 = vadd.f32 %v2392, %v2584
    %v2586 = vpop.f32.mrb[0].mxu0
    %v2587 = vadd.f32 %v2394, %v2586
    %v2588 = vpop.f32.mrb[0].mxu0
    %v2589 = vadd.f32 %v2396, %v2588
    %v2590 = vpop.f32.mrb[0].mxu0
    %v2591 = vadd.f32 %v2398, %v2590
    %2592 = vmatprep.mubr.bf16.mxu0 0
    %2593 = vmatmul.mubr.bf16.gmra.mrb[0].mxu0 %v1541
    %v2594 = vpop.f32.mrb[0].mxu0
    %v2595 = vadd.f32 %v2402, %v2594
    %v2596 = vpop.f32.mrb[0].mxu0
    %v2597 = vadd.f32 %v2404, %v2596
    %v2598 = vpop.f32.mrb[0].mxu0
    %v2599 = vadd.f32 %v2406, %v2598
    %v2600 = vpop.f32.mrb[0].mxu0
    %v2601 = vadd.f32 %v2408, %v2600
    %2602 = vmatprep.mubr.bf16.mxu0 0
    %2603 = vmatmul.mubr.bf16.gmra.mrb[0].mxu0 %v1544
    %v2604 = vpop.f32.mrb[0].mxu0
    %v2605 = vadd.f32 %v2412, %v2604
    %v2606 = vpop.f32.mrb[0].mxu0
    %v2607 = vadd.f32 %v2414, %v2606
    %v2608 = vpop.f32.mrb[0].mxu0
    %v2609 = vadd.f32 %v2416, %v2608
    %v2610 = vpop.f32.mrb[0].mxu0
    %v2611 = vadd.f32 %v2418, %v2610
    %2612 = vmatprep.mubr.bf16.mxu0 0
    %2613 = vmatmul.mubr.bf16.gmra.mrb[0].mxu0 %v1547
    %v2614 = vpop.f32.mrb[0].mxu0
    %v2615 = vadd.f32 %v2422, %v2614
    %v2616 = vpop.f32.mrb[0].mxu0
    %v2617 = vadd.f32 %v2424, %v2616
    %v2618 = vpop.f32.mrb[0].mxu0
    %v2619 = vadd.f32 %v2426, %v2618
    %v2620 = vpop.f32.mrb[0].mxu0
    %v2621 = vadd.f32 %v2428, %v2620
    %2622 = vmatprep.mubr.bf16.mxu0 0
    %2623 = vmatmul.mubr.bf16.gmra.mrb[0].mxu0 %v1550
    %v2624 = vpop.f32.mrb[0].mxu0
    %v2625 = vadd.f32 %v2432, %v2624
    %v2626 = vpop.f32.mrb[0].mxu0
    %v2627 = vadd.f32 %v2434, %v2626
    %v2628 = vpop.f32.mrb[0].mxu0
    %v2629 = vadd.f32 %v2436, %v2628
    %v2630 = vpop.f32.mrb[0].mxu0
    %v2631 = vadd.f32 %v2438, %v2630
    %2632 = vmatprep.mubr.bf16.mxu0 0
    %2633 = vmatmul.mubr.bf16.gmra.mrb[0].mxu0 %v1553
    %v2634 = vpop.f32.mrb[0].mxu0
    %v2635 = vadd.f32 %v2442, %v2634
    %v2636 = vpop.f32.mrb[0].mxu0
    %v2637 = vadd.f32 %v2444, %v2636
    %v2638 = vpop.f32.mrb[0].mxu0
    %v2639 = vadd.f32 %v2446, %v2638
    %v2640 = vpop.f32.mrb[0].mxu0
    %v2641 = vadd.f32 %v2448, %v2640
    %2642 = vmatprep.mubr.bf16.mxu0 0
    %2643 = vmatmul.mubr.bf16.gmra.mrb[0].mxu0 %v1556
    %v2644 = vpop.f32.mrb[0].mxu0
    %v2645 = vadd.f32 %v2452, %v2644
    %v2646 = vpop.f32.mrb[0].mxu0
    %v2647 = vadd.f32 %v2454, %v2646
    %v2648 = vpop.f32.mrb[0].mxu0
    %v2649 = vadd.f32 %v2456, %v2648
    %v2650 = vpop.f32.mrb[0].mxu0
    %v2651 = vadd.f32 %v2458, %v2650
    %2652 = vmatprep.mubr.bf16.mxu0 0
    %2653 = vmatmul.mubr.bf16.gmra.mrb[0].mxu0 %v1559
    %v2654 = vpop.f32.mrb[0].mxu0
    %v2655 = vadd.f32 %v2462, %v2654
    %v2656 = vpop.f32.mrb[0].mxu0
    %v2657 = vadd.f32 %v2464, %v2656
    %v2658 = vpop.f32.mrb[0].mxu0
    %v2659 = vadd.f32 %v2466, %v2658
    %v2660 = vpop.f32.mrb[0].mxu0
    %v2661 = vadd.f32 %v2468, %v2660
    %2662 = vmatprep.mubr.bf16.mxu0 0
    %2663 = vmatmul.mubr.bf16.gmra.mrb[0].mxu0 %v1562
    %v2664 = vpop.f32.mrb[0].mxu0
    %v2665 = vadd.f32 %v2472, %v2664
    %v2666 = vpop.f32.mrb[0].mxu0
    %v2667 = vadd.f32 %v2474, %v2666
    %v2668 = vpop.f32.mrb[0].mxu0
    %v2669 = vadd.f32 %v2476, %v2668
    %v2670 = vpop.f32.mrb[0].mxu0
    %v2671 = vadd.f32 %v2478, %v2670
    %2672 = vmatprep.mubr.bf16.mxu0 0
    %2673 = vmatmul.mubr.bf16.gmra.mrb[0].mxu0 %v1565
    %v2674 = vpop.f32.mrb[0].mxu0
    %v2675 = vadd.f32 %v2482, %v2674
    %v2676 = vpop.f32.mrb[0].mxu0
    %v2677 = vadd.f32 %v2484, %v2676
    %v2678 = vpop.f32.mrb[0].mxu0
    %v2679 = vadd.f32 %v2486, %v2678
    %v2680 = vpop.f32.mrb[0].mxu0
    %v2681 = vadd.f32 %v2488, %v2680
    %2682 = vmatprep.mubr.bf16.mxu0 0
    %2683 = vmatmul.mubr.bf16.gmra.mrb[0].mxu0 %v1568
    %v2684 = vpop.f32.mrb[0].mxu0
    %v2685 = vadd.f32 %v2492, %v2684
    %v2686 = vpop.f32.mrb[0].mxu0
    %v2687 = vadd.f32 %v2494, %v2686
    %v2688 = vpop.f32.mrb[0].mxu0
    %v2689 = vadd.f32 %v2496, %v2688
    %v2690 = vpop.f32.mrb[0].mxu0
    %v2691 = vadd.f32 %v2498, %v2690
    %2692 = vmatprep.mubr.bf16.mxu0 0
    %2693 = vmatmul.mubr.bf16.gmra.mrb[0].mxu0 %v1571
    %v2694 = vpop.f32.mrb[0].mxu0
    %v2695 = vadd.f32 %v2502, %v2694
    %v2696 = vpop.f32.mrb[0].mxu0
    %v2697 = vadd.f32 %v2504, %v2696
    %v2698 = vpop.f32.mrb[0].mxu0
    %v2699 = vadd.f32 %v2506, %v2698
    %v2700 = vpop.f32.mrb[0].mxu0
    %v2701 = vadd.f32 %v2508, %v2700
    %2702 = vmatprep.mubr.bf16.mxu0 0
    %2703 = vmatmul.mubr.bf16.gmra.mrb[0].mxu0 %v1574
    %v2704 = vpop.f32.mrb[0].mxu0
    %v2705 = vadd.f32 %v2512, %v2704
    %v2706 = vpop.f32.mrb[0].mxu0
    %v2707 = vadd.f32 %v2514, %v2706
    %v2708 = vpop.f32.mrb[0].mxu0
    %v2709 = vadd.f32 %v2516, %v2708
    %v2710 = vpop.f32.mrb[0].mxu0
    %v2711 = vadd.f32 %v2518, %v2710
    %2712 = vmatprep.mubr.bf16.mxu0 0
    %2713 = vmatmul.mubr.bf16.gmra.mrb[0].mxu0 %v1577
    %v2714 = vpop.f32.mrb[0].mxu0
    %v2715 = vadd.f32 %v2522, %v2714
    %v2716 = vpop.f32.mrb[0].mxu0
    %v2717 = vadd.f32 %v2524, %v2716
    %v2718 = vpop.f32.mrb[0].mxu0
    %v2719 = vadd.f32 %v2526, %v2718
    %v2720 = vpop.f32.mrb[0].mxu0
    %v2721 = vadd.f32 %v2528, %v2720
    %2722 = vmatprep.mubr.bf16.mxu0 0
    %2723 = vmatmul.mubr.bf16.gmra.mrb[0].mxu0 %v1580
    %v2724 = vpop.f32.mrb[0].mxu0
    %v2725 = vadd.f32 %v2532, %v2724
    %v2726 = vpop.f32.mrb[0].mxu0
    %v2727 = vadd.f32 %v2534, %v2726
    %v2728 = vpop.f32.mrb[0].mxu0
    %v2729 = vadd.f32 %v2536, %v2728
    %v2730 = vpop.f32.mrb[0].mxu0
    %v2731 = vadd.f32 %v2538, %v2730
    %2732 = vmatprep.mubr.bf16.mxu0 0
    %2733 = vmatmul.mubr.bf16.gmra.mrb[0].mxu0 %v1583
    %v2734 = vpop.f32.mrb[0].mxu0
    %v2735 = vadd.f32 %v2542, %v2734
    %v2736 = vpop.f32.mrb[0].mxu0
    %v2737 = vadd.f32 %v2544, %v2736
    %v2738 = vpop.f32.mrb[0].mxu0
    %v2739 = vadd.f32 %v2546, %v2738
    %v2740 = vpop.f32.mrb[0].mxu0
    %v2741 = vadd.f32 %v2548, %v2740
    %2742 = vdwg.mxu0
    %2743 = vmatprep.subr.bf16.mxu0 %v1191
    %2744 = vmatpush1.bf16.msra.mxu0 %v1190
    %2745 = vmatprep.subr.bf16.mxu0 %v1199
    %2746 = vmatpush1.bf16.msra.mxu0 %v1198
    %2747 = vmatprep.subr.bf16.mxu0 %v1207
    %2748 = vmatpush1.bf16.msra.mxu0 %v1206
    %2749 = vmatprep.subr.bf16.mxu0 %v1215
    %2750 = vmatpush1.bf16.msra.mxu0 %v1214
    %2751 = vmatprep.subr.bf16.mxu0 %v1223
    %2752 = vmatpush1.bf16.msra.mxu0 %v1222
    %2753 = vmatprep.subr.bf16.mxu0 %v1231
    %2754 = vmatpush1.bf16.msra.mxu0 %v1230
    %2755 = vmatprep.subr.bf16.mxu0 %v1239
    %2756 = vmatpush1.bf16.msra.mxu0 %v1238
    %2757 = vmatprep.subr.bf16.mxu0 %v1247
    %2758 = vmatpush1.bf16.msra.mxu0 %v1246
    %2759 = vmatprep.subr.bf16.mxu0 %v1255
    %2760 = vmatpush1.bf16.msra.mxu0 %v1254
    %2761 = vmatprep.subr.bf16.mxu0 %v1263
    %2762 = vmatpush1.bf16.msra.mxu0 %v1262
    %2763 = vmatprep.subr.bf16.mxu0 %v1271
    %2764 = vmatpush1.bf16.msra.mxu0 %v1270
    %2765 = vmatprep.subr.bf16.mxu0 %v1279
    %2766 = vmatpush1.bf16.msra.mxu0 %v1278
    %2767 = vmatprep.subr.bf16.mxu0 %v1287
    %2768 = vmatpush1.bf16.msra.mxu0 %v1286
    %2769 = vmatprep.subr.bf16.mxu0 %v1295
    %2770 = vmatpush1.bf16.msra.mxu0 %v1294
    %2771 = vmatprep.subr.bf16.mxu0 %v1303
    %2772 = vmatpush1.bf16.msra.mxu0 %v1302
    %2773 = vmatprep.subr.bf16.mxu0 %v1311
    %2774 = vmatpush1.bf16.msra.mxu0 %v1310
    %2775 = vmatprep.mubr.bf16.mxu0 %v577
    %2776 = vmatmul.mubr.bf16.gmra.mrb[0].mxu0 %v576
    %v2777 = vpop.f32.mrb[0].mxu0
    %v2778 = vadd.f32 %v403, %v2777
    %v2779 = vpop.f32.mrb[0].mxu0
    %v2780 = vadd.f32 %v407, %v2779
    %v2781 = vpop.f32.mrb[0].mxu0
    %v2782 = vadd.f32 %v403, %v2781
    %v2783 = vpop.f32.mrb[0].mxu0
    %v2784 = vadd.f32 %v407, %v2783
    %2785 = vmatprep.mubr.bf16.mxu0 %v580
    %2786 = vmatmul.mubr.bf16.gmra.mrb[0].mxu0 %v579
    %v2787 = vpop.f32.mrb[0].mxu0
    %v2788 = vadd.f32 %v403, %v2787
    %v2789 = vpop.f32.mrb[0].mxu0
    %v2790 = vadd.f32 %v407, %v2789
    %v2791 = vpop.f32.mrb[0].mxu0
    %v2792 = vadd.f32 %v403, %v2791
    %v2793 = vpop.f32.mrb[0].mxu0
    %v2794 = vadd.f32 %v407, %v2793
    %2795 = vmatprep.mubr.bf16.mxu0 %v583
    %2796 = vmatmul.mubr.bf16.gmra.mrb[0].mxu0 %v582
    %v2797 = vpop.f32.mrb[0].mxu0
    %v2798 = vadd.f32 %v403, %v2797
    %v2799 = vpop.f32.mrb[0].mxu0
    %v2800 = vadd.f32 %v407, %v2799
    %v2801 = vpop.f32.mrb[0].mxu0
    %v2802 = vadd.f32 %v403, %v2801
    %v2803 = vpop.f32.mrb[0].mxu0
    %v2804 = vadd.f32 %v407, %v2803
    %2805 = vmatprep.mubr.bf16.mxu0 %v586
    %2806 = vmatmul.mubr.bf16.gmra.mrb[0].mxu0 %v585
    %v2807 = vpop.f32.mrb[0].mxu0
    %v2808 = vadd.f32 %v403, %v2807
    %v2809 = vpop.f32.mrb[0].mxu0
    %v2810 = vadd.f32 %v407, %v2809
    %v2811 = vpop.f32.mrb[0].mxu0
    %v2812 = vadd.f32 %v403, %v2811
    %v2813 = vpop.f32.mrb[0].mxu0
    %v2814 = vadd.f32 %v407, %v2813
    %2815 = vmatprep.mubr.bf16.mxu0 %v589
    %2816 = vmatmul.mubr.bf16.gmra.mrb[0].mxu0 %v588
    %v2817 = vpop.f32.mrb[0].mxu0
    %v2818 = vadd.f32 %v403, %v2817
    %v2819 = vpop.f32.mrb[0].mxu0
    %v2820 = vadd.f32 %v407, %v2819
    %v2821 = vpop.f32.mrb[0].mxu0
    %v2822 = vadd.f32 %v403, %v2821
    %v2823 = vpop.f32.mrb[0].mxu0
    %v2824 = vadd.f32 %v407, %v2823
    %2825 = vmatprep.mubr.bf16.mxu0 %v592
    %2826 = vmatmul.mubr.bf16.gmra.mrb[0].mxu0 %v591
    %v2827 = vpop.f32.mrb[0].mxu0
    %v2828 = vadd.f32 %v403, %v2827
    %v2829 = vpop.f32.mrb[0].mxu0
    %v2830 = vadd.f32 %v407, %v2829
    %v2831 = vpop.f32.mrb[0].mxu0
    %v2832 = vadd.f32 %v403, %v2831
    %v2833 = vpop.f32.mrb[0].mxu0
    %v2834 = vadd.f32 %v407, %v2833
    %2835 = vmatprep.mubr.bf16.mxu0 %v595
    %2836 = vmatmul.mubr.bf16.gmra.mrb[0].mxu0 %v594
    %v2837 = vpop.f32.mrb[0].mxu0
    %v2838 = vadd.f32 %v403, %v2837
    %v2839 = vpop.f32.mrb[0].mxu0
    %v2840 = vadd.f32 %v407, %v2839
    %v2841 = vpop.f32.mrb[0].mxu0
    %v2842 = vadd.f32 %v403, %v2841
    %v2843 = vpop.f32.mrb[0].mxu0
    %v2844 = vadd.f32 %v407, %v2843
    %2845 = vmatprep.mubr.bf16.mxu0 %v598
    %2846 = vmatmul.mubr.bf16.gmra.mrb[0].mxu0 %v597
    %v2847 = vpop.f32.mrb[0].mxu0
    %v2848 = vadd.f32 %v403, %v2847
    %v2849 = vpop.f32.mrb[0].mxu0
    %v2850 = vadd.f32 %v407, %v2849
    %v2851 = vpop.f32.mrb[0].mxu0
    %v2852 = vadd.f32 %v403, %v2851
    %v2853 = vpop.f32.mrb[0].mxu0
    %v2854 = vadd.f32 %v407, %v2853
    %2855 = vmatprep.mubr.bf16.mxu0 %v601
    %2856 = vmatmul.mubr.bf16.gmra.mrb[0].mxu0 %v600
    %v2857 = vpop.f32.mrb[0].mxu0
    %v2858 = vadd.f32 %v403, %v2857
    %v2859 = vpop.f32.mrb[0].mxu0
    %v2860 = vadd.f32 %v407, %v2859
    %v2861 = vpop.f32.mrb[0].mxu0
    %v2862 = vadd.f32 %v403, %v2861
    %v2863 = vpop.f32.mrb[0].mxu0
    %v2864 = vadd.f32 %v407, %v2863
    %2865 = vmatprep.mubr.bf16.mxu0 %v604
    %2866 = vmatmul.mubr.bf16.gmra.mrb[0].mxu0 %v603
    %v2867 = vpop.f32.mrb[0].mxu0
    %v2868 = vadd.f32 %v403, %v2867
    %v2869 = vpop.f32.mrb[0].mxu0
    %v2870 = vadd.f32 %v407, %v2869
    %v2871 = vpop.f32.mrb[0].mxu0
    %v2872 = vadd.f32 %v403, %v2871
    %v2873 = vpop.f32.mrb[0].mxu0
    %v2874 = vadd.f32 %v407, %v2873
    %2875 = vmatprep.mubr.bf16.mxu0 %v607
    %2876 = vmatmul.mubr.bf16.gmra.mrb[0].mxu0 %v606
    %v2877 = vpop.f32.mrb[0].mxu0
    %v2878 = vadd.f32 %v403, %v2877
    %v2879 = vpop.f32.mrb[0].mxu0
    %v2880 = vadd.f32 %v407, %v2879
    %v2881 = vpop.f32.mrb[0].mxu0
    %v2882 = vadd.f32 %v403, %v2881
    %v2883 = vpop.f32.mrb[0].mxu0
    %v2884 = vadd.f32 %v407, %v2883
    %2885 = vmatprep.mubr.bf16.mxu0 %v610
    %2886 = vmatmul.mubr.bf16.gmra.mrb[0].mxu0 %v609
    %v2887 = vpop.f32.mrb[0].mxu0
    %v2888 = vadd.f32 %v403, %v2887
    %v2889 = vpop.f32.mrb[0].mxu0
    %v2890 = vadd.f32 %v407, %v2889
    %v2891 = vpop.f32.mrb[0].mxu0
    %v2892 = vadd.f32 %v403, %v2891
    %v2893 = vpop.f32.mrb[0].mxu0
    %v2894 = vadd.f32 %v407, %v2893
    %2895 = vmatprep.mubr.bf16.mxu0 %v613
    %2896 = vmatmul.mubr.bf16.gmra.mrb[0].mxu0 %v612
    %v2897 = vpop.f32.mrb[0].mxu0
    %v2898 = vadd.f32 %v403, %v2897
    %v2899 = vpop.f32.mrb[0].mxu0
    %v2900 = vadd.f32 %v407, %v2899
    %v2901 = vpop.f32.mrb[0].mxu0
    %v2902 = vadd.f32 %v403, %v2901
    %v2903 = vpop.f32.mrb[0].mxu0
    %v2904 = vadd.f32 %v407, %v2903
    %2905 = vmatprep.mubr.bf16.mxu0 %v616
    %2906 = vmatmul.mubr.bf16.gmra.mrb[0].mxu0 %v615
    %v2907 = vpop.f32.mrb[0].mxu0
    %v2908 = vadd.f32 %v403, %v2907
    %v2909 = vpop.f32.mrb[0].mxu0
    %v2910 = vadd.f32 %v407, %v2909
    %v2911 = vpop.f32.mrb[0].mxu0
    %v2912 = vadd.f32 %v403, %v2911
    %v2913 = vpop.f32.mrb[0].mxu0
    %v2914 = vadd.f32 %v407, %v2913
    %2915 = vmatprep.mubr.bf16.mxu0 %v619
    %2916 = vmatmul.mubr.bf16.gmra.mrb[0].mxu0 %v618
    %v2917 = vpop.f32.mrb[0].mxu0
    %v2918 = vadd.f32 %v403, %v2917
    %v2919 = vpop.f32.mrb[0].mxu0
    %v2920 = vadd.f32 %v407, %v2919
    %v2921 = vpop.f32.mrb[0].mxu0
    %v2922 = vadd.f32 %v403, %v2921
    %v2923 = vpop.f32.mrb[0].mxu0
    %v2924 = vadd.f32 %v407, %v2923
    %2925 = vmatprep.mubr.bf16.mxu0 %v622
    %2926 = vmatmul.mubr.bf16.gmra.mrb[0].mxu0 %v621
    %v2927 = vpop.f32.mrb[0].mxu0
    %v2928 = vadd.f32 %v403, %v2927
    %v2929 = vpop.f32.mrb[0].mxu0
    %v2930 = vadd.f32 %v407, %v2929
    %v2931 = vpop.f32.mrb[0].mxu0
    %v2932 = vadd.f32 %v403, %v2931
    %v2933 = vpop.f32.mrb[0].mxu0
    %v2934 = vadd.f32 %v407, %v2933
    %2935 = vdwg.mxu0
    %2936 = vmatprep.subr.bf16.mxu0 %v1319
    %2937 = vmatpush1.bf16.msra.mxu0 %v1318
    %2938 = vmatprep.subr.bf16.mxu0 %v1327
    %2939 = vmatpush1.bf16.msra.mxu0 %v1326
    %2940 = vmatprep.subr.bf16.mxu0 %v1335
    %2941 = vmatpush1.bf16.msra.mxu0 %v1334
    %2942 = vmatprep.subr.bf16.mxu0 %v1343
    %2943 = vmatpush1.bf16.msra.mxu0 %v1342
    %2944 = vmatprep.subr.bf16.mxu0 %v1351
    %2945 = vmatpush1.bf16.msra.mxu0 %v1350
    %2946 = vmatprep.subr.bf16.mxu0 %v1359
    %2947 = vmatpush1.bf16.msra.mxu0 %v1358
    %2948 = vmatprep.subr.bf16.mxu0 0
    %2949 = vmatpush1.bf16.msra.mxu0 0
    %2950 = vmatprep.subr.bf16.mxu0 0
    %2951 = vmatpush1.bf16.msra.mxu0 0
    %2952 = vmatprep.subr.bf16.mxu0 0
    %2953 = vmatpush1.bf16.msra.mxu0 0
    %2954 = vmatprep.subr.bf16.mxu0 0
    %2955 = vmatpush1.bf16.msra.mxu0 0
    %2956 = vmatprep.subr.bf16.mxu0 0
    %2957 = vmatpush1.bf16.msra.mxu0 0
    %2958 = vmatprep.subr.bf16.mxu0 0
    %2959 = vmatpush1.bf16.msra.mxu0 0
    %2960 = vmatprep.subr.bf16.mxu0 0
    %2961 = vmatpush1.bf16.msra.mxu0 0
    %2962 = vmatprep.subr.bf16.mxu0 0
    %2963 = vmatpush1.bf16.msra.mxu0 0
    %2964 = vmatprep.subr.bf16.mxu0 0
    %2965 = vmatpush1.bf16.msra.mxu0 0
    %2966 = vmatprep.subr.bf16.mxu0 0
    %2967 = vmatpush1.bf16.msra.mxu0 0
    %2968 = vmatprep.mubr.bf16.mxu0 0
    %2969 = vmatmul.mubr.bf16.gmra.mrb[0].mxu0 %v1538
    %v2970 = vpop.f32.mrb[0].mxu0
    %v2971 = vadd.f32 %v2778, %v2970
    %v2972 = vpop.f32.mrb[0].mxu0
    %v2973 = vadd.f32 %v2780, %v2972
    %v2974 = vpop.f32.mrb[0].mxu0
    %v2975 = vadd.f32 %v2782, %v2974
    %v2976 = vpop.f32.mrb[0].mxu0
    %v2977 = vadd.f32 %v2784, %v2976
    %2978 = vmatprep.mubr.bf16.mxu0 0
    %2979 = vmatmul.mubr.bf16.gmra.mrb[0].mxu0 %v1541
    %v2980 = vpop.f32.mrb[0].mxu0
    %v2981 = vadd.f32 %v2788, %v2980
    %v2982 = vpop.f32.mrb[0].mxu0
    %v2983 = vadd.f32 %v2790, %v2982
    %v2984 = vpop.f32.mrb[0].mxu0
    %v2985 = vadd.f32 %v2792, %v2984
    %v2986 = vpop.f32.mrb[0].mxu0
    %v2987 = vadd.f32 %v2794, %v2986
    %2988 = vmatprep.mubr.bf16.mxu0 0
    %2989 = vmatmul.mubr.bf16.gmra.mrb[0].mxu0 %v1544
    %v2990 = vpop.f32.mrb[0].mxu0
    %v2991 = vadd.f32 %v2798, %v2990
    %v2992 = vpop.f32.mrb[0].mxu0
    %v2993 = vadd.f32 %v2800, %v2992
    %v2994 = vpop.f32.mrb[0].mxu0
    %v2995 = vadd.f32 %v2802, %v2994
    %v2996 = vpop.f32.mrb[0].mxu0
    %v2997 = vadd.f32 %v2804, %v2996
    %2998 = vmatprep.mubr.bf16.mxu0 0
    %2999 = vmatmul.mubr.bf16.gmra.mrb[0].mxu0 %v1547
    %v3000 = vpop.f32.mrb[0].mxu0
    %v3001 = vadd.f32 %v2808, %v3000
    %v3002 = vpop.f32.mrb[0].mxu0
    %v3003 = vadd.f32 %v2810, %v3002
    %v3004 = vpop.f32.mrb[0].mxu0
    %v3005 = vadd.f32 %v2812, %v3004
    %v3006 = vpop.f32.mrb[0].mxu0
    %v3007 = vadd.f32 %v2814, %v3006
    %3008 = vmatprep.mubr.bf16.mxu0 0
    %3009 = vmatmul.mubr.bf16.gmra.mrb[0].mxu0 %v1550
    %v3010 = vpop.f32.mrb[0].mxu0
    %v3011 = vadd.f32 %v2818, %v3010
    %v3012 = vpop.f32.mrb[0].mxu0
    %v3013 = vadd.f32 %v2820, %v3012
    %v3014 = vpop.f32.mrb[0].mxu0
    %v3015 = vadd.f32 %v2822, %v3014
    %v3016 = vpop.f32.mrb[0].mxu0
    %v3017 = vadd.f32 %v2824, %v3016
    %3018 = vmatprep.mubr.bf16.mxu0 0
    %3019 = vmatmul.mubr.bf16.gmra.mrb[0].mxu0 %v1553
    %v3020 = vpop.f32.mrb[0].mxu0
    %v3021 = vadd.f32 %v2828, %v3020
    %v3022 = vpop.f32.mrb[0].mxu0
    %v3023 = vadd.f32 %v2830, %v3022
    %v3024 = vpop.f32.mrb[0].mxu0
    %v3025 = vadd.f32 %v2832, %v3024
    %v3026 = vpop.f32.mrb[0].mxu0
    %v3027 = vadd.f32 %v2834, %v3026
    %3028 = vmatprep.mubr.bf16.mxu0 0
    %3029 = vmatmul.mubr.bf16.gmra.mrb[0].mxu0 %v1556
    %v3030 = vpop.f32.mrb[0].mxu0
    %v3031 = vadd.f32 %v2838, %v3030
    %v3032 = vpop.f32.mrb[0].mxu0
    %v3033 = vadd.f32 %v2840, %v3032
    %v3034 = vpop.f32.mrb[0].mxu0
    %v3035 = vadd.f32 %v2842, %v3034
    %v3036 = vpop.f32.mrb[0].mxu0
    %v3037 = vadd.f32 %v2844, %v3036
    %3038 = vmatprep.mubr.bf16.mxu0 0
    %3039 = vmatmul.mubr.bf16.gmra.mrb[0].mxu0 %v1559
    %v3040 = vpop.f32.mrb[0].mxu0
    %v3041 = vadd.f32 %v2848, %v3040
    %v3042 = vpop.f32.mrb[0].mxu0
    %v3043 = vadd.f32 %v2850, %v3042
    %v3044 = vpop.f32.mrb[0].mxu0
    %v3045 = vadd.f32 %v2852, %v3044
    %v3046 = vpop.f32.mrb[0].mxu0
    %v3047 = vadd.f32 %v2854, %v3046
    %3048 = vmatprep.mubr.bf16.mxu0 0
    %3049 = vmatmul.mubr.bf16.gmra.mrb[0].mxu0 %v1562
    %v3050 = vpop.f32.mrb[0].mxu0
    %v3051 = vadd.f32 %v2858, %v3050
    %v3052 = vpop.f32.mrb[0].mxu0
    %v3053 = vadd.f32 %v2860, %v3052
    %v3054 = vpop.f32.mrb[0].mxu0
    %v3055 = vadd.f32 %v2862, %v3054
    %v3056 = vpop.f32.mrb[0].mxu0
    %v3057 = vadd.f32 %v2864, %v3056
    %3058 = vmatprep.mubr.bf16.mxu0 0
    %3059 = vmatmul.mubr.bf16.gmra.mrb[0].mxu0 %v1565
    %v3060 = vpop.f32.mrb[0].mxu0
    %v3061 = vadd.f32 %v2868, %v3060
    %v3062 = vpop.f32.mrb[0].mxu0
    %v3063 = vadd.f32 %v2870, %v3062
    %v3064 = vpop.f32.mrb[0].mxu0
    %v3065 = vadd.f32 %v2872, %v3064
    %v3066 = vpop.f32.mrb[0].mxu0
    %v3067 = vadd.f32 %v2874, %v3066
    %3068 = vmatprep.mubr.bf16.mxu0 0
    %3069 = vmatmul.mubr.bf16.gmra.mrb[0].mxu0 %v1568
    %v3070 = vpop.f32.mrb[0].mxu0
    %v3071 = vadd.f32 %v2878, %v3070
    %v3072 = vpop.f32.mrb[0].mxu0
    %v3073 = vadd.f32 %v2880, %v3072
    %v3074 = vpop.f32.mrb[0].mxu0
    %v3075 = vadd.f32 %v2882, %v3074
    %v3076 = vpop.f32.mrb[0].mxu0
    %v3077 = vadd.f32 %v2884, %v3076
    %3078 = vmatprep.mubr.bf16.mxu0 0
    %3079 = vmatmul.mubr.bf16.gmra.mrb[0].mxu0 %v1571
    %v3080 = vpop.f32.mrb[0].mxu0
    %v3081 = vadd.f32 %v2888, %v3080
    %v3082 = vpop.f32.mrb[0].mxu0
    %v3083 = vadd.f32 %v2890, %v3082
    %v3084 = vpop.f32.mrb[0].mxu0
    %v3085 = vadd.f32 %v2892, %v3084
    %v3086 = vpop.f32.mrb[0].mxu0
    %v3087 = vadd.f32 %v2894, %v3086
    %3088 = vmatprep.mubr.bf16.mxu0 0
    %3089 = vmatmul.mubr.bf16.gmra.mrb[0].mxu0 %v1574
    %v3090 = vpop.f32.mrb[0].mxu0
    %v3091 = vadd.f32 %v2898, %v3090
    %v3092 = vpop.f32.mrb[0].mxu0
    %v3093 = vadd.f32 %v2900, %v3092
    %v3094 = vpop.f32.mrb[0].mxu0
    %v3095 = vadd.f32 %v2902, %v3094
    %v3096 = vpop.f32.mrb[0].mxu0
    %v3097 = vadd.f32 %v2904, %v3096
    %3098 = vmatprep.mubr.bf16.mxu0 0
    %3099 = vmatmul.mubr.bf16.gmra.mrb[0].mxu0 %v1577
    %v3100 = vpop.f32.mrb[0].mxu0
    %v3101 = vadd.f32 %v2908, %v3100
    %v3102 = vpop.f32.mrb[0].mxu0
    %v3103 = vadd.f32 %v2910, %v3102
    %v3104 = vpop.f32.mrb[0].mxu0
    %v3105 = vadd.f32 %v2912, %v3104
    %v3106 = vpop.f32.mrb[0].mxu0
    %v3107 = vadd.f32 %v2914, %v3106
    %3108 = vmatprep.mubr.bf16.mxu0 0
    %3109 = vmatmul.mubr.bf16.gmra.mrb[0].mxu0 %v1580
    %v3110 = vpop.f32.mrb[0].mxu0
    %v3111 = vadd.f32 %v2918, %v3110
    %v3112 = vpop.f32.mrb[0].mxu0
    %v3113 = vadd.f32 %v2920, %v3112
    %v3114 = vpop.f32.mrb[0].mxu0
    %v3115 = vadd.f32 %v2922, %v3114
    %v3116 = vpop.f32.mrb[0].mxu0
    %v3117 = vadd.f32 %v2924, %v3116
    %3118 = vmatprep.mubr.bf16.mxu0 0
    %3119 = vmatmul.mubr.bf16.gmra.mrb[0].mxu0 %v1583
    %v3120 = vpop.f32.mrb[0].mxu0
    %v3121 = vadd.f32 %v2928, %v3120
    %v3122 = vpop.f32.mrb[0].mxu0
    %v3123 = vadd.f32 %v2930, %v3122
    %v3124 = vpop.f32.mrb[0].mxu0
    %v3125 = vadd.f32 %v2932, %v3124
    %v3126 = vpop.f32.mrb[0].mxu0
    %v3127 = vadd.f32 %v2934, %v3126
    %3128 = vdwg.mxu0
    %v3129 = vmax.f32 %v1813, 0.0
    %v3130 = vmax.f32 %v1815, 0.0
    %v3131 = vmax.f32 %v2199, 0.0
    %v3132 = vmax.f32 %v2201, 0.0
    %v3133 = vmax.f32 %v2585, 0.0
    %v3134 = vmax.f32 %v2587, 0.0
    %v3135 = vmax.f32 %v2971, 0.0
    %v3136 = vmax.f32 %v2973, 0.0
    %v3137 = vmax.f32 %v1817, 0.0
    %v3138 = vmax.f32 %v1819, 0.0
    %v3139 = vmax.f32 %v2203, 0.0
    %v3140 = vmax.f32 %v2205, 0.0
    %v3141 = vmax.f32 %v2589, 0.0
    %v3142 = vmax.f32 %v2591, 0.0
    %v3143 = vmax.f32 %v2975, 0.0
    %v3144 = vmax.f32 %v2977, 0.0
    %v3145 = vmax.f32 %v1823, 0.0
    %v3146 = vmax.f32 %v1825, 0.0
    %v3147 = vmax.f32 %v2209, 0.0
    %v3148 = vmax.f32 %v2211, 0.0
    %v3149 = vmax.f32 %v2595, 0.0
    %v3150 = vmax.f32 %v2597, 0.0
    %v3151 = vmax.f32 %v2981, 0.0
    %v3152 = vmax.f32 %v2983, 0.0
    %v3153 = vmax.f32 %v1827, 0.0
    %v3154 = vmax.f32 %v1829, 0.0
    %v3155 = vmax.f32 %v2213, 0.0
    %v3156 = vmax.f32 %v2215, 0.0
    %v3157 = vmax.f32 %v2599, 0.0
    %v3158 = vmax.f32 %v2601, 0.0
    %v3159 = vmax.f32 %v2985, 0.0
    %v3160 = vmax.f32 %v2987, 0.0
    %v3161 = vmax.f32 %v1833, 0.0
    %v3162 = vmax.f32 %v1835, 0.0
    %v3163 = vmax.f32 %v2219, 0.0
    %v3164 = vmax.f32 %v2221, 0.0
    %v3165 = vmax.f32 %v2605, 0.0
    %v3166 = vmax.f32 %v2607, 0.0
    %v3167 = vmax.f32 %v2991, 0.0
    %v3168 = vmax.f32 %v2993, 0.0
    %v3169 = vmax.f32 %v1837, 0.0
    %v3170 = vmax.f32 %v1839, 0.0
    %v3171 = vmax.f32 %v2223, 0.0
    %v3172 = vmax.f32 %v2225, 0.0
    %v3173 = vmax.f32 %v2609, 0.0
    %v3174 = vmax.f32 %v2611, 0.0
    %v3175 = vmax.f32 %v2995, 0.0
    %v3176 = vmax.f32 %v2997, 0.0
    %v3177 = vmax.f32 %v1843, 0.0
    %v3178 = vmax.f32 %v1845, 0.0
    %v3179 = vmax.f32 %v2229, 0.0
    %v3180 = vmax.f32 %v2231, 0.0
    %v3181 = vmax.f32 %v2615, 0.0
    %v3182 = vmax.f32 %v2617, 0.0
    %v3183 = vmax.f32 %v3001, 0.0
    %v3184 = vmax.f32 %v3003, 0.0
    %v3185 = vmax.f32 %v1847, 0.0
    %v3186 = vmax.f32 %v1849, 0.0
    %v3187 = vmax.f32 %v2233, 0.0
    %v3188 = vmax.f32 %v2235, 0.0
    %v3189 = vmax.f32 %v2619, 0.0
    %v3190 = vmax.f32 %v2621, 0.0
    %v3191 = vmax.f32 %v3005, 0.0
    %v3192 = vmax.f32 %v3007, 0.0
    %v3193 = vmax.f32 %v1853, 0.0
    %v3194 = vmax.f32 %v1855, 0.0
    %v3195 = vmax.f32 %v2239, 0.0
    %v3196 = vmax.f32 %v2241, 0.0
    %v3197 = vmax.f32 %v2625, 0.0
    %v3198 = vmax.f32 %v2627, 0.0
    %v3199 = vmax.f32 %v3011, 0.0
    %v3200 = vmax.f32 %v3013, 0.0
    %v3201 = vmax.f32 %v1857, 0.0
    %v3202 = vmax.f32 %v1859, 0.0
    %v3203 = vmax.f32 %v2243, 0.0
    %v3204 = vmax.f32 %v2245, 0.0
    %v3205 = vmax.f32 %v2629, 0.0
    %v3206 = vmax.f32 %v2631, 0.0
    %v3207 = vmax.f32 %v3015, 0.0
    %v3208 = vmax.f32 %v3017, 0.0
    %v3209 = vmax.f32 %v1863, 0.0
    %v3210 = vmax.f32 %v1865, 0.0
    %v3211 = vmax.f32 %v2249, 0.0
    %v3212 = vmax.f32 %v2251, 0.0
    %v3213 = vmax.f32 %v2635, 0.0
    %v3214 = vmax.f32 %v2637, 0.0
    %v3215 = vmax.f32 %v3021, 0.0
    %v3216 = vmax.f32 %v3023, 0.0
    %v3217 = vmax.f32 %v1867, 0.0
    %v3218 = vmax.f32 %v1869, 0.0
    %v3219 = vmax.f32 %v2253, 0.0
    %v3220 = vmax.f32 %v2255, 0.0
    %v3221 = vmax.f32 %v2639, 0.0
    %v3222 = vmax.f32 %v2641, 0.0
    %v3223 = vmax.f32 %v3025, 0.0
    %v3224 = vmax.f32 %v3027, 0.0
    %v3225 = vmax.f32 %v1873, 0.0
    %v3226 = vmax.f32 %v1875, 0.0
    %v3227 = vmax.f32 %v2259, 0.0
    %v3228 = vmax.f32 %v2261, 0.0
    %v3229 = vmax.f32 %v2645, 0.0
    %v3230 = vmax.f32 %v2647, 0.0
    %v3231 = vmax.f32 %v3031, 0.0
    %v3232 = vmax.f32 %v3033, 0.0
    %v3233 = vmax.f32 %v1877, 0.0
    %v3234 = vmax.f32 %v1879, 0.0
    %v3235 = vmax.f32 %v2263, 0.0
    %v3236 = vmax.f32 %v2265, 0.0
    %v3237 = vmax.f32 %v2649, 0.0
    %v3238 = vmax.f32 %v2651, 0.0
    %v3239 = vmax.f32 %v3035, 0.0
    %v3240 = vmax.f32 %v3037, 0.0
    %v3241 = vmax.f32 %v1883, 0.0
    %v3242 = vmax.f32 %v1885, 0.0
    %v3243 = vmax.f32 %v2269, 0.0
    %v3244 = vmax.f32 %v2271, 0.0
    %v3245 = vmax.f32 %v2655, 0.0
    %v3246 = vmax.f32 %v2657, 0.0
    %v3247 = vmax.f32 %v3041, 0.0
    %v3248 = vmax.f32 %v3043, 0.0
    %v3249 = vmax.f32 %v1887, 0.0
    %v3250 = vmax.f32 %v1889, 0.0
    %v3251 = vmax.f32 %v2273, 0.0
    %v3252 = vmax.f32 %v2275, 0.0
    %v3253 = vmax.f32 %v2659, 0.0
    %v3254 = vmax.f32 %v2661, 0.0
    %v3255 = vmax.f32 %v3045, 0.0
    %v3256 = vmax.f32 %v3047, 0.0
    %v3257 = vmax.f32 %v1893, 0.0
    %v3258 = vmax.f32 %v1895, 0.0
    %v3259 = vmax.f32 %v2279, 0.0
    %v3260 = vmax.f32 %v2281, 0.0
    %v3261 = vmax.f32 %v2665, 0.0
    %v3262 = vmax.f32 %v2667, 0.0
    %v3263 = vmax.f32 %v3051, 0.0
    %v3264 = vmax.f32 %v3053, 0.0
    %v3265 = vmax.f32 %v1897, 0.0
    %v3266 = vmax.f32 %v1899, 0.0
    %v3267 = vmax.f32 %v2283, 0.0
    %v3268 = vmax.f32 %v2285, 0.0
    %v3269 = vmax.f32 %v2669, 0.0
    %v3270 = vmax.f32 %v2671, 0.0
    %v3271 = vmax.f32 %v3055, 0.0
    %v3272 = vmax.f32 %v3057, 0.0
    %v3273 = vmax.f32 %v1903, 0.0
    %v3274 = vmax.f32 %v1905, 0.0
    %v3275 = vmax.f32 %v2289, 0.0
    %v3276 = vmax.f32 %v2291, 0.0
    %v3277 = vmax.f32 %v2675, 0.0
    %v3278 = vmax.f32 %v2677, 0.0
    %v3279 = vmax.f32 %v3061, 0.0
    %v3280 = vmax.f32 %v3063, 0.0
    %v3281 = vmax.f32 %v1907, 0.0
    %v3282 = vmax.f32 %v1909, 0.0
    %v3283 = vmax.f32 %v2293, 0.0
    %v3284 = vmax.f32 %v2295, 0.0
    %v3285 = vmax.f32 %v2679, 0.0
    %v3286 = vmax.f32 %v2681, 0.0
    %v3287 = vmax.f32 %v3065, 0.0
    %v3288 = vmax.f32 %v3067, 0.0
    %v3289 = vmax.f32 %v1913, 0.0
    %v3290 = vmax.f32 %v1915, 0.0
    %v3291 = vmax.f32 %v2299, 0.0
    %v3292 = vmax.f32 %v2301, 0.0
    %v3293 = vmax.f32 %v2685, 0.0
    %v3294 = vmax.f32 %v2687, 0.0
    %v3295 = vmax.f32 %v3071, 0.0
    %v3296 = vmax.f32 %v3073, 0.0
    %v3297 = vmax.f32 %v1917, 0.0
    %v3298 = vmax.f32 %v1919, 0.0
    %v3299 = vmax.f32 %v2303, 0.0
    %v3300 = vmax.f32 %v2305, 0.0
    %v3301 = vmax.f32 %v2689, 0.0
    %v3302 = vmax.f32 %v2691, 0.0
    %v3303 = vmax.f32 %v3075, 0.0
    %v3304 = vmax.f32 %v3077, 0.0
    %v3305 = vmax.f32 %v1923, 0.0
    %v3306 = vmax.f32 %v1925, 0.0
    %v3307 = vmax.f32 %v2309, 0.0
    %v3308 = vmax.f32 %v2311, 0.0
    %v3309 = vmax.f32 %v2695, 0.0
    %v3310 = vmax.f32 %v2697, 0.0
    %v3311 = vmax.f32 %v3081, 0.0
    %v3312 = vmax.f32 %v3083, 0.0
    %v3313 = vmax.f32 %v1927, 0.0
    %v3314 = vmax.f32 %v1929, 0.0
    %v3315 = vmax.f32 %v2313, 0.0
    %v3316 = vmax.f32 %v2315, 0.0
    %v3317 = vmax.f32 %v2699, 0.0
    %v3318 = vmax.f32 %v2701, 0.0
    %v3319 = vmax.f32 %v3085, 0.0
    %v3320 = vmax.f32 %v3087, 0.0
    %v3321 = vmax.f32 %v1933, 0.0
    %v3322 = vmax.f32 %v1935, 0.0
    %v3323 = vmax.f32 %v2319, 0.0
    %v3324 = vmax.f32 %v2321, 0.0
    %v3325 = vmax.f32 %v2705, 0.0
    %v3326 = vmax.f32 %v2707, 0.0
    %v3327 = vmax.f32 %v3091, 0.0
    %v3328 = vmax.f32 %v3093, 0.0
    %v3329 = vmax.f32 %v1937, 0.0
    %v3330 = vmax.f32 %v1939, 0.0
    %v3331 = vmax.f32 %v2323, 0.0
    %v3332 = vmax.f32 %v2325, 0.0
    %v3333 = vmax.f32 %v2709, 0.0
    %v3334 = vmax.f32 %v2711, 0.0
    %v3335 = vmax.f32 %v3095, 0.0
    %v3336 = vmax.f32 %v3097, 0.0
    %v3337 = vmax.f32 %v1943, 0.0
    %v3338 = vmax.f32 %v1945, 0.0
    %v3339 = vmax.f32 %v2329, 0.0
    %v3340 = vmax.f32 %v2331, 0.0
    %v3341 = vmax.f32 %v2715, 0.0
    %v3342 = vmax.f32 %v2717, 0.0
    %v3343 = vmax.f32 %v3101, 0.0
    %v3344 = vmax.f32 %v3103, 0.0
    %v3345 = vmax.f32 %v1947, 0.0
    %v3346 = vmax.f32 %v1949, 0.0
    %v3347 = vmax.f32 %v2333, 0.0
    %v3348 = vmax.f32 %v2335, 0.0
    %v3349 = vmax.f32 %v2719, 0.0
    %v3350 = vmax.f32 %v2721, 0.0
    %v3351 = vmax.f32 %v3105, 0.0
    %v3352 = vmax.f32 %v3107, 0.0
    %v3353 = vmax.f32 %v1953, 0.0
    %v3354 = vmax.f32 %v1955, 0.0
    %v3355 = vmax.f32 %v2339, 0.0
    %v3356 = vmax.f32 %v2341, 0.0
    %v3357 = vmax.f32 %v2725, 0.0
    %v3358 = vmax.f32 %v2727, 0.0
    %v3359 = vmax.f32 %v3111, 0.0
    %v3360 = vmax.f32 %v3113, 0.0
    %v3361 = vmax.f32 %v1957, 0.0
    %v3362 = vmax.f32 %v1959, 0.0
    %v3363 = vmax.f32 %v2343, 0.0
    %v3364 = vmax.f32 %v2345, 0.0
    %v3365 = vmax.f32 %v2729, 0.0
    %v3366 = vmax.f32 %v2731, 0.0
    %v3367 = vmax.f32 %v3115, 0.0
    %v3368 = vmax.f32 %v3117, 0.0
    %v3369 = vmax.f32 %v1963, 0.0
    %v3370 = vmax.f32 %v1965, 0.0
    %v3371 = vmax.f32 %v2349, 0.0
    %v3372 = vmax.f32 %v2351, 0.0
    %v3373 = vmax.f32 %v2735, 0.0
    %v3374 = vmax.f32 %v2737, 0.0
    %v3375 = vmax.f32 %v3121, 0.0
    %v3376 = vmax.f32 %v3123, 0.0
    %v3377 = vmax.f32 %v1967, 0.0
    %v3378 = vmax.f32 %v1969, 0.0
    %v3379 = vmax.f32 %v2353, 0.0
    %v3380 = vmax.f32 %v2355, 0.0
    %v3381 = vmax.f32 %v2739, 0.0
    %v3382 = vmax.f32 %v2741, 0.0
    %v3383 = vmax.f32 %v3125, 0.0
    %v3384 = vmax.f32 %v3127, 0.0
    %v3385 = vpack.c.bf16 %v3137, %v3129
    %v3386 = vpack.c.bf16 %v3138, %v3130
    %v3387 = vpack.c.bf16 %v3139, %v3131
    %v3388 = vpack.c.bf16 %v3140, %v3132
    %v3389 = vpack.c.bf16 %v3141, %v3133
    %v3390 = vpack.c.bf16 %v3142, %v3134
    %v3391 = vpack.c.bf16 %v3143, %v3135
    %v3392 = vpack.c.bf16 %v3144, %v3136
    %v3393 = vpack.c.bf16 %v3153, %v3145
    %v3394 = vpack.c.bf16 %v3154, %v3146
    %v3395 = vpack.c.bf16 %v3155, %v3147
    %v3396 = vpack.c.bf16 %v3156, %v3148
    %v3397 = vpack.c.bf16 %v3157, %v3149
    %v3398 = vpack.c.bf16 %v3158, %v3150
    %v3399 = vpack.c.bf16 %v3159, %v3151
    %v3400 = vpack.c.bf16 %v3160, %v3152
    %v3401 = vpack.c.bf16 %v3169, %v3161
    %v3402 = vpack.c.bf16 %v3170, %v3162
    %v3403 = vpack.c.bf16 %v3171, %v3163
    %v3404 = vpack.c.bf16 %v3172, %v3164
    %v3405 = vpack.c.bf16 %v3173, %v3165
    %v3406 = vpack.c.bf16 %v3174, %v3166
    %v3407 = vpack.c.bf16 %v3175, %v3167
    %v3408 = vpack.c.bf16 %v3176, %v3168
    %v3409 = vpack.c.bf16 %v3185, %v3177
    %v3410 = vpack.c.bf16 %v3186, %v3178
    %v3411 = vpack.c.bf16 %v3187, %v3179
    %v3412 = vpack.c.bf16 %v3188, %v3180
    %v3413 = vpack.c.bf16 %v3189, %v3181
    %v3414 = vpack.c.bf16 %v3190, %v3182
    %v3415 = vpack.c.bf16 %v3191, %v3183
    %v3416 = vpack.c.bf16 %v3192, %v3184
    %v3417 = vpack.c.bf16 %v3201, %v3193
    %v3418 = vpack.c.bf16 %v3202, %v3194
    %v3419 = vpack.c.bf16 %v3203, %v3195
    %v3420 = vpack.c.bf16 %v3204, %v3196
    %v3421 = vpack.c.bf16 %v3205, %v3197
    %v3422 = vpack.c.bf16 %v3206, %v3198
    %v3423 = vpack.c.bf16 %v3207, %v3199
    %v3424 = vpack.c.bf16 %v3208, %v3200
    %v3425 = vpack.c.bf16 %v3217, %v3209
    %v3426 = vpack.c.bf16 %v3218, %v3210
    %v3427 = vpack.c.bf16 %v3219, %v3211
    %v3428 = vpack.c.bf16 %v3220, %v3212
    %v3429 = vpack.c.bf16 %v3221, %v3213
    %v3430 = vpack.c.bf16 %v3222, %v3214
    %v3431 = vpack.c.bf16 %v3223, %v3215
    %v3432 = vpack.c.bf16 %v3224, %v3216
    %v3433 = vpack.c.bf16 %v3233, %v3225
    %v3434 = vpack.c.bf16 %v3234, %v3226
    %v3435 = vpack.c.bf16 %v3235, %v3227
    %v3436 = vpack.c.bf16 %v3236, %v3228
    %v3437 = vpack.c.bf16 %v3237, %v3229
    %v3438 = vpack.c.bf16 %v3238, %v3230
    %v3439 = vpack.c.bf16 %v3239, %v3231
    %v3440 = vpack.c.bf16 %v3240, %v3232
    %v3441 = vpack.c.bf16 %v3249, %v3241
    %v3442 = vpack.c.bf16 %v3250, %v3242
    %v3443 = vpack.c.bf16 %v3251, %v3243
    %v3444 = vpack.c.bf16 %v3252, %v3244
    %v3445 = vpack.c.bf16 %v3253, %v3245
    %v3446 = vpack.c.bf16 %v3254, %v3246
    %v3447 = vpack.c.bf16 %v3255, %v3247
    %v3448 = vpack.c.bf16 %v3256, %v3248
    %v3449 = vpack.c.bf16 %v3265, %v3257
    %v3450 = vpack.c.bf16 %v3266, %v3258
    %v3451 = vpack.c.bf16 %v3267, %v3259
    %v3452 = vpack.c.bf16 %v3268, %v3260
    %v3453 = vpack.c.bf16 %v3269, %v3261
    %v3454 = vpack.c.bf16 %v3270, %v3262
    %v3455 = vpack.c.bf16 %v3271, %v3263
    %v3456 = vpack.c.bf16 %v3272, %v3264
    %v3457 = vpack.c.bf16 %v3281, %v3273
    %v3458 = vpack.c.bf16 %v3282, %v3274
    %v3459 = vpack.c.bf16 %v3283, %v3275
    %v3460 = vpack.c.bf16 %v3284, %v3276
    %v3461 = vpack.c.bf16 %v3285, %v3277
    %v3462 = vpack.c.bf16 %v3286, %v3278
    %v3463 = vpack.c.bf16 %v3287, %v3279
    %v3464 = vpack.c.bf16 %v3288, %v3280
    %v3465 = vpack.c.bf16 %v3297, %v3289
    %v3466 = vpack.c.bf16 %v3298, %v3290
    %v3467 = vpack.c.bf16 %v3299, %v3291
    %v3468 = vpack.c.bf16 %v3300, %v3292
    %v3469 = vpack.c.bf16 %v3301, %v3293
    %v3470 = vpack.c.bf16 %v3302, %v3294
    %v3471 = vpack.c.bf16 %v3303, %v3295
    %v3472 = vpack.c.bf16 %v3304, %v3296
    %v3473 = vpack.c.bf16 %v3313, %v3305
    %v3474 = vpack.c.bf16 %v3314, %v3306
    %v3475 = vpack.c.bf16 %v3315, %v3307
    %v3476 = vpack.c.bf16 %v3316, %v3308
    %v3477 = vpack.c.bf16 %v3317, %v3309
    %v3478 = vpack.c.bf16 %v3318, %v3310
    %v3479 = vpack.c.bf16 %v3319, %v3311
    %v3480 = vpack.c.bf16 %v3320, %v3312
    %v3481 = vpack.c.bf16 %v3329, %v3321
    %v3482 = vpack.c.bf16 %v3330, %v3322
    %v3483 = vpack.c.bf16 %v3331, %v3323
    %v3484 = vpack.c.bf16 %v3332, %v3324
    %v3485 = vpack.c.bf16 %v3333, %v3325
    %v3486 = vpack.c.bf16 %v3334, %v3326
    %v3487 = vpack.c.bf16 %v3335, %v3327
    %v3488 = vpack.c.bf16 %v3336, %v3328
    %v3489 = vpack.c.bf16 %v3345, %v3337
    %v3490 = vpack.c.bf16 %v3346, %v3338
    %v3491 = vpack.c.bf16 %v3347, %v3339
    %v3492 = vpack.c.bf16 %v3348, %v3340
    %v3493 = vpack.c.bf16 %v3349, %v3341
    %v3494 = vpack.c.bf16 %v3350, %v3342
    %v3495 = vpack.c.bf16 %v3351, %v3343
    %v3496 = vpack.c.bf16 %v3352, %v3344
    %v3497 = vpack.c.bf16 %v3361, %v3353
    %v3498 = vpack.c.bf16 %v3362, %v3354
    %v3499 = vpack.c.bf16 %v3363, %v3355
    %v3500 = vpack.c.bf16 %v3364, %v3356
    %v3501 = vpack.c.bf16 %v3365, %v3357
    %v3502 = vpack.c.bf16 %v3366, %v3358
    %v3503 = vpack.c.bf16 %v3367, %v3359
    %v3504 = vpack.c.bf16 %v3368, %v3360
    %v3505 = vpack.c.bf16 %v3377, %v3369
    %v3506 = vpack.c.bf16 %v3378, %v3370
    %v3507 = vpack.c.bf16 %v3379, %v3371
    %v3508 = vpack.c.bf16 %v3380, %v3372
    %v3509 = vpack.c.bf16 %v3381, %v3373
    %v3510 = vpack.c.bf16 %v3382, %v3374
    %v3511 = vpack.c.bf16 %v3383, %v3375
    %v3512 = vpack.c.bf16 %v3384, %v3376
    %v3513 = vld [vmem:[#allocation6] sm:$0xff]
    %v3514 = vld [vmem:[#allocation6 + $0x8] sm:$0xff]
    %v3515 = vld [vmem:[#allocation6 + $0x10] sm:$0xff]
    %v3516 = vld [vmem:[#allocation6 + $0x18] sm:$0xff]
    %v3517 = vld [vmem:[#allocation6 + $0x20] sm:$0xff]
    %v3518 = vld [vmem:[#allocation6 + $0x28] sm:$0xff]
    %v3519 = vld [vmem:[#allocation6 + $0x30] sm:$0xff]
    %v3520 = vld [vmem:[#allocation6 + $0x38] sm:$0xff]
    %v3521 = vld [vmem:[#allocation6 + $0x40] sm:$0xff]
    %v3522 = vld [vmem:[#allocation6 + $0x48] sm:$0xff]
    %v3523 = vld [vmem:[#allocation6 + $0x50] sm:$0xff]
    %v3524 = vld [vmem:[#allocation6 + $0x58] sm:$0xff]
    %v3525 = vld [vmem:[#allocation6 + $0x60] sm:$0xff]
    %v3526 = vld [vmem:[#allocation6 + $0x68] sm:$0xff]
    %v3527 = vld [vmem:[#allocation6 + $0x70] sm:$0xff]
    %v3528 = vld [vmem:[#allocation6 + $0x78] sm:$0xff]
    %v3529 = vld [vmem:[#allocation6 + $0x80] sm:$0xff]
    %v3530 = vld [vmem:[#allocation6 + $0x88] sm:$0xff]
    %v3531 = vld [vmem:[#allocation6 + $0x90] sm:$0xff]
    %v3532 = vld [vmem:[#allocation6 + $0x98] sm:$0xff]
    %v3533 = vld [vmem:[#allocation6 + $0xa0] sm:$0xff]
    %v3534 = vld [vmem:[#allocation6 + $0xa8] sm:$0xff]
    %v3535 = vld [vmem:[#allocation6 + $0xb0] sm:$0xff]
    %v3536 = vld [vmem:[#allocation6 + $0xb8] sm:$0xff]
    %v3537 = vld [vmem:[#allocation6 + $0xc0] sm:$0xff]
    %v3538 = vld [vmem:[#allocation6 + $0xc8] sm:$0xff]
    %v3539 = vld [vmem:[#allocation6 + $0xd0] sm:$0xff]
    %v3540 = vld [vmem:[#allocation6 + $0xd8] sm:$0xff]
    %v3541 = vld [vmem:[#allocation6 + $0xe0] sm:$0xff]
    %v3542 = vld [vmem:[#allocation6 + $0xe8] sm:$0xff]
    %v3543 = vld [vmem:[#allocation6 + $0xf0] sm:$0xff]
    %v3544 = vld [vmem:[#allocation6 + $0xf8] sm:$0xff]
    %v3545 = vld [vmem:[#allocation6 + $0x100] sm:$0xff]
    %v3546 = vld [vmem:[#allocation6 + $0x108] sm:$0xff]
    %v3547 = vld [vmem:[#allocation6 + $0x110] sm:$0xff]
    %v3548 = vld [vmem:[#allocation6 + $0x118] sm:$0xff]
    %v3549 = vld [vmem:[#allocation6 + $0x120] sm:$0xff]
    %v3550 = vld [vmem:[#allocation6 + $0x128] sm:$0xff]
    %v3551 = vld [vmem:[#allocation6 + $0x130] sm:$0xff]
    %v3552 = vld [vmem:[#allocation6 + $0x138] sm:$0xff]
    %v3553 = vld [vmem:[#allocation6 + $0x140] sm:$0xff]
    %v3554 = vld [vmem:[#allocation6 + $0x148] sm:$0xff]
    %v3555 = vld [vmem:[#allocation6 + $0x150] sm:$0xff]
    %v3556 = vld [vmem:[#allocation6 + $0x158] sm:$0xff]
    %v3557 = vld [vmem:[#allocation6 + $0x160] sm:$0xff]
    %v3558 = vld [vmem:[#allocation6 + $0x168] sm:$0xff]
    %v3559 = vld [vmem:[#allocation6 + $0x170] sm:$0xff]
    %v3560 = vld [vmem:[#allocation6 + $0x178] sm:$0xff]
    %v3561 = vld [vmem:[#allocation6 + $0x180] sm:$0xff]
    %v3562 = vld [vmem:[#allocation6 + $0x188] sm:$0xff]
    %v3563 = vld [vmem:[#allocation6 + $0x190] sm:$0xff]
    %v3564 = vld [vmem:[#allocation6 + $0x198] sm:$0xff]
    %v3565 = vld [vmem:[#allocation6 + $0x1a0] sm:$0xff]
    %v3566 = vld [vmem:[#allocation6 + $0x1a8] sm:$0xff]
    %v3567 = vld [vmem:[#allocation6 + $0x1b0] sm:$0xff]
    %v3568 = vld [vmem:[#allocation6 + $0x1b8] sm:$0xff]
    %v3569 = vld [vmem:[#allocation6 + $0x1c0] sm:$0xff]
    %v3570 = vld [vmem:[#allocation6 + $0x1c8] sm:$0xff]
    %v3571 = vld [vmem:[#allocation6 + $0x1d0] sm:$0xff]
    %v3572 = vld [vmem:[#allocation6 + $0x1d8] sm:$0xff]
    %v3573 = vld [vmem:[#allocation6 + $0x1e0] sm:$0xff]
    %v3574 = vld [vmem:[#allocation6 + $0x1e8] sm:$0xff]
    %v3575 = vld [vmem:[#allocation6 + $0x1f0] sm:$0xff]
    %v3576 = vld [vmem:[#allocation6 + $0x1f8] sm:$0xff]
    %v3577 = vld [vmem:[#allocation6 + $0x200] sm:$0xff]
    %v3578 = vld [vmem:[#allocation6 + $0x208] sm:$0xff]
    %v3579 = vld [vmem:[#allocation6 + $0x210] sm:$0xff]
    %v3580 = vld [vmem:[#allocation6 + $0x218] sm:$0xff]
    %v3581 = vld [vmem:[#allocation6 + $0x220] sm:$0xff]
    %v3582 = vld [vmem:[#allocation6 + $0x228] sm:$0xff]
    %v3583 = vld [vmem:[#allocation6 + $0x230] sm:$0xff]
    %v3584 = vld [vmem:[#allocation6 + $0x238] sm:$0xff]
    %v3585 = vld [vmem:[#allocation6 + $0x240] sm:$0xff]
    %v3586 = vld [vmem:[#allocation6 + $0x248] sm:$0xff]
    %v3587 = vld [vmem:[#allocation6 + $0x250] sm:$0xff]
    %v3588 = vld [vmem:[#allocation6 + $0x258] sm:$0xff]
    %v3589 = vld [vmem:[#allocation6 + $0x260] sm:$0xff]
    %v3590 = vld [vmem:[#allocation6 + $0x268] sm:$0xff]
    %v3591 = vld [vmem:[#allocation6 + $0x270] sm:$0xff]
    %v3592 = vld [vmem:[#allocation6 + $0x278] sm:$0xff]
    %v3593 = vld [vmem:[#allocation6 + $0x280] sm:$0xff]
    %v3594 = vld [vmem:[#allocation6 + $0x288] sm:$0xff]
    %v3595 = vld [vmem:[#allocation6 + $0x290] sm:$0xff]
    %v3596 = vld [vmem:[#allocation6 + $0x298] sm:$0xff]
    %v3597 = vld [vmem:[#allocation6 + $0x2a0] sm:$0xff]
    %v3598 = vld [vmem:[#allocation6 + $0x2a8] sm:$0xff]
    %v3599 = vld [vmem:[#allocation6 + $0x2b0] sm:$0xff]
    %v3600 = vld [vmem:[#allocation6 + $0x2b8] sm:$0xff]
    %v3601 = vld [vmem:[#allocation6 + $0x2c0] sm:$0xff]
    %v3602 = vld [vmem:[#allocation6 + $0x2c8] sm:$0xff]
    %v3603 = vld [vmem:[#allocation6 + $0x2d0] sm:$0xff]
    %v3604 = vld [vmem:[#allocation6 + $0x2d8] sm:$0xff]
    %v3605 = vld [vmem:[#allocation6 + $0x2e0] sm:$0xff]
    %v3606 = vld [vmem:[#allocation6 + $0x2e8] sm:$0xff]
    %v3607 = vld [vmem:[#allocation6 + $0x2f0] sm:$0xff]
    %v3608 = vld [vmem:[#allocation6 + $0x2f8] sm:$0xff]
    %v3609 = vld [vmem:[#allocation6 + $0x300] sm:$0xff]
    %v3610 = vld [vmem:[#allocation6 + $0x308] sm:$0xff]
    %v3611 = vld [vmem:[#allocation6 + $0x310] sm:$0xff]
    %v3612 = vld [vmem:[#allocation6 + $0x318] sm:$0xff]
    %v3613 = vld [vmem:[#allocation6 + $0x320] sm:$0xff]
    %v3614 = vld [vmem:[#allocation6 + $0x328] sm:$0xff]
    %v3615 = vld [vmem:[#allocation6 + $0x330] sm:$0xff]
    %v3616 = vld [vmem:[#allocation6 + $0x338] sm:$0xff]
    %v3617 = vld [vmem:[#allocation6 + $0x340] sm:$0xff]
    %v3618 = vld [vmem:[#allocation6 + $0x348] sm:$0xff]
    %v3619 = vld [vmem:[#allocation6 + $0x350] sm:$0xff]
    %v3620 = vld [vmem:[#allocation6 + $0x358] sm:$0xff]
    %v3621 = vld [vmem:[#allocation6 + $0x360] sm:$0xff]
    %v3622 = vld [vmem:[#allocation6 + $0x368] sm:$0xff]
    %v3623 = vld [vmem:[#allocation6 + $0x370] sm:$0xff]
    %v3624 = vld [vmem:[#allocation6 + $0x378] sm:$0xff]
    %v3625 = vld [vmem:[#allocation6 + $0x380] sm:$0xff]
    %v3626 = vld [vmem:[#allocation6 + $0x388] sm:$0xff]
    %v3627 = vld [vmem:[#allocation6 + $0x390] sm:$0xff]
    %v3628 = vld [vmem:[#allocation6 + $0x398] sm:$0xff]
    %v3629 = vld [vmem:[#allocation6 + $0x3a0] sm:$0xff]
    %v3630 = vld [vmem:[#allocation6 + $0x3a8] sm:$0xff]
    %v3631 = vld [vmem:[#allocation6 + $0x3b0] sm:$0xff]
    %v3632 = vld [vmem:[#allocation6 + $0x3b8] sm:$0xff]
    %v3633 = vld [vmem:[#allocation6 + $0x3c0] sm:$0xff]
    %v3634 = vld [vmem:[#allocation6 + $0x3c8] sm:$0xff]
    %v3635 = vld [vmem:[#allocation6 + $0x3d0] sm:$0xff]
    %v3636 = vld [vmem:[#allocation6 + $0x3d8] sm:$0xff]
    %v3637 = vld [vmem:[#allocation6 + $0x3e0] sm:$0xff]
    %v3638 = vld [vmem:[#allocation6 + $0x3e8] sm:$0xff]
    %v3639 = vld [vmem:[#allocation6 + $0x3f0] sm:$0xff]
    %v3640 = vld [vmem:[#allocation6 + $0x3f8] sm:$0xff]
    %v3641 = vld [vmem:[#allocation6 + $0x400] sm:$0xff]
    %v3642 = vld [vmem:[#allocation6 + $0x408] sm:$0xff]
    %v3643 = vld [vmem:[#allocation6 + $0x410] sm:$0xff]
    %v3644 = vld [vmem:[#allocation6 + $0x418] sm:$0xff]
    %v3645 = vld [vmem:[#allocation6 + $0x420] sm:$0xff]
    %v3646 = vld [vmem:[#allocation6 + $0x428] sm:$0xff]
    %v3647 = vld [vmem:[#allocation6 + $0x430] sm:$0xff]
    %v3648 = vld [vmem:[#allocation6 + $0x438] sm:$0xff]
    %v3649 = vld [vmem:[#allocation6 + $0x440] sm:$0xff]
    %v3650 = vld [vmem:[#allocation6 + $0x448] sm:$0xff]
    %v3651 = vld [vmem:[#allocation6 + $0x450] sm:$0xff]
    %v3652 = vld [vmem:[#allocation6 + $0x458] sm:$0xff]
    %v3653 = vld [vmem:[#allocation6 + $0x460] sm:$0xff]
    %v3654 = vld [vmem:[#allocation6 + $0x468] sm:$0xff]
    %v3655 = vld [vmem:[#allocation6 + $0x470] sm:$0xff]
    %v3656 = vld [vmem:[#allocation6 + $0x478] sm:$0xff]
    %v3657 = vld [vmem:[#allocation6 + $0x480] sm:$0xff]
    %v3658 = vld [vmem:[#allocation6 + $0x488] sm:$0xff]
    %v3659 = vld [vmem:[#allocation6 + $0x490] sm:$0xff]
    %v3660 = vld [vmem:[#allocation6 + $0x498] sm:$0xff]
    %v3661 = vld [vmem:[#allocation6 + $0x4a0] sm:$0xff]
    %v3662 = vld [vmem:[#allocation6 + $0x4a8] sm:$0xff]
    %v3663 = vld [vmem:[#allocation6 + $0x4b0] sm:$0xff]
    %v3664 = vld [vmem:[#allocation6 + $0x4b8] sm:$0xff]
    %v3665 = vld [vmem:[#allocation6 + $0x4c0] sm:$0xff]
    %v3666 = vld [vmem:[#allocation6 + $0x4c8] sm:$0xff]
    %v3667 = vld [vmem:[#allocation6 + $0x4d0] sm:$0xff]
    %v3668 = vld [vmem:[#allocation6 + $0x4d8] sm:$0xff]
    %v3669 = vld [vmem:[#allocation6 + $0x4e0] sm:$0xff]
    %v3670 = vld [vmem:[#allocation6 + $0x4e8] sm:$0xff]
    %v3671 = vld [vmem:[#allocation6 + $0x4f0] sm:$0xff]
    %v3672 = vld [vmem:[#allocation6 + $0x4f8] sm:$0xff]
    %v3673 = vld [vmem:[#allocation6 + $0x500] sm:$0xff]
    %v3674 = vld [vmem:[#allocation6 + $0x508] sm:$0xff]
    %v3675 = vld [vmem:[#allocation6 + $0x510] sm:$0xff]
    %v3676 = vld [vmem:[#allocation6 + $0x518] sm:$0xff]
    %v3677 = vld [vmem:[#allocation6 + $0x520] sm:$0xff]
    %v3678 = vld [vmem:[#allocation6 + $0x528] sm:$0xff]
    %v3679 = vld [vmem:[#allocation6 + $0x530] sm:$0xff]
    %v3680 = vld [vmem:[#allocation6 + $0x538] sm:$0xff]
    %v3681 = vld [vmem:[#allocation6 + $0x540] sm:$0xff]
    %v3682 = vld [vmem:[#allocation6 + $0x548] sm:$0xff]
    %v3683 = vld [vmem:[#allocation6 + $0x550] sm:$0xff]
    %v3684 = vld [vmem:[#allocation6 + $0x558] sm:$0xff]
    %v3685 = vld [vmem:[#allocation6 + $0x560] sm:$0xff]
    %v3686 = vld [vmem:[#allocation6 + $0x568] sm:$0xff]
    %v3687 = vld [vmem:[#allocation6 + $0x570] sm:$0xff]
    %v3688 = vld [vmem:[#allocation6 + $0x578] sm:$0xff]
    %v3689 = vld [vmem:[#allocation6 + $0x580] sm:$0xff]
    %v3690 = vld [vmem:[#allocation6 + $0x588] sm:$0xff]
    %v3691 = vld [vmem:[#allocation6 + $0x590] sm:$0xff]
    %v3692 = vld [vmem:[#allocation6 + $0x598] sm:$0xff]
    %v3693 = vld [vmem:[#allocation6 + $0x5a0] sm:$0xff]
    %v3694 = vld [vmem:[#allocation6 + $0x5a8] sm:$0xff]
    %v3695 = vld [vmem:[#allocation6 + $0x5b0] sm:$0xff]
    %v3696 = vld [vmem:[#allocation6 + $0x5b8] sm:$0xff]
    %v3697 = vld [vmem:[#allocation6 + $0x5c0] sm:$0xff]
    %v3698 = vld [vmem:[#allocation6 + $0x5c8] sm:$0xff]
    %v3699 = vld [vmem:[#allocation6 + $0x5d0] sm:$0xff]
    %v3700 = vld [vmem:[#allocation6 + $0x5d8] sm:$0xff]
    %v3701 = vld [vmem:[#allocation6 + $0x5e0] sm:$0xff]
    %v3702 = vld [vmem:[#allocation6 + $0x5e8] sm:$0xff]
    %v3703 = vld [vmem:[#allocation6 + $0x5f0] sm:$0xff]
    %v3704 = vld [vmem:[#allocation6 + $0x5f8] sm:$0xff]
    %v3705 = vld [vmem:[#allocation6 + $0x600] sm:$0xff]
    %v3706 = vld [vmem:[#allocation6 + $0x608] sm:$0xff]
    %v3707 = vld [vmem:[#allocation6 + $0x610] sm:$0xff]
    %v3708 = vld [vmem:[#allocation6 + $0x618] sm:$0xff]
    %v3709 = vld [vmem:[#allocation6 + $0x620] sm:$0xff]
    %v3710 = vld [vmem:[#allocation6 + $0x628] sm:$0xff]
    %v3711 = vld [vmem:[#allocation6 + $0x630] sm:$0xff]
    %v3712 = vld [vmem:[#allocation6 + $0x638] sm:$0xff]
    %v3713 = vld [vmem:[#allocation6 + $0x640] sm:$0xff]
    %v3714 = vld [vmem:[#allocation6 + $0x648] sm:$0xff]
    %v3715 = vld [vmem:[#allocation6 + $0x650] sm:$0xff]
    %v3716 = vld [vmem:[#allocation6 + $0x658] sm:$0xff]
    %v3717 = vld [vmem:[#allocation6 + $0x660] sm:$0xff]
    %v3718 = vld [vmem:[#allocation6 + $0x668] sm:$0xff]
    %v3719 = vld [vmem:[#allocation6 + $0x670] sm:$0xff]
    %v3720 = vld [vmem:[#allocation6 + $0x678] sm:$0xff]
    %v3721 = vld [vmem:[#allocation6 + $0x680] sm:$0xff]
    %v3722 = vld [vmem:[#allocation6 + $0x688] sm:$0xff]
    %v3723 = vld [vmem:[#allocation6 + $0x690] sm:$0xff]
    %v3724 = vld [vmem:[#allocation6 + $0x698] sm:$0xff]
    %v3725 = vld [vmem:[#allocation6 + $0x6a0] sm:$0xff]
    %v3726 = vld [vmem:[#allocation6 + $0x6a8] sm:$0xff]
    %v3727 = vld [vmem:[#allocation6 + $0x6b0] sm:$0xff]
    %v3728 = vld [vmem:[#allocation6 + $0x6b8] sm:$0xff]
    %v3729 = vld [vmem:[#allocation6 + $0x6c0] sm:$0xff]
    %v3730 = vld [vmem:[#allocation6 + $0x6c8] sm:$0xff]
    %v3731 = vld [vmem:[#allocation6 + $0x6d0] sm:$0xff]
    %v3732 = vld [vmem:[#allocation6 + $0x6d8] sm:$0xff]
    %v3733 = vld [vmem:[#allocation6 + $0x6e0] sm:$0xff]
    %v3734 = vld [vmem:[#allocation6 + $0x6e8] sm:$0xff]
    %v3735 = vld [vmem:[#allocation6 + $0x6f0] sm:$0xff]
    %v3736 = vld [vmem:[#allocation6 + $0x6f8] sm:$0xff]
    %v3737 = vld [vmem:[#allocation6 + $0x700] sm:$0xff]
    %v3738 = vld [vmem:[#allocation6 + $0x708] sm:$0xff]
    %v3739 = vld [vmem:[#allocation6 + $0x710] sm:$0xff]
    %v3740 = vld [vmem:[#allocation6 + $0x718] sm:$0xff]
    %v3741 = vld [vmem:[#allocation6 + $0x720] sm:$0xff]
    %v3742 = vld [vmem:[#allocation6 + $0x728] sm:$0xff]
    %v3743 = vld [vmem:[#allocation6 + $0x730] sm:$0xff]
    %v3744 = vld [vmem:[#allocation6 + $0x738] sm:$0xff]
    %v3745 = vld [vmem:[#allocation6 + $0x740] sm:$0xff]
    %v3746 = vld [vmem:[#allocation6 + $0x748] sm:$0xff]
    %v3747 = vld [vmem:[#allocation6 + $0x750] sm:$0xff]
    %v3748 = vld [vmem:[#allocation6 + $0x758] sm:$0xff]
    %v3749 = vld [vmem:[#allocation6 + $0x760] sm:$0xff]
    %v3750 = vld [vmem:[#allocation6 + $0x768] sm:$0xff]
    %v3751 = vld [vmem:[#allocation6 + $0x770] sm:$0xff]
    %v3752 = vld [vmem:[#allocation6 + $0x778] sm:$0xff]
    %v3753 = vld [vmem:[#allocation6 + $0x780] sm:$0xff]
    %v3754 = vld [vmem:[#allocation6 + $0x788] sm:$0xff]
    %v3755 = vld [vmem:[#allocation6 + $0x790] sm:$0xff]
    %v3756 = vld [vmem:[#allocation6 + $0x798] sm:$0xff]
    %v3757 = vld [vmem:[#allocation6 + $0x7a0] sm:$0xff]
    %v3758 = vld [vmem:[#allocation6 + $0x7a8] sm:$0xff]
    %v3759 = vld [vmem:[#allocation6 + $0x7b0] sm:$0xff]
    %v3760 = vld [vmem:[#allocation6 + $0x7b8] sm:$0xff]
    %v3761 = vld [vmem:[#allocation6 + $0x7c0] sm:$0xff]
    %v3762 = vld [vmem:[#allocation6 + $0x7c8] sm:$0xff]
    %v3763 = vld [vmem:[#allocation6 + $0x7d0] sm:$0xff]
    %v3764 = vld [vmem:[#allocation6 + $0x7d8] sm:$0xff]
    %v3765 = vld [vmem:[#allocation6 + $0x7e0] sm:$0xff]
    %v3766 = vld [vmem:[#allocation6 + $0x7e8] sm:$0xff]
    %v3767 = vld [vmem:[#allocation6 + $0x7f0] sm:$0xff]
    %v3768 = vld [vmem:[#allocation6 + $0x7f8] sm:$0xff]
    %v3769 = vld [vmem:[#allocation6 + $0x800] sm:$0xff]
    %v3770 = vld [vmem:[#allocation6 + $0x808] sm:$0xff]
    %v3771 = vld [vmem:[#allocation6 + $0x810] sm:$0xff]
    %v3772 = vld [vmem:[#allocation6 + $0x818] sm:$0xff]
    %v3773 = vld [vmem:[#allocation6 + $0x820] sm:$0xff]
    %v3774 = vld [vmem:[#allocation6 + $0x828] sm:$0xff]
    %v3775 = vld [vmem:[#allocation6 + $0x830] sm:$0xff]
    %v3776 = vld [vmem:[#allocation6 + $0x838] sm:$0xff]
    %v3777 = vld [vmem:[#allocation6 + $0x840] sm:$0xff]
    %v3778 = vld [vmem:[#allocation6 + $0x848] sm:$0xff]
    %v3779 = vld [vmem:[#allocation6 + $0x850] sm:$0xff]
    %v3780 = vld [vmem:[#allocation6 + $0x858] sm:$0xff]
    %v3781 = vld [vmem:[#allocation6 + $0x860] sm:$0xff]
    %v3782 = vld [vmem:[#allocation6 + $0x868] sm:$0xff]
    %v3783 = vld [vmem:[#allocation6 + $0x870] sm:$0xff]
    %v3784 = vld [vmem:[#allocation6 + $0x878] sm:$0xff]
    %v3785 = vld [vmem:[#allocation6 + $0x880] sm:$0xff]
    %v3786 = vld [vmem:[#allocation6 + $0x888] sm:$0xff]
    %v3787 = vld [vmem:[#allocation6 + $0x890] sm:$0xff]
    %v3788 = vld [vmem:[#allocation6 + $0x898] sm:$0xff]
    %v3789 = vld [vmem:[#allocation6 + $0x8a0] sm:$0xff]
    %v3790 = vld [vmem:[#allocation6 + $0x8a8] sm:$0xff]
    %v3791 = vld [vmem:[#allocation6 + $0x8b0] sm:$0xff]
    %v3792 = vld [vmem:[#allocation6 + $0x8b8] sm:$0xff]
    %v3793 = vld [vmem:[#allocation6 + $0x8c0] sm:$0xff]
    %v3794 = vld [vmem:[#allocation6 + $0x8c8] sm:$0xff]
    %v3795 = vld [vmem:[#allocation6 + $0x8d0] sm:$0xff]
    %v3796 = vld [vmem:[#allocation6 + $0x8d8] sm:$0xff]
    %v3797 = vld [vmem:[#allocation6 + $0x8e0] sm:$0xff]
    %v3798 = vld [vmem:[#allocation6 + $0x8e8] sm:$0xff]
    %v3799 = vld [vmem:[#allocation6 + $0x8f0] sm:$0xff]
    %v3800 = vld [vmem:[#allocation6 + $0x8f8] sm:$0xff]
    %v3801 = vld [vmem:[#allocation6 + $0x900] sm:$0xff]
    %v3802 = vld [vmem:[#allocation6 + $0x908] sm:$0xff]
    %v3803 = vld [vmem:[#allocation6 + $0x910] sm:$0xff]
    %v3804 = vld [vmem:[#allocation6 + $0x918] sm:$0xff]
    %v3805 = vld [vmem:[#allocation6 + $0x920] sm:$0xff]
    %v3806 = vld [vmem:[#allocation6 + $0x928] sm:$0xff]
    %v3807 = vld [vmem:[#allocation6 + $0x930] sm:$0xff]
    %v3808 = vld [vmem:[#allocation6 + $0x938] sm:$0xff]
    %v3809 = vld [vmem:[#allocation6 + $0x940] sm:$0xff]
    %v3810 = vld [vmem:[#allocation6 + $0x948] sm:$0xff]
    %v3811 = vld [vmem:[#allocation6 + $0x950] sm:$0xff]
    %v3812 = vld [vmem:[#allocation6 + $0x958] sm:$0xff]
    %v3813 = vld [vmem:[#allocation6 + $0x960] sm:$0xff]
    %v3814 = vld [vmem:[#allocation6 + $0x968] sm:$0xff]
    %v3815 = vld [vmem:[#allocation6 + $0x970] sm:$0xff]
    %v3816 = vld [vmem:[#allocation6 + $0x978] sm:$0xff]
    %v3817 = vld [vmem:[#allocation6 + $0x980] sm:$0xff]
    %v3818 = vld [vmem:[#allocation6 + $0x988] sm:$0xff]
    %v3819 = vld [vmem:[#allocation6 + $0x990] sm:$0xff]
    %v3820 = vld [vmem:[#allocation6 + $0x998] sm:$0xff]
    %v3821 = vld [vmem:[#allocation6 + $0x9a0] sm:$0xff]
    %v3822 = vld [vmem:[#allocation6 + $0x9a8] sm:$0xff]
    %v3823 = vld [vmem:[#allocation6 + $0x9b0] sm:$0xff]
    %v3824 = vld [vmem:[#allocation6 + $0x9b8] sm:$0xff]
    %v3825 = vld [vmem:[#allocation6 + $0x9c0] sm:$0xff]
    %v3826 = vld [vmem:[#allocation6 + $0x9c8] sm:$0xff]
    %v3827 = vld [vmem:[#allocation6 + $0x9d0] sm:$0xff]
    %v3828 = vld [vmem:[#allocation6 + $0x9d8] sm:$0xff]
    %v3829 = vld [vmem:[#allocation6 + $0x9e0] sm:$0xff]
    %v3830 = vld [vmem:[#allocation6 + $0x9e8] sm:$0xff]
    %v3831 = vld [vmem:[#allocation6 + $0x9f0] sm:$0xff]
    %v3832 = vld [vmem:[#allocation6 + $0x9f8] sm:$0xff]
    %v3833 = vld [vmem:[#allocation6 + $0xa00] sm:$0xff]
    %v3834 = vld [vmem:[#allocation6 + $0xa08] sm:$0xff]
    %v3835 = vld [vmem:[#allocation6 + $0xa10] sm:$0xff]
    %v3836 = vld [vmem:[#allocation6 + $0xa18] sm:$0xff]
    %v3837 = vld [vmem:[#allocation6 + $0xa20] sm:$0xff]
    %v3838 = vld [vmem:[#allocation6 + $0xa28] sm:$0xff]
    %v3839 = vld [vmem:[#allocation6 + $0xa30] sm:$0xff]
    %v3840 = vld [vmem:[#allocation6 + $0xa38] sm:$0xff]
    %v3841 = vld [vmem:[#allocation6 + $0xa40] sm:$0xff]
    %v3842 = vld [vmem:[#allocation6 + $0xa48] sm:$0xff]
    %v3843 = vld [vmem:[#allocation6 + $0xa50] sm:$0xff]
    %v3844 = vld [vmem:[#allocation6 + $0xa58] sm:$0xff]
    %v3845 = vld [vmem:[#allocation6 + $0xa60] sm:$0xff]
    %v3846 = vld [vmem:[#allocation6 + $0xa68] sm:$0xff]
    %v3847 = vld [vmem:[#allocation6 + $0xa70] sm:$0xff]
    %v3848 = vld [vmem:[#allocation6 + $0xa78] sm:$0xff]
    %v3849 = vld [vmem:[#allocation6 + $0xa80] sm:$0xff]
    %v3850 = vld [vmem:[#allocation6 + $0xa88] sm:$0xff]
    %v3851 = vld [vmem:[#allocation6 + $0xa90] sm:$0xff]
    %v3852 = vld [vmem:[#allocation6 + $0xa98] sm:$0xff]
    %v3853 = vld [vmem:[#allocation6 + $0xaa0] sm:$0xff]
    %v3854 = vld [vmem:[#allocation6 + $0xaa8] sm:$0xff]
    %v3855 = vld [vmem:[#allocation6 + $0xab0] sm:$0xff]
    %v3856 = vld [vmem:[#allocation6 + $0xab8] sm:$0xff]
    %v3857 = vld [vmem:[#allocation6 + $0xac0] sm:$0xff]
    %v3858 = vld [vmem:[#allocation6 + $0xac8] sm:$0xff]
    %v3859 = vld [vmem:[#allocation6 + $0xad0] sm:$0xff]
    %v3860 = vld [vmem:[#allocation6 + $0xad8] sm:$0xff]
    %v3861 = vld [vmem:[#allocation6 + $0xae0] sm:$0xff]
    %v3862 = vld [vmem:[#allocation6 + $0xae8] sm:$0xff]
    %v3863 = vld [vmem:[#allocation6 + $0xaf0] sm:$0xff]
    %v3864 = vld [vmem:[#allocation6 + $0xaf8] sm:$0xff]
    %v3865 = vld [vmem:[#allocation6 + $0xb00] sm:$0xff]
    %v3866 = vld [vmem:[#allocation6 + $0xb08] sm:$0xff]
    %v3867 = vld [vmem:[#allocation6 + $0xb10] sm:$0xff]
    %v3868 = vld [vmem:[#allocation6 + $0xb18] sm:$0xff]
    %v3869 = vld [vmem:[#allocation6 + $0xb20] sm:$0xff]
    %v3870 = vld [vmem:[#allocation6 + $0xb28] sm:$0xff]
    %v3871 = vld [vmem:[#allocation6 + $0xb30] sm:$0xff]
    %v3872 = vld [vmem:[#allocation6 + $0xb38] sm:$0xff]
    %v3873 = vld [vmem:[#allocation6 + $0xb40] sm:$0xff]
    %v3874 = vld [vmem:[#allocation6 + $0xb48] sm:$0xff]
    %v3875 = vld [vmem:[#allocation6 + $0xb50] sm:$0xff]
    %v3876 = vld [vmem:[#allocation6 + $0xb58] sm:$0xff]
    %v3877 = vld [vmem:[#allocation6 + $0xb60] sm:$0xff]
    %v3878 = vld [vmem:[#allocation6 + $0xb68] sm:$0xff]
    %v3879 = vld [vmem:[#allocation6 + $0xb70] sm:$0xff]
    %v3880 = vld [vmem:[#allocation6 + $0xb78] sm:$0xff]
    %v3881 = vld [vmem:[#allocation6 + $0xb80] sm:$0xff]
    %v3882 = vld [vmem:[#allocation6 + $0xb88] sm:$0xff]
    %v3883 = vld [vmem:[#allocation6 + $0xb90] sm:$0xff]
    %v3884 = vld [vmem:[#allocation6 + $0xb98] sm:$0xff]
    %v3885 = vld [vmem:[#allocation6 + $0xba0] sm:$0xff]
    %v3886 = vld [vmem:[#allocation6 + $0xba8] sm:$0xff]
    %v3887 = vld [vmem:[#allocation6 + $0xbb0] sm:$0xff]
    %v3888 = vld [vmem:[#allocation6 + $0xbb8] sm:$0xff]
    %v3889 = vld [vmem:[#allocation6 + $0xbc0] sm:$0xff]
    %v3890 = vld [vmem:[#allocation6 + $0xbc8] sm:$0xff]
    %v3891 = vld [vmem:[#allocation6 + $0xbd0] sm:$0xff]
    %v3892 = vld [vmem:[#allocation6 + $0xbd8] sm:$0xff]
    %v3893 = vld [vmem:[#allocation6 + $0xbe0] sm:$0xff]
    %v3894 = vld [vmem:[#allocation6 + $0xbe8] sm:$0xff]
    %v3895 = vld [vmem:[#allocation6 + $0xbf0] sm:$0xff]
    %v3896 = vld [vmem:[#allocation6 + $0xbf8] sm:$0xff]
    %v3897 = vld [vmem:[#allocation6 + $0xc00] sm:$0xff]
    %v3898 = vld [vmem:[#allocation6 + $0xc08] sm:$0xff]
    %v3899 = vld [vmem:[#allocation6 + $0xc10] sm:$0xff]
    %v3900 = vld [vmem:[#allocation6 + $0xc18] sm:$0xff]
    %v3901 = vld [vmem:[#allocation6 + $0xc20] sm:$0xff]
    %v3902 = vld [vmem:[#allocation6 + $0xc28] sm:$0xff]
    %v3903 = vld [vmem:[#allocation6 + $0xc30] sm:$0xff]
    %v3904 = vld [vmem:[#allocation6 + $0xc38] sm:$0xff]
    %v3905 = vld [vmem:[#allocation6 + $0xc40] sm:$0xff]
    %v3906 = vld [vmem:[#allocation6 + $0xc48] sm:$0xff]
    %v3907 = vld [vmem:[#allocation6 + $0xc50] sm:$0xff]
    %v3908 = vld [vmem:[#allocation6 + $0xc58] sm:$0xff]
    %v3909 = vld [vmem:[#allocation6 + $0xc60] sm:$0xff]
    %v3910 = vld [vmem:[#allocation6 + $0xc68] sm:$0xff]
    %v3911 = vld [vmem:[#allocation6 + $0xc70] sm:$0xff]
    %v3912 = vld [vmem:[#allocation6 + $0xc78] sm:$0xff]
    %v3913 = vld [vmem:[#allocation6 + $0xc80] sm:$0xff]
    %v3914 = vld [vmem:[#allocation6 + $0xc88] sm:$0xff]
    %v3915 = vld [vmem:[#allocation6 + $0xc90] sm:$0xff]
    %v3916 = vld [vmem:[#allocation6 + $0xc98] sm:$0xff]
    %v3917 = vld [vmem:[#allocation6 + $0xca0] sm:$0xff]
    %v3918 = vld [vmem:[#allocation6 + $0xca8] sm:$0xff]
    %v3919 = vld [vmem:[#allocation6 + $0xcb0] sm:$0xff]
    %v3920 = vld [vmem:[#allocation6 + $0xcb8] sm:$0xff]
    %v3921 = vld [vmem:[#allocation6 + $0xcc0] sm:$0xff]
    %v3922 = vld [vmem:[#allocation6 + $0xcc8] sm:$0xff]
    %v3923 = vld [vmem:[#allocation6 + $0xcd0] sm:$0xff]
    %v3924 = vld [vmem:[#allocation6 + $0xcd8] sm:$0xff]
    %v3925 = vld [vmem:[#allocation6 + $0xce0] sm:$0xff]
    %v3926 = vld [vmem:[#allocation6 + $0xce8] sm:$0xff]
    %v3927 = vld [vmem:[#allocation6 + $0xcf0] sm:$0xff]
    %v3928 = vld [vmem:[#allocation6 + $0xcf8] sm:$0xff]
    %v3929 = vld [vmem:[#allocation6 + $0xd00] sm:$0xff]
    %v3930 = vld [vmem:[#allocation6 + $0xd08] sm:$0xff]
    %v3931 = vld [vmem:[#allocation6 + $0xd10] sm:$0xff]
    %v3932 = vld [vmem:[#allocation6 + $0xd18] sm:$0xff]
    %v3933 = vld [vmem:[#allocation6 + $0xd20] sm:$0xff]
    %v3934 = vld [vmem:[#allocation6 + $0xd28] sm:$0xff]
    %v3935 = vld [vmem:[#allocation6 + $0xd30] sm:$0xff]
    %v3936 = vld [vmem:[#allocation6 + $0xd38] sm:$0xff]
    %v3937 = vld [vmem:[#allocation6 + $0xd40] sm:$0xff]
    %v3938 = vld [vmem:[#allocation6 + $0xd48] sm:$0xff]
    %v3939 = vld [vmem:[#allocation6 + $0xd50] sm:$0xff]
    %v3940 = vld [vmem:[#allocation6 + $0xd58] sm:$0xff]
    %v3941 = vld [vmem:[#allocation6 + $0xd60] sm:$0xff]
    %v3942 = vld [vmem:[#allocation6 + $0xd68] sm:$0xff]
    %v3943 = vld [vmem:[#allocation6 + $0xd70] sm:$0xff]
    %v3944 = vld [vmem:[#allocation6 + $0xd78] sm:$0xff]
    %v3945 = vld [vmem:[#allocation6 + $0xd80] sm:$0xff]
    %v3946 = vld [vmem:[#allocation6 + $0xd88] sm:$0xff]
    %v3947 = vld [vmem:[#allocation6 + $0xd90] sm:$0xff]
    %v3948 = vld [vmem:[#allocation6 + $0xd98] sm:$0xff]
    %v3949 = vld [vmem:[#allocation6 + $0xda0] sm:$0xff]
    %v3950 = vld [vmem:[#allocation6 + $0xda8] sm:$0xff]
    %v3951 = vld [vmem:[#allocation6 + $0xdb0] sm:$0xff]
    %v3952 = vld [vmem:[#allocation6 + $0xdb8] sm:$0xff]
    %v3953 = vld [vmem:[#allocation6 + $0xdc0] sm:$0xff]
    %v3954 = vld [vmem:[#allocation6 + $0xdc8] sm:$0xff]
    %v3955 = vld [vmem:[#allocation6 + $0xdd0] sm:$0xff]
    %v3956 = vld [vmem:[#allocation6 + $0xdd8] sm:$0xff]
    %v3957 = vld [vmem:[#allocation6 + $0xde0] sm:$0xff]
    %v3958 = vld [vmem:[#allocation6 + $0xde8] sm:$0xff]
    %v3959 = vld [vmem:[#allocation6 + $0xdf0] sm:$0xff]
    %v3960 = vld [vmem:[#allocation6 + $0xdf8] sm:$0xff]
    %v3961 = vld [vmem:[#allocation6 + $0xe00] sm:$0xff]
    %v3962 = vld [vmem:[#allocation6 + $0xe08] sm:$0xff]
    %v3963 = vld [vmem:[#allocation6 + $0xe10] sm:$0xff]
    %v3964 = vld [vmem:[#allocation6 + $0xe18] sm:$0xff]
    %v3965 = vld [vmem:[#allocation6 + $0xe20] sm:$0xff]
    %v3966 = vld [vmem:[#allocation6 + $0xe28] sm:$0xff]
    %v3967 = vld [vmem:[#allocation6 + $0xe30] sm:$0xff]
    %v3968 = vld [vmem:[#allocation6 + $0xe38] sm:$0xff]
    %v3969 = vld [vmem:[#allocation6 + $0xe40] sm:$0xff]
    %v3970 = vld [vmem:[#allocation6 + $0xe48] sm:$0xff]
    %v3971 = vld [vmem:[#allocation6 + $0xe50] sm:$0xff]
    %v3972 = vld [vmem:[#allocation6 + $0xe58] sm:$0xff]
    %v3973 = vld [vmem:[#allocation6 + $0xe60] sm:$0xff]
    %v3974 = vld [vmem:[#allocation6 + $0xe68] sm:$0xff]
    %v3975 = vld [vmem:[#allocation6 + $0xe70] sm:$0xff]
    %v3976 = vld [vmem:[#allocation6 + $0xe78] sm:$0xff]
    %v3977 = vld [vmem:[#allocation6 + $0xe80] sm:$0xff]
    %v3978 = vld [vmem:[#allocation6 + $0xe88] sm:$0xff]
    %v3979 = vld [vmem:[#allocation6 + $0xe90] sm:$0xff]
    %v3980 = vld [vmem:[#allocation6 + $0xe98] sm:$0xff]
    %v3981 = vld [vmem:[#allocation6 + $0xea0] sm:$0xff]
    %v3982 = vld [vmem:[#allocation6 + $0xea8] sm:$0xff]
    %v3983 = vld [vmem:[#allocation6 + $0xeb0] sm:$0xff]
    %v3984 = vld [vmem:[#allocation6 + $0xeb8] sm:$0xff]
    %v3985 = vld [vmem:[#allocation6 + $0xec0] sm:$0xff]
    %v3986 = vld [vmem:[#allocation6 + $0xec8] sm:$0xff]
    %v3987 = vld [vmem:[#allocation6 + $0xed0] sm:$0xff]
    %v3988 = vld [vmem:[#allocation6 + $0xed8] sm:$0xff]
    %v3989 = vld [vmem:[#allocation6 + $0xee0] sm:$0xff]
    %v3990 = vld [vmem:[#allocation6 + $0xee8] sm:$0xff]
    %v3991 = vld [vmem:[#allocation6 + $0xef0] sm:$0xff]
    %v3992 = vld [vmem:[#allocation6 + $0xef8] sm:$0xff]
    %v3993 = vld [vmem:[#allocation6 + $0xf00] sm:$0xff]
    %v3994 = vld [vmem:[#allocation6 + $0xf08] sm:$0xff]
    %v3995 = vld [vmem:[#allocation6 + $0xf10] sm:$0xff]
    %v3996 = vld [vmem:[#allocation6 + $0xf18] sm:$0xff]
    %v3997 = vld [vmem:[#allocation6 + $0xf20] sm:$0xff]
    %v3998 = vld [vmem:[#allocation6 + $0xf28] sm:$0xff]
    %v3999 = vld [vmem:[#allocation6 + $0xf30] sm:$0xff]
    %v4000 = vld [vmem:[#allocation6 + $0xf38] sm:$0xff]
    %v4001 = vld [vmem:[#allocation6 + $0xf40] sm:$0xff]
    %v4002 = vld [vmem:[#allocation6 + $0xf48] sm:$0xff]
    %v4003 = vld [vmem:[#allocation6 + $0xf50] sm:$0xff]
    %v4004 = vld [vmem:[#allocation6 + $0xf58] sm:$0xff]
    %v4005 = vld [vmem:[#allocation6 + $0xf60] sm:$0xff]
    %v4006 = vld [vmem:[#allocation6 + $0xf68] sm:$0xff]
    %v4007 = vld [vmem:[#allocation6 + $0xf70] sm:$0xff]
    %v4008 = vld [vmem:[#allocation6 + $0xf78] sm:$0xff]
    %v4009 = vld [vmem:[#allocation6 + $0xf80] sm:$0xff]
    %v4010 = vld [vmem:[#allocation6 + $0xf88] sm:$0xff]
    %v4011 = vld [vmem:[#allocation6 + $0xf90] sm:$0xff]
    %v4012 = vld [vmem:[#allocation6 + $0xf98] sm:$0xff]
    %v4013 = vld [vmem:[#allocation6 + $0xfa0] sm:$0xff]
    %v4014 = vld [vmem:[#allocation6 + $0xfa8] sm:$0xff]
    %v4015 = vld [vmem:[#allocation6 + $0xfb0] sm:$0xff]
    %v4016 = vld [vmem:[#allocation6 + $0xfb8] sm:$0xff]
    %v4017 = vld [vmem:[#allocation6 + $0xfc0] sm:$0xff]
    %v4018 = vld [vmem:[#allocation6 + $0xfc8] sm:$0xff]
    %v4019 = vld [vmem:[#allocation6 + $0xfd0] sm:$0xff]
    %v4020 = vld [vmem:[#allocation6 + $0xfd8] sm:$0xff]
    %v4021 = vld [vmem:[#allocation6 + $0xfe0] sm:$0xff]
    %v4022 = vld [vmem:[#allocation6 + $0xfe8] sm:$0xff]
    %v4023 = vld [vmem:[#allocation6 + $0xff0] sm:$0xff]
    %v4024 = vld [vmem:[#allocation6 + $0xff8] sm:$0xff]
    %v4025 = vld [vmem:[#allocation7] sm:$0xff]
    %v4027 = vlaneseq
    %v4028 = vshrl.u32 %v4027, 7
    %v4029 = vsub.s32 0, %v4028
    %v4030 = vrot.slane %v4025, %v4029
    %v4031 = vlaneseq
    %v4032 = vshrl.u32 %v4031, 7
    %v4033 = vsub.s32 1, %v4032
    %v4034 = vrot.slane %v4025, %v4033
    %v4035 = vlaneseq
    %v4036 = vshrl.u32 %v4035, 7
    %v4037 = vsub.s32 2, %v4036
    %v4038 = vrot.slane %v4025, %v4037
    %v4039 = vlaneseq
    %v4040 = vshrl.u32 %v4039, 7
    %v4041 = vsub.s32 3, %v4040
    %v4042 = vrot.slane %v4025, %v4041
    %v4043 = vlaneseq
    %v4044 = vshrl.u32 %v4043, 7
    %v4045 = vsub.s32 4, %v4044
    %v4046 = vrot.slane %v4025, %v4045
    %v4047 = vlaneseq
    %v4048 = vshrl.u32 %v4047, 7
    %v4049 = vsub.s32 5, %v4048
    %v4050 = vrot.slane %v4025, %v4049
    %v4051 = vlaneseq
    %v4052 = vshrl.u32 %v4051, 7
    %v4053 = vsub.s32 6, %v4052
    %v4054 = vrot.slane %v4025, %v4053
    %v4055 = vlaneseq
    %v4056 = vshrl.u32 %v4055, 7
    %v4057 = vsub.s32 7, %v4056
    %v4058 = vrot.slane %v4025, %v4057
    %v4579 = vunpack.c.l.b16 %v3513
    %v4580 = vunpack.c.h.b16 %v3513
    %v4581 = vunpack.c.l.b16 %v3514
    %v4582 = vunpack.c.h.b16 %v3514
    %v4583 = vunpack.c.l.b16 %v3515
    %v4584 = vunpack.c.h.b16 %v3515
    %v4585 = vunpack.c.l.b16 %v3516
    %v4586 = vunpack.c.h.b16 %v3516
    %v4587 = vunpack.c.l.b16 %v3517
    %v4588 = vunpack.c.h.b16 %v3517
    %v4589 = vunpack.c.l.b16 %v3518
    %v4590 = vunpack.c.h.b16 %v3518
    %v4591 = vunpack.c.l.b16 %v3519
    %v4592 = vunpack.c.h.b16 %v3519
    %v4593 = vunpack.c.l.b16 %v3520
    %v4594 = vunpack.c.h.b16 %v3520
    %v4595 = vunpack.c.l.b16 %v3521
    %v4596 = vunpack.c.h.b16 %v3521
    %v4597 = vunpack.c.l.b16 %v3522
    %v4598 = vunpack.c.h.b16 %v3522
    %v4599 = vunpack.c.l.b16 %v3523
    %v4600 = vunpack.c.h.b16 %v3523
    %v4601 = vunpack.c.l.b16 %v3524
    %v4602 = vunpack.c.h.b16 %v3524
    %v4603 = vunpack.c.l.b16 %v3525
    %v4604 = vunpack.c.h.b16 %v3525
    %v4605 = vunpack.c.l.b16 %v3526
    %v4606 = vunpack.c.h.b16 %v3526
    %v4607 = vunpack.c.l.b16 %v3527
    %v4608 = vunpack.c.h.b16 %v3527
    %v4609 = vunpack.c.l.b16 %v3528
    %v4610 = vunpack.c.h.b16 %v3528
    %v4611 = vunpack.c.l.b16 %v3529
    %v4612 = vunpack.c.h.b16 %v3529
    %v4613 = vunpack.c.l.b16 %v3530
    %v4614 = vunpack.c.h.b16 %v3530
    %v4615 = vunpack.c.l.b16 %v3531
    %v4616 = vunpack.c.h.b16 %v3531
    %v4617 = vunpack.c.l.b16 %v3532
    %v4618 = vunpack.c.h.b16 %v3532
    %v4619 = vunpack.c.l.b16 %v3533
    %v4620 = vunpack.c.h.b16 %v3533
    %v4621 = vunpack.c.l.b16 %v3534
    %v4622 = vunpack.c.h.b16 %v3534
    %v4623 = vunpack.c.l.b16 %v3535
    %v4624 = vunpack.c.h.b16 %v3535
    %v4625 = vunpack.c.l.b16 %v3536
    %v4626 = vunpack.c.h.b16 %v3536
    %v4627 = vunpack.c.l.b16 %v3537
    %v4628 = vunpack.c.h.b16 %v3537
    %v4629 = vunpack.c.l.b16 %v3538
    %v4630 = vunpack.c.h.b16 %v3538
    %v4631 = vunpack.c.l.b16 %v3539
    %v4632 = vunpack.c.h.b16 %v3539
    %v4633 = vunpack.c.l.b16 %v3540
    %v4634 = vunpack.c.h.b16 %v3540
    %v4635 = vunpack.c.l.b16 %v3541
    %v4636 = vunpack.c.h.b16 %v3541
    %v4637 = vunpack.c.l.b16 %v3542
    %v4638 = vunpack.c.h.b16 %v3542
    %v4639 = vunpack.c.l.b16 %v3543
    %v4640 = vunpack.c.h.b16 %v3543
    %v4641 = vunpack.c.l.b16 %v3544
    %v4642 = vunpack.c.h.b16 %v3544
    %v4643 = vunpack.c.l.b16 %v3545
    %v4644 = vunpack.c.h.b16 %v3545
    %v4645 = vunpack.c.l.b16 %v3546
    %v4646 = vunpack.c.h.b16 %v3546
    %v4647 = vunpack.c.l.b16 %v3547
    %v4648 = vunpack.c.h.b16 %v3547
    %v4649 = vunpack.c.l.b16 %v3548
    %v4650 = vunpack.c.h.b16 %v3548
    %v4651 = vunpack.c.l.b16 %v3549
    %v4652 = vunpack.c.h.b16 %v3549
    %v4653 = vunpack.c.l.b16 %v3550
    %v4654 = vunpack.c.h.b16 %v3550
    %v4655 = vunpack.c.l.b16 %v3551
    %v4656 = vunpack.c.h.b16 %v3551
    %v4657 = vunpack.c.l.b16 %v3552
    %v4658 = vunpack.c.h.b16 %v3552
    %v4659 = vunpack.c.l.b16 %v3553
    %v4660 = vunpack.c.h.b16 %v3553
    %v4661 = vunpack.c.l.b16 %v3554
    %v4662 = vunpack.c.h.b16 %v3554
    %v4663 = vunpack.c.l.b16 %v3555
    %v4664 = vunpack.c.h.b16 %v3555
    %v4665 = vunpack.c.l.b16 %v3556
    %v4666 = vunpack.c.h.b16 %v3556
    %v4667 = vunpack.c.l.b16 %v3557
    %v4668 = vunpack.c.h.b16 %v3557
    %v4669 = vunpack.c.l.b16 %v3558
    %v4670 = vunpack.c.h.b16 %v3558
    %v4671 = vunpack.c.l.b16 %v3559
    %v4672 = vunpack.c.h.b16 %v3559
    %v4673 = vunpack.c.l.b16 %v3560
    %v4674 = vunpack.c.h.b16 %v3560
    %v4675 = vunpack.c.l.b16 %v3561
    %v4676 = vunpack.c.h.b16 %v3561
    %v4677 = vunpack.c.l.b16 %v3562
    %v4678 = vunpack.c.h.b16 %v3562
    %v4679 = vunpack.c.l.b16 %v3563
    %v4680 = vunpack.c.h.b16 %v3563
    %v4681 = vunpack.c.l.b16 %v3564
    %v4682 = vunpack.c.h.b16 %v3564
    %v4683 = vunpack.c.l.b16 %v3565
    %v4684 = vunpack.c.h.b16 %v3565
    %v4685 = vunpack.c.l.b16 %v3566
    %v4686 = vunpack.c.h.b16 %v3566
    %v4687 = vunpack.c.l.b16 %v3567
    %v4688 = vunpack.c.h.b16 %v3567
    %v4689 = vunpack.c.l.b16 %v3568
    %v4690 = vunpack.c.h.b16 %v3568
    %v4691 = vunpack.c.l.b16 %v3569
    %v4692 = vunpack.c.h.b16 %v3569
    %v4693 = vunpack.c.l.b16 %v3570
    %v4694 = vunpack.c.h.b16 %v3570
    %v4695 = vunpack.c.l.b16 %v3571
    %v4696 = vunpack.c.h.b16 %v3571
    %v4697 = vunpack.c.l.b16 %v3572
    %v4698 = vunpack.c.h.b16 %v3572
    %v4699 = vunpack.c.l.b16 %v3573
    %v4700 = vunpack.c.h.b16 %v3573
    %v4701 = vunpack.c.l.b16 %v3574
    %v4702 = vunpack.c.h.b16 %v3574
    %v4703 = vunpack.c.l.b16 %v3575
    %v4704 = vunpack.c.h.b16 %v3575
    %v4705 = vunpack.c.l.b16 %v3576
    %v4706 = vunpack.c.h.b16 %v3576
    %v4707 = vunpack.c.l.b16 %v3577
    %v4708 = vunpack.c.h.b16 %v3577
    %v4709 = vunpack.c.l.b16 %v3578
    %v4710 = vunpack.c.h.b16 %v3578
    %v4711 = vunpack.c.l.b16 %v3579
    %v4712 = vunpack.c.h.b16 %v3579
    %v4713 = vunpack.c.l.b16 %v3580
    %v4714 = vunpack.c.h.b16 %v3580
    %v4715 = vunpack.c.l.b16 %v3581
    %v4716 = vunpack.c.h.b16 %v3581
    %v4717 = vunpack.c.l.b16 %v3582
    %v4718 = vunpack.c.h.b16 %v3582
    %v4719 = vunpack.c.l.b16 %v3583
    %v4720 = vunpack.c.h.b16 %v3583
    %v4721 = vunpack.c.l.b16 %v3584
    %v4722 = vunpack.c.h.b16 %v3584
    %v4723 = vunpack.c.l.b16 %v3585
    %v4724 = vunpack.c.h.b16 %v3585
    %v4725 = vunpack.c.l.b16 %v3586
    %v4726 = vunpack.c.h.b16 %v3586
    %v4727 = vunpack.c.l.b16 %v3587
    %v4728 = vunpack.c.h.b16 %v3587
    %v4729 = vunpack.c.l.b16 %v3588
    %v4730 = vunpack.c.h.b16 %v3588
    %v4731 = vunpack.c.l.b16 %v3589
    %v4732 = vunpack.c.h.b16 %v3589
    %v4733 = vunpack.c.l.b16 %v3590
    %v4734 = vunpack.c.h.b16 %v3590
    %v4735 = vunpack.c.l.b16 %v3591
    %v4736 = vunpack.c.h.b16 %v3591
    %v4737 = vunpack.c.l.b16 %v3592
    %v4738 = vunpack.c.h.b16 %v3592
    %v4739 = vunpack.c.l.b16 %v3593
    %v4740 = vunpack.c.h.b16 %v3593
    %v4741 = vunpack.c.l.b16 %v3594
    %v4742 = vunpack.c.h.b16 %v3594
    %v4743 = vunpack.c.l.b16 %v3595
    %v4744 = vunpack.c.h.b16 %v3595
    %v4745 = vunpack.c.l.b16 %v3596
    %v4746 = vunpack.c.h.b16 %v3596
    %v4747 = vunpack.c.l.b16 %v3597
    %v4748 = vunpack.c.h.b16 %v3597
    %v4749 = vunpack.c.l.b16 %v3598
    %v4750 = vunpack.c.h.b16 %v3598
    %v4751 = vunpack.c.l.b16 %v3599
    %v4752 = vunpack.c.h.b16 %v3599
    %v4753 = vunpack.c.l.b16 %v3600
    %v4754 = vunpack.c.h.b16 %v3600
    %v4755 = vunpack.c.l.b16 %v3601
    %v4756 = vunpack.c.h.b16 %v3601
    %v4757 = vunpack.c.l.b16 %v3602
    %v4758 = vunpack.c.h.b16 %v3602
    %v4759 = vunpack.c.l.b16 %v3603
    %v4760 = vunpack.c.h.b16 %v3603
    %v4761 = vunpack.c.l.b16 %v3604
    %v4762 = vunpack.c.h.b16 %v3604
    %v4763 = vunpack.c.l.b16 %v3605
    %v4764 = vunpack.c.h.b16 %v3605
    %v4765 = vunpack.c.l.b16 %v3606
    %v4766 = vunpack.c.h.b16 %v3606
    %v4767 = vunpack.c.l.b16 %v3607
    %v4768 = vunpack.c.h.b16 %v3607
    %v4769 = vunpack.c.l.b16 %v3608
    %v4770 = vunpack.c.h.b16 %v3608
    %v4771 = vunpack.c.l.b16 %v3609
    %v4772 = vunpack.c.h.b16 %v3609
    %v4773 = vunpack.c.l.b16 %v3610
    %v4774 = vunpack.c.h.b16 %v3610
    %v4775 = vunpack.c.l.b16 %v3611
    %v4776 = vunpack.c.h.b16 %v3611
    %v4777 = vunpack.c.l.b16 %v3612
    %v4778 = vunpack.c.h.b16 %v3612
    %v4779 = vunpack.c.l.b16 %v3613
    %v4780 = vunpack.c.h.b16 %v3613
    %v4781 = vunpack.c.l.b16 %v3614
    %v4782 = vunpack.c.h.b16 %v3614
    %v4783 = vunpack.c.l.b16 %v3615
    %v4784 = vunpack.c.h.b16 %v3615
    %v4785 = vunpack.c.l.b16 %v3616
    %v4786 = vunpack.c.h.b16 %v3616
    %v4787 = vunpack.c.l.b16 %v3617
    %v4788 = vunpack.c.h.b16 %v3617
    %v4789 = vunpack.c.l.b16 %v3618
    %v4790 = vunpack.c.h.b16 %v3618
    %v4791 = vunpack.c.l.b16 %v3619
    %v4792 = vunpack.c.h.b16 %v3619
    %v4793 = vunpack.c.l.b16 %v3620
    %v4794 = vunpack.c.h.b16 %v3620
    %v4795 = vunpack.c.l.b16 %v3621
    %v4796 = vunpack.c.h.b16 %v3621
    %v4797 = vunpack.c.l.b16 %v3622
    %v4798 = vunpack.c.h.b16 %v3622
    %v4799 = vunpack.c.l.b16 %v3623
    %v4800 = vunpack.c.h.b16 %v3623
    %v4801 = vunpack.c.l.b16 %v3624
    %v4802 = vunpack.c.h.b16 %v3624
    %v4803 = vunpack.c.l.b16 %v3625
    %v4804 = vunpack.c.h.b16 %v3625
    %v4805 = vunpack.c.l.b16 %v3626
    %v4806 = vunpack.c.h.b16 %v3626
    %v4807 = vunpack.c.l.b16 %v3627
    %v4808 = vunpack.c.h.b16 %v3627
    %v4809 = vunpack.c.l.b16 %v3628
    %v4810 = vunpack.c.h.b16 %v3628
    %v4811 = vunpack.c.l.b16 %v3629
    %v4812 = vunpack.c.h.b16 %v3629
    %v4813 = vunpack.c.l.b16 %v3630
    %v4814 = vunpack.c.h.b16 %v3630
    %v4815 = vunpack.c.l.b16 %v3631
    %v4816 = vunpack.c.h.b16 %v3631
    %v4817 = vunpack.c.l.b16 %v3632
    %v4818 = vunpack.c.h.b16 %v3632
    %v4819 = vunpack.c.l.b16 %v3633
    %v4820 = vunpack.c.h.b16 %v3633
    %v4821 = vunpack.c.l.b16 %v3634
    %v4822 = vunpack.c.h.b16 %v3634
    %v4823 = vunpack.c.l.b16 %v3635
    %v4824 = vunpack.c.h.b16 %v3635
    %v4825 = vunpack.c.l.b16 %v3636
    %v4826 = vunpack.c.h.b16 %v3636
    %v4827 = vunpack.c.l.b16 %v3637
    %v4828 = vunpack.c.h.b16 %v3637
    %v4829 = vunpack.c.l.b16 %v3638
    %v4830 = vunpack.c.h.b16 %v3638
    %v4831 = vunpack.c.l.b16 %v3639
    %v4832 = vunpack.c.h.b16 %v3639
    %v4833 = vunpack.c.l.b16 %v3640
    %v4834 = vunpack.c.h.b16 %v3640
    %v4835 = vunpack.c.l.b16 %v3641
    %v4836 = vunpack.c.h.b16 %v3641
    %v4837 = vunpack.c.l.b16 %v3642
    %v4838 = vunpack.c.h.b16 %v3642
    %v4839 = vunpack.c.l.b16 %v3643
    %v4840 = vunpack.c.h.b16 %v3643
    %v4841 = vunpack.c.l.b16 %v3644
    %v4842 = vunpack.c.h.b16 %v3644
    %v4843 = vunpack.c.l.b16 %v3645
    %v4844 = vunpack.c.h.b16 %v3645
    %v4845 = vunpack.c.l.b16 %v3646
    %v4846 = vunpack.c.h.b16 %v3646
    %v4847 = vunpack.c.l.b16 %v3647
    %v4848 = vunpack.c.h.b16 %v3647
    %v4849 = vunpack.c.l.b16 %v3648
    %v4850 = vunpack.c.h.b16 %v3648
    %v4851 = vunpack.c.l.b16 %v3649
    %v4852 = vunpack.c.h.b16 %v3649
    %v4853 = vunpack.c.l.b16 %v3650
    %v4854 = vunpack.c.h.b16 %v3650
    %v4855 = vunpack.c.l.b16 %v3651
    %v4856 = vunpack.c.h.b16 %v3651
    %v4857 = vunpack.c.l.b16 %v3652
    %v4858 = vunpack.c.h.b16 %v3652
    %v4859 = vunpack.c.l.b16 %v3653
    %v4860 = vunpack.c.h.b16 %v3653
    %v4861 = vunpack.c.l.b16 %v3654
    %v4862 = vunpack.c.h.b16 %v3654
    %v4863 = vunpack.c.l.b16 %v3655
    %v4864 = vunpack.c.h.b16 %v3655
    %v4865 = vunpack.c.l.b16 %v3656
    %v4866 = vunpack.c.h.b16 %v3656
    %v4867 = vunpack.c.l.b16 %v3657
    %v4868 = vunpack.c.h.b16 %v3657
    %v4869 = vunpack.c.l.b16 %v3658
    %v4870 = vunpack.c.h.b16 %v3658
    %v4871 = vunpack.c.l.b16 %v3659
    %v4872 = vunpack.c.h.b16 %v3659
    %v4873 = vunpack.c.l.b16 %v3660
    %v4874 = vunpack.c.h.b16 %v3660
    %v4875 = vunpack.c.l.b16 %v3661
    %v4876 = vunpack.c.h.b16 %v3661
    %v4877 = vunpack.c.l.b16 %v3662
    %v4878 = vunpack.c.h.b16 %v3662
    %v4879 = vunpack.c.l.b16 %v3663
    %v4880 = vunpack.c.h.b16 %v3663
    %v4881 = vunpack.c.l.b16 %v3664
    %v4882 = vunpack.c.h.b16 %v3664
    %v4883 = vunpack.c.l.b16 %v3665
    %v4884 = vunpack.c.h.b16 %v3665
    %v4885 = vunpack.c.l.b16 %v3666
    %v4886 = vunpack.c.h.b16 %v3666
    %v4887 = vunpack.c.l.b16 %v3667
    %v4888 = vunpack.c.h.b16 %v3667
    %v4889 = vunpack.c.l.b16 %v3668
    %v4890 = vunpack.c.h.b16 %v3668
    %v4891 = vunpack.c.l.b16 %v3669
    %v4892 = vunpack.c.h.b16 %v3669
    %v4893 = vunpack.c.l.b16 %v3670
    %v4894 = vunpack.c.h.b16 %v3670
    %v4895 = vunpack.c.l.b16 %v3671
    %v4896 = vunpack.c.h.b16 %v3671
    %v4897 = vunpack.c.l.b16 %v3672
    %v4898 = vunpack.c.h.b16 %v3672
    %v4899 = vunpack.c.l.b16 %v3673
    %v4900 = vunpack.c.h.b16 %v3673
    %v4901 = vunpack.c.l.b16 %v3674
    %v4902 = vunpack.c.h.b16 %v3674
    %v4903 = vunpack.c.l.b16 %v3675
    %v4904 = vunpack.c.h.b16 %v3675
    %v4905 = vunpack.c.l.b16 %v3676
    %v4906 = vunpack.c.h.b16 %v3676
    %v4907 = vunpack.c.l.b16 %v3677
    %v4908 = vunpack.c.h.b16 %v3677
    %v4909 = vunpack.c.l.b16 %v3678
    %v4910 = vunpack.c.h.b16 %v3678
    %v4911 = vunpack.c.l.b16 %v3679
    %v4912 = vunpack.c.h.b16 %v3679
    %v4913 = vunpack.c.l.b16 %v3680
    %v4914 = vunpack.c.h.b16 %v3680
    %v4915 = vunpack.c.l.b16 %v3681
    %v4916 = vunpack.c.h.b16 %v3681
    %v4917 = vunpack.c.l.b16 %v3682
    %v4918 = vunpack.c.h.b16 %v3682
    %v4919 = vunpack.c.l.b16 %v3683
    %v4920 = vunpack.c.h.b16 %v3683
    %v4921 = vunpack.c.l.b16 %v3684
    %v4922 = vunpack.c.h.b16 %v3684
    %v4923 = vunpack.c.l.b16 %v3685
    %v4924 = vunpack.c.h.b16 %v3685
    %v4925 = vunpack.c.l.b16 %v3686
    %v4926 = vunpack.c.h.b16 %v3686
    %v4927 = vunpack.c.l.b16 %v3687
    %v4928 = vunpack.c.h.b16 %v3687
    %v4929 = vunpack.c.l.b16 %v3688
    %v4930 = vunpack.c.h.b16 %v3688
    %v4931 = vunpack.c.l.b16 %v3689
    %v4932 = vunpack.c.h.b16 %v3689
    %v4933 = vunpack.c.l.b16 %v3690
    %v4934 = vunpack.c.h.b16 %v3690
    %v4935 = vunpack.c.l.b16 %v3691
    %v4936 = vunpack.c.h.b16 %v3691
    %v4937 = vunpack.c.l.b16 %v3692
    %v4938 = vunpack.c.h.b16 %v3692
    %v4939 = vunpack.c.l.b16 %v3693
    %v4940 = vunpack.c.h.b16 %v3693
    %v4941 = vunpack.c.l.b16 %v3694
    %v4942 = vunpack.c.h.b16 %v3694
    %v4943 = vunpack.c.l.b16 %v3695
    %v4944 = vunpack.c.h.b16 %v3695
    %v4945 = vunpack.c.l.b16 %v3696
    %v4946 = vunpack.c.h.b16 %v3696
    %v4947 = vunpack.c.l.b16 %v3697
    %v4948 = vunpack.c.h.b16 %v3697
    %v4949 = vunpack.c.l.b16 %v3698
    %v4950 = vunpack.c.h.b16 %v3698
    %v4951 = vunpack.c.l.b16 %v3699
    %v4952 = vunpack.c.h.b16 %v3699
    %v4953 = vunpack.c.l.b16 %v3700
    %v4954 = vunpack.c.h.b16 %v3700
    %v4955 = vunpack.c.l.b16 %v3701
    %v4956 = vunpack.c.h.b16 %v3701
    %v4957 = vunpack.c.l.b16 %v3702
    %v4958 = vunpack.c.h.b16 %v3702
    %v4959 = vunpack.c.l.b16 %v3703
    %v4960 = vunpack.c.h.b16 %v3703
    %v4961 = vunpack.c.l.b16 %v3704
    %v4962 = vunpack.c.h.b16 %v3704
    %v4963 = vunpack.c.l.b16 %v3705
    %v4964 = vunpack.c.h.b16 %v3705
    %v4965 = vunpack.c.l.b16 %v3706
    %v4966 = vunpack.c.h.b16 %v3706
    %v4967 = vunpack.c.l.b16 %v3707
    %v4968 = vunpack.c.h.b16 %v3707
    %v4969 = vunpack.c.l.b16 %v3708
    %v4970 = vunpack.c.h.b16 %v3708
    %v4971 = vunpack.c.l.b16 %v3709
    %v4972 = vunpack.c.h.b16 %v3709
    %v4973 = vunpack.c.l.b16 %v3710
    %v4974 = vunpack.c.h.b16 %v3710
    %v4975 = vunpack.c.l.b16 %v3711
    %v4976 = vunpack.c.h.b16 %v3711
    %v4977 = vunpack.c.l.b16 %v3712
    %v4978 = vunpack.c.h.b16 %v3712
    %v4979 = vunpack.c.l.b16 %v3713
    %v4980 = vunpack.c.h.b16 %v3713
    %v4981 = vunpack.c.l.b16 %v3714
    %v4982 = vunpack.c.h.b16 %v3714
    %v4983 = vunpack.c.l.b16 %v3715
    %v4984 = vunpack.c.h.b16 %v3715
    %v4985 = vunpack.c.l.b16 %v3716
    %v4986 = vunpack.c.h.b16 %v3716
    %v4987 = vunpack.c.l.b16 %v3717
    %v4988 = vunpack.c.h.b16 %v3717
    %v4989 = vunpack.c.l.b16 %v3718
    %v4990 = vunpack.c.h.b16 %v3718
    %v4991 = vunpack.c.l.b16 %v3719
    %v4992 = vunpack.c.h.b16 %v3719
    %v4993 = vunpack.c.l.b16 %v3720
    %v4994 = vunpack.c.h.b16 %v3720
    %v4995 = vunpack.c.l.b16 %v3721
    %v4996 = vunpack.c.h.b16 %v3721
    %v4997 = vunpack.c.l.b16 %v3722
    %v4998 = vunpack.c.h.b16 %v3722
    %v4999 = vunpack.c.l.b16 %v3723
    %v5000 = vunpack.c.h.b16 %v3723
    %v5001 = vunpack.c.l.b16 %v3724
    %v5002 = vunpack.c.h.b16 %v3724
    %v5003 = vunpack.c.l.b16 %v3725
    %v5004 = vunpack.c.h.b16 %v3725
    %v5005 = vunpack.c.l.b16 %v3726
    %v5006 = vunpack.c.h.b16 %v3726
    %v5007 = vunpack.c.l.b16 %v3727
    %v5008 = vunpack.c.h.b16 %v3727
    %v5009 = vunpack.c.l.b16 %v3728
    %v5010 = vunpack.c.h.b16 %v3728
    %v5011 = vunpack.c.l.b16 %v3729
    %v5012 = vunpack.c.h.b16 %v3729
    %v5013 = vunpack.c.l.b16 %v3730
    %v5014 = vunpack.c.h.b16 %v3730
    %v5015 = vunpack.c.l.b16 %v3731
    %v5016 = vunpack.c.h.b16 %v3731
    %v5017 = vunpack.c.l.b16 %v3732
    %v5018 = vunpack.c.h.b16 %v3732
    %v5019 = vunpack.c.l.b16 %v3733
    %v5020 = vunpack.c.h.b16 %v3733
    %v5021 = vunpack.c.l.b16 %v3734
    %v5022 = vunpack.c.h.b16 %v3734
    %v5023 = vunpack.c.l.b16 %v3735
    %v5024 = vunpack.c.h.b16 %v3735
    %v5025 = vunpack.c.l.b16 %v3736
    %v5026 = vunpack.c.h.b16 %v3736
    %v5027 = vunpack.c.l.b16 %v3737
    %v5028 = vunpack.c.h.b16 %v3737
    %v5029 = vunpack.c.l.b16 %v3738
    %v5030 = vunpack.c.h.b16 %v3738
    %v5031 = vunpack.c.l.b16 %v3739
    %v5032 = vunpack.c.h.b16 %v3739
    %v5033 = vunpack.c.l.b16 %v3740
    %v5034 = vunpack.c.h.b16 %v3740
    %v5035 = vunpack.c.l.b16 %v3741
    %v5036 = vunpack.c.h.b16 %v3741
    %v5037 = vunpack.c.l.b16 %v3742
    %v5038 = vunpack.c.h.b16 %v3742
    %v5039 = vunpack.c.l.b16 %v3743
    %v5040 = vunpack.c.h.b16 %v3743
    %v5041 = vunpack.c.l.b16 %v3744
    %v5042 = vunpack.c.h.b16 %v3744
    %v5043 = vunpack.c.l.b16 %v3745
    %v5044 = vunpack.c.h.b16 %v3745
    %v5045 = vunpack.c.l.b16 %v3746
    %v5046 = vunpack.c.h.b16 %v3746
    %v5047 = vunpack.c.l.b16 %v3747
    %v5048 = vunpack.c.h.b16 %v3747
    %v5049 = vunpack.c.l.b16 %v3748
    %v5050 = vunpack.c.h.b16 %v3748
    %v5051 = vunpack.c.l.b16 %v3749
    %v5052 = vunpack.c.h.b16 %v3749
    %v5053 = vunpack.c.l.b16 %v3750
    %v5054 = vunpack.c.h.b16 %v3750
    %v5055 = vunpack.c.l.b16 %v3751
    %v5056 = vunpack.c.h.b16 %v3751
    %v5057 = vunpack.c.l.b16 %v3752
    %v5058 = vunpack.c.h.b16 %v3752
    %v5059 = vunpack.c.l.b16 %v3753
    %v5060 = vunpack.c.h.b16 %v3753
    %v5061 = vunpack.c.l.b16 %v3754
    %v5062 = vunpack.c.h.b16 %v3754
    %v5063 = vunpack.c.l.b16 %v3755
    %v5064 = vunpack.c.h.b16 %v3755
    %v5065 = vunpack.c.l.b16 %v3756
    %v5066 = vunpack.c.h.b16 %v3756
    %v5067 = vunpack.c.l.b16 %v3757
    %v5068 = vunpack.c.h.b16 %v3757
    %v5069 = vunpack.c.l.b16 %v3758
    %v5070 = vunpack.c.h.b16 %v3758
    %v5071 = vunpack.c.l.b16 %v3759
    %v5072 = vunpack.c.h.b16 %v3759
    %v5073 = vunpack.c.l.b16 %v3760
    %v5074 = vunpack.c.h.b16 %v3760
    %v5075 = vunpack.c.l.b16 %v3761
    %v5076 = vunpack.c.h.b16 %v3761
    %v5077 = vunpack.c.l.b16 %v3762
    %v5078 = vunpack.c.h.b16 %v3762
    %v5079 = vunpack.c.l.b16 %v3763
    %v5080 = vunpack.c.h.b16 %v3763
    %v5081 = vunpack.c.l.b16 %v3764
    %v5082 = vunpack.c.h.b16 %v3764
    %v5083 = vunpack.c.l.b16 %v3765
    %v5084 = vunpack.c.h.b16 %v3765
    %v5085 = vunpack.c.l.b16 %v3766
    %v5086 = vunpack.c.h.b16 %v3766
    %v5087 = vunpack.c.l.b16 %v3767
    %v5088 = vunpack.c.h.b16 %v3767
    %v5089 = vunpack.c.l.b16 %v3768
    %v5090 = vunpack.c.h.b16 %v3768
    %v5091 = vunpack.c.l.b16 %v3769
    %v5092 = vunpack.c.h.b16 %v3769
    %v5093 = vunpack.c.l.b16 %v3770
    %v5094 = vunpack.c.h.b16 %v3770
    %v5095 = vunpack.c.l.b16 %v3771
    %v5096 = vunpack.c.h.b16 %v3771
    %v5097 = vunpack.c.l.b16 %v3772
    %v5098 = vunpack.c.h.b16 %v3772
    %v5099 = vunpack.c.l.b16 %v3773
    %v5100 = vunpack.c.h.b16 %v3773
    %v5101 = vunpack.c.l.b16 %v3774
    %v5102 = vunpack.c.h.b16 %v3774
    %v5103 = vunpack.c.l.b16 %v3775
    %v5104 = vunpack.c.h.b16 %v3775
    %v5105 = vunpack.c.l.b16 %v3776
    %v5106 = vunpack.c.h.b16 %v3776
    %v5107 = vunpack.c.l.b16 %v3777
    %v5108 = vunpack.c.h.b16 %v3777
    %v5109 = vunpack.c.l.b16 %v3778
    %v5110 = vunpack.c.h.b16 %v3778
    %v5111 = vunpack.c.l.b16 %v3779
    %v5112 = vunpack.c.h.b16 %v3779
    %v5113 = vunpack.c.l.b16 %v3780
    %v5114 = vunpack.c.h.b16 %v3780
    %v5115 = vunpack.c.l.b16 %v3781
    %v5116 = vunpack.c.h.b16 %v3781
    %v5117 = vunpack.c.l.b16 %v3782
    %v5118 = vunpack.c.h.b16 %v3782
    %v5119 = vunpack.c.l.b16 %v3783
    %v5120 = vunpack.c.h.b16 %v3783
    %v5121 = vunpack.c.l.b16 %v3784
    %v5122 = vunpack.c.h.b16 %v3784
    %v5123 = vunpack.c.l.b16 %v3785
    %v5124 = vunpack.c.h.b16 %v3785
    %v5125 = vunpack.c.l.b16 %v3786
    %v5126 = vunpack.c.h.b16 %v3786
    %v5127 = vunpack.c.l.b16 %v3787
    %v5128 = vunpack.c.h.b16 %v3787
    %v5129 = vunpack.c.l.b16 %v3788
    %v5130 = vunpack.c.h.b16 %v3788
    %v5131 = vunpack.c.l.b16 %v3789
    %v5132 = vunpack.c.h.b16 %v3789
    %v5133 = vunpack.c.l.b16 %v3790
    %v5134 = vunpack.c.h.b16 %v3790
    %v5135 = vunpack.c.l.b16 %v3791
    %v5136 = vunpack.c.h.b16 %v3791
    %v5137 = vunpack.c.l.b16 %v3792
    %v5138 = vunpack.c.h.b16 %v3792
    %v5139 = vunpack.c.l.b16 %v3793
    %v5140 = vunpack.c.h.b16 %v3793
    %v5141 = vunpack.c.l.b16 %v3794
    %v5142 = vunpack.c.h.b16 %v3794
    %v5143 = vunpack.c.l.b16 %v3795
    %v5144 = vunpack.c.h.b16 %v3795
    %v5145 = vunpack.c.l.b16 %v3796
    %v5146 = vunpack.c.h.b16 %v3796
    %v5147 = vunpack.c.l.b16 %v3797
    %v5148 = vunpack.c.h.b16 %v3797
    %v5149 = vunpack.c.l.b16 %v3798
    %v5150 = vunpack.c.h.b16 %v3798
    %v5151 = vunpack.c.l.b16 %v3799
    %v5152 = vunpack.c.h.b16 %v3799
    %v5153 = vunpack.c.l.b16 %v3800
    %v5154 = vunpack.c.h.b16 %v3800
    %v5155 = vunpack.c.l.b16 %v3801
    %v5156 = vunpack.c.h.b16 %v3801
    %v5157 = vunpack.c.l.b16 %v3802
    %v5158 = vunpack.c.h.b16 %v3802
    %v5159 = vunpack.c.l.b16 %v3803
    %v5160 = vunpack.c.h.b16 %v3803
    %v5161 = vunpack.c.l.b16 %v3804
    %v5162 = vunpack.c.h.b16 %v3804
    %v5163 = vunpack.c.l.b16 %v3805
    %v5164 = vunpack.c.h.b16 %v3805
    %v5165 = vunpack.c.l.b16 %v3806
    %v5166 = vunpack.c.h.b16 %v3806
    %v5167 = vunpack.c.l.b16 %v3807
    %v5168 = vunpack.c.h.b16 %v3807
    %v5169 = vunpack.c.l.b16 %v3808
    %v5170 = vunpack.c.h.b16 %v3808
    %v5171 = vunpack.c.l.b16 %v3809
    %v5172 = vunpack.c.h.b16 %v3809
    %v5173 = vunpack.c.l.b16 %v3810
    %v5174 = vunpack.c.h.b16 %v3810
    %v5175 = vunpack.c.l.b16 %v3811
    %v5176 = vunpack.c.h.b16 %v3811
    %v5177 = vunpack.c.l.b16 %v3812
    %v5178 = vunpack.c.h.b16 %v3812
    %v5179 = vunpack.c.l.b16 %v3813
    %v5180 = vunpack.c.h.b16 %v3813
    %v5181 = vunpack.c.l.b16 %v3814
    %v5182 = vunpack.c.h.b16 %v3814
    %v5183 = vunpack.c.l.b16 %v3815
    %v5184 = vunpack.c.h.b16 %v3815
    %v5185 = vunpack.c.l.b16 %v3816
    %v5186 = vunpack.c.h.b16 %v3816
    %v5187 = vunpack.c.l.b16 %v3817
    %v5188 = vunpack.c.h.b16 %v3817
    %v5189 = vunpack.c.l.b16 %v3818
    %v5190 = vunpack.c.h.b16 %v3818
    %v5191 = vunpack.c.l.b16 %v3819
    %v5192 = vunpack.c.h.b16 %v3819
    %v5193 = vunpack.c.l.b16 %v3820
    %v5194 = vunpack.c.h.b16 %v3820
    %v5195 = vunpack.c.l.b16 %v3821
    %v5196 = vunpack.c.h.b16 %v3821
    %v5197 = vunpack.c.l.b16 %v3822
    %v5198 = vunpack.c.h.b16 %v3822
    %v5199 = vunpack.c.l.b16 %v3823
    %v5200 = vunpack.c.h.b16 %v3823
    %v5201 = vunpack.c.l.b16 %v3824
    %v5202 = vunpack.c.h.b16 %v3824
    %v5203 = vunpack.c.l.b16 %v3825
    %v5204 = vunpack.c.h.b16 %v3825
    %v5205 = vunpack.c.l.b16 %v3826
    %v5206 = vunpack.c.h.b16 %v3826
    %v5207 = vunpack.c.l.b16 %v3827
    %v5208 = vunpack.c.h.b16 %v3827
    %v5209 = vunpack.c.l.b16 %v3828
    %v5210 = vunpack.c.h.b16 %v3828
    %v5211 = vunpack.c.l.b16 %v3829
    %v5212 = vunpack.c.h.b16 %v3829
    %v5213 = vunpack.c.l.b16 %v3830
    %v5214 = vunpack.c.h.b16 %v3830
    %v5215 = vunpack.c.l.b16 %v3831
    %v5216 = vunpack.c.h.b16 %v3831
    %v5217 = vunpack.c.l.b16 %v3832
    %v5218 = vunpack.c.h.b16 %v3832
    %v5219 = vunpack.c.l.b16 %v3833
    %v5220 = vunpack.c.h.b16 %v3833
    %v5221 = vunpack.c.l.b16 %v3834
    %v5222 = vunpack.c.h.b16 %v3834
    %v5223 = vunpack.c.l.b16 %v3835
    %v5224 = vunpack.c.h.b16 %v3835
    %v5225 = vunpack.c.l.b16 %v3836
    %v5226 = vunpack.c.h.b16 %v3836
    %v5227 = vunpack.c.l.b16 %v3837
    %v5228 = vunpack.c.h.b16 %v3837
    %v5229 = vunpack.c.l.b16 %v3838
    %v5230 = vunpack.c.h.b16 %v3838
    %v5231 = vunpack.c.l.b16 %v3839
    %v5232 = vunpack.c.h.b16 %v3839
    %v5233 = vunpack.c.l.b16 %v3840
    %v5234 = vunpack.c.h.b16 %v3840
    %v5235 = vunpack.c.l.b16 %v3841
    %v5236 = vunpack.c.h.b16 %v3841
    %v5237 = vunpack.c.l.b16 %v3842
    %v5238 = vunpack.c.h.b16 %v3842
    %v5239 = vunpack.c.l.b16 %v3843
    %v5240 = vunpack.c.h.b16 %v3843
    %v5241 = vunpack.c.l.b16 %v3844
    %v5242 = vunpack.c.h.b16 %v3844
    %v5243 = vunpack.c.l.b16 %v3845
    %v5244 = vunpack.c.h.b16 %v3845
    %v5245 = vunpack.c.l.b16 %v3846
    %v5246 = vunpack.c.h.b16 %v3846
    %v5247 = vunpack.c.l.b16 %v3847
    %v5248 = vunpack.c.h.b16 %v3847
    %v5249 = vunpack.c.l.b16 %v3848
    %v5250 = vunpack.c.h.b16 %v3848
    %v5251 = vunpack.c.l.b16 %v3849
    %v5252 = vunpack.c.h.b16 %v3849
    %v5253 = vunpack.c.l.b16 %v3850
    %v5254 = vunpack.c.h.b16 %v3850
    %v5255 = vunpack.c.l.b16 %v3851
    %v5256 = vunpack.c.h.b16 %v3851
    %v5257 = vunpack.c.l.b16 %v3852
    %v5258 = vunpack.c.h.b16 %v3852
    %v5259 = vunpack.c.l.b16 %v3853
    %v5260 = vunpack.c.h.b16 %v3853
    %v5261 = vunpack.c.l.b16 %v3854
    %v5262 = vunpack.c.h.b16 %v3854
    %v5263 = vunpack.c.l.b16 %v3855
    %v5264 = vunpack.c.h.b16 %v3855
    %v5265 = vunpack.c.l.b16 %v3856
    %v5266 = vunpack.c.h.b16 %v3856
    %v5267 = vunpack.c.l.b16 %v3857
    %v5268 = vunpack.c.h.b16 %v3857
    %v5269 = vunpack.c.l.b16 %v3858
    %v5270 = vunpack.c.h.b16 %v3858
    %v5271 = vunpack.c.l.b16 %v3859
    %v5272 = vunpack.c.h.b16 %v3859
    %v5273 = vunpack.c.l.b16 %v3860
    %v5274 = vunpack.c.h.b16 %v3860
    %v5275 = vunpack.c.l.b16 %v3861
    %v5276 = vunpack.c.h.b16 %v3861
    %v5277 = vunpack.c.l.b16 %v3862
    %v5278 = vunpack.c.h.b16 %v3862
    %v5279 = vunpack.c.l.b16 %v3863
    %v5280 = vunpack.c.h.b16 %v3863
    %v5281 = vunpack.c.l.b16 %v3864
    %v5282 = vunpack.c.h.b16 %v3864
    %v5283 = vunpack.c.l.b16 %v3865
    %v5284 = vunpack.c.h.b16 %v3865
    %v5285 = vunpack.c.l.b16 %v3866
    %v5286 = vunpack.c.h.b16 %v3866
    %v5287 = vunpack.c.l.b16 %v3867
    %v5288 = vunpack.c.h.b16 %v3867
    %v5289 = vunpack.c.l.b16 %v3868
    %v5290 = vunpack.c.h.b16 %v3868
    %v5291 = vunpack.c.l.b16 %v3869
    %v5292 = vunpack.c.h.b16 %v3869
    %v5293 = vunpack.c.l.b16 %v3870
    %v5294 = vunpack.c.h.b16 %v3870
    %v5295 = vunpack.c.l.b16 %v3871
    %v5296 = vunpack.c.h.b16 %v3871
    %v5297 = vunpack.c.l.b16 %v3872
    %v5298 = vunpack.c.h.b16 %v3872
    %v5299 = vunpack.c.l.b16 %v3873
    %v5300 = vunpack.c.h.b16 %v3873
    %v5301 = vunpack.c.l.b16 %v3874
    %v5302 = vunpack.c.h.b16 %v3874
    %v5303 = vunpack.c.l.b16 %v3875
    %v5304 = vunpack.c.h.b16 %v3875
    %v5305 = vunpack.c.l.b16 %v3876
    %v5306 = vunpack.c.h.b16 %v3876
    %v5307 = vunpack.c.l.b16 %v3877
    %v5308 = vunpack.c.h.b16 %v3877
    %v5309 = vunpack.c.l.b16 %v3878
    %v5310 = vunpack.c.h.b16 %v3878
    %v5311 = vunpack.c.l.b16 %v3879
    %v5312 = vunpack.c.h.b16 %v3879
    %v5313 = vunpack.c.l.b16 %v3880
    %v5314 = vunpack.c.h.b16 %v3880
    %v5315 = vunpack.c.l.b16 %v3881
    %v5316 = vunpack.c.h.b16 %v3881
    %v5317 = vunpack.c.l.b16 %v3882
    %v5318 = vunpack.c.h.b16 %v3882
    %v5319 = vunpack.c.l.b16 %v3883
    %v5320 = vunpack.c.h.b16 %v3883
    %v5321 = vunpack.c.l.b16 %v3884
    %v5322 = vunpack.c.h.b16 %v3884
    %v5323 = vunpack.c.l.b16 %v3885
    %v5324 = vunpack.c.h.b16 %v3885
    %v5325 = vunpack.c.l.b16 %v3886
    %v5326 = vunpack.c.h.b16 %v3886
    %v5327 = vunpack.c.l.b16 %v3887
    %v5328 = vunpack.c.h.b16 %v3887
    %v5329 = vunpack.c.l.b16 %v3888
    %v5330 = vunpack.c.h.b16 %v3888
    %v5331 = vunpack.c.l.b16 %v3889
    %v5332 = vunpack.c.h.b16 %v3889
    %v5333 = vunpack.c.l.b16 %v3890
    %v5334 = vunpack.c.h.b16 %v3890
    %v5335 = vunpack.c.l.b16 %v3891
    %v5336 = vunpack.c.h.b16 %v3891
    %v5337 = vunpack.c.l.b16 %v3892
    %v5338 = vunpack.c.h.b16 %v3892
    %v5339 = vunpack.c.l.b16 %v3893
    %v5340 = vunpack.c.h.b16 %v3893
    %v5341 = vunpack.c.l.b16 %v3894
    %v5342 = vunpack.c.h.b16 %v3894
    %v5343 = vunpack.c.l.b16 %v3895
    %v5344 = vunpack.c.h.b16 %v3895
    %v5345 = vunpack.c.l.b16 %v3896
    %v5346 = vunpack.c.h.b16 %v3896
    %v5347 = vunpack.c.l.b16 %v3897
    %v5348 = vunpack.c.h.b16 %v3897
    %v5349 = vunpack.c.l.b16 %v3898
    %v5350 = vunpack.c.h.b16 %v3898
    %v5351 = vunpack.c.l.b16 %v3899
    %v5352 = vunpack.c.h.b16 %v3899
    %v5353 = vunpack.c.l.b16 %v3900
    %v5354 = vunpack.c.h.b16 %v3900
    %v5355 = vunpack.c.l.b16 %v3901
    %v5356 = vunpack.c.h.b16 %v3901
    %v5357 = vunpack.c.l.b16 %v3902
    %v5358 = vunpack.c.h.b16 %v3902
    %v5359 = vunpack.c.l.b16 %v3903
    %v5360 = vunpack.c.h.b16 %v3903
    %v5361 = vunpack.c.l.b16 %v3904
    %v5362 = vunpack.c.h.b16 %v3904
    %v5363 = vunpack.c.l.b16 %v3905
    %v5364 = vunpack.c.h.b16 %v3905
    %v5365 = vunpack.c.l.b16 %v3906
    %v5366 = vunpack.c.h.b16 %v3906
    %v5367 = vunpack.c.l.b16 %v3907
    %v5368 = vunpack.c.h.b16 %v3907
    %v5369 = vunpack.c.l.b16 %v3908
    %v5370 = vunpack.c.h.b16 %v3908
    %v5371 = vunpack.c.l.b16 %v3909
    %v5372 = vunpack.c.h.b16 %v3909
    %v5373 = vunpack.c.l.b16 %v3910
    %v5374 = vunpack.c.h.b16 %v3910
    %v5375 = vunpack.c.l.b16 %v3911
    %v5376 = vunpack.c.h.b16 %v3911
    %v5377 = vunpack.c.l.b16 %v3912
    %v5378 = vunpack.c.h.b16 %v3912
    %v5379 = vunpack.c.l.b16 %v3913
    %v5380 = vunpack.c.h.b16 %v3913
    %v5381 = vunpack.c.l.b16 %v3914
    %v5382 = vunpack.c.h.b16 %v3914
    %v5383 = vunpack.c.l.b16 %v3915
    %v5384 = vunpack.c.h.b16 %v3915
    %v5385 = vunpack.c.l.b16 %v3916
    %v5386 = vunpack.c.h.b16 %v3916
    %v5387 = vunpack.c.l.b16 %v3917
    %v5388 = vunpack.c.h.b16 %v3917
    %v5389 = vunpack.c.l.b16 %v3918
    %v5390 = vunpack.c.h.b16 %v3918
    %v5391 = vunpack.c.l.b16 %v3919
    %v5392 = vunpack.c.h.b16 %v3919
    %v5393 = vunpack.c.l.b16 %v3920
    %v5394 = vunpack.c.h.b16 %v3920
    %v5395 = vunpack.c.l.b16 %v3921
    %v5396 = vunpack.c.h.b16 %v3921
    %v5397 = vunpack.c.l.b16 %v3922
    %v5398 = vunpack.c.h.b16 %v3922
    %v5399 = vunpack.c.l.b16 %v3923
    %v5400 = vunpack.c.h.b16 %v3923
    %v5401 = vunpack.c.l.b16 %v3924
    %v5402 = vunpack.c.h.b16 %v3924
    %v5403 = vunpack.c.l.b16 %v3925
    %v5404 = vunpack.c.h.b16 %v3925
    %v5405 = vunpack.c.l.b16 %v3926
    %v5406 = vunpack.c.h.b16 %v3926
    %v5407 = vunpack.c.l.b16 %v3927
    %v5408 = vunpack.c.h.b16 %v3927
    %v5409 = vunpack.c.l.b16 %v3928
    %v5410 = vunpack.c.h.b16 %v3928
    %v5411 = vunpack.c.l.b16 %v3929
    %v5412 = vunpack.c.h.b16 %v3929
    %v5413 = vunpack.c.l.b16 %v3930
    %v5414 = vunpack.c.h.b16 %v3930
    %v5415 = vunpack.c.l.b16 %v3931
    %v5416 = vunpack.c.h.b16 %v3931
    %v5417 = vunpack.c.l.b16 %v3932
    %v5418 = vunpack.c.h.b16 %v3932
    %v5419 = vunpack.c.l.b16 %v3933
    %v5420 = vunpack.c.h.b16 %v3933
    %v5421 = vunpack.c.l.b16 %v3934
    %v5422 = vunpack.c.h.b16 %v3934
    %v5423 = vunpack.c.l.b16 %v3935
    %v5424 = vunpack.c.h.b16 %v3935
    %v5425 = vunpack.c.l.b16 %v3936
    %v5426 = vunpack.c.h.b16 %v3936
    %v5427 = vunpack.c.l.b16 %v3937
    %v5428 = vunpack.c.h.b16 %v3937
    %v5429 = vunpack.c.l.b16 %v3938
    %v5430 = vunpack.c.h.b16 %v3938
    %v5431 = vunpack.c.l.b16 %v3939
    %v5432 = vunpack.c.h.b16 %v3939
    %v5433 = vunpack.c.l.b16 %v3940
    %v5434 = vunpack.c.h.b16 %v3940
    %v5435 = vunpack.c.l.b16 %v3941
    %v5436 = vunpack.c.h.b16 %v3941
    %v5437 = vunpack.c.l.b16 %v3942
    %v5438 = vunpack.c.h.b16 %v3942
    %v5439 = vunpack.c.l.b16 %v3943
    %v5440 = vunpack.c.h.b16 %v3943
    %v5441 = vunpack.c.l.b16 %v3944
    %v5442 = vunpack.c.h.b16 %v3944
    %v5443 = vunpack.c.l.b16 %v3945
    %v5444 = vunpack.c.h.b16 %v3945
    %v5445 = vunpack.c.l.b16 %v3946
    %v5446 = vunpack.c.h.b16 %v3946
    %v5447 = vunpack.c.l.b16 %v3947
    %v5448 = vunpack.c.h.b16 %v3947
    %v5449 = vunpack.c.l.b16 %v3948
    %v5450 = vunpack.c.h.b16 %v3948
    %v5451 = vunpack.c.l.b16 %v3949
    %v5452 = vunpack.c.h.b16 %v3949
    %v5453 = vunpack.c.l.b16 %v3950
    %v5454 = vunpack.c.h.b16 %v3950
    %v5455 = vunpack.c.l.b16 %v3951
    %v5456 = vunpack.c.h.b16 %v3951
    %v5457 = vunpack.c.l.b16 %v3952
    %v5458 = vunpack.c.h.b16 %v3952
    %v5459 = vunpack.c.l.b16 %v3953
    %v5460 = vunpack.c.h.b16 %v3953
    %v5461 = vunpack.c.l.b16 %v3954
    %v5462 = vunpack.c.h.b16 %v3954
    %v5463 = vunpack.c.l.b16 %v3955
    %v5464 = vunpack.c.h.b16 %v3955
    %v5465 = vunpack.c.l.b16 %v3956
    %v5466 = vunpack.c.h.b16 %v3956
    %v5467 = vunpack.c.l.b16 %v3957
    %v5468 = vunpack.c.h.b16 %v3957
    %v5469 = vunpack.c.l.b16 %v3958
    %v5470 = vunpack.c.h.b16 %v3958
    %v5471 = vunpack.c.l.b16 %v3959
    %v5472 = vunpack.c.h.b16 %v3959
    %v5473 = vunpack.c.l.b16 %v3960
    %v5474 = vunpack.c.h.b16 %v3960
    %v5475 = vunpack.c.l.b16 %v3961
    %v5476 = vunpack.c.h.b16 %v3961
    %v5477 = vunpack.c.l.b16 %v3962
    %v5478 = vunpack.c.h.b16 %v3962
    %v5479 = vunpack.c.l.b16 %v3963
    %v5480 = vunpack.c.h.b16 %v3963
    %v5481 = vunpack.c.l.b16 %v3964
    %v5482 = vunpack.c.h.b16 %v3964
    %v5483 = vunpack.c.l.b16 %v3965
    %v5484 = vunpack.c.h.b16 %v3965
    %v5485 = vunpack.c.l.b16 %v3966
    %v5486 = vunpack.c.h.b16 %v3966
    %v5487 = vunpack.c.l.b16 %v3967
    %v5488 = vunpack.c.h.b16 %v3967
    %v5489 = vunpack.c.l.b16 %v3968
    %v5490 = vunpack.c.h.b16 %v3968
    %v5491 = vunpack.c.l.b16 %v3969
    %v5492 = vunpack.c.h.b16 %v3969
    %v5493 = vunpack.c.l.b16 %v3970
    %v5494 = vunpack.c.h.b16 %v3970
    %v5495 = vunpack.c.l.b16 %v3971
    %v5496 = vunpack.c.h.b16 %v3971
    %v5497 = vunpack.c.l.b16 %v3972
    %v5498 = vunpack.c.h.b16 %v3972
    %v5499 = vunpack.c.l.b16 %v3973
    %v5500 = vunpack.c.h.b16 %v3973
    %v5501 = vunpack.c.l.b16 %v3974
    %v5502 = vunpack.c.h.b16 %v3974
    %v5503 = vunpack.c.l.b16 %v3975
    %v5504 = vunpack.c.h.b16 %v3975
    %v5505 = vunpack.c.l.b16 %v3976
    %v5506 = vunpack.c.h.b16 %v3976
    %v5507 = vunpack.c.l.b16 %v3977
    %v5508 = vunpack.c.h.b16 %v3977
    %v5509 = vunpack.c.l.b16 %v3978
    %v5510 = vunpack.c.h.b16 %v3978
    %v5511 = vunpack.c.l.b16 %v3979
    %v5512 = vunpack.c.h.b16 %v3979
    %v5513 = vunpack.c.l.b16 %v3980
    %v5514 = vunpack.c.h.b16 %v3980
    %v5515 = vunpack.c.l.b16 %v3981
    %v5516 = vunpack.c.h.b16 %v3981
    %v5517 = vunpack.c.l.b16 %v3982
    %v5518 = vunpack.c.h.b16 %v3982
    %v5519 = vunpack.c.l.b16 %v3983
    %v5520 = vunpack.c.h.b16 %v3983
    %v5521 = vunpack.c.l.b16 %v3984
    %v5522 = vunpack.c.h.b16 %v3984
    %v5523 = vunpack.c.l.b16 %v3985
    %v5524 = vunpack.c.h.b16 %v3985
    %v5525 = vunpack.c.l.b16 %v3986
    %v5526 = vunpack.c.h.b16 %v3986
    %v5527 = vunpack.c.l.b16 %v3987
    %v5528 = vunpack.c.h.b16 %v3987
    %v5529 = vunpack.c.l.b16 %v3988
    %v5530 = vunpack.c.h.b16 %v3988
    %v5531 = vunpack.c.l.b16 %v3989
    %v5532 = vunpack.c.h.b16 %v3989
    %v5533 = vunpack.c.l.b16 %v3990
    %v5534 = vunpack.c.h.b16 %v3990
    %v5535 = vunpack.c.l.b16 %v3991
    %v5536 = vunpack.c.h.b16 %v3991
    %v5537 = vunpack.c.l.b16 %v3992
    %v5538 = vunpack.c.h.b16 %v3992
    %v5539 = vunpack.c.l.b16 %v3993
    %v5540 = vunpack.c.h.b16 %v3993
    %v5541 = vunpack.c.l.b16 %v3994
    %v5542 = vunpack.c.h.b16 %v3994
    %v5543 = vunpack.c.l.b16 %v3995
    %v5544 = vunpack.c.h.b16 %v3995
    %v5545 = vunpack.c.l.b16 %v3996
    %v5546 = vunpack.c.h.b16 %v3996
    %v5547 = vunpack.c.l.b16 %v3997
    %v5548 = vunpack.c.h.b16 %v3997
    %v5549 = vunpack.c.l.b16 %v3998
    %v5550 = vunpack.c.h.b16 %v3998
    %v5551 = vunpack.c.l.b16 %v3999
    %v5552 = vunpack.c.h.b16 %v3999
    %v5553 = vunpack.c.l.b16 %v4000
    %v5554 = vunpack.c.h.b16 %v4000
    %v5555 = vunpack.c.l.b16 %v4001
    %v5556 = vunpack.c.h.b16 %v4001
    %v5557 = vunpack.c.l.b16 %v4002
    %v5558 = vunpack.c.h.b16 %v4002
    %v5559 = vunpack.c.l.b16 %v4003
    %v5560 = vunpack.c.h.b16 %v4003
    %v5561 = vunpack.c.l.b16 %v4004
    %v5562 = vunpack.c.h.b16 %v4004
    %v5563 = vunpack.c.l.b16 %v4005
    %v5564 = vunpack.c.h.b16 %v4005
    %v5565 = vunpack.c.l.b16 %v4006
    %v5566 = vunpack.c.h.b16 %v4006
    %v5567 = vunpack.c.l.b16 %v4007
    %v5568 = vunpack.c.h.b16 %v4007
    %v5569 = vunpack.c.l.b16 %v4008
    %v5570 = vunpack.c.h.b16 %v4008
    %v5571 = vunpack.c.l.b16 %v4009
    %v5572 = vunpack.c.h.b16 %v4009
    %v5573 = vunpack.c.l.b16 %v4010
    %v5574 = vunpack.c.h.b16 %v4010
    %v5575 = vunpack.c.l.b16 %v4011
    %v5576 = vunpack.c.h.b16 %v4011
    %v5577 = vunpack.c.l.b16 %v4012
    %v5578 = vunpack.c.h.b16 %v4012
    %v5579 = vunpack.c.l.b16 %v4013
    %v5580 = vunpack.c.h.b16 %v4013
    %v5581 = vunpack.c.l.b16 %v4014
    %v5582 = vunpack.c.h.b16 %v4014
    %v5583 = vunpack.c.l.b16 %v4015
    %v5584 = vunpack.c.h.b16 %v4015
    %v5585 = vunpack.c.l.b16 %v4016
    %v5586 = vunpack.c.h.b16 %v4016
    %v5587 = vunpack.c.l.b16 %v4017
    %v5588 = vunpack.c.h.b16 %v4017
    %v5589 = vunpack.c.l.b16 %v4018
    %v5590 = vunpack.c.h.b16 %v4018
    %v5591 = vunpack.c.l.b16 %v4019
    %v5592 = vunpack.c.h.b16 %v4019
    %v5593 = vunpack.c.l.b16 %v4020
    %v5594 = vunpack.c.h.b16 %v4020
    %v5595 = vunpack.c.l.b16 %v4021
    %v5596 = vunpack.c.h.b16 %v4021
    %v5597 = vunpack.c.l.b16 %v4022
    %v5598 = vunpack.c.h.b16 %v4022
    %v5599 = vunpack.c.l.b16 %v4023
    %v5600 = vunpack.c.h.b16 %v4023
    %v5601 = vunpack.c.l.b16 %v4024
    %v5602 = vunpack.c.h.b16 %v4024
    %v5603 = vpack.c.b16 %v4587, %v4579
    %v5604 = vpack.c.b16 %v4588, %v4580
    %v5605 = vpack.c.b16 %v4589, %v4581
    %v5606 = vpack.c.b16 %v4590, %v4582
    %v5607 = vpack.c.b16 %v4591, %v4583
    %v5608 = vpack.c.b16 %v4592, %v4584
    %v5609 = vpack.c.b16 %v4593, %v4585
    %v5610 = vpack.c.b16 %v4594, %v4586
    %v5611 = vpack.c.b16 %v4603, %v4595
    %v5612 = vpack.c.b16 %v4604, %v4596
    %v5613 = vpack.c.b16 %v4605, %v4597
    %v5614 = vpack.c.b16 %v4606, %v4598
    %v5615 = vpack.c.b16 %v4607, %v4599
    %v5616 = vpack.c.b16 %v4608, %v4600
    %v5617 = vpack.c.b16 %v4609, %v4601
    %v5618 = vpack.c.b16 %v4610, %v4602
    %v5619 = vpack.c.b16 %v4619, %v4611
    %v5620 = vpack.c.b16 %v4620, %v4612
    %v5621 = vpack.c.b16 %v4621, %v4613
    %v5622 = vpack.c.b16 %v4622, %v4614
    %v5623 = vpack.c.b16 %v4623, %v4615
    %v5624 = vpack.c.b16 %v4624, %v4616
    %v5625 = vpack.c.b16 %v4625, %v4617
    %v5626 = vpack.c.b16 %v4626, %v4618
    %v5627 = vpack.c.b16 %v4635, %v4627
    %v5628 = vpack.c.b16 %v4636, %v4628
    %v5629 = vpack.c.b16 %v4637, %v4629
    %v5630 = vpack.c.b16 %v4638, %v4630
    %v5631 = vpack.c.b16 %v4639, %v4631
    %v5632 = vpack.c.b16 %v4640, %v4632
    %v5633 = vpack.c.b16 %v4641, %v4633
    %v5634 = vpack.c.b16 %v4642, %v4634
    %v5635 = vpack.c.b16 %v4651, %v4643
    %v5636 = vpack.c.b16 %v4652, %v4644
    %v5637 = vpack.c.b16 %v4653, %v4645
    %v5638 = vpack.c.b16 %v4654, %v4646
    %v5639 = vpack.c.b16 %v4655, %v4647
    %v5640 = vpack.c.b16 %v4656, %v4648
    %v5641 = vpack.c.b16 %v4657, %v4649
    %v5642 = vpack.c.b16 %v4658, %v4650
    %v5643 = vpack.c.b16 %v4667, %v4659
    %v5644 = vpack.c.b16 %v4668, %v4660
    %v5645 = vpack.c.b16 %v4669, %v4661
    %v5646 = vpack.c.b16 %v4670, %v4662
    %v5647 = vpack.c.b16 %v4671, %v4663
    %v5648 = vpack.c.b16 %v4672, %v4664
    %v5649 = vpack.c.b16 %v4673, %v4665
    %v5650 = vpack.c.b16 %v4674, %v4666
    %v5651 = vpack.c.b16 %v4683, %v4675
    %v5652 = vpack.c.b16 %v4684, %v4676
    %v5653 = vpack.c.b16 %v4685, %v4677
    %v5654 = vpack.c.b16 %v4686, %v4678
    %v5655 = vpack.c.b16 %v4687, %v4679
    %v5656 = vpack.c.b16 %v4688, %v4680
    %v5657 = vpack.c.b16 %v4689, %v4681
    %v5658 = vpack.c.b16 %v4690, %v4682
    %v5659 = vpack.c.b16 %v4699, %v4691
    %v5660 = vpack.c.b16 %v4700, %v4692
    %v5661 = vpack.c.b16 %v4701, %v4693
    %v5662 = vpack.c.b16 %v4702, %v4694
    %v5663 = vpack.c.b16 %v4703, %v4695
    %v5664 = vpack.c.b16 %v4704, %v4696
    %v5665 = vpack.c.b16 %v4705, %v4697
    %v5666 = vpack.c.b16 %v4706, %v4698
    %v5667 = vpack.c.b16 %v4715, %v4707
    %v5668 = vpack.c.b16 %v4716, %v4708
    %v5669 = vpack.c.b16 %v4717, %v4709
    %v5670 = vpack.c.b16 %v4718, %v4710
    %v5671 = vpack.c.b16 %v4719, %v4711
    %v5672 = vpack.c.b16 %v4720, %v4712
    %v5673 = vpack.c.b16 %v4721, %v4713
    %v5674 = vpack.c.b16 %v4722, %v4714
    %v5675 = vpack.c.b16 %v4731, %v4723
    %v5676 = vpack.c.b16 %v4732, %v4724
    %v5677 = vpack.c.b16 %v4733, %v4725
    %v5678 = vpack.c.b16 %v4734, %v4726
    %v5679 = vpack.c.b16 %v4735, %v4727
    %v5680 = vpack.c.b16 %v4736, %v4728
    %v5681 = vpack.c.b16 %v4737, %v4729
    %v5682 = vpack.c.b16 %v4738, %v4730
    %v5683 = vpack.c.b16 %v4747, %v4739
    %v5684 = vpack.c.b16 %v4748, %v4740
    %v5685 = vpack.c.b16 %v4749, %v4741
    %v5686 = vpack.c.b16 %v4750, %v4742
    %v5687 = vpack.c.b16 %v4751, %v4743
    %v5688 = vpack.c.b16 %v4752, %v4744
    %v5689 = vpack.c.b16 %v4753, %v4745
    %v5690 = vpack.c.b16 %v4754, %v4746
    %v5691 = vpack.c.b16 %v4763, %v4755
    %v5692 = vpack.c.b16 %v4764, %v4756
    %v5693 = vpack.c.b16 %v4765, %v4757
    %v5694 = vpack.c.b16 %v4766, %v4758
    %v5695 = vpack.c.b16 %v4767, %v4759
    %v5696 = vpack.c.b16 %v4768, %v4760
    %v5697 = vpack.c.b16 %v4769, %v4761
    %v5698 = vpack.c.b16 %v4770, %v4762
    %v5699 = vpack.c.b16 %v4779, %v4771
    %v5700 = vpack.c.b16 %v4780, %v4772
    %v5701 = vpack.c.b16 %v4781, %v4773
    %v5702 = vpack.c.b16 %v4782, %v4774
    %v5703 = vpack.c.b16 %v4783, %v4775
    %v5704 = vpack.c.b16 %v4784, %v4776
    %v5705 = vpack.c.b16 %v4785, %v4777
    %v5706 = vpack.c.b16 %v4786, %v4778
    %v5707 = vpack.c.b16 %v4795, %v4787
    %v5708 = vpack.c.b16 %v4796, %v4788
    %v5709 = vpack.c.b16 %v4797, %v4789
    %v5710 = vpack.c.b16 %v4798, %v4790
    %v5711 = vpack.c.b16 %v4799, %v4791
    %v5712 = vpack.c.b16 %v4800, %v4792
    %v5713 = vpack.c.b16 %v4801, %v4793
    %v5714 = vpack.c.b16 %v4802, %v4794
    %v5715 = vpack.c.b16 %v4811, %v4803
    %v5716 = vpack.c.b16 %v4812, %v4804
    %v5717 = vpack.c.b16 %v4813, %v4805
    %v5718 = vpack.c.b16 %v4814, %v4806
    %v5719 = vpack.c.b16 %v4815, %v4807
    %v5720 = vpack.c.b16 %v4816, %v4808
    %v5721 = vpack.c.b16 %v4817, %v4809
    %v5722 = vpack.c.b16 %v4818, %v4810
    %v5723 = vpack.c.b16 %v4827, %v4819
    %v5724 = vpack.c.b16 %v4828, %v4820
    %v5725 = vpack.c.b16 %v4829, %v4821
    %v5726 = vpack.c.b16 %v4830, %v4822
    %v5727 = vpack.c.b16 %v4831, %v4823
    %v5728 = vpack.c.b16 %v4832, %v4824
    %v5729 = vpack.c.b16 %v4833, %v4825
    %v5730 = vpack.c.b16 %v4834, %v4826
    %v5731 = vpack.c.b16 %v4843, %v4835
    %v5732 = vpack.c.b16 %v4844, %v4836
    %v5733 = vpack.c.b16 %v4845, %v4837
    %v5734 = vpack.c.b16 %v4846, %v4838
    %v5735 = vpack.c.b16 %v4847, %v4839
    %v5736 = vpack.c.b16 %v4848, %v4840
    %v5737 = vpack.c.b16 %v4849, %v4841
    %v5738 = vpack.c.b16 %v4850, %v4842
    %v5739 = vpack.c.b16 %v4859, %v4851
    %v5740 = vpack.c.b16 %v4860, %v4852
    %v5741 = vpack.c.b16 %v4861, %v4853
    %v5742 = vpack.c.b16 %v4862, %v4854
    %v5743 = vpack.c.b16 %v4863, %v4855
    %v5744 = vpack.c.b16 %v4864, %v4856
    %v5745 = vpack.c.b16 %v4865, %v4857
    %v5746 = vpack.c.b16 %v4866, %v4858
    %v5747 = vpack.c.b16 %v4875, %v4867
    %v5748 = vpack.c.b16 %v4876, %v4868
    %v5749 = vpack.c.b16 %v4877, %v4869
    %v5750 = vpack.c.b16 %v4878, %v4870
    %v5751 = vpack.c.b16 %v4879, %v4871
    %v5752 = vpack.c.b16 %v4880, %v4872
    %v5753 = vpack.c.b16 %v4881, %v4873
    %v5754 = vpack.c.b16 %v4882, %v4874
    %v5755 = vpack.c.b16 %v4891, %v4883
    %v5756 = vpack.c.b16 %v4892, %v4884
    %v5757 = vpack.c.b16 %v4893, %v4885
    %v5758 = vpack.c.b16 %v4894, %v4886
    %v5759 = vpack.c.b16 %v4895, %v4887
    %v5760 = vpack.c.b16 %v4896, %v4888
    %v5761 = vpack.c.b16 %v4897, %v4889
    %v5762 = vpack.c.b16 %v4898, %v4890
    %v5763 = vpack.c.b16 %v4907, %v4899
    %v5764 = vpack.c.b16 %v4908, %v4900
    %v5765 = vpack.c.b16 %v4909, %v4901
    %v5766 = vpack.c.b16 %v4910, %v4902
    %v5767 = vpack.c.b16 %v4911, %v4903
    %v5768 = vpack.c.b16 %v4912, %v4904
    %v5769 = vpack.c.b16 %v4913, %v4905
    %v5770 = vpack.c.b16 %v4914, %v4906
    %v5771 = vpack.c.b16 %v4923, %v4915
    %v5772 = vpack.c.b16 %v4924, %v4916
    %v5773 = vpack.c.b16 %v4925, %v4917
    %v5774 = vpack.c.b16 %v4926, %v4918
    %v5775 = vpack.c.b16 %v4927, %v4919
    %v5776 = vpack.c.b16 %v4928, %v4920
    %v5777 = vpack.c.b16 %v4929, %v4921
    %v5778 = vpack.c.b16 %v4930, %v4922
    %v5779 = vpack.c.b16 %v4939, %v4931
    %v5780 = vpack.c.b16 %v4940, %v4932
    %v5781 = vpack.c.b16 %v4941, %v4933
    %v5782 = vpack.c.b16 %v4942, %v4934
    %v5783 = vpack.c.b16 %v4943, %v4935
    %v5784 = vpack.c.b16 %v4944, %v4936
    %v5785 = vpack.c.b16 %v4945, %v4937
    %v5786 = vpack.c.b16 %v4946, %v4938
    %v5787 = vpack.c.b16 %v4955, %v4947
    %v5788 = vpack.c.b16 %v4956, %v4948
    %v5789 = vpack.c.b16 %v4957, %v4949
    %v5790 = vpack.c.b16 %v4958, %v4950
    %v5791 = vpack.c.b16 %v4959, %v4951
    %v5792 = vpack.c.b16 %v4960, %v4952
    %v5793 = vpack.c.b16 %v4961, %v4953
    %v5794 = vpack.c.b16 %v4962, %v4954
    %v5795 = vpack.c.b16 %v4971, %v4963
    %v5796 = vpack.c.b16 %v4972, %v4964
    %v5797 = vpack.c.b16 %v4973, %v4965
    %v5798 = vpack.c.b16 %v4974, %v4966
    %v5799 = vpack.c.b16 %v4975, %v4967
    %v5800 = vpack.c.b16 %v4976, %v4968
    %v5801 = vpack.c.b16 %v4977, %v4969
    %v5802 = vpack.c.b16 %v4978, %v4970
    %v5803 = vpack.c.b16 %v4987, %v4979
    %v5804 = vpack.c.b16 %v4988, %v4980
    %v5805 = vpack.c.b16 %v4989, %v4981
    %v5806 = vpack.c.b16 %v4990, %v4982
    %v5807 = vpack.c.b16 %v4991, %v4983
    %v5808 = vpack.c.b16 %v4992, %v4984
    %v5809 = vpack.c.b16 %v4993, %v4985
    %v5810 = vpack.c.b16 %v4994, %v4986
    %v5811 = vpack.c.b16 %v5003, %v4995
    %v5812 = vpack.c.b16 %v5004, %v4996
    %v5813 = vpack.c.b16 %v5005, %v4997
    %v5814 = vpack.c.b16 %v5006, %v4998
    %v5815 = vpack.c.b16 %v5007, %v4999
    %v5816 = vpack.c.b16 %v5008, %v5000
    %v5817 = vpack.c.b16 %v5009, %v5001
    %v5818 = vpack.c.b16 %v5010, %v5002
    %v5819 = vpack.c.b16 %v5019, %v5011
    %v5820 = vpack.c.b16 %v5020, %v5012
    %v5821 = vpack.c.b16 %v5021, %v5013
    %v5822 = vpack.c.b16 %v5022, %v5014
    %v5823 = vpack.c.b16 %v5023, %v5015
    %v5824 = vpack.c.b16 %v5024, %v5016
    %v5825 = vpack.c.b16 %v5025, %v5017
    %v5826 = vpack.c.b16 %v5026, %v5018
    %v5827 = vpack.c.b16 %v5035, %v5027
    %v5828 = vpack.c.b16 %v5036, %v5028
    %v5829 = vpack.c.b16 %v5037, %v5029
    %v5830 = vpack.c.b16 %v5038, %v5030
    %v5831 = vpack.c.b16 %v5039, %v5031
    %v5832 = vpack.c.b16 %v5040, %v5032
    %v5833 = vpack.c.b16 %v5041, %v5033
    %v5834 = vpack.c.b16 %v5042, %v5034
    %v5835 = vpack.c.b16 %v5051, %v5043
    %v5836 = vpack.c.b16 %v5052, %v5044
    %v5837 = vpack.c.b16 %v5053, %v5045
    %v5838 = vpack.c.b16 %v5054, %v5046
    %v5839 = vpack.c.b16 %v5055, %v5047
    %v5840 = vpack.c.b16 %v5056, %v5048
    %v5841 = vpack.c.b16 %v5057, %v5049
    %v5842 = vpack.c.b16 %v5058, %v5050
    %v5843 = vpack.c.b16 %v5067, %v5059
    %v5844 = vpack.c.b16 %v5068, %v5060
    %v5845 = vpack.c.b16 %v5069, %v5061
    %v5846 = vpack.c.b16 %v5070, %v5062
    %v5847 = vpack.c.b16 %v5071, %v5063
    %v5848 = vpack.c.b16 %v5072, %v5064
    %v5849 = vpack.c.b16 %v5073, %v5065
    %v5850 = vpack.c.b16 %v5074, %v5066
    %v5851 = vpack.c.b16 %v5083, %v5075
    %v5852 = vpack.c.b16 %v5084, %v5076
    %v5853 = vpack.c.b16 %v5085, %v5077
    %v5854 = vpack.c.b16 %v5086, %v5078
    %v5855 = vpack.c.b16 %v5087, %v5079
    %v5856 = vpack.c.b16 %v5088, %v5080
    %v5857 = vpack.c.b16 %v5089, %v5081
    %v5858 = vpack.c.b16 %v5090, %v5082
    %v5859 = vpack.c.b16 %v5099, %v5091
    %v5860 = vpack.c.b16 %v5100, %v5092
    %v5861 = vpack.c.b16 %v5101, %v5093
    %v5862 = vpack.c.b16 %v5102, %v5094
    %v5863 = vpack.c.b16 %v5103, %v5095
    %v5864 = vpack.c.b16 %v5104, %v5096
    %v5865 = vpack.c.b16 %v5105, %v5097
    %v5866 = vpack.c.b16 %v5106, %v5098
    %v5867 = vpack.c.b16 %v5115, %v5107
    %v5868 = vpack.c.b16 %v5116, %v5108
    %v5869 = vpack.c.b16 %v5117, %v5109
    %v5870 = vpack.c.b16 %v5118, %v5110
    %v5871 = vpack.c.b16 %v5119, %v5111
    %v5872 = vpack.c.b16 %v5120, %v5112
    %v5873 = vpack.c.b16 %v5121, %v5113
    %v5874 = vpack.c.b16 %v5122, %v5114
    %v5875 = vpack.c.b16 %v5131, %v5123
    %v5876 = vpack.c.b16 %v5132, %v5124
    %v5877 = vpack.c.b16 %v5133, %v5125
    %v5878 = vpack.c.b16 %v5134, %v5126
    %v5879 = vpack.c.b16 %v5135, %v5127
    %v5880 = vpack.c.b16 %v5136, %v5128
    %v5881 = vpack.c.b16 %v5137, %v5129
    %v5882 = vpack.c.b16 %v5138, %v5130
    %v5883 = vpack.c.b16 %v5147, %v5139
    %v5884 = vpack.c.b16 %v5148, %v5140
    %v5885 = vpack.c.b16 %v5149, %v5141
    %v5886 = vpack.c.b16 %v5150, %v5142
    %v5887 = vpack.c.b16 %v5151, %v5143
    %v5888 = vpack.c.b16 %v5152, %v5144
    %v5889 = vpack.c.b16 %v5153, %v5145
    %v5890 = vpack.c.b16 %v5154, %v5146
    %v5891 = vpack.c.b16 %v5163, %v5155
    %v5892 = vpack.c.b16 %v5164, %v5156
    %v5893 = vpack.c.b16 %v5165, %v5157
    %v5894 = vpack.c.b16 %v5166, %v5158
    %v5895 = vpack.c.b16 %v5167, %v5159
    %v5896 = vpack.c.b16 %v5168, %v5160
    %v5897 = vpack.c.b16 %v5169, %v5161
    %v5898 = vpack.c.b16 %v5170, %v5162
    %v5899 = vpack.c.b16 %v5179, %v5171
    %v5900 = vpack.c.b16 %v5180, %v5172
    %v5901 = vpack.c.b16 %v5181, %v5173
    %v5902 = vpack.c.b16 %v5182, %v5174
    %v5903 = vpack.c.b16 %v5183, %v5175
    %v5904 = vpack.c.b16 %v5184, %v5176
    %v5905 = vpack.c.b16 %v5185, %v5177
    %v5906 = vpack.c.b16 %v5186, %v5178
    %v5907 = vpack.c.b16 %v5195, %v5187
    %v5908 = vpack.c.b16 %v5196, %v5188
    %v5909 = vpack.c.b16 %v5197, %v5189
    %v5910 = vpack.c.b16 %v5198, %v5190
    %v5911 = vpack.c.b16 %v5199, %v5191
    %v5912 = vpack.c.b16 %v5200, %v5192
    %v5913 = vpack.c.b16 %v5201, %v5193
    %v5914 = vpack.c.b16 %v5202, %v5194
    %v5915 = vpack.c.b16 %v5211, %v5203
    %v5916 = vpack.c.b16 %v5212, %v5204
    %v5917 = vpack.c.b16 %v5213, %v5205
    %v5918 = vpack.c.b16 %v5214, %v5206
    %v5919 = vpack.c.b16 %v5215, %v5207
    %v5920 = vpack.c.b16 %v5216, %v5208
    %v5921 = vpack.c.b16 %v5217, %v5209
    %v5922 = vpack.c.b16 %v5218, %v5210
    %v5923 = vpack.c.b16 %v5227, %v5219
    %v5924 = vpack.c.b16 %v5228, %v5220
    %v5925 = vpack.c.b16 %v5229, %v5221
    %v5926 = vpack.c.b16 %v5230, %v5222
    %v5927 = vpack.c.b16 %v5231, %v5223
    %v5928 = vpack.c.b16 %v5232, %v5224
    %v5929 = vpack.c.b16 %v5233, %v5225
    %v5930 = vpack.c.b16 %v5234, %v5226
    %v5931 = vpack.c.b16 %v5243, %v5235
    %v5932 = vpack.c.b16 %v5244, %v5236
    %v5933 = vpack.c.b16 %v5245, %v5237
    %v5934 = vpack.c.b16 %v5246, %v5238
    %v5935 = vpack.c.b16 %v5247, %v5239
    %v5936 = vpack.c.b16 %v5248, %v5240
    %v5937 = vpack.c.b16 %v5249, %v5241
    %v5938 = vpack.c.b16 %v5250, %v5242
    %v5939 = vpack.c.b16 %v5259, %v5251
    %v5940 = vpack.c.b16 %v5260, %v5252
    %v5941 = vpack.c.b16 %v5261, %v5253
    %v5942 = vpack.c.b16 %v5262, %v5254
    %v5943 = vpack.c.b16 %v5263, %v5255
    %v5944 = vpack.c.b16 %v5264, %v5256
    %v5945 = vpack.c.b16 %v5265, %v5257
    %v5946 = vpack.c.b16 %v5266, %v5258
    %v5947 = vpack.c.b16 %v5275, %v5267
    %v5948 = vpack.c.b16 %v5276, %v5268
    %v5949 = vpack.c.b16 %v5277, %v5269
    %v5950 = vpack.c.b16 %v5278, %v5270
    %v5951 = vpack.c.b16 %v5279, %v5271
    %v5952 = vpack.c.b16 %v5280, %v5272
    %v5953 = vpack.c.b16 %v5281, %v5273
    %v5954 = vpack.c.b16 %v5282, %v5274
    %v5955 = vpack.c.b16 %v5291, %v5283
    %v5956 = vpack.c.b16 %v5292, %v5284
    %v5957 = vpack.c.b16 %v5293, %v5285
    %v5958 = vpack.c.b16 %v5294, %v5286
    %v5959 = vpack.c.b16 %v5295, %v5287
    %v5960 = vpack.c.b16 %v5296, %v5288
    %v5961 = vpack.c.b16 %v5297, %v5289
    %v5962 = vpack.c.b16 %v5298, %v5290
    %v5963 = vpack.c.b16 %v5307, %v5299
    %v5964 = vpack.c.b16 %v5308, %v5300
    %v5965 = vpack.c.b16 %v5309, %v5301
    %v5966 = vpack.c.b16 %v5310, %v5302
    %v5967 = vpack.c.b16 %v5311, %v5303
    %v5968 = vpack.c.b16 %v5312, %v5304
    %v5969 = vpack.c.b16 %v5313, %v5305
    %v5970 = vpack.c.b16 %v5314, %v5306
    %v5971 = vpack.c.b16 %v5323, %v5315
    %v5972 = vpack.c.b16 %v5324, %v5316
    %v5973 = vpack.c.b16 %v5325, %v5317
    %v5974 = vpack.c.b16 %v5326, %v5318
    %v5975 = vpack.c.b16 %v5327, %v5319
    %v5976 = vpack.c.b16 %v5328, %v5320
    %v5977 = vpack.c.b16 %v5329, %v5321
    %v5978 = vpack.c.b16 %v5330, %v5322
    %v5979 = vpack.c.b16 %v5339, %v5331
    %v5980 = vpack.c.b16 %v5340, %v5332
    %v5981 = vpack.c.b16 %v5341, %v5333
    %v5982 = vpack.c.b16 %v5342, %v5334
    %v5983 = vpack.c.b16 %v5343, %v5335
    %v5984 = vpack.c.b16 %v5344, %v5336
    %v5985 = vpack.c.b16 %v5345, %v5337
    %v5986 = vpack.c.b16 %v5346, %v5338
    %v5987 = vpack.c.b16 %v5355, %v5347
    %v5988 = vpack.c.b16 %v5356, %v5348
    %v5989 = vpack.c.b16 %v5357, %v5349
    %v5990 = vpack.c.b16 %v5358, %v5350
    %v5991 = vpack.c.b16 %v5359, %v5351
    %v5992 = vpack.c.b16 %v5360, %v5352
    %v5993 = vpack.c.b16 %v5361, %v5353
    %v5994 = vpack.c.b16 %v5362, %v5354
    %v5995 = vpack.c.b16 %v5371, %v5363
    %v5996 = vpack.c.b16 %v5372, %v5364
    %v5997 = vpack.c.b16 %v5373, %v5365
    %v5998 = vpack.c.b16 %v5374, %v5366
    %v5999 = vpack.c.b16 %v5375, %v5367
    %v6000 = vpack.c.b16 %v5376, %v5368
    %v6001 = vpack.c.b16 %v5377, %v5369
    %v6002 = vpack.c.b16 %v5378, %v5370
    %v6003 = vpack.c.b16 %v5387, %v5379
    %v6004 = vpack.c.b16 %v5388, %v5380
    %v6005 = vpack.c.b16 %v5389, %v5381
    %v6006 = vpack.c.b16 %v5390, %v5382
    %v6007 = vpack.c.b16 %v5391, %v5383
    %v6008 = vpack.c.b16 %v5392, %v5384
    %v6009 = vpack.c.b16 %v5393, %v5385
    %v6010 = vpack.c.b16 %v5394, %v5386
    %v6011 = vpack.c.b16 %v5403, %v5395
    %v6012 = vpack.c.b16 %v5404, %v5396
    %v6013 = vpack.c.b16 %v5405, %v5397
    %v6014 = vpack.c.b16 %v5406, %v5398
    %v6015 = vpack.c.b16 %v5407, %v5399
    %v6016 = vpack.c.b16 %v5408, %v5400
    %v6017 = vpack.c.b16 %v5409, %v5401
    %v6018 = vpack.c.b16 %v5410, %v5402
    %v6019 = vpack.c.b16 %v5419, %v5411
    %v6020 = vpack.c.b16 %v5420, %v5412
    %v6021 = vpack.c.b16 %v5421, %v5413
    %v6022 = vpack.c.b16 %v5422, %v5414
    %v6023 = vpack.c.b16 %v5423, %v5415
    %v6024 = vpack.c.b16 %v5424, %v5416
    %v6025 = vpack.c.b16 %v5425, %v5417
    %v6026 = vpack.c.b16 %v5426, %v5418
    %v6027 = vpack.c.b16 %v5435, %v5427
    %v6028 = vpack.c.b16 %v5436, %v5428
    %v6029 = vpack.c.b16 %v5437, %v5429
    %v6030 = vpack.c.b16 %v5438, %v5430
    %v6031 = vpack.c.b16 %v5439, %v5431
    %v6032 = vpack.c.b16 %v5440, %v5432
    %v6033 = vpack.c.b16 %v5441, %v5433
    %v6034 = vpack.c.b16 %v5442, %v5434
    %v6035 = vpack.c.b16 %v5451, %v5443
    %v6036 = vpack.c.b16 %v5452, %v5444
    %v6037 = vpack.c.b16 %v5453, %v5445
    %v6038 = vpack.c.b16 %v5454, %v5446
    %v6039 = vpack.c.b16 %v5455, %v5447
    %v6040 = vpack.c.b16 %v5456, %v5448
    %v6041 = vpack.c.b16 %v5457, %v5449
    %v6042 = vpack.c.b16 %v5458, %v5450
    %v6043 = vpack.c.b16 %v5467, %v5459
    %v6044 = vpack.c.b16 %v5468, %v5460
    %v6045 = vpack.c.b16 %v5469, %v5461
    %v6046 = vpack.c.b16 %v5470, %v5462
    %v6047 = vpack.c.b16 %v5471, %v5463
    %v6048 = vpack.c.b16 %v5472, %v5464
    %v6049 = vpack.c.b16 %v5473, %v5465
    %v6050 = vpack.c.b16 %v5474, %v5466
    %v6051 = vpack.c.b16 %v5483, %v5475
    %v6052 = vpack.c.b16 %v5484, %v5476
    %v6053 = vpack.c.b16 %v5485, %v5477
    %v6054 = vpack.c.b16 %v5486, %v5478
    %v6055 = vpack.c.b16 %v5487, %v5479
    %v6056 = vpack.c.b16 %v5488, %v5480
    %v6057 = vpack.c.b16 %v5489, %v5481
    %v6058 = vpack.c.b16 %v5490, %v5482
    %v6059 = vpack.c.b16 %v5499, %v5491
    %v6060 = vpack.c.b16 %v5500, %v5492
    %v6061 = vpack.c.b16 %v5501, %v5493
    %v6062 = vpack.c.b16 %v5502, %v5494
    %v6063 = vpack.c.b16 %v5503, %v5495
    %v6064 = vpack.c.b16 %v5504, %v5496
    %v6065 = vpack.c.b16 %v5505, %v5497
    %v6066 = vpack.c.b16 %v5506, %v5498
    %v6067 = vpack.c.b16 %v5515, %v5507
    %v6068 = vpack.c.b16 %v5516, %v5508
    %v6069 = vpack.c.b16 %v5517, %v5509
    %v6070 = vpack.c.b16 %v5518, %v5510
    %v6071 = vpack.c.b16 %v5519, %v5511
    %v6072 = vpack.c.b16 %v5520, %v5512
    %v6073 = vpack.c.b16 %v5521, %v5513
    %v6074 = vpack.c.b16 %v5522, %v5514
    %v6075 = vpack.c.b16 %v5531, %v5523
    %v6076 = vpack.c.b16 %v5532, %v5524
    %v6077 = vpack.c.b16 %v5533, %v5525
    %v6078 = vpack.c.b16 %v5534, %v5526
    %v6079 = vpack.c.b16 %v5535, %v5527
    %v6080 = vpack.c.b16 %v5536, %v5528
    %v6081 = vpack.c.b16 %v5537, %v5529
    %v6082 = vpack.c.b16 %v5538, %v5530
    %v6083 = vpack.c.b16 %v5547, %v5539
    %v6084 = vpack.c.b16 %v5548, %v5540
    %v6085 = vpack.c.b16 %v5549, %v5541
    %v6086 = vpack.c.b16 %v5550, %v5542
    %v6087 = vpack.c.b16 %v5551, %v5543
    %v6088 = vpack.c.b16 %v5552, %v5544
    %v6089 = vpack.c.b16 %v5553, %v5545
    %v6090 = vpack.c.b16 %v5554, %v5546
    %v6091 = vpack.c.b16 %v5563, %v5555
    %v6092 = vpack.c.b16 %v5564, %v5556
    %v6093 = vpack.c.b16 %v5565, %v5557
    %v6094 = vpack.c.b16 %v5566, %v5558
    %v6095 = vpack.c.b16 %v5567, %v5559
    %v6096 = vpack.c.b16 %v5568, %v5560
    %v6097 = vpack.c.b16 %v5569, %v5561
    %v6098 = vpack.c.b16 %v5570, %v5562
    %v6099 = vpack.c.b16 %v5579, %v5571
    %v6100 = vpack.c.b16 %v5580, %v5572
    %v6101 = vpack.c.b16 %v5581, %v5573
    %v6102 = vpack.c.b16 %v5582, %v5574
    %v6103 = vpack.c.b16 %v5583, %v5575
    %v6104 = vpack.c.b16 %v5584, %v5576
    %v6105 = vpack.c.b16 %v5585, %v5577
    %v6106 = vpack.c.b16 %v5586, %v5578
    %v6107 = vpack.c.b16 %v5595, %v5587
    %v6108 = vpack.c.b16 %v5596, %v5588
    %v6109 = vpack.c.b16 %v5597, %v5589
    %v6110 = vpack.c.b16 %v5598, %v5590
    %v6111 = vpack.c.b16 %v5599, %v5591
    %v6112 = vpack.c.b16 %v5600, %v5592
    %v6113 = vpack.c.b16 %v5601, %v5593
    %v6114 = vpack.c.b16 %v5602, %v5594
    %6627 = vmatprep.subr.bf16.mxu0 %v5604
    %6628 = vmatpush1.bf16.msra.mxu0 %v5603
    %6629 = vmatprep.subr.bf16.mxu0 %v5612
    %6630 = vmatpush1.bf16.msra.mxu0 %v5611
    %6631 = vmatprep.subr.bf16.mxu0 %v5620
    %6632 = vmatpush1.bf16.msra.mxu0 %v5619
    %6633 = vmatprep.subr.bf16.mxu0 %v5628
    %6634 = vmatpush1.bf16.msra.mxu0 %v5627
    %6635 = vmatprep.subr.bf16.mxu0 %v5636
    %6636 = vmatpush1.bf16.msra.mxu0 %v5635
    %6637 = vmatprep.subr.bf16.mxu0 %v5644
    %6638 = vmatpush1.bf16.msra.mxu0 %v5643
    %6639 = vmatprep.subr.bf16.mxu0 %v5652
    %6640 = vmatpush1.bf16.msra.mxu0 %v5651
    %6641 = vmatprep.subr.bf16.mxu0 %v5660
    %6642 = vmatpush1.bf16.msra.mxu0 %v5659
    %6643 = vmatprep.subr.bf16.mxu0 %v5668
    %6644 = vmatpush1.bf16.msra.mxu0 %v5667
    %6645 = vmatprep.subr.bf16.mxu0 %v5676
    %6646 = vmatpush1.bf16.msra.mxu0 %v5675
    %6647 = vmatprep.subr.bf16.mxu0 %v5684
    %6648 = vmatpush1.bf16.msra.mxu0 %v5683
    %6649 = vmatprep.subr.bf16.mxu0 %v5692
    %6650 = vmatpush1.bf16.msra.mxu0 %v5691
    %6651 = vmatprep.subr.bf16.mxu0 %v5700
    %6652 = vmatpush1.bf16.msra.mxu0 %v5699
    %6653 = vmatprep.subr.bf16.mxu0 %v5708
    %6654 = vmatpush1.bf16.msra.mxu0 %v5707
    %6655 = vmatprep.subr.bf16.mxu0 %v5716
    %6656 = vmatpush1.bf16.msra.mxu0 %v5715
    %6657 = vmatprep.subr.bf16.mxu0 %v5724
    %6658 = vmatpush1.bf16.msra.mxu0 %v5723
    %6659 = vmatprep.mubr.bf16.mxu0 %v3386
    %6660 = vmatmul.mubr.bf16.gmra.mrb[0].mxu0 %v3385
    %v6661 = vpop.f32.mrb[0].mxu0
    %v6662 = vadd.f32 %v4030, %v6661
    %v6663 = vpop.f32.mrb[0].mxu0
    %v6664 = vadd.f32 %v4034, %v6663
    %v6665 = vpop.f32.mrb[0].mxu0
    %v6666 = vadd.f32 %v4030, %v6665
    %v6667 = vpop.f32.mrb[0].mxu0
    %v6668 = vadd.f32 %v4034, %v6667
    %6669 = vmatprep.mubr.bf16.mxu0 %v3394
    %6670 = vmatmul.mubr.bf16.gmra.mrb[0].mxu0 %v3393
    %v6671 = vpop.f32.mrb[0].mxu0
    %v6672 = vadd.f32 %v4030, %v6671
    %v6673 = vpop.f32.mrb[0].mxu0
    %v6674 = vadd.f32 %v4034, %v6673
    %v6675 = vpop.f32.mrb[0].mxu0
    %v6676 = vadd.f32 %v4030, %v6675
    %v6677 = vpop.f32.mrb[0].mxu0
    %v6678 = vadd.f32 %v4034, %v6677
    %6679 = vmatprep.mubr.bf16.mxu0 %v3402
    %6680 = vmatmul.mubr.bf16.gmra.mrb[0].mxu0 %v3401
    %v6681 = vpop.f32.mrb[0].mxu0
    %v6682 = vadd.f32 %v4030, %v6681
    %v6683 = vpop.f32.mrb[0].mxu0
    %v6684 = vadd.f32 %v4034, %v6683
    %v6685 = vpop.f32.mrb[0].mxu0
    %v6686 = vadd.f32 %v4030, %v6685
    %v6687 = vpop.f32.mrb[0].mxu0
    %v6688 = vadd.f32 %v4034, %v6687
    %6689 = vmatprep.mubr.bf16.mxu0 %v3410
    %6690 = vmatmul.mubr.bf16.gmra.mrb[0].mxu0 %v3409
    %v6691 = vpop.f32.mrb[0].mxu0
    %v6692 = vadd.f32 %v4030, %v6691
    %v6693 = vpop.f32.mrb[0].mxu0
    %v6694 = vadd.f32 %v4034, %v6693
    %v6695 = vpop.f32.mrb[0].mxu0
    %v6696 = vadd.f32 %v4030, %v6695
    %v6697 = vpop.f32.mrb[0].mxu0
    %v6698 = vadd.f32 %v4034, %v6697
    %6699 = vmatprep.mubr.bf16.mxu0 %v3418
    %6700 = vmatmul.mubr.bf16.gmra.mrb[0].mxu0 %v3417
    %v6701 = vpop.f32.mrb[0].mxu0
    %v6702 = vadd.f32 %v4030, %v6701
    %v6703 = vpop.f32.mrb[0].mxu0
    %v6704 = vadd.f32 %v4034, %v6703
    %v6705 = vpop.f32.mrb[0].mxu0
    %v6706 = vadd.f32 %v4030, %v6705
    %v6707 = vpop.f32.mrb[0].mxu0
    %v6708 = vadd.f32 %v4034, %v6707
    %6709 = vmatprep.mubr.bf16.mxu0 %v3426
    %6710 = vmatmul.mubr.bf16.gmra.mrb[0].mxu0 %v3425
    %v6711 = vpop.f32.mrb[0].mxu0
    %v6712 = vadd.f32 %v4030, %v6711
    %v6713 = vpop.f32.mrb[0].mxu0
    %v6714 = vadd.f32 %v4034, %v6713
    %v6715 = vpop.f32.mrb[0].mxu0
    %v6716 = vadd.f32 %v4030, %v6715
    %v6717 = vpop.f32.mrb[0].mxu0
    %v6718 = vadd.f32 %v4034, %v6717
    %6719 = vmatprep.mubr.bf16.mxu0 %v3434
    %6720 = vmatmul.mubr.bf16.gmra.mrb[0].mxu0 %v3433
    %v6721 = vpop.f32.mrb[0].mxu0
    %v6722 = vadd.f32 %v4030, %v6721
    %v6723 = vpop.f32.mrb[0].mxu0
    %v6724 = vadd.f32 %v4034, %v6723
    %v6725 = vpop.f32.mrb[0].mxu0
    %v6726 = vadd.f32 %v4030, %v6725
    %v6727 = vpop.f32.mrb[0].mxu0
    %v6728 = vadd.f32 %v4034, %v6727
    %6729 = vmatprep.mubr.bf16.mxu0 %v3442
    %6730 = vmatmul.mubr.bf16.gmra.mrb[0].mxu0 %v3441
    %v6731 = vpop.f32.mrb[0].mxu0
    %v6732 = vadd.f32 %v4030, %v6731
    %v6733 = vpop.f32.mrb[0].mxu0
    %v6734 = vadd.f32 %v4034, %v6733
    %v6735 = vpop.f32.mrb[0].mxu0
    %v6736 = vadd.f32 %v4030, %v6735
    %v6737 = vpop.f32.mrb[0].mxu0
    %v6738 = vadd.f32 %v4034, %v6737
    %6739 = vmatprep.mubr.bf16.mxu0 %v3450
    %6740 = vmatmul.mubr.bf16.gmra.mrb[0].mxu0 %v3449
    %v6741 = vpop.f32.mrb[0].mxu0
    %v6742 = vadd.f32 %v4030, %v6741
    %v6743 = vpop.f32.mrb[0].mxu0
    %v6744 = vadd.f32 %v4034, %v6743
    %v6745 = vpop.f32.mrb[0].mxu0
    %v6746 = vadd.f32 %v4030, %v6745
    %v6747 = vpop.f32.mrb[0].mxu0
    %v6748 = vadd.f32 %v4034, %v6747
    %6749 = vmatprep.mubr.bf16.mxu0 %v3458
    %6750 = vmatmul.mubr.bf16.gmra.mrb[0].mxu0 %v3457
    %v6751 = vpop.f32.mrb[0].mxu0
    %v6752 = vadd.f32 %v4030, %v6751
    %v6753 = vpop.f32.mrb[0].mxu0
    %v6754 = vadd.f32 %v4034, %v6753
    %v6755 = vpop.f32.mrb[0].mxu0
    %v6756 = vadd.f32 %v4030, %v6755
    %v6757 = vpop.f32.mrb[0].mxu0
    %v6758 = vadd.f32 %v4034, %v6757
    %6759 = vmatprep.mubr.bf16.mxu0 %v3466
    %6760 = vmatmul.mubr.bf16.gmra.mrb[0].mxu0 %v3465
    %v6761 = vpop.f32.mrb[0].mxu0
    %v6762 = vadd.f32 %v4030, %v6761
    %v6763 = vpop.f32.mrb[0].mxu0
    %v6764 = vadd.f32 %v4034, %v6763
    %v6765 = vpop.f32.mrb[0].mxu0
    %v6766 = vadd.f32 %v4030, %v6765
    %v6767 = vpop.f32.mrb[0].mxu0
    %v6768 = vadd.f32 %v4034, %v6767
    %6769 = vmatprep.mubr.bf16.mxu0 %v3474
    %6770 = vmatmul.mubr.bf16.gmra.mrb[0].mxu0 %v3473
    %v6771 = vpop.f32.mrb[0].mxu0
    %v6772 = vadd.f32 %v4030, %v6771
    %v6773 = vpop.f32.mrb[0].mxu0
    %v6774 = vadd.f32 %v4034, %v6773
    %v6775 = vpop.f32.mrb[0].mxu0
    %v6776 = vadd.f32 %v4030, %v6775
    %v6777 = vpop.f32.mrb[0].mxu0
    %v6778 = vadd.f32 %v4034, %v6777
    %6779 = vmatprep.mubr.bf16.mxu0 %v3482
    %6780 = vmatmul.mubr.bf16.gmra.mrb[0].mxu0 %v3481
    %v6781 = vpop.f32.mrb[0].mxu0
    %v6782 = vadd.f32 %v4030, %v6781
    %v6783 = vpop.f32.mrb[0].mxu0
    %v6784 = vadd.f32 %v4034, %v6783
    %v6785 = vpop.f32.mrb[0].mxu0
    %v6786 = vadd.f32 %v4030, %v6785
    %v6787 = vpop.f32.mrb[0].mxu0
    %v6788 = vadd.f32 %v4034, %v6787
    %6789 = vmatprep.mubr.bf16.mxu0 %v3490
    %6790 = vmatmul.mubr.bf16.gmra.mrb[0].mxu0 %v3489
    %v6791 = vpop.f32.mrb[0].mxu0
    %v6792 = vadd.f32 %v4030, %v6791
    %v6793 = vpop.f32.mrb[0].mxu0
    %v6794 = vadd.f32 %v4034, %v6793
    %v6795 = vpop.f32.mrb[0].mxu0
    %v6796 = vadd.f32 %v4030, %v6795
    %v6797 = vpop.f32.mrb[0].mxu0
    %v6798 = vadd.f32 %v4034, %v6797
    %6799 = vmatprep.mubr.bf16.mxu0 %v3498
    %6800 = vmatmul.mubr.bf16.gmra.mrb[0].mxu0 %v3497
    %v6801 = vpop.f32.mrb[0].mxu0
    %v6802 = vadd.f32 %v4030, %v6801
    %v6803 = vpop.f32.mrb[0].mxu0
    %v6804 = vadd.f32 %v4034, %v6803
    %v6805 = vpop.f32.mrb[0].mxu0
    %v6806 = vadd.f32 %v4030, %v6805
    %v6807 = vpop.f32.mrb[0].mxu0
    %v6808 = vadd.f32 %v4034, %v6807
    %6809 = vmatprep.mubr.bf16.mxu0 %v3506
    %6810 = vmatmul.mubr.bf16.gmra.mrb[0].mxu0 %v3505
    %v6811 = vpop.f32.mrb[0].mxu0
    %v6812 = vadd.f32 %v4030, %v6811
    %v6813 = vpop.f32.mrb[0].mxu0
    %v6814 = vadd.f32 %v4034, %v6813
    %v6815 = vpop.f32.mrb[0].mxu0
    %v6816 = vadd.f32 %v4030, %v6815
    %v6817 = vpop.f32.mrb[0].mxu0
    %v6818 = vadd.f32 %v4034, %v6817
    %6819 = vdwg.mxu0
    %6820 = vmatprep.subr.bf16.mxu0 %v5732
    %6821 = vmatpush1.bf16.msra.mxu0 %v5731
    %6822 = vmatprep.subr.bf16.mxu0 %v5740
    %6823 = vmatpush1.bf16.msra.mxu0 %v5739
    %6824 = vmatprep.subr.bf16.mxu0 %v5748
    %6825 = vmatpush1.bf16.msra.mxu0 %v5747
    %6826 = vmatprep.subr.bf16.mxu0 %v5756
    %6827 = vmatpush1.bf16.msra.mxu0 %v5755
    %6828 = vmatprep.subr.bf16.mxu0 %v5764
    %6829 = vmatpush1.bf16.msra.mxu0 %v5763
    %6830 = vmatprep.subr.bf16.mxu0 %v5772
    %6831 = vmatpush1.bf16.msra.mxu0 %v5771
    %6832 = vmatprep.subr.bf16.mxu0 %v5780
    %6833 = vmatpush1.bf16.msra.mxu0 %v5779
    %6834 = vmatprep.subr.bf16.mxu0 %v5788
    %6835 = vmatpush1.bf16.msra.mxu0 %v5787
    %6836 = vmatprep.subr.bf16.mxu0 %v5796
    %6837 = vmatpush1.bf16.msra.mxu0 %v5795
    %6838 = vmatprep.subr.bf16.mxu0 %v5804
    %6839 = vmatpush1.bf16.msra.mxu0 %v5803
    %6840 = vmatprep.subr.bf16.mxu0 %v5812
    %6841 = vmatpush1.bf16.msra.mxu0 %v5811
    %6842 = vmatprep.subr.bf16.mxu0 %v5820
    %6843 = vmatpush1.bf16.msra.mxu0 %v5819
    %6844 = vmatprep.subr.bf16.mxu0 %v5828
    %6845 = vmatpush1.bf16.msra.mxu0 %v5827
    %6846 = vmatprep.subr.bf16.mxu0 %v5836
    %6847 = vmatpush1.bf16.msra.mxu0 %v5835
    %6848 = vmatprep.subr.bf16.mxu0 %v5844
    %6849 = vmatpush1.bf16.msra.mxu0 %v5843
    %6850 = vmatprep.subr.bf16.mxu0 %v5852
    %6851 = vmatpush1.bf16.msra.mxu0 %v5851
    %6852 = vmatprep.mubr.bf16.mxu0 %v3388
    %6853 = vmatmul.mubr.bf16.gmra.mrb[0].mxu0 %v3387
    %v6854 = vpop.f32.mrb[0].mxu0
    %v6855 = vadd.f32 %v6662, %v6854
    %v6856 = vpop.f32.mrb[0].mxu0
    %v6857 = vadd.f32 %v6664, %v6856
    %v6858 = vpop.f32.mrb[0].mxu0
    %v6859 = vadd.f32 %v6666, %v6858
    %v6860 = vpop.f32.mrb[0].mxu0
    %v6861 = vadd.f32 %v6668, %v6860
    %6862 = vmatprep.mubr.bf16.mxu0 %v3396
    %6863 = vmatmul.mubr.bf16.gmra.mrb[0].mxu0 %v3395
    %v6864 = vpop.f32.mrb[0].mxu0
    %v6865 = vadd.f32 %v6672, %v6864
    %v6866 = vpop.f32.mrb[0].mxu0
    %v6867 = vadd.f32 %v6674, %v6866
    %v6868 = vpop.f32.mrb[0].mxu0
    %v6869 = vadd.f32 %v6676, %v6868
    %v6870 = vpop.f32.mrb[0].mxu0
    %v6871 = vadd.f32 %v6678, %v6870
    %6872 = vmatprep.mubr.bf16.mxu0 %v3404
    %6873 = vmatmul.mubr.bf16.gmra.mrb[0].mxu0 %v3403
    %v6874 = vpop.f32.mrb[0].mxu0
    %v6875 = vadd.f32 %v6682, %v6874
    %v6876 = vpop.f32.mrb[0].mxu0
    %v6877 = vadd.f32 %v6684, %v6876
    %v6878 = vpop.f32.mrb[0].mxu0
    %v6879 = vadd.f32 %v6686, %v6878
    %v6880 = vpop.f32.mrb[0].mxu0
    %v6881 = vadd.f32 %v6688, %v6880
    %6882 = vmatprep.mubr.bf16.mxu0 %v3412
    %6883 = vmatmul.mubr.bf16.gmra.mrb[0].mxu0 %v3411
    %v6884 = vpop.f32.mrb[0].mxu0
    %v6885 = vadd.f32 %v6692, %v6884
    %v6886 = vpop.f32.mrb[0].mxu0
    %v6887 = vadd.f32 %v6694, %v6886
    %v6888 = vpop.f32.mrb[0].mxu0
    %v6889 = vadd.f32 %v6696, %v6888
    %v6890 = vpop.f32.mrb[0].mxu0
    %v6891 = vadd.f32 %v6698, %v6890
    %6892 = vmatprep.mubr.bf16.mxu0 %v3420
    %6893 = vmatmul.mubr.bf16.gmra.mrb[0].mxu0 %v3419
    %v6894 = vpop.f32.mrb[0].mxu0
    %v6895 = vadd.f32 %v6702, %v6894
    %v6896 = vpop.f32.mrb[0].mxu0
    %v6897 = vadd.f32 %v6704, %v6896
    %v6898 = vpop.f32.mrb[0].mxu0
    %v6899 = vadd.f32 %v6706, %v6898
    %v6900 = vpop.f32.mrb[0].mxu0
    %v6901 = vadd.f32 %v6708, %v6900
    %6902 = vmatprep.mubr.bf16.mxu0 %v3428
    %6903 = vmatmul.mubr.bf16.gmra.mrb[0].mxu0 %v3427
    %v6904 = vpop.f32.mrb[0].mxu0
    %v6905 = vadd.f32 %v6712, %v6904
    %v6906 = vpop.f32.mrb[0].mxu0
    %v6907 = vadd.f32 %v6714, %v6906
    %v6908 = vpop.f32.mrb[0].mxu0
    %v6909 = vadd.f32 %v6716, %v6908
    %v6910 = vpop.f32.mrb[0].mxu0
    %v6911 = vadd.f32 %v6718, %v6910
    %6912 = vmatprep.mubr.bf16.mxu0 %v3436
    %6913 = vmatmul.mubr.bf16.gmra.mrb[0].mxu0 %v3435
    %v6914 = vpop.f32.mrb[0].mxu0
    %v6915 = vadd.f32 %v6722, %v6914
    %v6916 = vpop.f32.mrb[0].mxu0
    %v6917 = vadd.f32 %v6724, %v6916
    %v6918 = vpop.f32.mrb[0].mxu0
    %v6919 = vadd.f32 %v6726, %v6918
    %v6920 = vpop.f32.mrb[0].mxu0
    %v6921 = vadd.f32 %v6728, %v6920
    %6922 = vmatprep.mubr.bf16.mxu0 %v3444
    %6923 = vmatmul.mubr.bf16.gmra.mrb[0].mxu0 %v3443
    %v6924 = vpop.f32.mrb[0].mxu0
    %v6925 = vadd.f32 %v6732, %v6924
    %v6926 = vpop.f32.mrb[0].mxu0
    %v6927 = vadd.f32 %v6734, %v6926
    %v6928 = vpop.f32.mrb[0].mxu0
    %v6929 = vadd.f32 %v6736, %v6928
    %v6930 = vpop.f32.mrb[0].mxu0
    %v6931 = vadd.f32 %v6738, %v6930
    %6932 = vmatprep.mubr.bf16.mxu0 %v3452
    %6933 = vmatmul.mubr.bf16.gmra.mrb[0].mxu0 %v3451
    %v6934 = vpop.f32.mrb[0].mxu0
    %v6935 = vadd.f32 %v6742, %v6934
    %v6936 = vpop.f32.mrb[0].mxu0
    %v6937 = vadd.f32 %v6744, %v6936
    %v6938 = vpop.f32.mrb[0].mxu0
    %v6939 = vadd.f32 %v6746, %v6938
    %v6940 = vpop.f32.mrb[0].mxu0
    %v6941 = vadd.f32 %v6748, %v6940
    %6942 = vmatprep.mubr.bf16.mxu0 %v3460
    %6943 = vmatmul.mubr.bf16.gmra.mrb[0].mxu0 %v3459
    %v6944 = vpop.f32.mrb[0].mxu0
    %v6945 = vadd.f32 %v6752, %v6944
    %v6946 = vpop.f32.mrb[0].mxu0
    %v6947 = vadd.f32 %v6754, %v6946
    %v6948 = vpop.f32.mrb[0].mxu0
    %v6949 = vadd.f32 %v6756, %v6948
    %v6950 = vpop.f32.mrb[0].mxu0
    %v6951 = vadd.f32 %v6758, %v6950
    %6952 = vmatprep.mubr.bf16.mxu0 %v3468
    %6953 = vmatmul.mubr.bf16.gmra.mrb[0].mxu0 %v3467
    %v6954 = vpop.f32.mrb[0].mxu0
    %v6955 = vadd.f32 %v6762, %v6954
    %v6956 = vpop.f32.mrb[0].mxu0
    %v6957 = vadd.f32 %v6764, %v6956
    %v6958 = vpop.f32.mrb[0].mxu0
    %v6959 = vadd.f32 %v6766, %v6958
    %v6960 = vpop.f32.mrb[0].mxu0
    %v6961 = vadd.f32 %v6768, %v6960
    %6962 = vmatprep.mubr.bf16.mxu0 %v3476
    %6963 = vmatmul.mubr.bf16.gmra.mrb[0].mxu0 %v3475
    %v6964 = vpop.f32.mrb[0].mxu0
    %v6965 = vadd.f32 %v6772, %v6964
    %v6966 = vpop.f32.mrb[0].mxu0
    %v6967 = vadd.f32 %v6774, %v6966
    %v6968 = vpop.f32.mrb[0].mxu0
    %v6969 = vadd.f32 %v6776, %v6968
    %v6970 = vpop.f32.mrb[0].mxu0
    %v6971 = vadd.f32 %v6778, %v6970
    %6972 = vmatprep.mubr.bf16.mxu0 %v3484
    %6973 = vmatmul.mubr.bf16.gmra.mrb[0].mxu0 %v3483
    %v6974 = vpop.f32.mrb[0].mxu0
    %v6975 = vadd.f32 %v6782, %v6974
    %v6976 = vpop.f32.mrb[0].mxu0
    %v6977 = vadd.f32 %v6784, %v6976
    %v6978 = vpop.f32.mrb[0].mxu0
    %v6979 = vadd.f32 %v6786, %v6978
    %v6980 = vpop.f32.mrb[0].mxu0
    %v6981 = vadd.f32 %v6788, %v6980
    %6982 = vmatprep.mubr.bf16.mxu0 %v3492
    %6983 = vmatmul.mubr.bf16.gmra.mrb[0].mxu0 %v3491
    %v6984 = vpop.f32.mrb[0].mxu0
    %v6985 = vadd.f32 %v6792, %v6984
    %v6986 = vpop.f32.mrb[0].mxu0
    %v6987 = vadd.f32 %v6794, %v6986
    %v6988 = vpop.f32.mrb[0].mxu0
    %v6989 = vadd.f32 %v6796, %v6988
    %v6990 = vpop.f32.mrb[0].mxu0
    %v6991 = vadd.f32 %v6798, %v6990
    %6992 = vmatprep.mubr.bf16.mxu0 %v3500
    %6993 = vmatmul.mubr.bf16.gmra.mrb[0].mxu0 %v3499
    %v6994 = vpop.f32.mrb[0].mxu0
    %v6995 = vadd.f32 %v6802, %v6994
    %v6996 = vpop.f32.mrb[0].mxu0
    %v6997 = vadd.f32 %v6804, %v6996
    %v6998 = vpop.f32.mrb[0].mxu0
    %v6999 = vadd.f32 %v6806, %v6998
    %v7000 = vpop.f32.mrb[0].mxu0
    %v7001 = vadd.f32 %v6808, %v7000
    %7002 = vmatprep.mubr.bf16.mxu0 %v3508
    %7003 = vmatmul.mubr.bf16.gmra.mrb[0].mxu0 %v3507
    %v7004 = vpop.f32.mrb[0].mxu0
    %v7005 = vadd.f32 %v6812, %v7004
    %v7006 = vpop.f32.mrb[0].mxu0
    %v7007 = vadd.f32 %v6814, %v7006
    %v7008 = vpop.f32.mrb[0].mxu0
    %v7009 = vadd.f32 %v6816, %v7008
    %v7010 = vpop.f32.mrb[0].mxu0
    %v7011 = vadd.f32 %v6818, %v7010
    %7012 = vdwg.mxu0
    %7013 = vmatprep.subr.bf16.mxu0 %v5860
    %7014 = vmatpush1.bf16.msra.mxu0 %v5859
    %7015 = vmatprep.subr.bf16.mxu0 %v5868
    %7016 = vmatpush1.bf16.msra.mxu0 %v5867
    %7017 = vmatprep.subr.bf16.mxu0 %v5876
    %7018 = vmatpush1.bf16.msra.mxu0 %v5875
    %7019 = vmatprep.subr.bf16.mxu0 %v5884
    %7020 = vmatpush1.bf16.msra.mxu0 %v5883
    %7021 = vmatprep.subr.bf16.mxu0 %v5892
    %7022 = vmatpush1.bf16.msra.mxu0 %v5891
    %7023 = vmatprep.subr.bf16.mxu0 %v5900
    %7024 = vmatpush1.bf16.msra.mxu0 %v5899
    %7025 = vmatprep.subr.bf16.mxu0 %v5908
    %7026 = vmatpush1.bf16.msra.mxu0 %v5907
    %7027 = vmatprep.subr.bf16.mxu0 %v5916
    %7028 = vmatpush1.bf16.msra.mxu0 %v5915
    %7029 = vmatprep.subr.bf16.mxu0 %v5924
    %7030 = vmatpush1.bf16.msra.mxu0 %v5923
    %7031 = vmatprep.subr.bf16.mxu0 %v5932
    %7032 = vmatpush1.bf16.msra.mxu0 %v5931
    %7033 = vmatprep.subr.bf16.mxu0 %v5940
    %7034 = vmatpush1.bf16.msra.mxu0 %v5939
    %7035 = vmatprep.subr.bf16.mxu0 %v5948
    %7036 = vmatpush1.bf16.msra.mxu0 %v5947
    %7037 = vmatprep.subr.bf16.mxu0 %v5956
    %7038 = vmatpush1.bf16.msra.mxu0 %v5955
    %7039 = vmatprep.subr.bf16.mxu0 %v5964
    %7040 = vmatpush1.bf16.msra.mxu0 %v5963
    %7041 = vmatprep.subr.bf16.mxu0 %v5972
    %7042 = vmatpush1.bf16.msra.mxu0 %v5971
    %7043 = vmatprep.subr.bf16.mxu0 %v5980
    %7044 = vmatpush1.bf16.msra.mxu0 %v5979
    %7045 = vmatprep.mubr.bf16.mxu0 %v3390
    %7046 = vmatmul.mubr.bf16.gmra.mrb[0].mxu0 %v3389
    %v7047 = vpop.f32.mrb[0].mxu0
    %v7048 = vadd.f32 %v6855, %v7047
    %v7049 = vpop.f32.mrb[0].mxu0
    %v7050 = vadd.f32 %v6857, %v7049
    %v7051 = vpop.f32.mrb[0].mxu0
    %v7052 = vadd.f32 %v6859, %v7051
    %v7053 = vpop.f32.mrb[0].mxu0
    %v7054 = vadd.f32 %v6861, %v7053
    %7055 = vmatprep.mubr.bf16.mxu0 %v3398
    %7056 = vmatmul.mubr.bf16.gmra.mrb[0].mxu0 %v3397
    %v7057 = vpop.f32.mrb[0].mxu0
    %v7058 = vadd.f32 %v6865, %v7057
    %v7059 = vpop.f32.mrb[0].mxu0
    %v7060 = vadd.f32 %v6867, %v7059
    %v7061 = vpop.f32.mrb[0].mxu0
    %v7062 = vadd.f32 %v6869, %v7061
    %v7063 = vpop.f32.mrb[0].mxu0
    %v7064 = vadd.f32 %v6871, %v7063
    %7065 = vmatprep.mubr.bf16.mxu0 %v3406
    %7066 = vmatmul.mubr.bf16.gmra.mrb[0].mxu0 %v3405
    %v7067 = vpop.f32.mrb[0].mxu0
    %v7068 = vadd.f32 %v6875, %v7067
    %v7069 = vpop.f32.mrb[0].mxu0
    %v7070 = vadd.f32 %v6877, %v7069
    %v7071 = vpop.f32.mrb[0].mxu0
    %v7072 = vadd.f32 %v6879, %v7071
    %v7073 = vpop.f32.mrb[0].mxu0
    %v7074 = vadd.f32 %v6881, %v7073
    %7075 = vmatprep.mubr.bf16.mxu0 %v3414
    %7076 = vmatmul.mubr.bf16.gmra.mrb[0].mxu0 %v3413
    %v7077 = vpop.f32.mrb[0].mxu0
    %v7078 = vadd.f32 %v6885, %v7077
    %v7079 = vpop.f32.mrb[0].mxu0
    %v7080 = vadd.f32 %v6887, %v7079
    %v7081 = vpop.f32.mrb[0].mxu0
    %v7082 = vadd.f32 %v6889, %v7081
    %v7083 = vpop.f32.mrb[0].mxu0
    %v7084 = vadd.f32 %v6891, %v7083
    %7085 = vmatprep.mubr.bf16.mxu0 %v3422
    %7086 = vmatmul.mubr.bf16.gmra.mrb[0].mxu0 %v3421
    %v7087 = vpop.f32.mrb[0].mxu0
    %v7088 = vadd.f32 %v6895, %v7087
    %v7089 = vpop.f32.mrb[0].mxu0
    %v7090 = vadd.f32 %v6897, %v7089
    %v7091 = vpop.f32.mrb[0].mxu0
    %v7092 = vadd.f32 %v6899, %v7091
    %v7093 = vpop.f32.mrb[0].mxu0
    %v7094 = vadd.f32 %v6901, %v7093
    %7095 = vmatprep.mubr.bf16.mxu0 %v3430
    %7096 = vmatmul.mubr.bf16.gmra.mrb[0].mxu0 %v3429
    %v7097 = vpop.f32.mrb[0].mxu0
    %v7098 = vadd.f32 %v6905, %v7097
    %v7099 = vpop.f32.mrb[0].mxu0
    %v7100 = vadd.f32 %v6907, %v7099
    %v7101 = vpop.f32.mrb[0].mxu0
    %v7102 = vadd.f32 %v6909, %v7101
    %v7103 = vpop.f32.mrb[0].mxu0
    %v7104 = vadd.f32 %v6911, %v7103
    %7105 = vmatprep.mubr.bf16.mxu0 %v3438
    %7106 = vmatmul.mubr.bf16.gmra.mrb[0].mxu0 %v3437
    %v7107 = vpop.f32.mrb[0].mxu0
    %v7108 = vadd.f32 %v6915, %v7107
    %v7109 = vpop.f32.mrb[0].mxu0
    %v7110 = vadd.f32 %v6917, %v7109
    %v7111 = vpop.f32.mrb[0].mxu0
    %v7112 = vadd.f32 %v6919, %v7111
    %v7113 = vpop.f32.mrb[0].mxu0
    %v7114 = vadd.f32 %v6921, %v7113
    %7115 = vmatprep.mubr.bf16.mxu0 %v3446
    %7116 = vmatmul.mubr.bf16.gmra.mrb[0].mxu0 %v3445
    %v7117 = vpop.f32.mrb[0].mxu0
    %v7118 = vadd.f32 %v6925, %v7117
    %v7119 = vpop.f32.mrb[0].mxu0
    %v7120 = vadd.f32 %v6927, %v7119
    %v7121 = vpop.f32.mrb[0].mxu0
    %v7122 = vadd.f32 %v6929, %v7121
    %v7123 = vpop.f32.mrb[0].mxu0
    %v7124 = vadd.f32 %v6931, %v7123
    %7125 = vmatprep.mubr.bf16.mxu0 %v3454
    %7126 = vmatmul.mubr.bf16.gmra.mrb[0].mxu0 %v3453
    %v7127 = vpop.f32.mrb[0].mxu0
    %v7128 = vadd.f32 %v6935, %v7127
    %v7129 = vpop.f32.mrb[0].mxu0
    %v7130 = vadd.f32 %v6937, %v7129
    %v7131 = vpop.f32.mrb[0].mxu0
    %v7132 = vadd.f32 %v6939, %v7131
    %v7133 = vpop.f32.mrb[0].mxu0
    %v7134 = vadd.f32 %v6941, %v7133
    %7135 = vmatprep.mubr.bf16.mxu0 %v3462
    %7136 = vmatmul.mubr.bf16.gmra.mrb[0].mxu0 %v3461
    %v7137 = vpop.f32.mrb[0].mxu0
    %v7138 = vadd.f32 %v6945, %v7137
    %v7139 = vpop.f32.mrb[0].mxu0
    %v7140 = vadd.f32 %v6947, %v7139
    %v7141 = vpop.f32.mrb[0].mxu0
    %v7142 = vadd.f32 %v6949, %v7141
    %v7143 = vpop.f32.mrb[0].mxu0
    %v7144 = vadd.f32 %v6951, %v7143
    %7145 = vmatprep.mubr.bf16.mxu0 %v3470
    %7146 = vmatmul.mubr.bf16.gmra.mrb[0].mxu0 %v3469
    %v7147 = vpop.f32.mrb[0].mxu0
    %v7148 = vadd.f32 %v6955, %v7147
    %v7149 = vpop.f32.mrb[0].mxu0
    %v7150 = vadd.f32 %v6957, %v7149
    %v7151 = vpop.f32.mrb[0].mxu0
    %v7152 = vadd.f32 %v6959, %v7151
    %v7153 = vpop.f32.mrb[0].mxu0
    %v7154 = vadd.f32 %v6961, %v7153
    %7155 = vmatprep.mubr.bf16.mxu0 %v3478
    %7156 = vmatmul.mubr.bf16.gmra.mrb[0].mxu0 %v3477
    %v7157 = vpop.f32.mrb[0].mxu0
    %v7158 = vadd.f32 %v6965, %v7157
    %v7159 = vpop.f32.mrb[0].mxu0
    %v7160 = vadd.f32 %v6967, %v7159
    %v7161 = vpop.f32.mrb[0].mxu0
    %v7162 = vadd.f32 %v6969, %v7161
    %v7163 = vpop.f32.mrb[0].mxu0
    %v7164 = vadd.f32 %v6971, %v7163
    %7165 = vmatprep.mubr.bf16.mxu0 %v3486
    %7166 = vmatmul.mubr.bf16.gmra.mrb[0].mxu0 %v3485
    %v7167 = vpop.f32.mrb[0].mxu0
    %v7168 = vadd.f32 %v6975, %v7167
    %v7169 = vpop.f32.mrb[0].mxu0
    %v7170 = vadd.f32 %v6977, %v7169
    %v7171 = vpop.f32.mrb[0].mxu0
    %v7172 = vadd.f32 %v6979, %v7171
    %v7173 = vpop.f32.mrb[0].mxu0
    %v7174 = vadd.f32 %v6981, %v7173
    %7175 = vmatprep.mubr.bf16.mxu0 %v3494
    %7176 = vmatmul.mubr.bf16.gmra.mrb[0].mxu0 %v3493
    %v7177 = vpop.f32.mrb[0].mxu0
    %v7178 = vadd.f32 %v6985, %v7177
    %v7179 = vpop.f32.mrb[0].mxu0
    %v7180 = vadd.f32 %v6987, %v7179
    %v7181 = vpop.f32.mrb[0].mxu0
    %v7182 = vadd.f32 %v6989, %v7181
    %v7183 = vpop.f32.mrb[0].mxu0
    %v7184 = vadd.f32 %v6991, %v7183
    %7185 = vmatprep.mubr.bf16.mxu0 %v3502
    %7186 = vmatmul.mubr.bf16.gmra.mrb[0].mxu0 %v3501
    %v7187 = vpop.f32.mrb[0].mxu0
    %v7188 = vadd.f32 %v6995, %v7187
    %v7189 = vpop.f32.mrb[0].mxu0
    %v7190 = vadd.f32 %v6997, %v7189
    %v7191 = vpop.f32.mrb[0].mxu0
    %v7192 = vadd.f32 %v6999, %v7191
    %v7193 = vpop.f32.mrb[0].mxu0
    %v7194 = vadd.f32 %v7001, %v7193
    %7195 = vmatprep.mubr.bf16.mxu0 %v3510
    %7196 = vmatmul.mubr.bf16.gmra.mrb[0].mxu0 %v3509
    %v7197 = vpop.f32.mrb[0].mxu0
    %v7198 = vadd.f32 %v7005, %v7197
    %v7199 = vpop.f32.mrb[0].mxu0
    %v7200 = vadd.f32 %v7007, %v7199
    %v7201 = vpop.f32.mrb[0].mxu0
    %v7202 = vadd.f32 %v7009, %v7201
    %v7203 = vpop.f32.mrb[0].mxu0
    %v7204 = vadd.f32 %v7011, %v7203
    %7205 = vdwg.mxu0
    %7206 = vmatprep.subr.bf16.mxu0 %v5988
    %7207 = vmatpush1.bf16.msra.mxu0 %v5987
    %7208 = vmatprep.subr.bf16.mxu0 %v5996
    %7209 = vmatpush1.bf16.msra.mxu0 %v5995
    %7210 = vmatprep.subr.bf16.mxu0 %v6004
    %7211 = vmatpush1.bf16.msra.mxu0 %v6003
    %7212 = vmatprep.subr.bf16.mxu0 %v6012
    %7213 = vmatpush1.bf16.msra.mxu0 %v6011
    %7214 = vmatprep.subr.bf16.mxu0 %v6020
    %7215 = vmatpush1.bf16.msra.mxu0 %v6019
    %7216 = vmatprep.subr.bf16.mxu0 %v6028
    %7217 = vmatpush1.bf16.msra.mxu0 %v6027
    %7218 = vmatprep.subr.bf16.mxu0 %v6036
    %7219 = vmatpush1.bf16.msra.mxu0 %v6035
    %7220 = vmatprep.subr.bf16.mxu0 %v6044
    %7221 = vmatpush1.bf16.msra.mxu0 %v6043
    %7222 = vmatprep.subr.bf16.mxu0 %v6052
    %7223 = vmatpush1.bf16.msra.mxu0 %v6051
    %7224 = vmatprep.subr.bf16.mxu0 %v6060
    %7225 = vmatpush1.bf16.msra.mxu0 %v6059
    %7226 = vmatprep.subr.bf16.mxu0 %v6068
    %7227 = vmatpush1.bf16.msra.mxu0 %v6067
    %7228 = vmatprep.subr.bf16.mxu0 %v6076
    %7229 = vmatpush1.bf16.msra.mxu0 %v6075
    %7230 = vmatprep.subr.bf16.mxu0 %v6084
    %7231 = vmatpush1.bf16.msra.mxu0 %v6083
    %7232 = vmatprep.subr.bf16.mxu0 %v6092
    %7233 = vmatpush1.bf16.msra.mxu0 %v6091
    %7234 = vmatprep.subr.bf16.mxu0 %v6100
    %7235 = vmatpush1.bf16.msra.mxu0 %v6099
    %7236 = vmatprep.subr.bf16.mxu0 %v6108
    %7237 = vmatpush1.bf16.msra.mxu0 %v6107
    %7238 = vmatprep.mubr.bf16.mxu0 %v3392
    %7239 = vmatmul.mubr.bf16.gmra.mrb[0].mxu0 %v3391
    %v7240 = vpop.f32.mrb[0].mxu0
    %v7241 = vadd.f32 %v7048, %v7240
    %v7242 = vpop.f32.mrb[0].mxu0
    %v7243 = vadd.f32 %v7050, %v7242
    %v7244 = vpop.f32.mrb[0].mxu0
    %v7245 = vadd.f32 %v7052, %v7244
    %v7246 = vpop.f32.mrb[0].mxu0
    %v7247 = vadd.f32 %v7054, %v7246
    %7248 = vmatprep.mubr.bf16.mxu0 %v3400
    %7249 = vmatmul.mubr.bf16.gmra.mrb[0].mxu0 %v3399
    %v7250 = vpop.f32.mrb[0].mxu0
    %v7251 = vadd.f32 %v7058, %v7250
    %v7252 = vpop.f32.mrb[0].mxu0
    %v7253 = vadd.f32 %v7060, %v7252
    %v7254 = vpop.f32.mrb[0].mxu0
    %v7255 = vadd.f32 %v7062, %v7254
    %v7256 = vpop.f32.mrb[0].mxu0
    %v7257 = vadd.f32 %v7064, %v7256
    %7258 = vmatprep.mubr.bf16.mxu0 %v3408
    %7259 = vmatmul.mubr.bf16.gmra.mrb[0].mxu0 %v3407
    %v7260 = vpop.f32.mrb[0].mxu0
    %v7261 = vadd.f32 %v7068, %v7260
    %v7262 = vpop.f32.mrb[0].mxu0
    %v7263 = vadd.f32 %v7070, %v7262
    %v7264 = vpop.f32.mrb[0].mxu0
    %v7265 = vadd.f32 %v7072, %v7264
    %v7266 = vpop.f32.mrb[0].mxu0
    %v7267 = vadd.f32 %v7074, %v7266
    %7268 = vmatprep.mubr.bf16.mxu0 %v3416
    %7269 = vmatmul.mubr.bf16.gmra.mrb[0].mxu0 %v3415
    %v7270 = vpop.f32.mrb[0].mxu0
    %v7271 = vadd.f32 %v7078, %v7270
    %v7272 = vpop.f32.mrb[0].mxu0
    %v7273 = vadd.f32 %v7080, %v7272
    %v7274 = vpop.f32.mrb[0].mxu0
    %v7275 = vadd.f32 %v7082, %v7274
    %v7276 = vpop.f32.mrb[0].mxu0
    %v7277 = vadd.f32 %v7084, %v7276
    %7278 = vmatprep.mubr.bf16.mxu0 %v3424
    %7279 = vmatmul.mubr.bf16.gmra.mrb[0].mxu0 %v3423
    %v7280 = vpop.f32.mrb[0].mxu0
    %v7281 = vadd.f32 %v7088, %v7280
    %v7282 = vpop.f32.mrb[0].mxu0
    %v7283 = vadd.f32 %v7090, %v7282
    %v7284 = vpop.f32.mrb[0].mxu0
    %v7285 = vadd.f32 %v7092, %v7284
    %v7286 = vpop.f32.mrb[0].mxu0
    %v7287 = vadd.f32 %v7094, %v7286
    %7288 = vmatprep.mubr.bf16.mxu0 %v3432
    %7289 = vmatmul.mubr.bf16.gmra.mrb[0].mxu0 %v3431
    %v7290 = vpop.f32.mrb[0].mxu0
    %v7291 = vadd.f32 %v7098, %v7290
    %v7292 = vpop.f32.mrb[0].mxu0
    %v7293 = vadd.f32 %v7100, %v7292
    %v7294 = vpop.f32.mrb[0].mxu0
    %v7295 = vadd.f32 %v7102, %v7294
    %v7296 = vpop.f32.mrb[0].mxu0
    %v7297 = vadd.f32 %v7104, %v7296
    %7298 = vmatprep.mubr.bf16.mxu0 %v3440
    %7299 = vmatmul.mubr.bf16.gmra.mrb[0].mxu0 %v3439
    %v7300 = vpop.f32.mrb[0].mxu0
    %v7301 = vadd.f32 %v7108, %v7300
    %v7302 = vpop.f32.mrb[0].mxu0
    %v7303 = vadd.f32 %v7110, %v7302
    %v7304 = vpop.f32.mrb[0].mxu0
    %v7305 = vadd.f32 %v7112, %v7304
    %v7306 = vpop.f32.mrb[0].mxu0
    %v7307 = vadd.f32 %v7114, %v7306
    %7308 = vmatprep.mubr.bf16.mxu0 %v3448
    %7309 = vmatmul.mubr.bf16.gmra.mrb[0].mxu0 %v3447
    %v7310 = vpop.f32.mrb[0].mxu0
    %v7311 = vadd.f32 %v7118, %v7310
    %v7312 = vpop.f32.mrb[0].mxu0
    %v7313 = vadd.f32 %v7120, %v7312
    %v7314 = vpop.f32.mrb[0].mxu0
    %v7315 = vadd.f32 %v7122, %v7314
    %v7316 = vpop.f32.mrb[0].mxu0
    %v7317 = vadd.f32 %v7124, %v7316
    %7318 = vmatprep.mubr.bf16.mxu0 %v3456
    %7319 = vmatmul.mubr.bf16.gmra.mrb[0].mxu0 %v3455
    %v7320 = vpop.f32.mrb[0].mxu0
    %v7321 = vadd.f32 %v7128, %v7320
    %v7322 = vpop.f32.mrb[0].mxu0
    %v7323 = vadd.f32 %v7130, %v7322
    %v7324 = vpop.f32.mrb[0].mxu0
    %v7325 = vadd.f32 %v7132, %v7324
    %v7326 = vpop.f32.mrb[0].mxu0
    %v7327 = vadd.f32 %v7134, %v7326
    %7328 = vmatprep.mubr.bf16.mxu0 %v3464
    %7329 = vmatmul.mubr.bf16.gmra.mrb[0].mxu0 %v3463
    %v7330 = vpop.f32.mrb[0].mxu0
    %v7331 = vadd.f32 %v7138, %v7330
    %v7332 = vpop.f32.mrb[0].mxu0
    %v7333 = vadd.f32 %v7140, %v7332
    %v7334 = vpop.f32.mrb[0].mxu0
    %v7335 = vadd.f32 %v7142, %v7334
    %v7336 = vpop.f32.mrb[0].mxu0
    %v7337 = vadd.f32 %v7144, %v7336
    %7338 = vmatprep.mubr.bf16.mxu0 %v3472
    %7339 = vmatmul.mubr.bf16.gmra.mrb[0].mxu0 %v3471
    %v7340 = vpop.f32.mrb[0].mxu0
    %v7341 = vadd.f32 %v7148, %v7340
    %v7342 = vpop.f32.mrb[0].mxu0
    %v7343 = vadd.f32 %v7150, %v7342
    %v7344 = vpop.f32.mrb[0].mxu0
    %v7345 = vadd.f32 %v7152, %v7344
    %v7346 = vpop.f32.mrb[0].mxu0
    %v7347 = vadd.f32 %v7154, %v7346
    %7348 = vmatprep.mubr.bf16.mxu0 %v3480
    %7349 = vmatmul.mubr.bf16.gmra.mrb[0].mxu0 %v3479
    %v7350 = vpop.f32.mrb[0].mxu0
    %v7351 = vadd.f32 %v7158, %v7350
    %v7352 = vpop.f32.mrb[0].mxu0
    %v7353 = vadd.f32 %v7160, %v7352
    %v7354 = vpop.f32.mrb[0].mxu0
    %v7355 = vadd.f32 %v7162, %v7354
    %v7356 = vpop.f32.mrb[0].mxu0
    %v7357 = vadd.f32 %v7164, %v7356
    %7358 = vmatprep.mubr.bf16.mxu0 %v3488
    %7359 = vmatmul.mubr.bf16.gmra.mrb[0].mxu0 %v3487
    %v7360 = vpop.f32.mrb[0].mxu0
    %v7361 = vadd.f32 %v7168, %v7360
    %v7362 = vpop.f32.mrb[0].mxu0
    %v7363 = vadd.f32 %v7170, %v7362
    %v7364 = vpop.f32.mrb[0].mxu0
    %v7365 = vadd.f32 %v7172, %v7364
    %v7366 = vpop.f32.mrb[0].mxu0
    %v7367 = vadd.f32 %v7174, %v7366
    %7368 = vmatprep.mubr.bf16.mxu0 %v3496
    %7369 = vmatmul.mubr.bf16.gmra.mrb[0].mxu0 %v3495
    %v7370 = vpop.f32.mrb[0].mxu0
    %v7371 = vadd.f32 %v7178, %v7370
    %v7372 = vpop.f32.mrb[0].mxu0
    %v7373 = vadd.f32 %v7180, %v7372
    %v7374 = vpop.f32.mrb[0].mxu0
    %v7375 = vadd.f32 %v7182, %v7374
    %v7376 = vpop.f32.mrb[0].mxu0
    %v7377 = vadd.f32 %v7184, %v7376
    %7378 = vmatprep.mubr.bf16.mxu0 %v3504
    %7379 = vmatmul.mubr.bf16.gmra.mrb[0].mxu0 %v3503
    %v7380 = vpop.f32.mrb[0].mxu0
    %v7381 = vadd.f32 %v7188, %v7380
    %v7382 = vpop.f32.mrb[0].mxu0
    %v7383 = vadd.f32 %v7190, %v7382
    %v7384 = vpop.f32.mrb[0].mxu0
    %v7385 = vadd.f32 %v7192, %v7384
    %v7386 = vpop.f32.mrb[0].mxu0
    %v7387 = vadd.f32 %v7194, %v7386
    %7388 = vmatprep.mubr.bf16.mxu0 %v3512
    %7389 = vmatmul.mubr.bf16.gmra.mrb[0].mxu0 %v3511
    %v7390 = vpop.f32.mrb[0].mxu0
    %v7391 = vadd.f32 %v7198, %v7390
    %v7392 = vpop.f32.mrb[0].mxu0
    %v7393 = vadd.f32 %v7200, %v7392
    %v7394 = vpop.f32.mrb[0].mxu0
    %v7395 = vadd.f32 %v7202, %v7394
    %v7396 = vpop.f32.mrb[0].mxu0
    %v7397 = vadd.f32 %v7204, %v7396
    %7398 = vdwg.mxu0
    %7399 = vmatprep.subr.bf16.mxu0 %v5606
    %7400 = vmatpush1.bf16.msra.mxu0 %v5605
    %7401 = vmatprep.subr.bf16.mxu0 %v5614
    %7402 = vmatpush1.bf16.msra.mxu0 %v5613
    %7403 = vmatprep.subr.bf16.mxu0 %v5622
    %7404 = vmatpush1.bf16.msra.mxu0 %v5621
    %7405 = vmatprep.subr.bf16.mxu0 %v5630
    %7406 = vmatpush1.bf16.msra.mxu0 %v5629
    %7407 = vmatprep.subr.bf16.mxu0 %v5638
    %7408 = vmatpush1.bf16.msra.mxu0 %v5637
    %7409 = vmatprep.subr.bf16.mxu0 %v5646
    %7410 = vmatpush1.bf16.msra.mxu0 %v5645
    %7411 = vmatprep.subr.bf16.mxu0 %v5654
    %7412 = vmatpush1.bf16.msra.mxu0 %v5653
    %7413 = vmatprep.subr.bf16.mxu0 %v5662
    %7414 = vmatpush1.bf16.msra.mxu0 %v5661
    %7415 = vmatprep.subr.bf16.mxu0 %v5670
    %7416 = vmatpush1.bf16.msra.mxu0 %v5669
    %7417 = vmatprep.subr.bf16.mxu0 %v5678
    %7418 = vmatpush1.bf16.msra.mxu0 %v5677
    %7419 = vmatprep.subr.bf16.mxu0 %v5686
    %7420 = vmatpush1.bf16.msra.mxu0 %v5685
    %7421 = vmatprep.subr.bf16.mxu0 %v5694
    %7422 = vmatpush1.bf16.msra.mxu0 %v5693
    %7423 = vmatprep.subr.bf16.mxu0 %v5702
    %7424 = vmatpush1.bf16.msra.mxu0 %v5701
    %7425 = vmatprep.subr.bf16.mxu0 %v5710
    %7426 = vmatpush1.bf16.msra.mxu0 %v5709
    %7427 = vmatprep.subr.bf16.mxu0 %v5718
    %7428 = vmatpush1.bf16.msra.mxu0 %v5717
    %7429 = vmatprep.subr.bf16.mxu0 %v5726
    %7430 = vmatpush1.bf16.msra.mxu0 %v5725
    %7431 = vmatprep.mubr.bf16.mxu0 %v3386
    %7432 = vmatmul.mubr.bf16.gmra.mrb[0].mxu0 %v3385
    %v7433 = vpop.f32.mrb[0].mxu0
    %v7434 = vadd.f32 %v4038, %v7433
    %v7435 = vpop.f32.mrb[0].mxu0
    %v7436 = vadd.f32 %v4042, %v7435
    %v7437 = vpop.f32.mrb[0].mxu0
    %v7438 = vadd.f32 %v4038, %v7437
    %v7439 = vpop.f32.mrb[0].mxu0
    %v7440 = vadd.f32 %v4042, %v7439
    %7441 = vmatprep.mubr.bf16.mxu0 %v3394
    %7442 = vmatmul.mubr.bf16.gmra.mrb[0].mxu0 %v3393
    %v7443 = vpop.f32.mrb[0].mxu0
    %v7444 = vadd.f32 %v4038, %v7443
    %v7445 = vpop.f32.mrb[0].mxu0
    %v7446 = vadd.f32 %v4042, %v7445
    %v7447 = vpop.f32.mrb[0].mxu0
    %v7448 = vadd.f32 %v4038, %v7447
    %v7449 = vpop.f32.mrb[0].mxu0
    %v7450 = vadd.f32 %v4042, %v7449
    %7451 = vmatprep.mubr.bf16.mxu0 %v3402
    %7452 = vmatmul.mubr.bf16.gmra.mrb[0].mxu0 %v3401
    %v7453 = vpop.f32.mrb[0].mxu0
    %v7454 = vadd.f32 %v4038, %v7453
    %v7455 = vpop.f32.mrb[0].mxu0
    %v7456 = vadd.f32 %v4042, %v7455
    %v7457 = vpop.f32.mrb[0].mxu0
    %v7458 = vadd.f32 %v4038, %v7457
    %v7459 = vpop.f32.mrb[0].mxu0
    %v7460 = vadd.f32 %v4042, %v7459
    %7461 = vmatprep.mubr.bf16.mxu0 %v3410
    %7462 = vmatmul.mubr.bf16.gmra.mrb[0].mxu0 %v3409
    %v7463 = vpop.f32.mrb[0].mxu0
    %v7464 = vadd.f32 %v4038, %v7463
    %v7465 = vpop.f32.mrb[0].mxu0
    %v7466 = vadd.f32 %v4042, %v7465
    %v7467 = vpop.f32.mrb[0].mxu0
    %v7468 = vadd.f32 %v4038, %v7467
    %v7469 = vpop.f32.mrb[0].mxu0
    %v7470 = vadd.f32 %v4042, %v7469
    %7471 = vmatprep.mubr.bf16.mxu0 %v3418
    %7472 = vmatmul.mubr.bf16.gmra.mrb[0].mxu0 %v3417
    %v7473 = vpop.f32.mrb[0].mxu0
    %v7474 = vadd.f32 %v4038, %v7473
    %v7475 = vpop.f32.mrb[0].mxu0
    %v7476 = vadd.f32 %v4042, %v7475
    %v7477 = vpop.f32.mrb[0].mxu0
    %v7478 = vadd.f32 %v4038, %v7477
    %v7479 = vpop.f32.mrb[0].mxu0
    %v7480 = vadd.f32 %v4042, %v7479
    %7481 = vmatprep.mubr.bf16.mxu0 %v3426
    %7482 = vmatmul.mubr.bf16.gmra.mrb[0].mxu0 %v3425
    %v7483 = vpop.f32.mrb[0].mxu0
    %v7484 = vadd.f32 %v4038, %v7483
    %v7485 = vpop.f32.mrb[0].mxu0
    %v7486 = vadd.f32 %v4042, %v7485
    %v7487 = vpop.f32.mrb[0].mxu0
    %v7488 = vadd.f32 %v4038, %v7487
    %v7489 = vpop.f32.mrb[0].mxu0
    %v7490 = vadd.f32 %v4042, %v7489
    %7491 = vmatprep.mubr.bf16.mxu0 %v3434
    %7492 = vmatmul.mubr.bf16.gmra.mrb[0].mxu0 %v3433
    %v7493 = vpop.f32.mrb[0].mxu0
    %v7494 = vadd.f32 %v4038, %v7493
    %v7495 = vpop.f32.mrb[0].mxu0
    %v7496 = vadd.f32 %v4042, %v7495
    %v7497 = vpop.f32.mrb[0].mxu0
    %v7498 = vadd.f32 %v4038, %v7497
    %v7499 = vpop.f32.mrb[0].mxu0
    %v7500 = vadd.f32 %v4042, %v7499
    %7501 = vmatprep.mubr.bf16.mxu0 %v3442
    %7502 = vmatmul.mubr.bf16.gmra.mrb[0].mxu0 %v3441
    %v7503 = vpop.f32.mrb[0].mxu0
    %v7504 = vadd.f32 %v4038, %v7503
    %v7505 = vpop.f32.mrb[0].mxu0
    %v7506 = vadd.f32 %v4042, %v7505
    %v7507 = vpop.f32.mrb[0].mxu0
    %v7508 = vadd.f32 %v4038, %v7507
    %v7509 = vpop.f32.mrb[0].mxu0
    %v7510 = vadd.f32 %v4042, %v7509
    %7511 = vmatprep.mubr.bf16.mxu0 %v3450
    %7512 = vmatmul.mubr.bf16.gmra.mrb[0].mxu0 %v3449
    %v7513 = vpop.f32.mrb[0].mxu0
    %v7514 = vadd.f32 %v4038, %v7513
    %v7515 = vpop.f32.mrb[0].mxu0
    %v7516 = vadd.f32 %v4042, %v7515
    %v7517 = vpop.f32.mrb[0].mxu0
    %v7518 = vadd.f32 %v4038, %v7517
    %v7519 = vpop.f32.mrb[0].mxu0
    %v7520 = vadd.f32 %v4042, %v7519
    %7521 = vmatprep.mubr.bf16.mxu0 %v3458
    %7522 = vmatmul.mubr.bf16.gmra.mrb[0].mxu0 %v3457
    %v7523 = vpop.f32.mrb[0].mxu0
    %v7524 = vadd.f32 %v4038, %v7523
    %v7525 = vpop.f32.mrb[0].mxu0
    %v7526 = vadd.f32 %v4042, %v7525
    %v7527 = vpop.f32.mrb[0].mxu0
    %v7528 = vadd.f32 %v4038, %v7527
    %v7529 = vpop.f32.mrb[0].mxu0
    %v7530 = vadd.f32 %v4042, %v7529
    %7531 = vmatprep.mubr.bf16.mxu0 %v3466
    %7532 = vmatmul.mubr.bf16.gmra.mrb[0].mxu0 %v3465
    %v7533 = vpop.f32.mrb[0].mxu0
    %v7534 = vadd.f32 %v4038, %v7533
    %v7535 = vpop.f32.mrb[0].mxu0
    %v7536 = vadd.f32 %v4042, %v7535
    %v7537 = vpop.f32.mrb[0].mxu0
    %v7538 = vadd.f32 %v4038, %v7537
    %v7539 = vpop.f32.mrb[0].mxu0
    %v7540 = vadd.f32 %v4042, %v7539
    %7541 = vmatprep.mubr.bf16.mxu0 %v3474
    %7542 = vmatmul.mubr.bf16.gmra.mrb[0].mxu0 %v3473
    %v7543 = vpop.f32.mrb[0].mxu0
    %v7544 = vadd.f32 %v4038, %v7543
    %v7545 = vpop.f32.mrb[0].mxu0
    %v7546 = vadd.f32 %v4042, %v7545
    %v7547 = vpop.f32.mrb[0].mxu0
    %v7548 = vadd.f32 %v4038, %v7547
    %v7549 = vpop.f32.mrb[0].mxu0
    %v7550 = vadd.f32 %v4042, %v7549
    %7551 = vmatprep.mubr.bf16.mxu0 %v3482
    %7552 = vmatmul.mubr.bf16.gmra.mrb[0].mxu0 %v3481
    %v7553 = vpop.f32.mrb[0].mxu0
    %v7554 = vadd.f32 %v4038, %v7553
    %v7555 = vpop.f32.mrb[0].mxu0
    %v7556 = vadd.f32 %v4042, %v7555
    %v7557 = vpop.f32.mrb[0].mxu0
    %v7558 = vadd.f32 %v4038, %v7557
    %v7559 = vpop.f32.mrb[0].mxu0
    %v7560 = vadd.f32 %v4042, %v7559
    %7561 = vmatprep.mubr.bf16.mxu0 %v3490
    %7562 = vmatmul.mubr.bf16.gmra.mrb[0].mxu0 %v3489
    %v7563 = vpop.f32.mrb[0].mxu0
    %v7564 = vadd.f32 %v4038, %v7563
    %v7565 = vpop.f32.mrb[0].mxu0
    %v7566 = vadd.f32 %v4042, %v7565
    %v7567 = vpop.f32.mrb[0].mxu0
    %v7568 = vadd.f32 %v4038, %v7567
    %v7569 = vpop.f32.mrb[0].mxu0
    %v7570 = vadd.f32 %v4042, %v7569
    %7571 = vmatprep.mubr.bf16.mxu0 %v3498
    %7572 = vmatmul.mubr.bf16.gmra.mrb[0].mxu0 %v3497
    %v7573 = vpop.f32.mrb[0].mxu0
    %v7574 = vadd.f32 %v4038, %v7573
    %v7575 = vpop.f32.mrb[0].mxu0
    %v7576 = vadd.f32 %v4042, %v7575
    %v7577 = vpop.f32.mrb[0].mxu0
    %v7578 = vadd.f32 %v4038, %v7577
    %v7579 = vpop.f32.mrb[0].mxu0
    %v7580 = vadd.f32 %v4042, %v7579
    %7581 = vmatprep.mubr.bf16.mxu0 %v3506
    %7582 = vmatmul.mubr.bf16.gmra.mrb[0].mxu0 %v3505
    %v7583 = vpop.f32.mrb[0].mxu0
    %v7584 = vadd.f32 %v4038, %v7583
    %v7585 = vpop.f32.mrb[0].mxu0
    %v7586 = vadd.f32 %v4042, %v7585
    %v7587 = vpop.f32.mrb[0].mxu0
    %v7588 = vadd.f32 %v4038, %v7587
    %v7589 = vpop.f32.mrb[0].mxu0
    %v7590 = vadd.f32 %v4042, %v7589
    %7591 = vdwg.mxu0
    %7592 = vmatprep.subr.bf16.mxu0 %v5734
    %7593 = vmatpush1.bf16.msra.mxu0 %v5733
    %7594 = vmatprep.subr.bf16.mxu0 %v5742
    %7595 = vmatpush1.bf16.msra.mxu0 %v5741
    %7596 = vmatprep.subr.bf16.mxu0 %v5750
    %7597 = vmatpush1.bf16.msra.mxu0 %v5749
    %7598 = vmatprep.subr.bf16.mxu0 %v5758
    %7599 = vmatpush1.bf16.msra.mxu0 %v5757
    %7600 = vmatprep.subr.bf16.mxu0 %v5766
    %7601 = vmatpush1.bf16.msra.mxu0 %v5765
    %7602 = vmatprep.subr.bf16.mxu0 %v5774
    %7603 = vmatpush1.bf16.msra.mxu0 %v5773
    %7604 = vmatprep.subr.bf16.mxu0 %v5782
    %7605 = vmatpush1.bf16.msra.mxu0 %v5781
    %7606 = vmatprep.subr.bf16.mxu0 %v5790
    %7607 = vmatpush1.bf16.msra.mxu0 %v5789
    %7608 = vmatprep.subr.bf16.mxu0 %v5798
    %7609 = vmatpush1.bf16.msra.mxu0 %v5797
    %7610 = vmatprep.subr.bf16.mxu0 %v5806
    %7611 = vmatpush1.bf16.msra.mxu0 %v5805
    %7612 = vmatprep.subr.bf16.mxu0 %v5814
    %7613 = vmatpush1.bf16.msra.mxu0 %v5813
    %7614 = vmatprep.subr.bf16.mxu0 %v5822
    %7615 = vmatpush1.bf16.msra.mxu0 %v5821
    %7616 = vmatprep.subr.bf16.mxu0 %v5830
    %7617 = vmatpush1.bf16.msra.mxu0 %v5829
    %7618 = vmatprep.subr.bf16.mxu0 %v5838
    %7619 = vmatpush1.bf16.msra.mxu0 %v5837
    %7620 = vmatprep.subr.bf16.mxu0 %v5846
    %7621 = vmatpush1.bf16.msra.mxu0 %v5845
    %7622 = vmatprep.subr.bf16.mxu0 %v5854
    %7623 = vmatpush1.bf16.msra.mxu0 %v5853
    %7624 = vmatprep.mubr.bf16.mxu0 %v3388
    %7625 = vmatmul.mubr.bf16.gmra.mrb[0].mxu0 %v3387
    %v7626 = vpop.f32.mrb[0].mxu0
    %v7627 = vadd.f32 %v7434, %v7626
    %v7628 = vpop.f32.mrb[0].mxu0
    %v7629 = vadd.f32 %v7436, %v7628
    %v7630 = vpop.f32.mrb[0].mxu0
    %v7631 = vadd.f32 %v7438, %v7630
    %v7632 = vpop.f32.mrb[0].mxu0
    %v7633 = vadd.f32 %v7440, %v7632
    %7634 = vmatprep.mubr.bf16.mxu0 %v3396
    %7635 = vmatmul.mubr.bf16.gmra.mrb[0].mxu0 %v3395
    %v7636 = vpop.f32.mrb[0].mxu0
    %v7637 = vadd.f32 %v7444, %v7636
    %v7638 = vpop.f32.mrb[0].mxu0
    %v7639 = vadd.f32 %v7446, %v7638
    %v7640 = vpop.f32.mrb[0].mxu0
    %v7641 = vadd.f32 %v7448, %v7640
    %v7642 = vpop.f32.mrb[0].mxu0
    %v7643 = vadd.f32 %v7450, %v7642
    %7644 = vmatprep.mubr.bf16.mxu0 %v3404
    %7645 = vmatmul.mubr.bf16.gmra.mrb[0].mxu0 %v3403
    %v7646 = vpop.f32.mrb[0].mxu0
    %v7647 = vadd.f32 %v7454, %v7646
    %v7648 = vpop.f32.mrb[0].mxu0
    %v7649 = vadd.f32 %v7456, %v7648
    %v7650 = vpop.f32.mrb[0].mxu0
    %v7651 = vadd.f32 %v7458, %v7650
    %v7652 = vpop.f32.mrb[0].mxu0
    %v7653 = vadd.f32 %v7460, %v7652
    %7654 = vmatprep.mubr.bf16.mxu0 %v3412
    %7655 = vmatmul.mubr.bf16.gmra.mrb[0].mxu0 %v3411
    %v7656 = vpop.f32.mrb[0].mxu0
    %v7657 = vadd.f32 %v7464, %v7656
    %v7658 = vpop.f32.mrb[0].mxu0
    %v7659 = vadd.f32 %v7466, %v7658
    %v7660 = vpop.f32.mrb[0].mxu0
    %v7661 = vadd.f32 %v7468, %v7660
    %v7662 = vpop.f32.mrb[0].mxu0
    %v7663 = vadd.f32 %v7470, %v7662
    %7664 = vmatprep.mubr.bf16.mxu0 %v3420
    %7665 = vmatmul.mubr.bf16.gmra.mrb[0].mxu0 %v3419
    %v7666 = vpop.f32.mrb[0].mxu0
    %v7667 = vadd.f32 %v7474, %v7666
    %v7668 = vpop.f32.mrb[0].mxu0
    %v7669 = vadd.f32 %v7476, %v7668
    %v7670 = vpop.f32.mrb[0].mxu0
    %v7671 = vadd.f32 %v7478, %v7670
    %v7672 = vpop.f32.mrb[0].mxu0
    %v7673 = vadd.f32 %v7480, %v7672
    %7674 = vmatprep.mubr.bf16.mxu0 %v3428
    %7675 = vmatmul.mubr.bf16.gmra.mrb[0].mxu0 %v3427
    %v7676 = vpop.f32.mrb[0].mxu0
    %v7677 = vadd.f32 %v7484, %v7676
    %v7678 = vpop.f32.mrb[0].mxu0
    %v7679 = vadd.f32 %v7486, %v7678
    %v7680 = vpop.f32.mrb[0].mxu0
    %v7681 = vadd.f32 %v7488, %v7680
    %v7682 = vpop.f32.mrb[0].mxu0
    %v7683 = vadd.f32 %v7490, %v7682
    %7684 = vmatprep.mubr.bf16.mxu0 %v3436
    %7685 = vmatmul.mubr.bf16.gmra.mrb[0].mxu0 %v3435
    %v7686 = vpop.f32.mrb[0].mxu0
    %v7687 = vadd.f32 %v7494, %v7686
    %v7688 = vpop.f32.mrb[0].mxu0
    %v7689 = vadd.f32 %v7496, %v7688
    %v7690 = vpop.f32.mrb[0].mxu0
    %v7691 = vadd.f32 %v7498, %v7690
    %v7692 = vpop.f32.mrb[0].mxu0
    %v7693 = vadd.f32 %v7500, %v7692
    %7694 = vmatprep.mubr.bf16.mxu0 %v3444
    %7695 = vmatmul.mubr.bf16.gmra.mrb[0].mxu0 %v3443
    %v7696 = vpop.f32.mrb[0].mxu0
    %v7697 = vadd.f32 %v7504, %v7696
    %v7698 = vpop.f32.mrb[0].mxu0
    %v7699 = vadd.f32 %v7506, %v7698
    %v7700 = vpop.f32.mrb[0].mxu0
    %v7701 = vadd.f32 %v7508, %v7700
    %v7702 = vpop.f32.mrb[0].mxu0
    %v7703 = vadd.f32 %v7510, %v7702
    %7704 = vmatprep.mubr.bf16.mxu0 %v3452
    %7705 = vmatmul.mubr.bf16.gmra.mrb[0].mxu0 %v3451
    %v7706 = vpop.f32.mrb[0].mxu0
    %v7707 = vadd.f32 %v7514, %v7706
    %v7708 = vpop.f32.mrb[0].mxu0
    %v7709 = vadd.f32 %v7516, %v7708
    %v7710 = vpop.f32.mrb[0].mxu0
    %v7711 = vadd.f32 %v7518, %v7710
    %v7712 = vpop.f32.mrb[0].mxu0
    %v7713 = vadd.f32 %v7520, %v7712
    %7714 = vmatprep.mubr.bf16.mxu0 %v3460
    %7715 = vmatmul.mubr.bf16.gmra.mrb[0].mxu0 %v3459
    %v7716 = vpop.f32.mrb[0].mxu0
    %v7717 = vadd.f32 %v7524, %v7716
    %v7718 = vpop.f32.mrb[0].mxu0
    %v7719 = vadd.f32 %v7526, %v7718
    %v7720 = vpop.f32.mrb[0].mxu0
    %v7721 = vadd.f32 %v7528, %v7720
    %v7722 = vpop.f32.mrb[0].mxu0
    %v7723 = vadd.f32 %v7530, %v7722
    %7724 = vmatprep.mubr.bf16.mxu0 %v3468
    %7725 = vmatmul.mubr.bf16.gmra.mrb[0].mxu0 %v3467
    %v7726 = vpop.f32.mrb[0].mxu0
    %v7727 = vadd.f32 %v7534, %v7726
    %v7728 = vpop.f32.mrb[0].mxu0
    %v7729 = vadd.f32 %v7536, %v7728
    %v7730 = vpop.f32.mrb[0].mxu0
    %v7731 = vadd.f32 %v7538, %v7730
    %v7732 = vpop.f32.mrb[0].mxu0
    %v7733 = vadd.f32 %v7540, %v7732
    %7734 = vmatprep.mubr.bf16.mxu0 %v3476
    %7735 = vmatmul.mubr.bf16.gmra.mrb[0].mxu0 %v3475
    %v7736 = vpop.f32.mrb[0].mxu0
    %v7737 = vadd.f32 %v7544, %v7736
    %v7738 = vpop.f32.mrb[0].mxu0
    %v7739 = vadd.f32 %v7546, %v7738
    %v7740 = vpop.f32.mrb[0].mxu0
    %v7741 = vadd.f32 %v7548, %v7740
    %v7742 = vpop.f32.mrb[0].mxu0
    %v7743 = vadd.f32 %v7550, %v7742
    %7744 = vmatprep.mubr.bf16.mxu0 %v3484
    %7745 = vmatmul.mubr.bf16.gmra.mrb[0].mxu0 %v3483
    %v7746 = vpop.f32.mrb[0].mxu0
    %v7747 = vadd.f32 %v7554, %v7746
    %v7748 = vpop.f32.mrb[0].mxu0
    %v7749 = vadd.f32 %v7556, %v7748
    %v7750 = vpop.f32.mrb[0].mxu0
    %v7751 = vadd.f32 %v7558, %v7750
    %v7752 = vpop.f32.mrb[0].mxu0
    %v7753 = vadd.f32 %v7560, %v7752
    %7754 = vmatprep.mubr.bf16.mxu0 %v3492
    %7755 = vmatmul.mubr.bf16.gmra.mrb[0].mxu0 %v3491
    %v7756 = vpop.f32.mrb[0].mxu0
    %v7757 = vadd.f32 %v7564, %v7756
    %v7758 = vpop.f32.mrb[0].mxu0
    %v7759 = vadd.f32 %v7566, %v7758
    %v7760 = vpop.f32.mrb[0].mxu0
    %v7761 = vadd.f32 %v7568, %v7760
    %v7762 = vpop.f32.mrb[0].mxu0
    %v7763 = vadd.f32 %v7570, %v7762
    %7764 = vmatprep.mubr.bf16.mxu0 %v3500
    %7765 = vmatmul.mubr.bf16.gmra.mrb[0].mxu0 %v3499
    %v7766 = vpop.f32.mrb[0].mxu0
    %v7767 = vadd.f32 %v7574, %v7766
    %v7768 = vpop.f32.mrb[0].mxu0
    %v7769 = vadd.f32 %v7576, %v7768
    %v7770 = vpop.f32.mrb[0].mxu0
    %v7771 = vadd.f32 %v7578, %v7770
    %v7772 = vpop.f32.mrb[0].mxu0
    %v7773 = vadd.f32 %v7580, %v7772
    %7774 = vmatprep.mubr.bf16.mxu0 %v3508
    %7775 = vmatmul.mubr.bf16.gmra.mrb[0].mxu0 %v3507
    %v7776 = vpop.f32.mrb[0].mxu0
    %v7777 = vadd.f32 %v7584, %v7776
    %v7778 = vpop.f32.mrb[0].mxu0
    %v7779 = vadd.f32 %v7586, %v7778
    %v7780 = vpop.f32.mrb[0].mxu0
    %v7781 = vadd.f32 %v7588, %v7780
    %v7782 = vpop.f32.mrb[0].mxu0
    %v7783 = vadd.f32 %v7590, %v7782
    %7784 = vdwg.mxu0
    %7785 = vmatprep.subr.bf16.mxu0 %v5862
    %7786 = vmatpush1.bf16.msra.mxu0 %v5861
    %7787 = vmatprep.subr.bf16.mxu0 %v5870
    %7788 = vmatpush1.bf16.msra.mxu0 %v5869
    %7789 = vmatprep.subr.bf16.mxu0 %v5878
    %7790 = vmatpush1.bf16.msra.mxu0 %v5877
    %7791 = vmatprep.subr.bf16.mxu0 %v5886
    %7792 = vmatpush1.bf16.msra.mxu0 %v5885
    %7793 = vmatprep.subr.bf16.mxu0 %v5894
    %7794 = vmatpush1.bf16.msra.mxu0 %v5893
    %7795 = vmatprep.subr.bf16.mxu0 %v5902
    %7796 = vmatpush1.bf16.msra.mxu0 %v5901
    %7797 = vmatprep.subr.bf16.mxu0 %v5910
    %7798 = vmatpush1.bf16.msra.mxu0 %v5909
    %7799 = vmatprep.subr.bf16.mxu0 %v5918
    %7800 = vmatpush1.bf16.msra.mxu0 %v5917
    %7801 = vmatprep.subr.bf16.mxu0 %v5926
    %7802 = vmatpush1.bf16.msra.mxu0 %v5925
    %7803 = vmatprep.subr.bf16.mxu0 %v5934
    %7804 = vmatpush1.bf16.msra.mxu0 %v5933
    %7805 = vmatprep.subr.bf16.mxu0 %v5942
    %7806 = vmatpush1.bf16.msra.mxu0 %v5941
    %7807 = vmatprep.subr.bf16.mxu0 %v5950
    %7808 = vmatpush1.bf16.msra.mxu0 %v5949
    %7809 = vmatprep.subr.bf16.mxu0 %v5958
    %7810 = vmatpush1.bf16.msra.mxu0 %v5957
    %7811 = vmatprep.subr.bf16.mxu0 %v5966
    %7812 = vmatpush1.bf16.msra.mxu0 %v5965
    %7813 = vmatprep.subr.bf16.mxu0 %v5974
    %7814 = vmatpush1.bf16.msra.mxu0 %v5973
    %7815 = vmatprep.subr.bf16.mxu0 %v5982
    %7816 = vmatpush1.bf16.msra.mxu0 %v5981
    %7817 = vmatprep.mubr.bf16.mxu0 %v3390
    %7818 = vmatmul.mubr.bf16.gmra.mrb[0].mxu0 %v3389
    %v7819 = vpop.f32.mrb[0].mxu0
    %v7820 = vadd.f32 %v7627, %v7819
    %v7821 = vpop.f32.mrb[0].mxu0
    %v7822 = vadd.f32 %v7629, %v7821
    %v7823 = vpop.f32.mrb[0].mxu0
    %v7824 = vadd.f32 %v7631, %v7823
    %v7825 = vpop.f32.mrb[0].mxu0
    %v7826 = vadd.f32 %v7633, %v7825
    %7827 = vmatprep.mubr.bf16.mxu0 %v3398
    %7828 = vmatmul.mubr.bf16.gmra.mrb[0].mxu0 %v3397
    %v7829 = vpop.f32.mrb[0].mxu0
    %v7830 = vadd.f32 %v7637, %v7829
    %v7831 = vpop.f32.mrb[0].mxu0
    %v7832 = vadd.f32 %v7639, %v7831
    %v7833 = vpop.f32.mrb[0].mxu0
    %v7834 = vadd.f32 %v7641, %v7833
    %v7835 = vpop.f32.mrb[0].mxu0
    %v7836 = vadd.f32 %v7643, %v7835
    %7837 = vmatprep.mubr.bf16.mxu0 %v3406
    %7838 = vmatmul.mubr.bf16.gmra.mrb[0].mxu0 %v3405
    %v7839 = vpop.f32.mrb[0].mxu0
    %v7840 = vadd.f32 %v7647, %v7839
    %v7841 = vpop.f32.mrb[0].mxu0
    %v7842 = vadd.f32 %v7649, %v7841
    %v7843 = vpop.f32.mrb[0].mxu0
    %v7844 = vadd.f32 %v7651, %v7843
    %v7845 = vpop.f32.mrb[0].mxu0
    %v7846 = vadd.f32 %v7653, %v7845
    %7847 = vmatprep.mubr.bf16.mxu0 %v3414
    %7848 = vmatmul.mubr.bf16.gmra.mrb[0].mxu0 %v3413
    %v7849 = vpop.f32.mrb[0].mxu0
    %v7850 = vadd.f32 %v7657, %v7849
    %v7851 = vpop.f32.mrb[0].mxu0
    %v7852 = vadd.f32 %v7659, %v7851
    %v7853 = vpop.f32.mrb[0].mxu0
    %v7854 = vadd.f32 %v7661, %v7853
    %v7855 = vpop.f32.mrb[0].mxu0
    %v7856 = vadd.f32 %v7663, %v7855
    %7857 = vmatprep.mubr.bf16.mxu0 %v3422
    %7858 = vmatmul.mubr.bf16.gmra.mrb[0].mxu0 %v3421
    %v7859 = vpop.f32.mrb[0].mxu0
    %v7860 = vadd.f32 %v7667, %v7859
    %v7861 = vpop.f32.mrb[0].mxu0
    %v7862 = vadd.f32 %v7669, %v7861
    %v7863 = vpop.f32.mrb[0].mxu0
    %v7864 = vadd.f32 %v7671, %v7863
    %v7865 = vpop.f32.mrb[0].mxu0
    %v7866 = vadd.f32 %v7673, %v7865
    %7867 = vmatprep.mubr.bf16.mxu0 %v3430
    %7868 = vmatmul.mubr.bf16.gmra.mrb[0].mxu0 %v3429
    %v7869 = vpop.f32.mrb[0].mxu0
    %v7870 = vadd.f32 %v7677, %v7869
    %v7871 = vpop.f32.mrb[0].mxu0
    %v7872 = vadd.f32 %v7679, %v7871
    %v7873 = vpop.f32.mrb[0].mxu0
    %v7874 = vadd.f32 %v7681, %v7873
    %v7875 = vpop.f32.mrb[0].mxu0
    %v7876 = vadd.f32 %v7683, %v7875
    %7877 = vmatprep.mubr.bf16.mxu0 %v3438
    %7878 = vmatmul.mubr.bf16.gmra.mrb[0].mxu0 %v3437
    %v7879 = vpop.f32.mrb[0].mxu0
    %v7880 = vadd.f32 %v7687, %v7879
    %v7881 = vpop.f32.mrb[0].mxu0
    %v7882 = vadd.f32 %v7689, %v7881
    %v7883 = vpop.f32.mrb[0].mxu0
    %v7884 = vadd.f32 %v7691, %v7883
    %v7885 = vpop.f32.mrb[0].mxu0
    %v7886 = vadd.f32 %v7693, %v7885
    %7887 = vmatprep.mubr.bf16.mxu0 %v3446
    %7888 = vmatmul.mubr.bf16.gmra.mrb[0].mxu0 %v3445
    %v7889 = vpop.f32.mrb[0].mxu0
    %v7890 = vadd.f32 %v7697, %v7889
    %v7891 = vpop.f32.mrb[0].mxu0
    %v7892 = vadd.f32 %v7699, %v7891
    %v7893 = vpop.f32.mrb[0].mxu0
    %v7894 = vadd.f32 %v7701, %v7893
    %v7895 = vpop.f32.mrb[0].mxu0
    %v7896 = vadd.f32 %v7703, %v7895
    %7897 = vmatprep.mubr.bf16.mxu0 %v3454
    %7898 = vmatmul.mubr.bf16.gmra.mrb[0].mxu0 %v3453
    %v7899 = vpop.f32.mrb[0].mxu0
    %v7900 = vadd.f32 %v7707, %v7899
    %v7901 = vpop.f32.mrb[0].mxu0
    %v7902 = vadd.f32 %v7709, %v7901
    %v7903 = vpop.f32.mrb[0].mxu0
    %v7904 = vadd.f32 %v7711, %v7903
    %v7905 = vpop.f32.mrb[0].mxu0
    %v7906 = vadd.f32 %v7713, %v7905
    %7907 = vmatprep.mubr.bf16.mxu0 %v3462
    %7908 = vmatmul.mubr.bf16.gmra.mrb[0].mxu0 %v3461
    %v7909 = vpop.f32.mrb[0].mxu0
    %v7910 = vadd.f32 %v7717, %v7909
    %v7911 = vpop.f32.mrb[0].mxu0
    %v7912 = vadd.f32 %v7719, %v7911
    %v7913 = vpop.f32.mrb[0].mxu0
    %v7914 = vadd.f32 %v7721, %v7913
    %v7915 = vpop.f32.mrb[0].mxu0
    %v7916 = vadd.f32 %v7723, %v7915
    %7917 = vmatprep.mubr.bf16.mxu0 %v3470
    %7918 = vmatmul.mubr.bf16.gmra.mrb[0].mxu0 %v3469
    %v7919 = vpop.f32.mrb[0].mxu0
    %v7920 = vadd.f32 %v7727, %v7919
    %v7921 = vpop.f32.mrb[0].mxu0
    %v7922 = vadd.f32 %v7729, %v7921
    %v7923 = vpop.f32.mrb[0].mxu0
    %v7924 = vadd.f32 %v7731, %v7923
    %v7925 = vpop.f32.mrb[0].mxu0
    %v7926 = vadd.f32 %v7733, %v7925
    %7927 = vmatprep.mubr.bf16.mxu0 %v3478
    %7928 = vmatmul.mubr.bf16.gmra.mrb[0].mxu0 %v3477
    %v7929 = vpop.f32.mrb[0].mxu0
    %v7930 = vadd.f32 %v7737, %v7929
    %v7931 = vpop.f32.mrb[0].mxu0
    %v7932 = vadd.f32 %v7739, %v7931
    %v7933 = vpop.f32.mrb[0].mxu0
    %v7934 = vadd.f32 %v7741, %v7933
    %v7935 = vpop.f32.mrb[0].mxu0
    %v7936 = vadd.f32 %v7743, %v7935
    %7937 = vmatprep.mubr.bf16.mxu0 %v3486
    %7938 = vmatmul.mubr.bf16.gmra.mrb[0].mxu0 %v3485
    %v7939 = vpop.f32.mrb[0].mxu0
    %v7940 = vadd.f32 %v7747, %v7939
    %v7941 = vpop.f32.mrb[0].mxu0
    %v7942 = vadd.f32 %v7749, %v7941
    %v7943 = vpop.f32.mrb[0].mxu0
    %v7944 = vadd.f32 %v7751, %v7943
    %v7945 = vpop.f32.mrb[0].mxu0
    %v7946 = vadd.f32 %v7753, %v7945
    %7947 = vmatprep.mubr.bf16.mxu0 %v3494
    %7948 = vmatmul.mubr.bf16.gmra.mrb[0].mxu0 %v3493
    %v7949 = vpop.f32.mrb[0].mxu0
    %v7950 = vadd.f32 %v7757, %v7949
    %v7951 = vpop.f32.mrb[0].mxu0
    %v7952 = vadd.f32 %v7759, %v7951
    %v7953 = vpop.f32.mrb[0].mxu0
    %v7954 = vadd.f32 %v7761, %v7953
    %v7955 = vpop.f32.mrb[0].mxu0
    %v7956 = vadd.f32 %v7763, %v7955
    %7957 = vmatprep.mubr.bf16.mxu0 %v3502
    %7958 = vmatmul.mubr.bf16.gmra.mrb[0].mxu0 %v3501
    %v7959 = vpop.f32.mrb[0].mxu0
    %v7960 = vadd.f32 %v7767, %v7959
    %v7961 = vpop.f32.mrb[0].mxu0
    %v7962 = vadd.f32 %v7769, %v7961
    %v7963 = vpop.f32.mrb[0].mxu0
    %v7964 = vadd.f32 %v7771, %v7963
    %v7965 = vpop.f32.mrb[0].mxu0
    %v7966 = vadd.f32 %v7773, %v7965
    %7967 = vmatprep.mubr.bf16.mxu0 %v3510
    %7968 = vmatmul.mubr.bf16.gmra.mrb[0].mxu0 %v3509
    %v7969 = vpop.f32.mrb[0].mxu0
    %v7970 = vadd.f32 %v7777, %v7969
    %v7971 = vpop.f32.mrb[0].mxu0
    %v7972 = vadd.f32 %v7779, %v7971
    %v7973 = vpop.f32.mrb[0].mxu0
    %v7974 = vadd.f32 %v7781, %v7973
    %v7975 = vpop.f32.mrb[0].mxu0
    %v7976 = vadd.f32 %v7783, %v7975
    %7977 = vdwg.mxu0
    %7978 = vmatprep.subr.bf16.mxu0 %v5990
    %7979 = vmatpush1.bf16.msra.mxu0 %v5989
    %7980 = vmatprep.subr.bf16.mxu0 %v5998
    %7981 = vmatpush1.bf16.msra.mxu0 %v5997
    %7982 = vmatprep.subr.bf16.mxu0 %v6006
    %7983 = vmatpush1.bf16.msra.mxu0 %v6005
    %7984 = vmatprep.subr.bf16.mxu0 %v6014
    %7985 = vmatpush1.bf16.msra.mxu0 %v6013
    %7986 = vmatprep.subr.bf16.mxu0 %v6022
    %7987 = vmatpush1.bf16.msra.mxu0 %v6021
    %7988 = vmatprep.subr.bf16.mxu0 %v6030
    %7989 = vmatpush1.bf16.msra.mxu0 %v6029
    %7990 = vmatprep.subr.bf16.mxu0 %v6038
    %7991 = vmatpush1.bf16.msra.mxu0 %v6037
    %7992 = vmatprep.subr.bf16.mxu0 %v6046
    %7993 = vmatpush1.bf16.msra.mxu0 %v6045
    %7994 = vmatprep.subr.bf16.mxu0 %v6054
    %7995 = vmatpush1.bf16.msra.mxu0 %v6053
    %7996 = vmatprep.subr.bf16.mxu0 %v6062
    %7997 = vmatpush1.bf16.msra.mxu0 %v6061
    %7998 = vmatprep.subr.bf16.mxu0 %v6070
    %7999 = vmatpush1.bf16.msra.mxu0 %v6069
    %8000 = vmatprep.subr.bf16.mxu0 %v6078
    %8001 = vmatpush1.bf16.msra.mxu0 %v6077
    %8002 = vmatprep.subr.bf16.mxu0 %v6086
    %8003 = vmatpush1.bf16.msra.mxu0 %v6085
    %8004 = vmatprep.subr.bf16.mxu0 %v6094
    %8005 = vmatpush1.bf16.msra.mxu0 %v6093
    %8006 = vmatprep.subr.bf16.mxu0 %v6102
    %8007 = vmatpush1.bf16.msra.mxu0 %v6101
    %8008 = vmatprep.subr.bf16.mxu0 %v6110
    %8009 = vmatpush1.bf16.msra.mxu0 %v6109
    %8010 = vmatprep.mubr.bf16.mxu0 %v3392
    %8011 = vmatmul.mubr.bf16.gmra.mrb[0].mxu0 %v3391
    %v8012 = vpop.f32.mrb[0].mxu0
    %v8013 = vadd.f32 %v7820, %v8012
    %v8014 = vpop.f32.mrb[0].mxu0
    %v8015 = vadd.f32 %v7822, %v8014
    %v8016 = vpop.f32.mrb[0].mxu0
    %v8017 = vadd.f32 %v7824, %v8016
    %v8018 = vpop.f32.mrb[0].mxu0
    %v8019 = vadd.f32 %v7826, %v8018
    %8020 = vmatprep.mubr.bf16.mxu0 %v3400
    %8021 = vmatmul.mubr.bf16.gmra.mrb[0].mxu0 %v3399
    %v8022 = vpop.f32.mrb[0].mxu0
    %v8023 = vadd.f32 %v7830, %v8022
    %v8024 = vpop.f32.mrb[0].mxu0
    %v8025 = vadd.f32 %v7832, %v8024
    %v8026 = vpop.f32.mrb[0].mxu0
    %v8027 = vadd.f32 %v7834, %v8026
    %v8028 = vpop.f32.mrb[0].mxu0
    %v8029 = vadd.f32 %v7836, %v8028
    %8030 = vmatprep.mubr.bf16.mxu0 %v3408
    %8031 = vmatmul.mubr.bf16.gmra.mrb[0].mxu0 %v3407
    %v8032 = vpop.f32.mrb[0].mxu0
    %v8033 = vadd.f32 %v7840, %v8032
    %v8034 = vpop.f32.mrb[0].mxu0
    %v8035 = vadd.f32 %v7842, %v8034
    %v8036 = vpop.f32.mrb[0].mxu0
    %v8037 = vadd.f32 %v7844, %v8036
    %v8038 = vpop.f32.mrb[0].mxu0
    %v8039 = vadd.f32 %v7846, %v8038
    %8040 = vmatprep.mubr.bf16.mxu0 %v3416
    %8041 = vmatmul.mubr.bf16.gmra.mrb[0].mxu0 %v3415
    %v8042 = vpop.f32.mrb[0].mxu0
    %v8043 = vadd.f32 %v7850, %v8042
    %v8044 = vpop.f32.mrb[0].mxu0
    %v8045 = vadd.f32 %v7852, %v8044
    %v8046 = vpop.f32.mrb[0].mxu0
    %v8047 = vadd.f32 %v7854, %v8046
    %v8048 = vpop.f32.mrb[0].mxu0
    %v8049 = vadd.f32 %v7856, %v8048
    %8050 = vmatprep.mubr.bf16.mxu0 %v3424
    %8051 = vmatmul.mubr.bf16.gmra.mrb[0].mxu0 %v3423
    %v8052 = vpop.f32.mrb[0].mxu0
    %v8053 = vadd.f32 %v7860, %v8052
    %v8054 = vpop.f32.mrb[0].mxu0
    %v8055 = vadd.f32 %v7862, %v8054
    %v8056 = vpop.f32.mrb[0].mxu0
    %v8057 = vadd.f32 %v7864, %v8056
    %v8058 = vpop.f32.mrb[0].mxu0
    %v8059 = vadd.f32 %v7866, %v8058
    %8060 = vmatprep.mubr.bf16.mxu0 %v3432
    %8061 = vmatmul.mubr.bf16.gmra.mrb[0].mxu0 %v3431
    %v8062 = vpop.f32.mrb[0].mxu0
    %v8063 = vadd.f32 %v7870, %v8062
    %v8064 = vpop.f32.mrb[0].mxu0
    %v8065 = vadd.f32 %v7872, %v8064
    %v8066 = vpop.f32.mrb[0].mxu0
    %v8067 = vadd.f32 %v7874, %v8066
    %v8068 = vpop.f32.mrb[0].mxu0
    %v8069 = vadd.f32 %v7876, %v8068
    %8070 = vmatprep.mubr.bf16.mxu0 %v3440
    %8071 = vmatmul.mubr.bf16.gmra.mrb[0].mxu0 %v3439
    %v8072 = vpop.f32.mrb[0].mxu0
    %v8073 = vadd.f32 %v7880, %v8072
    %v8074 = vpop.f32.mrb[0].mxu0
    %v8075 = vadd.f32 %v7882, %v8074
    %v8076 = vpop.f32.mrb[0].mxu0
    %v8077 = vadd.f32 %v7884, %v8076
    %v8078 = vpop.f32.mrb[0].mxu0
    %v8079 = vadd.f32 %v7886, %v8078
    %8080 = vmatprep.mubr.bf16.mxu0 %v3448
    %8081 = vmatmul.mubr.bf16.gmra.mrb[0].mxu0 %v3447
    %v8082 = vpop.f32.mrb[0].mxu0
    %v8083 = vadd.f32 %v7890, %v8082
    %v8084 = vpop.f32.mrb[0].mxu0
    %v8085 = vadd.f32 %v7892, %v8084
    %v8086 = vpop.f32.mrb[0].mxu0
    %v8087 = vadd.f32 %v7894, %v8086
    %v8088 = vpop.f32.mrb[0].mxu0
    %v8089 = vadd.f32 %v7896, %v8088
    %8090 = vmatprep.mubr.bf16.mxu0 %v3456
    %8091 = vmatmul.mubr.bf16.gmra.mrb[0].mxu0 %v3455
    %v8092 = vpop.f32.mrb[0].mxu0
    %v8093 = vadd.f32 %v7900, %v8092
    %v8094 = vpop.f32.mrb[0].mxu0
    %v8095 = vadd.f32 %v7902, %v8094
    %v8096 = vpop.f32.mrb[0].mxu0
    %v8097 = vadd.f32 %v7904, %v8096
    %v8098 = vpop.f32.mrb[0].mxu0
    %v8099 = vadd.f32 %v7906, %v8098
    %8100 = vmatprep.mubr.bf16.mxu0 %v3464
    %8101 = vmatmul.mubr.bf16.gmra.mrb[0].mxu0 %v3463
    %v8102 = vpop.f32.mrb[0].mxu0
    %v8103 = vadd.f32 %v7910, %v8102
    %v8104 = vpop.f32.mrb[0].mxu0
    %v8105 = vadd.f32 %v7912, %v8104
    %v8106 = vpop.f32.mrb[0].mxu0
    %v8107 = vadd.f32 %v7914, %v8106
    %v8108 = vpop.f32.mrb[0].mxu0
    %v8109 = vadd.f32 %v7916, %v8108
    %8110 = vmatprep.mubr.bf16.mxu0 %v3472
    %8111 = vmatmul.mubr.bf16.gmra.mrb[0].mxu0 %v3471
    %v8112 = vpop.f32.mrb[0].mxu0
    %v8113 = vadd.f32 %v7920, %v8112
    %v8114 = vpop.f32.mrb[0].mxu0
    %v8115 = vadd.f32 %v7922, %v8114
    %v8116 = vpop.f32.mrb[0].mxu0
    %v8117 = vadd.f32 %v7924, %v8116
    %v8118 = vpop.f32.mrb[0].mxu0
    %v8119 = vadd.f32 %v7926, %v8118
    %8120 = vmatprep.mubr.bf16.mxu0 %v3480
    %8121 = vmatmul.mubr.bf16.gmra.mrb[0].mxu0 %v3479
    %v8122 = vpop.f32.mrb[0].mxu0
    %v8123 = vadd.f32 %v7930, %v8122
    %v8124 = vpop.f32.mrb[0].mxu0
    %v8125 = vadd.f32 %v7932, %v8124
    %v8126 = vpop.f32.mrb[0].mxu0
    %v8127 = vadd.f32 %v7934, %v8126
    %v8128 = vpop.f32.mrb[0].mxu0
    %v8129 = vadd.f32 %v7936, %v8128
    %8130 = vmatprep.mubr.bf16.mxu0 %v3488
    %8131 = vmatmul.mubr.bf16.gmra.mrb[0].mxu0 %v3487
    %v8132 = vpop.f32.mrb[0].mxu0
    %v8133 = vadd.f32 %v7940, %v8132
    %v8134 = vpop.f32.mrb[0].mxu0
    %v8135 = vadd.f32 %v7942, %v8134
    %v8136 = vpop.f32.mrb[0].mxu0
    %v8137 = vadd.f32 %v7944, %v8136
    %v8138 = vpop.f32.mrb[0].mxu0
    %v8139 = vadd.f32 %v7946, %v8138
    %8140 = vmatprep.mubr.bf16.mxu0 %v3496
    %8141 = vmatmul.mubr.bf16.gmra.mrb[0].mxu0 %v3495
    %v8142 = vpop.f32.mrb[0].mxu0
    %v8143 = vadd.f32 %v7950, %v8142
    %v8144 = vpop.f32.mrb[0].mxu0
    %v8145 = vadd.f32 %v7952, %v8144
    %v8146 = vpop.f32.mrb[0].mxu0
    %v8147 = vadd.f32 %v7954, %v8146
    %v8148 = vpop.f32.mrb[0].mxu0
    %v8149 = vadd.f32 %v7956, %v8148
    %8150 = vmatprep.mubr.bf16.mxu0 %v3504
    %8151 = vmatmul.mubr.bf16.gmra.mrb[0].mxu0 %v3503
    %v8152 = vpop.f32.mrb[0].mxu0
    %v8153 = vadd.f32 %v7960, %v8152
    %v8154 = vpop.f32.mrb[0].mxu0
    %v8155 = vadd.f32 %v7962, %v8154
    %v8156 = vpop.f32.mrb[0].mxu0
    %v8157 = vadd.f32 %v7964, %v8156
    %v8158 = vpop.f32.mrb[0].mxu0
    %v8159 = vadd.f32 %v7966, %v8158
    %8160 = vmatprep.mubr.bf16.mxu0 %v3512
    %8161 = vmatmul.mubr.bf16.gmra.mrb[0].mxu0 %v3511
    %v8162 = vpop.f32.mrb[0].mxu0
    %v8163 = vadd.f32 %v7970, %v8162
    %v8164 = vpop.f32.mrb[0].mxu0
    %v8165 = vadd.f32 %v7972, %v8164
    %v8166 = vpop.f32.mrb[0].mxu0
    %v8167 = vadd.f32 %v7974, %v8166
    %v8168 = vpop.f32.mrb[0].mxu0
    %v8169 = vadd.f32 %v7976, %v8168
    %8170 = vdwg.mxu0
    %8171 = vmatprep.subr.bf16.mxu0 %v5608
    %8172 = vmatpush1.bf16.msra.mxu0 %v5607
    %8173 = vmatprep.subr.bf16.mxu0 %v5616
    %8174 = vmatpush1.bf16.msra.mxu0 %v5615
    %8175 = vmatprep.subr.bf16.mxu0 %v5624
    %8176 = vmatpush1.bf16.msra.mxu0 %v5623
    %8177 = vmatprep.subr.bf16.mxu0 %v5632
    %8178 = vmatpush1.bf16.msra.mxu0 %v5631
    %8179 = vmatprep.subr.bf16.mxu0 %v5640
    %8180 = vmatpush1.bf16.msra.mxu0 %v5639
    %8181 = vmatprep.subr.bf16.mxu0 %v5648
    %8182 = vmatpush1.bf16.msra.mxu0 %v5647
    %8183 = vmatprep.subr.bf16.mxu0 %v5656
    %8184 = vmatpush1.bf16.msra.mxu0 %v5655
    %8185 = vmatprep.subr.bf16.mxu0 %v5664
    %8186 = vmatpush1.bf16.msra.mxu0 %v5663
    %8187 = vmatprep.subr.bf16.mxu0 %v5672
    %8188 = vmatpush1.bf16.msra.mxu0 %v5671
    %8189 = vmatprep.subr.bf16.mxu0 %v5680
    %8190 = vmatpush1.bf16.msra.mxu0 %v5679
    %8191 = vmatprep.subr.bf16.mxu0 %v5688
    %8192 = vmatpush1.bf16.msra.mxu0 %v5687
    %8193 = vmatprep.subr.bf16.mxu0 %v5696
    %8194 = vmatpush1.bf16.msra.mxu0 %v5695
    %8195 = vmatprep.subr.bf16.mxu0 %v5704
    %8196 = vmatpush1.bf16.msra.mxu0 %v5703
    %8197 = vmatprep.subr.bf16.mxu0 %v5712
    %8198 = vmatpush1.bf16.msra.mxu0 %v5711
    %8199 = vmatprep.subr.bf16.mxu0 %v5720
    %8200 = vmatpush1.bf16.msra.mxu0 %v5719
    %8201 = vmatprep.subr.bf16.mxu0 %v5728
    %8202 = vmatpush1.bf16.msra.mxu0 %v5727
    %8203 = vmatprep.mubr.bf16.mxu0 %v3386
    %8204 = vmatmul.mubr.bf16.gmra.mrb[0].mxu0 %v3385
    %v8205 = vpop.f32.mrb[0].mxu0
    %v8206 = vadd.f32 %v4046, %v8205
    %v8207 = vpop.f32.mrb[0].mxu0
    %v8208 = vadd.f32 %v4050, %v8207
    %v8209 = vpop.f32.mrb[0].mxu0
    %v8210 = vadd.f32 %v4046, %v8209
    %v8211 = vpop.f32.mrb[0].mxu0
    %v8212 = vadd.f32 %v4050, %v8211
    %8213 = vmatprep.mubr.bf16.mxu0 %v3394
    %8214 = vmatmul.mubr.bf16.gmra.mrb[0].mxu0 %v3393
    %v8215 = vpop.f32.mrb[0].mxu0
    %v8216 = vadd.f32 %v4046, %v8215
    %v8217 = vpop.f32.mrb[0].mxu0
    %v8218 = vadd.f32 %v4050, %v8217
    %v8219 = vpop.f32.mrb[0].mxu0
    %v8220 = vadd.f32 %v4046, %v8219
    %v8221 = vpop.f32.mrb[0].mxu0
    %v8222 = vadd.f32 %v4050, %v8221
    %8223 = vmatprep.mubr.bf16.mxu0 %v3402
    %8224 = vmatmul.mubr.bf16.gmra.mrb[0].mxu0 %v3401
    %v8225 = vpop.f32.mrb[0].mxu0
    %v8226 = vadd.f32 %v4046, %v8225
    %v8227 = vpop.f32.mrb[0].mxu0
    %v8228 = vadd.f32 %v4050, %v8227
    %v8229 = vpop.f32.mrb[0].mxu0
    %v8230 = vadd.f32 %v4046, %v8229
    %v8231 = vpop.f32.mrb[0].mxu0
    %v8232 = vadd.f32 %v4050, %v8231
    %8233 = vmatprep.mubr.bf16.mxu0 %v3410
    %8234 = vmatmul.mubr.bf16.gmra.mrb[0].mxu0 %v3409
    %v8235 = vpop.f32.mrb[0].mxu0
    %v8236 = vadd.f32 %v4046, %v8235
    %v8237 = vpop.f32.mrb[0].mxu0
    %v8238 = vadd.f32 %v4050, %v8237
    %v8239 = vpop.f32.mrb[0].mxu0
    %v8240 = vadd.f32 %v4046, %v8239
    %v8241 = vpop.f32.mrb[0].mxu0
    %v8242 = vadd.f32 %v4050, %v8241
    %8243 = vmatprep.mubr.bf16.mxu0 %v3418
    %8244 = vmatmul.mubr.bf16.gmra.mrb[0].mxu0 %v3417
    %v8245 = vpop.f32.mrb[0].mxu0
    %v8246 = vadd.f32 %v4046, %v8245
    %v8247 = vpop.f32.mrb[0].mxu0
    %v8248 = vadd.f32 %v4050, %v8247
    %v8249 = vpop.f32.mrb[0].mxu0
    %v8250 = vadd.f32 %v4046, %v8249
    %v8251 = vpop.f32.mrb[0].mxu0
    %v8252 = vadd.f32 %v4050, %v8251
    %8253 = vmatprep.mubr.bf16.mxu0 %v3426
    %8254 = vmatmul.mubr.bf16.gmra.mrb[0].mxu0 %v3425
    %v8255 = vpop.f32.mrb[0].mxu0
    %v8256 = vadd.f32 %v4046, %v8255
    %v8257 = vpop.f32.mrb[0].mxu0
    %v8258 = vadd.f32 %v4050, %v8257
    %v8259 = vpop.f32.mrb[0].mxu0
    %v8260 = vadd.f32 %v4046, %v8259
    %v8261 = vpop.f32.mrb[0].mxu0
    %v8262 = vadd.f32 %v4050, %v8261
    %8263 = vmatprep.mubr.bf16.mxu0 %v3434
    %8264 = vmatmul.mubr.bf16.gmra.mrb[0].mxu0 %v3433
    %v8265 = vpop.f32.mrb[0].mxu0
    %v8266 = vadd.f32 %v4046, %v8265
    %v8267 = vpop.f32.mrb[0].mxu0
    %v8268 = vadd.f32 %v4050, %v8267
    %v8269 = vpop.f32.mrb[0].mxu0
    %v8270 = vadd.f32 %v4046, %v8269
    %v8271 = vpop.f32.mrb[0].mxu0
    %v8272 = vadd.f32 %v4050, %v8271
    %8273 = vmatprep.mubr.bf16.mxu0 %v3442
    %8274 = vmatmul.mubr.bf16.gmra.mrb[0].mxu0 %v3441
    %v8275 = vpop.f32.mrb[0].mxu0
    %v8276 = vadd.f32 %v4046, %v8275
    %v8277 = vpop.f32.mrb[0].mxu0
    %v8278 = vadd.f32 %v4050, %v8277
    %v8279 = vpop.f32.mrb[0].mxu0
    %v8280 = vadd.f32 %v4046, %v8279
    %v8281 = vpop.f32.mrb[0].mxu0
    %v8282 = vadd.f32 %v4050, %v8281
    %8283 = vmatprep.mubr.bf16.mxu0 %v3450
    %8284 = vmatmul.mubr.bf16.gmra.mrb[0].mxu0 %v3449
    %v8285 = vpop.f32.mrb[0].mxu0
    %v8286 = vadd.f32 %v4046, %v8285
    %v8287 = vpop.f32.mrb[0].mxu0
    %v8288 = vadd.f32 %v4050, %v8287
    %v8289 = vpop.f32.mrb[0].mxu0
    %v8290 = vadd.f32 %v4046, %v8289
    %v8291 = vpop.f32.mrb[0].mxu0
    %v8292 = vadd.f32 %v4050, %v8291
    %8293 = vmatprep.mubr.bf16.mxu0 %v3458
    %8294 = vmatmul.mubr.bf16.gmra.mrb[0].mxu0 %v3457
    %v8295 = vpop.f32.mrb[0].mxu0
    %v8296 = vadd.f32 %v4046, %v8295
    %v8297 = vpop.f32.mrb[0].mxu0
    %v8298 = vadd.f32 %v4050, %v8297
    %v8299 = vpop.f32.mrb[0].mxu0
    %v8300 = vadd.f32 %v4046, %v8299
    %v8301 = vpop.f32.mrb[0].mxu0
    %v8302 = vadd.f32 %v4050, %v8301
    %8303 = vmatprep.mubr.bf16.mxu0 %v3466
    %8304 = vmatmul.mubr.bf16.gmra.mrb[0].mxu0 %v3465
    %v8305 = vpop.f32.mrb[0].mxu0
    %v8306 = vadd.f32 %v4046, %v8305
    %v8307 = vpop.f32.mrb[0].mxu0
    %v8308 = vadd.f32 %v4050, %v8307
    %v8309 = vpop.f32.mrb[0].mxu0
    %v8310 = vadd.f32 %v4046, %v8309
    %v8311 = vpop.f32.mrb[0].mxu0
    %v8312 = vadd.f32 %v4050, %v8311
    %8313 = vmatprep.mubr.bf16.mxu0 %v3474
    %8314 = vmatmul.mubr.bf16.gmra.mrb[0].mxu0 %v3473
    %v8315 = vpop.f32.mrb[0].mxu0
    %v8316 = vadd.f32 %v4046, %v8315
    %v8317 = vpop.f32.mrb[0].mxu0
    %v8318 = vadd.f32 %v4050, %v8317
    %v8319 = vpop.f32.mrb[0].mxu0
    %v8320 = vadd.f32 %v4046, %v8319
    %v8321 = vpop.f32.mrb[0].mxu0
    %v8322 = vadd.f32 %v4050, %v8321
    %8323 = vmatprep.mubr.bf16.mxu0 %v3482
    %8324 = vmatmul.mubr.bf16.gmra.mrb[0].mxu0 %v3481
    %v8325 = vpop.f32.mrb[0].mxu0
    %v8326 = vadd.f32 %v4046, %v8325
    %v8327 = vpop.f32.mrb[0].mxu0
    %v8328 = vadd.f32 %v4050, %v8327
    %v8329 = vpop.f32.mrb[0].mxu0
    %v8330 = vadd.f32 %v4046, %v8329
    %v8331 = vpop.f32.mrb[0].mxu0
    %v8332 = vadd.f32 %v4050, %v8331
    %8333 = vmatprep.mubr.bf16.mxu0 %v3490
    %8334 = vmatmul.mubr.bf16.gmra.mrb[0].mxu0 %v3489
    %v8335 = vpop.f32.mrb[0].mxu0
    %v8336 = vadd.f32 %v4046, %v8335
    %v8337 = vpop.f32.mrb[0].mxu0
    %v8338 = vadd.f32 %v4050, %v8337
    %v8339 = vpop.f32.mrb[0].mxu0
    %v8340 = vadd.f32 %v4046, %v8339
    %v8341 = vpop.f32.mrb[0].mxu0
    %v8342 = vadd.f32 %v4050, %v8341
    %8343 = vmatprep.mubr.bf16.mxu0 %v3498
    %8344 = vmatmul.mubr.bf16.gmra.mrb[0].mxu0 %v3497
    %v8345 = vpop.f32.mrb[0].mxu0
    %v8346 = vadd.f32 %v4046, %v8345
    %v8347 = vpop.f32.mrb[0].mxu0
    %v8348 = vadd.f32 %v4050, %v8347
    %v8349 = vpop.f32.mrb[0].mxu0
    %v8350 = vadd.f32 %v4046, %v8349
    %v8351 = vpop.f32.mrb[0].mxu0
    %v8352 = vadd.f32 %v4050, %v8351
    %8353 = vmatprep.mubr.bf16.mxu0 %v3506
    %8354 = vmatmul.mubr.bf16.gmra.mrb[0].mxu0 %v3505
    %v8355 = vpop.f32.mrb[0].mxu0
    %v8356 = vadd.f32 %v4046, %v8355
    %v8357 = vpop.f32.mrb[0].mxu0
    %v8358 = vadd.f32 %v4050, %v8357
    %v8359 = vpop.f32.mrb[0].mxu0
    %v8360 = vadd.f32 %v4046, %v8359
    %v8361 = vpop.f32.mrb[0].mxu0
    %v8362 = vadd.f32 %v4050, %v8361
    %8363 = vdwg.mxu0
    %8364 = vmatprep.subr.bf16.mxu0 %v5736
    %8365 = vmatpush1.bf16.msra.mxu0 %v5735
    %8366 = vmatprep.subr.bf16.mxu0 %v5744
    %8367 = vmatpush1.bf16.msra.mxu0 %v5743
    %8368 = vmatprep.subr.bf16.mxu0 %v5752
    %8369 = vmatpush1.bf16.msra.mxu0 %v5751
    %8370 = vmatprep.subr.bf16.mxu0 %v5760
    %8371 = vmatpush1.bf16.msra.mxu0 %v5759
    %8372 = vmatprep.subr.bf16.mxu0 %v5768
    %8373 = vmatpush1.bf16.msra.mxu0 %v5767
    %8374 = vmatprep.subr.bf16.mxu0 %v5776
    %8375 = vmatpush1.bf16.msra.mxu0 %v5775
    %8376 = vmatprep.subr.bf16.mxu0 %v5784
    %8377 = vmatpush1.bf16.msra.mxu0 %v5783
    %8378 = vmatprep.subr.bf16.mxu0 %v5792
    %8379 = vmatpush1.bf16.msra.mxu0 %v5791
    %8380 = vmatprep.subr.bf16.mxu0 %v5800
    %8381 = vmatpush1.bf16.msra.mxu0 %v5799
    %8382 = vmatprep.subr.bf16.mxu0 %v5808
    %8383 = vmatpush1.bf16.msra.mxu0 %v5807
    %8384 = vmatprep.subr.bf16.mxu0 %v5816
    %8385 = vmatpush1.bf16.msra.mxu0 %v5815
    %8386 = vmatprep.subr.bf16.mxu0 %v5824
    %8387 = vmatpush1.bf16.msra.mxu0 %v5823
    %8388 = vmatprep.subr.bf16.mxu0 %v5832
    %8389 = vmatpush1.bf16.msra.mxu0 %v5831
    %8390 = vmatprep.subr.bf16.mxu0 %v5840
    %8391 = vmatpush1.bf16.msra.mxu0 %v5839
    %8392 = vmatprep.subr.bf16.mxu0 %v5848
    %8393 = vmatpush1.bf16.msra.mxu0 %v5847
    %8394 = vmatprep.subr.bf16.mxu0 %v5856
    %8395 = vmatpush1.bf16.msra.mxu0 %v5855
    %8396 = vmatprep.mubr.bf16.mxu0 %v3388
    %8397 = vmatmul.mubr.bf16.gmra.mrb[0].mxu0 %v3387
    %v8398 = vpop.f32.mrb[0].mxu0
    %v8399 = vadd.f32 %v8206, %v8398
    %v8400 = vpop.f32.mrb[0].mxu0
    %v8401 = vadd.f32 %v8208, %v8400
    %v8402 = vpop.f32.mrb[0].mxu0
    %v8403 = vadd.f32 %v8210, %v8402
    %v8404 = vpop.f32.mrb[0].mxu0
    %v8405 = vadd.f32 %v8212, %v8404
    %8406 = vmatprep.mubr.bf16.mxu0 %v3396
    %8407 = vmatmul.mubr.bf16.gmra.mrb[0].mxu0 %v3395
    %v8408 = vpop.f32.mrb[0].mxu0
    %v8409 = vadd.f32 %v8216, %v8408
    %v8410 = vpop.f32.mrb[0].mxu0
    %v8411 = vadd.f32 %v8218, %v8410
    %v8412 = vpop.f32.mrb[0].mxu0
    %v8413 = vadd.f32 %v8220, %v8412
    %v8414 = vpop.f32.mrb[0].mxu0
    %v8415 = vadd.f32 %v8222, %v8414
    %8416 = vmatprep.mubr.bf16.mxu0 %v3404
    %8417 = vmatmul.mubr.bf16.gmra.mrb[0].mxu0 %v3403
    %v8418 = vpop.f32.mrb[0].mxu0
    %v8419 = vadd.f32 %v8226, %v8418
    %v8420 = vpop.f32.mrb[0].mxu0
    %v8421 = vadd.f32 %v8228, %v8420
    %v8422 = vpop.f32.mrb[0].mxu0
    %v8423 = vadd.f32 %v8230, %v8422
    %v8424 = vpop.f32.mrb[0].mxu0
    %v8425 = vadd.f32 %v8232, %v8424
    %8426 = vmatprep.mubr.bf16.mxu0 %v3412
    %8427 = vmatmul.mubr.bf16.gmra.mrb[0].mxu0 %v3411
    %v8428 = vpop.f32.mrb[0].mxu0
    %v8429 = vadd.f32 %v8236, %v8428
    %v8430 = vpop.f32.mrb[0].mxu0
    %v8431 = vadd.f32 %v8238, %v8430
    %v8432 = vpop.f32.mrb[0].mxu0
    %v8433 = vadd.f32 %v8240, %v8432
    %v8434 = vpop.f32.mrb[0].mxu0
    %v8435 = vadd.f32 %v8242, %v8434
    %8436 = vmatprep.mubr.bf16.mxu0 %v3420
    %8437 = vmatmul.mubr.bf16.gmra.mrb[0].mxu0 %v3419
    %v8438 = vpop.f32.mrb[0].mxu0
    %v8439 = vadd.f32 %v8246, %v8438
    %v8440 = vpop.f32.mrb[0].mxu0
    %v8441 = vadd.f32 %v8248, %v8440
    %v8442 = vpop.f32.mrb[0].mxu0
    %v8443 = vadd.f32 %v8250, %v8442
    %v8444 = vpop.f32.mrb[0].mxu0
    %v8445 = vadd.f32 %v8252, %v8444
    %8446 = vmatprep.mubr.bf16.mxu0 %v3428
    %8447 = vmatmul.mubr.bf16.gmra.mrb[0].mxu0 %v3427
    %v8448 = vpop.f32.mrb[0].mxu0
    %v8449 = vadd.f32 %v8256, %v8448
    %v8450 = vpop.f32.mrb[0].mxu0
    %v8451 = vadd.f32 %v8258, %v8450
    %v8452 = vpop.f32.mrb[0].mxu0
    %v8453 = vadd.f32 %v8260, %v8452
    %v8454 = vpop.f32.mrb[0].mxu0
    %v8455 = vadd.f32 %v8262, %v8454
    %8456 = vmatprep.mubr.bf16.mxu0 %v3436
    %8457 = vmatmul.mubr.bf16.gmra.mrb[0].mxu0 %v3435
    %v8458 = vpop.f32.mrb[0].mxu0
    %v8459 = vadd.f32 %v8266, %v8458
    %v8460 = vpop.f32.mrb[0].mxu0
    %v8461 = vadd.f32 %v8268, %v8460
    %v8462 = vpop.f32.mrb[0].mxu0
    %v8463 = vadd.f32 %v8270, %v8462
    %v8464 = vpop.f32.mrb[0].mxu0
    %v8465 = vadd.f32 %v8272, %v8464
    %8466 = vmatprep.mubr.bf16.mxu0 %v3444
    %8467 = vmatmul.mubr.bf16.gmra.mrb[0].mxu0 %v3443
    %v8468 = vpop.f32.mrb[0].mxu0
    %v8469 = vadd.f32 %v8276, %v8468
    %v8470 = vpop.f32.mrb[0].mxu0
    %v8471 = vadd.f32 %v8278, %v8470
    %v8472 = vpop.f32.mrb[0].mxu0
    %v8473 = vadd.f32 %v8280, %v8472
    %v8474 = vpop.f32.mrb[0].mxu0
    %v8475 = vadd.f32 %v8282, %v8474
    %8476 = vmatprep.mubr.bf16.mxu0 %v3452
    %8477 = vmatmul.mubr.bf16.gmra.mrb[0].mxu0 %v3451
    %v8478 = vpop.f32.mrb[0].mxu0
    %v8479 = vadd.f32 %v8286, %v8478
    %v8480 = vpop.f32.mrb[0].mxu0
    %v8481 = vadd.f32 %v8288, %v8480
    %v8482 = vpop.f32.mrb[0].mxu0
    %v8483 = vadd.f32 %v8290, %v8482
    %v8484 = vpop.f32.mrb[0].mxu0
    %v8485 = vadd.f32 %v8292, %v8484
    %8486 = vmatprep.mubr.bf16.mxu0 %v3460
    %8487 = vmatmul.mubr.bf16.gmra.mrb[0].mxu0 %v3459
    %v8488 = vpop.f32.mrb[0].mxu0
    %v8489 = vadd.f32 %v8296, %v8488
    %v8490 = vpop.f32.mrb[0].mxu0
    %v8491 = vadd.f32 %v8298, %v8490
    %v8492 = vpop.f32.mrb[0].mxu0
    %v8493 = vadd.f32 %v8300, %v8492
    %v8494 = vpop.f32.mrb[0].mxu0
    %v8495 = vadd.f32 %v8302, %v8494
    %8496 = vmatprep.mubr.bf16.mxu0 %v3468
    %8497 = vmatmul.mubr.bf16.gmra.mrb[0].mxu0 %v3467
    %v8498 = vpop.f32.mrb[0].mxu0
    %v8499 = vadd.f32 %v8306, %v8498
    %v8500 = vpop.f32.mrb[0].mxu0
    %v8501 = vadd.f32 %v8308, %v8500
    %v8502 = vpop.f32.mrb[0].mxu0
    %v8503 = vadd.f32 %v8310, %v8502
    %v8504 = vpop.f32.mrb[0].mxu0
    %v8505 = vadd.f32 %v8312, %v8504
    %8506 = vmatprep.mubr.bf16.mxu0 %v3476
    %8507 = vmatmul.mubr.bf16.gmra.mrb[0].mxu0 %v3475
    %v8508 = vpop.f32.mrb[0].mxu0
    %v8509 = vadd.f32 %v8316, %v8508
    %v8510 = vpop.f32.mrb[0].mxu0
    %v8511 = vadd.f32 %v8318, %v8510
    %v8512 = vpop.f32.mrb[0].mxu0
    %v8513 = vadd.f32 %v8320, %v8512
    %v8514 = vpop.f32.mrb[0].mxu0
    %v8515 = vadd.f32 %v8322, %v8514
    %8516 = vmatprep.mubr.bf16.mxu0 %v3484
    %8517 = vmatmul.mubr.bf16.gmra.mrb[0].mxu0 %v3483
    %v8518 = vpop.f32.mrb[0].mxu0
    %v8519 = vadd.f32 %v8326, %v8518
    %v8520 = vpop.f32.mrb[0].mxu0
    %v8521 = vadd.f32 %v8328, %v8520
    %v8522 = vpop.f32.mrb[0].mxu0
    %v8523 = vadd.f32 %v8330, %v8522
    %v8524 = vpop.f32.mrb[0].mxu0
    %v8525 = vadd.f32 %v8332, %v8524
    %8526 = vmatprep.mubr.bf16.mxu0 %v3492
    %8527 = vmatmul.mubr.bf16.gmra.mrb[0].mxu0 %v3491
    %v8528 = vpop.f32.mrb[0].mxu0
    %v8529 = vadd.f32 %v8336, %v8528
    %v8530 = vpop.f32.mrb[0].mxu0
    %v8531 = vadd.f32 %v8338, %v8530
    %v8532 = vpop.f32.mrb[0].mxu0
    %v8533 = vadd.f32 %v8340, %v8532
    %v8534 = vpop.f32.mrb[0].mxu0
    %v8535 = vadd.f32 %v8342, %v8534
    %8536 = vmatprep.mubr.bf16.mxu0 %v3500
    %8537 = vmatmul.mubr.bf16.gmra.mrb[0].mxu0 %v3499
    %v8538 = vpop.f32.mrb[0].mxu0
    %v8539 = vadd.f32 %v8346, %v8538
    %v8540 = vpop.f32.mrb[0].mxu0
    %v8541 = vadd.f32 %v8348, %v8540
    %v8542 = vpop.f32.mrb[0].mxu0
    %v8543 = vadd.f32 %v8350, %v8542
    %v8544 = vpop.f32.mrb[0].mxu0
    %v8545 = vadd.f32 %v8352, %v8544
    %8546 = vmatprep.mubr.bf16.mxu0 %v3508
    %8547 = vmatmul.mubr.bf16.gmra.mrb[0].mxu0 %v3507
    %v8548 = vpop.f32.mrb[0].mxu0
    %v8549 = vadd.f32 %v8356, %v8548
    %v8550 = vpop.f32.mrb[0].mxu0
    %v8551 = vadd.f32 %v8358, %v8550
    %v8552 = vpop.f32.mrb[0].mxu0
    %v8553 = vadd.f32 %v8360, %v8552
    %v8554 = vpop.f32.mrb[0].mxu0
    %v8555 = vadd.f32 %v8362, %v8554
    %8556 = vdwg.mxu0
    %8557 = vmatprep.subr.bf16.mxu0 %v5864
    %8558 = vmatpush1.bf16.msra.mxu0 %v5863
    %8559 = vmatprep.subr.bf16.mxu0 %v5872
    %8560 = vmatpush1.bf16.msra.mxu0 %v5871
    %8561 = vmatprep.subr.bf16.mxu0 %v5880
    %8562 = vmatpush1.bf16.msra.mxu0 %v5879
    %8563 = vmatprep.subr.bf16.mxu0 %v5888
    %8564 = vmatpush1.bf16.msra.mxu0 %v5887
    %8565 = vmatprep.subr.bf16.mxu0 %v5896
    %8566 = vmatpush1.bf16.msra.mxu0 %v5895
    %8567 = vmatprep.subr.bf16.mxu0 %v5904
    %8568 = vmatpush1.bf16.msra.mxu0 %v5903
    %8569 = vmatprep.subr.bf16.mxu0 %v5912
    %8570 = vmatpush1.bf16.msra.mxu0 %v5911
    %8571 = vmatprep.subr.bf16.mxu0 %v5920
    %8572 = vmatpush1.bf16.msra.mxu0 %v5919
    %8573 = vmatprep.subr.bf16.mxu0 %v5928
    %8574 = vmatpush1.bf16.msra.mxu0 %v5927
    %8575 = vmatprep.subr.bf16.mxu0 %v5936
    %8576 = vmatpush1.bf16.msra.mxu0 %v5935
    %8577 = vmatprep.subr.bf16.mxu0 %v5944
    %8578 = vmatpush1.bf16.msra.mxu0 %v5943
    %8579 = vmatprep.subr.bf16.mxu0 %v5952
    %8580 = vmatpush1.bf16.msra.mxu0 %v5951
    %8581 = vmatprep.subr.bf16.mxu0 %v5960
    %8582 = vmatpush1.bf16.msra.mxu0 %v5959
    %8583 = vmatprep.subr.bf16.mxu0 %v5968
    %8584 = vmatpush1.bf16.msra.mxu0 %v5967
    %8585 = vmatprep.subr.bf16.mxu0 %v5976
    %8586 = vmatpush1.bf16.msra.mxu0 %v5975
    %8587 = vmatprep.subr.bf16.mxu0 %v5984
    %8588 = vmatpush1.bf16.msra.mxu0 %v5983
    %8589 = vmatprep.mubr.bf16.mxu0 %v3390
    %8590 = vmatmul.mubr.bf16.gmra.mrb[0].mxu0 %v3389
    %v8591 = vpop.f32.mrb[0].mxu0
    %v8592 = vadd.f32 %v8399, %v8591
    %v8593 = vpop.f32.mrb[0].mxu0
    %v8594 = vadd.f32 %v8401, %v8593
    %v8595 = vpop.f32.mrb[0].mxu0
    %v8596 = vadd.f32 %v8403, %v8595
    %v8597 = vpop.f32.mrb[0].mxu0
    %v8598 = vadd.f32 %v8405, %v8597
    %8599 = vmatprep.mubr.bf16.mxu0 %v3398
    %8600 = vmatmul.mubr.bf16.gmra.mrb[0].mxu0 %v3397
    %v8601 = vpop.f32.mrb[0].mxu0
    %v8602 = vadd.f32 %v8409, %v8601
    %v8603 = vpop.f32.mrb[0].mxu0
    %v8604 = vadd.f32 %v8411, %v8603
    %v8605 = vpop.f32.mrb[0].mxu0
    %v8606 = vadd.f32 %v8413, %v8605
    %v8607 = vpop.f32.mrb[0].mxu0
    %v8608 = vadd.f32 %v8415, %v8607
    %8609 = vmatprep.mubr.bf16.mxu0 %v3406
    %8610 = vmatmul.mubr.bf16.gmra.mrb[0].mxu0 %v3405
    %v8611 = vpop.f32.mrb[0].mxu0
    %v8612 = vadd.f32 %v8419, %v8611
    %v8613 = vpop.f32.mrb[0].mxu0
    %v8614 = vadd.f32 %v8421, %v8613
    %v8615 = vpop.f32.mrb[0].mxu0
    %v8616 = vadd.f32 %v8423, %v8615
    %v8617 = vpop.f32.mrb[0].mxu0
    %v8618 = vadd.f32 %v8425, %v8617
    %8619 = vmatprep.mubr.bf16.mxu0 %v3414
    %8620 = vmatmul.mubr.bf16.gmra.mrb[0].mxu0 %v3413
    %v8621 = vpop.f32.mrb[0].mxu0
    %v8622 = vadd.f32 %v8429, %v8621
    %v8623 = vpop.f32.mrb[0].mxu0
    %v8624 = vadd.f32 %v8431, %v8623
    %v8625 = vpop.f32.mrb[0].mxu0
    %v8626 = vadd.f32 %v8433, %v8625
    %v8627 = vpop.f32.mrb[0].mxu0
    %v8628 = vadd.f32 %v8435, %v8627
    %8629 = vmatprep.mubr.bf16.mxu0 %v3422
    %8630 = vmatmul.mubr.bf16.gmra.mrb[0].mxu0 %v3421
    %v8631 = vpop.f32.mrb[0].mxu0
    %v8632 = vadd.f32 %v8439, %v8631
    %v8633 = vpop.f32.mrb[0].mxu0
    %v8634 = vadd.f32 %v8441, %v8633
    %v8635 = vpop.f32.mrb[0].mxu0
    %v8636 = vadd.f32 %v8443, %v8635
    %v8637 = vpop.f32.mrb[0].mxu0
    %v8638 = vadd.f32 %v8445, %v8637
    %8639 = vmatprep.mubr.bf16.mxu0 %v3430
    %8640 = vmatmul.mubr.bf16.gmra.mrb[0].mxu0 %v3429
    %v8641 = vpop.f32.mrb[0].mxu0
    %v8642 = vadd.f32 %v8449, %v8641
    %v8643 = vpop.f32.mrb[0].mxu0
    %v8644 = vadd.f32 %v8451, %v8643
    %v8645 = vpop.f32.mrb[0].mxu0
    %v8646 = vadd.f32 %v8453, %v8645
    %v8647 = vpop.f32.mrb[0].mxu0
    %v8648 = vadd.f32 %v8455, %v8647
    %8649 = vmatprep.mubr.bf16.mxu0 %v3438
    %8650 = vmatmul.mubr.bf16.gmra.mrb[0].mxu0 %v3437
    %v8651 = vpop.f32.mrb[0].mxu0
    %v8652 = vadd.f32 %v8459, %v8651
    %v8653 = vpop.f32.mrb[0].mxu0
    %v8654 = vadd.f32 %v8461, %v8653
    %v8655 = vpop.f32.mrb[0].mxu0
    %v8656 = vadd.f32 %v8463, %v8655
    %v8657 = vpop.f32.mrb[0].mxu0
    %v8658 = vadd.f32 %v8465, %v8657
    %8659 = vmatprep.mubr.bf16.mxu0 %v3446
    %8660 = vmatmul.mubr.bf16.gmra.mrb[0].mxu0 %v3445
    %v8661 = vpop.f32.mrb[0].mxu0
    %v8662 = vadd.f32 %v8469, %v8661
    %v8663 = vpop.f32.mrb[0].mxu0
    %v8664 = vadd.f32 %v8471, %v8663
    %v8665 = vpop.f32.mrb[0].mxu0
    %v8666 = vadd.f32 %v8473, %v8665
    %v8667 = vpop.f32.mrb[0].mxu0
    %v8668 = vadd.f32 %v8475, %v8667
    %8669 = vmatprep.mubr.bf16.mxu0 %v3454
    %8670 = vmatmul.mubr.bf16.gmra.mrb[0].mxu0 %v3453
    %v8671 = vpop.f32.mrb[0].mxu0
    %v8672 = vadd.f32 %v8479, %v8671
    %v8673 = vpop.f32.mrb[0].mxu0
    %v8674 = vadd.f32 %v8481, %v8673
    %v8675 = vpop.f32.mrb[0].mxu0
    %v8676 = vadd.f32 %v8483, %v8675
    %v8677 = vpop.f32.mrb[0].mxu0
    %v8678 = vadd.f32 %v8485, %v8677
    %8679 = vmatprep.mubr.bf16.mxu0 %v3462
    %8680 = vmatmul.mubr.bf16.gmra.mrb[0].mxu0 %v3461
    %v8681 = vpop.f32.mrb[0].mxu0
    %v8682 = vadd.f32 %v8489, %v8681
    %v8683 = vpop.f32.mrb[0].mxu0
    %v8684 = vadd.f32 %v8491, %v8683
    %v8685 = vpop.f32.mrb[0].mxu0
    %v8686 = vadd.f32 %v8493, %v8685
    %v8687 = vpop.f32.mrb[0].mxu0
    %v8688 = vadd.f32 %v8495, %v8687
    %8689 = vmatprep.mubr.bf16.mxu0 %v3470
    %8690 = vmatmul.mubr.bf16.gmra.mrb[0].mxu0 %v3469
    %v8691 = vpop.f32.mrb[0].mxu0
    %v8692 = vadd.f32 %v8499, %v8691
    %v8693 = vpop.f32.mrb[0].mxu0
    %v8694 = vadd.f32 %v8501, %v8693
    %v8695 = vpop.f32.mrb[0].mxu0
    %v8696 = vadd.f32 %v8503, %v8695
    %v8697 = vpop.f32.mrb[0].mxu0
    %v8698 = vadd.f32 %v8505, %v8697
    %8699 = vmatprep.mubr.bf16.mxu0 %v3478
    %8700 = vmatmul.mubr.bf16.gmra.mrb[0].mxu0 %v3477
    %v8701 = vpop.f32.mrb[0].mxu0
    %v8702 = vadd.f32 %v8509, %v8701
    %v8703 = vpop.f32.mrb[0].mxu0
    %v8704 = vadd.f32 %v8511, %v8703
    %v8705 = vpop.f32.mrb[0].mxu0
    %v8706 = vadd.f32 %v8513, %v8705
    %v8707 = vpop.f32.mrb[0].mxu0
    %v8708 = vadd.f32 %v8515, %v8707
    %8709 = vmatprep.mubr.bf16.mxu0 %v3486
    %8710 = vmatmul.mubr.bf16.gmra.mrb[0].mxu0 %v3485
    %v8711 = vpop.f32.mrb[0].mxu0
    %v8712 = vadd.f32 %v8519, %v8711
    %v8713 = vpop.f32.mrb[0].mxu0
    %v8714 = vadd.f32 %v8521, %v8713
    %v8715 = vpop.f32.mrb[0].mxu0
    %v8716 = vadd.f32 %v8523, %v8715
    %v8717 = vpop.f32.mrb[0].mxu0
    %v8718 = vadd.f32 %v8525, %v8717
    %8719 = vmatprep.mubr.bf16.mxu0 %v3494
    %8720 = vmatmul.mubr.bf16.gmra.mrb[0].mxu0 %v3493
    %v8721 = vpop.f32.mrb[0].mxu0
    %v8722 = vadd.f32 %v8529, %v8721
    %v8723 = vpop.f32.mrb[0].mxu0
    %v8724 = vadd.f32 %v8531, %v8723
    %v8725 = vpop.f32.mrb[0].mxu0
    %v8726 = vadd.f32 %v8533, %v8725
    %v8727 = vpop.f32.mrb[0].mxu0
    %v8728 = vadd.f32 %v8535, %v8727
    %8729 = vmatprep.mubr.bf16.mxu0 %v3502
    %8730 = vmatmul.mubr.bf16.gmra.mrb[0].mxu0 %v3501
    %v8731 = vpop.f32.mrb[0].mxu0
    %v8732 = vadd.f32 %v8539, %v8731
    %v8733 = vpop.f32.mrb[0].mxu0
    %v8734 = vadd.f32 %v8541, %v8733
    %v8735 = vpop.f32.mrb[0].mxu0
    %v8736 = vadd.f32 %v8543, %v8735
    %v8737 = vpop.f32.mrb[0].mxu0
    %v8738 = vadd.f32 %v8545, %v8737
    %8739 = vmatprep.mubr.bf16.mxu0 %v3510
    %8740 = vmatmul.mubr.bf16.gmra.mrb[0].mxu0 %v3509
    %v8741 = vpop.f32.mrb[0].mxu0
    %v8742 = vadd.f32 %v8549, %v8741
    %v8743 = vpop.f32.mrb[0].mxu0
    %v8744 = vadd.f32 %v8551, %v8743
    %v8745 = vpop.f32.mrb[0].mxu0
    %v8746 = vadd.f32 %v8553, %v8745
    %v8747 = vpop.f32.mrb[0].mxu0
    %v8748 = vadd.f32 %v8555, %v8747
    %8749 = vdwg.mxu0
    %8750 = vmatprep.subr.bf16.mxu0 %v5992
    %8751 = vmatpush1.bf16.msra.mxu0 %v5991
    %8752 = vmatprep.subr.bf16.mxu0 %v6000
    %8753 = vmatpush1.bf16.msra.mxu0 %v5999
    %8754 = vmatprep.subr.bf16.mxu0 %v6008
    %8755 = vmatpush1.bf16.msra.mxu0 %v6007
    %8756 = vmatprep.subr.bf16.mxu0 %v6016
    %8757 = vmatpush1.bf16.msra.mxu0 %v6015
    %8758 = vmatprep.subr.bf16.mxu0 %v6024
    %8759 = vmatpush1.bf16.msra.mxu0 %v6023
    %8760 = vmatprep.subr.bf16.mxu0 %v6032
    %8761 = vmatpush1.bf16.msra.mxu0 %v6031
    %8762 = vmatprep.subr.bf16.mxu0 %v6040
    %8763 = vmatpush1.bf16.msra.mxu0 %v6039
    %8764 = vmatprep.subr.bf16.mxu0 %v6048
    %8765 = vmatpush1.bf16.msra.mxu0 %v6047
    %8766 = vmatprep.subr.bf16.mxu0 %v6056
    %8767 = vmatpush1.bf16.msra.mxu0 %v6055
    %8768 = vmatprep.subr.bf16.mxu0 %v6064
    %8769 = vmatpush1.bf16.msra.mxu0 %v6063
    %8770 = vmatprep.subr.bf16.mxu0 %v6072
    %8771 = vmatpush1.bf16.msra.mxu0 %v6071
    %8772 = vmatprep.subr.bf16.mxu0 %v6080
    %8773 = vmatpush1.bf16.msra.mxu0 %v6079
    %8774 = vmatprep.subr.bf16.mxu0 %v6088
    %8775 = vmatpush1.bf16.msra.mxu0 %v6087
    %8776 = vmatprep.subr.bf16.mxu0 %v6096
    %8777 = vmatpush1.bf16.msra.mxu0 %v6095
    %8778 = vmatprep.subr.bf16.mxu0 %v6104
    %8779 = vmatpush1.bf16.msra.mxu0 %v6103
    %8780 = vmatprep.subr.bf16.mxu0 %v6112
    %8781 = vmatpush1.bf16.msra.mxu0 %v6111
    %8782 = vmatprep.mubr.bf16.mxu0 %v3392
    %8783 = vmatmul.mubr.bf16.gmra.mrb[0].mxu0 %v3391
    %v8784 = vpop.f32.mrb[0].mxu0
    %v8785 = vadd.f32 %v8592, %v8784
    %v8786 = vpop.f32.mrb[0].mxu0
    %v8787 = vadd.f32 %v8594, %v8786
    %v8788 = vpop.f32.mrb[0].mxu0
    %v8789 = vadd.f32 %v8596, %v8788
    %v8790 = vpop.f32.mrb[0].mxu0
    %v8791 = vadd.f32 %v8598, %v8790
    %8792 = vmatprep.mubr.bf16.mxu0 %v3400
    %8793 = vmatmul.mubr.bf16.gmra.mrb[0].mxu0 %v3399
    %v8794 = vpop.f32.mrb[0].mxu0
    %v8795 = vadd.f32 %v8602, %v8794
    %v8796 = vpop.f32.mrb[0].mxu0
    %v8797 = vadd.f32 %v8604, %v8796
    %v8798 = vpop.f32.mrb[0].mxu0
    %v8799 = vadd.f32 %v8606, %v8798
    %v8800 = vpop.f32.mrb[0].mxu0
    %v8801 = vadd.f32 %v8608, %v8800
    %8802 = vmatprep.mubr.bf16.mxu0 %v3408
    %8803 = vmatmul.mubr.bf16.gmra.mrb[0].mxu0 %v3407
    %v8804 = vpop.f32.mrb[0].mxu0
    %v8805 = vadd.f32 %v8612, %v8804
    %v8806 = vpop.f32.mrb[0].mxu0
    %v8807 = vadd.f32 %v8614, %v8806
    %v8808 = vpop.f32.mrb[0].mxu0
    %v8809 = vadd.f32 %v8616, %v8808
    %v8810 = vpop.f32.mrb[0].mxu0
    %v8811 = vadd.f32 %v8618, %v8810
    %8812 = vmatprep.mubr.bf16.mxu0 %v3416
    %8813 = vmatmul.mubr.bf16.gmra.mrb[0].mxu0 %v3415
    %v8814 = vpop.f32.mrb[0].mxu0
    %v8815 = vadd.f32 %v8622, %v8814
    %v8816 = vpop.f32.mrb[0].mxu0
    %v8817 = vadd.f32 %v8624, %v8816
    %v8818 = vpop.f32.mrb[0].mxu0
    %v8819 = vadd.f32 %v8626, %v8818
    %v8820 = vpop.f32.mrb[0].mxu0
    %v8821 = vadd.f32 %v8628, %v8820
    %8822 = vmatprep.mubr.bf16.mxu0 %v3424
    %8823 = vmatmul.mubr.bf16.gmra.mrb[0].mxu0 %v3423
    %v8824 = vpop.f32.mrb[0].mxu0
    %v8825 = vadd.f32 %v8632, %v8824
    %v8826 = vpop.f32.mrb[0].mxu0
    %v8827 = vadd.f32 %v8634, %v8826
    %v8828 = vpop.f32.mrb[0].mxu0
    %v8829 = vadd.f32 %v8636, %v8828
    %v8830 = vpop.f32.mrb[0].mxu0
    %v8831 = vadd.f32 %v8638, %v8830
    %8832 = vmatprep.mubr.bf16.mxu0 %v3432
    %8833 = vmatmul.mubr.bf16.gmra.mrb[0].mxu0 %v3431
    %v8834 = vpop.f32.mrb[0].mxu0
    %v8835 = vadd.f32 %v8642, %v8834
    %v8836 = vpop.f32.mrb[0].mxu0
    %v8837 = vadd.f32 %v8644, %v8836
    %v8838 = vpop.f32.mrb[0].mxu0
    %v8839 = vadd.f32 %v8646, %v8838
    %v8840 = vpop.f32.mrb[0].mxu0
    %v8841 = vadd.f32 %v8648, %v8840
    %8842 = vmatprep.mubr.bf16.mxu0 %v3440
    %8843 = vmatmul.mubr.bf16.gmra.mrb[0].mxu0 %v3439
    %v8844 = vpop.f32.mrb[0].mxu0
    %v8845 = vadd.f32 %v8652, %v8844
    %v8846 = vpop.f32.mrb[0].mxu0
    %v8847 = vadd.f32 %v8654, %v8846
    %v8848 = vpop.f32.mrb[0].mxu0
    %v8849 = vadd.f32 %v8656, %v8848
    %v8850 = vpop.f32.mrb[0].mxu0
    %v8851 = vadd.f32 %v8658, %v8850
    %8852 = vmatprep.mubr.bf16.mxu0 %v3448
    %8853 = vmatmul.mubr.bf16.gmra.mrb[0].mxu0 %v3447
    %v8854 = vpop.f32.mrb[0].mxu0
    %v8855 = vadd.f32 %v8662, %v8854
    %v8856 = vpop.f32.mrb[0].mxu0
    %v8857 = vadd.f32 %v8664, %v8856
    %v8858 = vpop.f32.mrb[0].mxu0
    %v8859 = vadd.f32 %v8666, %v8858
    %v8860 = vpop.f32.mrb[0].mxu0
    %v8861 = vadd.f32 %v8668, %v8860
    %8862 = vmatprep.mubr.bf16.mxu0 %v3456
    %8863 = vmatmul.mubr.bf16.gmra.mrb[0].mxu0 %v3455
    %v8864 = vpop.f32.mrb[0].mxu0
    %v8865 = vadd.f32 %v8672, %v8864
    %v8866 = vpop.f32.mrb[0].mxu0
    %v8867 = vadd.f32 %v8674, %v8866
    %v8868 = vpop.f32.mrb[0].mxu0
    %v8869 = vadd.f32 %v8676, %v8868
    %v8870 = vpop.f32.mrb[0].mxu0
    %v8871 = vadd.f32 %v8678, %v8870
    %8872 = vmatprep.mubr.bf16.mxu0 %v3464
    %8873 = vmatmul.mubr.bf16.gmra.mrb[0].mxu0 %v3463
    %v8874 = vpop.f32.mrb[0].mxu0
    %v8875 = vadd.f32 %v8682, %v8874
    %v8876 = vpop.f32.mrb[0].mxu0
    %v8877 = vadd.f32 %v8684, %v8876
    %v8878 = vpop.f32.mrb[0].mxu0
    %v8879 = vadd.f32 %v8686, %v8878
    %v8880 = vpop.f32.mrb[0].mxu0
    %v8881 = vadd.f32 %v8688, %v8880
    %8882 = vmatprep.mubr.bf16.mxu0 %v3472
    %8883 = vmatmul.mubr.bf16.gmra.mrb[0].mxu0 %v3471
    %v8884 = vpop.f32.mrb[0].mxu0
    %v8885 = vadd.f32 %v8692, %v8884
    %v8886 = vpop.f32.mrb[0].mxu0
    %v8887 = vadd.f32 %v8694, %v8886
    %v8888 = vpop.f32.mrb[0].mxu0
    %v8889 = vadd.f32 %v8696, %v8888
    %v8890 = vpop.f32.mrb[0].mxu0
    %v8891 = vadd.f32 %v8698, %v8890
    %8892 = vmatprep.mubr.bf16.mxu0 %v3480
    %8893 = vmatmul.mubr.bf16.gmra.mrb[0].mxu0 %v3479
    %v8894 = vpop.f32.mrb[0].mxu0
    %v8895 = vadd.f32 %v8702, %v8894
    %v8896 = vpop.f32.mrb[0].mxu0
    %v8897 = vadd.f32 %v8704, %v8896
    %v8898 = vpop.f32.mrb[0].mxu0
    %v8899 = vadd.f32 %v8706, %v8898
    %v8900 = vpop.f32.mrb[0].mxu0
    %v8901 = vadd.f32 %v8708, %v8900
    %8902 = vmatprep.mubr.bf16.mxu0 %v3488
    %8903 = vmatmul.mubr.bf16.gmra.mrb[0].mxu0 %v3487
    %v8904 = vpop.f32.mrb[0].mxu0
    %v8905 = vadd.f32 %v8712, %v8904
    %v8906 = vpop.f32.mrb[0].mxu0
    %v8907 = vadd.f32 %v8714, %v8906
    %v8908 = vpop.f32.mrb[0].mxu0
    %v8909 = vadd.f32 %v8716, %v8908
    %v8910 = vpop.f32.mrb[0].mxu0
    %v8911 = vadd.f32 %v8718, %v8910
    %8912 = vmatprep.mubr.bf16.mxu0 %v3496
    %8913 = vmatmul.mubr.bf16.gmra.mrb[0].mxu0 %v3495
    %v8914 = vpop.f32.mrb[0].mxu0
    %v8915 = vadd.f32 %v8722, %v8914
    %v8916 = vpop.f32.mrb[0].mxu0
    %v8917 = vadd.f32 %v8724, %v8916
    %v8918 = vpop.f32.mrb[0].mxu0
    %v8919 = vadd.f32 %v8726, %v8918
    %v8920 = vpop.f32.mrb[0].mxu0
    %v8921 = vadd.f32 %v8728, %v8920
    %8922 = vmatprep.mubr.bf16.mxu0 %v3504
    %8923 = vmatmul.mubr.bf16.gmra.mrb[0].mxu0 %v3503
    %v8924 = vpop.f32.mrb[0].mxu0
    %v8925 = vadd.f32 %v8732, %v8924
    %v8926 = vpop.f32.mrb[0].mxu0
    %v8927 = vadd.f32 %v8734, %v8926
    %v8928 = vpop.f32.mrb[0].mxu0
    %v8929 = vadd.f32 %v8736, %v8928
    %v8930 = vpop.f32.mrb[0].mxu0
    %v8931 = vadd.f32 %v8738, %v8930
    %8932 = vmatprep.mubr.bf16.mxu0 %v3512
    %8933 = vmatmul.mubr.bf16.gmra.mrb[0].mxu0 %v3511
    %v8934 = vpop.f32.mrb[0].mxu0
    %v8935 = vadd.f32 %v8742, %v8934
    %v8936 = vpop.f32.mrb[0].mxu0
    %v8937 = vadd.f32 %v8744, %v8936
    %v8938 = vpop.f32.mrb[0].mxu0
    %v8939 = vadd.f32 %v8746, %v8938
    %v8940 = vpop.f32.mrb[0].mxu0
    %v8941 = vadd.f32 %v8748, %v8940
    %8942 = vdwg.mxu0
    %8943 = vmatprep.subr.bf16.mxu0 %v5610
    %8944 = vmatpush1.bf16.msra.mxu0 %v5609
    %8945 = vmatprep.subr.bf16.mxu0 %v5618
    %8946 = vmatpush1.bf16.msra.mxu0 %v5617
    %8947 = vmatprep.subr.bf16.mxu0 %v5626
    %8948 = vmatpush1.bf16.msra.mxu0 %v5625
    %8949 = vmatprep.subr.bf16.mxu0 %v5634
    %8950 = vmatpush1.bf16.msra.mxu0 %v5633
    %8951 = vmatprep.subr.bf16.mxu0 %v5642
    %8952 = vmatpush1.bf16.msra.mxu0 %v5641
    %8953 = vmatprep.subr.bf16.mxu0 %v5650
    %8954 = vmatpush1.bf16.msra.mxu0 %v5649
    %8955 = vmatprep.subr.bf16.mxu0 %v5658
    %8956 = vmatpush1.bf16.msra.mxu0 %v5657
    %8957 = vmatprep.subr.bf16.mxu0 %v5666
    %8958 = vmatpush1.bf16.msra.mxu0 %v5665
    %8959 = vmatprep.subr.bf16.mxu0 %v5674
    %8960 = vmatpush1.bf16.msra.mxu0 %v5673
    %8961 = vmatprep.subr.bf16.mxu0 %v5682
    %8962 = vmatpush1.bf16.msra.mxu0 %v5681
    %8963 = vmatprep.subr.bf16.mxu0 %v5690
    %8964 = vmatpush1.bf16.msra.mxu0 %v5689
    %8965 = vmatprep.subr.bf16.mxu0 %v5698
    %8966 = vmatpush1.bf16.msra.mxu0 %v5697
    %8967 = vmatprep.subr.bf16.mxu0 %v5706
    %8968 = vmatpush1.bf16.msra.mxu0 %v5705
    %8969 = vmatprep.subr.bf16.mxu0 %v5714
    %8970 = vmatpush1.bf16.msra.mxu0 %v5713
    %8971 = vmatprep.subr.bf16.mxu0 %v5722
    %8972 = vmatpush1.bf16.msra.mxu0 %v5721
    %8973 = vmatprep.subr.bf16.mxu0 %v5730
    %8974 = vmatpush1.bf16.msra.mxu0 %v5729
    %8975 = vmatprep.mubr.bf16.mxu0 %v3386
    %8976 = vmatmul.mubr.bf16.gmra.mrb[0].mxu0 %v3385
    %v8977 = vpop.f32.mrb[0].mxu0
    %v8978 = vadd.f32 %v4054, %v8977
    %v8979 = vpop.f32.mrb[0].mxu0
    %v8980 = vadd.f32 %v4058, %v8979
    %v8981 = vpop.f32.mrb[0].mxu0
    %v8982 = vadd.f32 %v4054, %v8981
    %v8983 = vpop.f32.mrb[0].mxu0
    %v8984 = vadd.f32 %v4058, %v8983
    %8985 = vmatprep.mubr.bf16.mxu0 %v3394
    %8986 = vmatmul.mubr.bf16.gmra.mrb[0].mxu0 %v3393
    %v8987 = vpop.f32.mrb[0].mxu0
    %v8988 = vadd.f32 %v4054, %v8987
    %v8989 = vpop.f32.mrb[0].mxu0
    %v8990 = vadd.f32 %v4058, %v8989
    %v8991 = vpop.f32.mrb[0].mxu0
    %v8992 = vadd.f32 %v4054, %v8991
    %v8993 = vpop.f32.mrb[0].mxu0
    %v8994 = vadd.f32 %v4058, %v8993
    %8995 = vmatprep.mubr.bf16.mxu0 %v3402
    %8996 = vmatmul.mubr.bf16.gmra.mrb[0].mxu0 %v3401
    %v8997 = vpop.f32.mrb[0].mxu0
    %v8998 = vadd.f32 %v4054, %v8997
    %v8999 = vpop.f32.mrb[0].mxu0
    %v9000 = vadd.f32 %v4058, %v8999
    %v9001 = vpop.f32.mrb[0].mxu0
    %v9002 = vadd.f32 %v4054, %v9001
    %v9003 = vpop.f32.mrb[0].mxu0
    %v9004 = vadd.f32 %v4058, %v9003
    %9005 = vmatprep.mubr.bf16.mxu0 %v3410
    %9006 = vmatmul.mubr.bf16.gmra.mrb[0].mxu0 %v3409
    %v9007 = vpop.f32.mrb[0].mxu0
    %v9008 = vadd.f32 %v4054, %v9007
    %v9009 = vpop.f32.mrb[0].mxu0
    %v9010 = vadd.f32 %v4058, %v9009
    %v9011 = vpop.f32.mrb[0].mxu0
    %v9012 = vadd.f32 %v4054, %v9011
    %v9013 = vpop.f32.mrb[0].mxu0
    %v9014 = vadd.f32 %v4058, %v9013
    %9015 = vmatprep.mubr.bf16.mxu0 %v3418
    %9016 = vmatmul.mubr.bf16.gmra.mrb[0].mxu0 %v3417
    %v9017 = vpop.f32.mrb[0].mxu0
    %v9018 = vadd.f32 %v4054, %v9017
    %v9019 = vpop.f32.mrb[0].mxu0
    %v9020 = vadd.f32 %v4058, %v9019
    %v9021 = vpop.f32.mrb[0].mxu0
    %v9022 = vadd.f32 %v4054, %v9021
    %v9023 = vpop.f32.mrb[0].mxu0
    %v9024 = vadd.f32 %v4058, %v9023
    %9025 = vmatprep.mubr.bf16.mxu0 %v3426
    %9026 = vmatmul.mubr.bf16.gmra.mrb[0].mxu0 %v3425
    %v9027 = vpop.f32.mrb[0].mxu0
    %v9028 = vadd.f32 %v4054, %v9027
    %v9029 = vpop.f32.mrb[0].mxu0
    %v9030 = vadd.f32 %v4058, %v9029
    %v9031 = vpop.f32.mrb[0].mxu0
    %v9032 = vadd.f32 %v4054, %v9031
    %v9033 = vpop.f32.mrb[0].mxu0
    %v9034 = vadd.f32 %v4058, %v9033
    %9035 = vmatprep.mubr.bf16.mxu0 %v3434
    %9036 = vmatmul.mubr.bf16.gmra.mrb[0].mxu0 %v3433
    %v9037 = vpop.f32.mrb[0].mxu0
    %v9038 = vadd.f32 %v4054, %v9037
    %v9039 = vpop.f32.mrb[0].mxu0
    %v9040 = vadd.f32 %v4058, %v9039
    %v9041 = vpop.f32.mrb[0].mxu0
    %v9042 = vadd.f32 %v4054, %v9041
    %v9043 = vpop.f32.mrb[0].mxu0
    %v9044 = vadd.f32 %v4058, %v9043
    %9045 = vmatprep.mubr.bf16.mxu0 %v3442
    %9046 = vmatmul.mubr.bf16.gmra.mrb[0].mxu0 %v3441
    %v9047 = vpop.f32.mrb[0].mxu0
    %v9048 = vadd.f32 %v4054, %v9047
    %v9049 = vpop.f32.mrb[0].mxu0
    %v9050 = vadd.f32 %v4058, %v9049
    %v9051 = vpop.f32.mrb[0].mxu0
    %v9052 = vadd.f32 %v4054, %v9051
    %v9053 = vpop.f32.mrb[0].mxu0
    %v9054 = vadd.f32 %v4058, %v9053
    %9055 = vmatprep.mubr.bf16.mxu0 %v3450
    %9056 = vmatmul.mubr.bf16.gmra.mrb[0].mxu0 %v3449
    %v9057 = vpop.f32.mrb[0].mxu0
    %v9058 = vadd.f32 %v4054, %v9057
    %v9059 = vpop.f32.mrb[0].mxu0
    %v9060 = vadd.f32 %v4058, %v9059
    %v9061 = vpop.f32.mrb[0].mxu0
    %v9062 = vadd.f32 %v4054, %v9061
    %v9063 = vpop.f32.mrb[0].mxu0
    %v9064 = vadd.f32 %v4058, %v9063
    %9065 = vmatprep.mubr.bf16.mxu0 %v3458
    %9066 = vmatmul.mubr.bf16.gmra.mrb[0].mxu0 %v3457
    %v9067 = vpop.f32.mrb[0].mxu0
    %v9068 = vadd.f32 %v4054, %v9067
    %v9069 = vpop.f32.mrb[0].mxu0
    %v9070 = vadd.f32 %v4058, %v9069
    %v9071 = vpop.f32.mrb[0].mxu0
    %v9072 = vadd.f32 %v4054, %v9071
    %v9073 = vpop.f32.mrb[0].mxu0
    %v9074 = vadd.f32 %v4058, %v9073
    %9075 = vmatprep.mubr.bf16.mxu0 %v3466
    %9076 = vmatmul.mubr.bf16.gmra.mrb[0].mxu0 %v3465
    %v9077 = vpop.f32.mrb[0].mxu0
    %v9078 = vadd.f32 %v4054, %v9077
    %v9079 = vpop.f32.mrb[0].mxu0
    %v9080 = vadd.f32 %v4058, %v9079
    %v9081 = vpop.f32.mrb[0].mxu0
    %v9082 = vadd.f32 %v4054, %v9081
    %v9083 = vpop.f32.mrb[0].mxu0
    %v9084 = vadd.f32 %v4058, %v9083
    %9085 = vmatprep.mubr.bf16.mxu0 %v3474
    %9086 = vmatmul.mubr.bf16.gmra.mrb[0].mxu0 %v3473
    %v9087 = vpop.f32.mrb[0].mxu0
    %v9088 = vadd.f32 %v4054, %v9087
    %v9089 = vpop.f32.mrb[0].mxu0
    %v9090 = vadd.f32 %v4058, %v9089
    %v9091 = vpop.f32.mrb[0].mxu0
    %v9092 = vadd.f32 %v4054, %v9091
    %v9093 = vpop.f32.mrb[0].mxu0
    %v9094 = vadd.f32 %v4058, %v9093
    %9095 = vmatprep.mubr.bf16.mxu0 %v3482
    %9096 = vmatmul.mubr.bf16.gmra.mrb[0].mxu0 %v3481
    %v9097 = vpop.f32.mrb[0].mxu0
    %v9098 = vadd.f32 %v4054, %v9097
    %v9099 = vpop.f32.mrb[0].mxu0
    %v9100 = vadd.f32 %v4058, %v9099
    %v9101 = vpop.f32.mrb[0].mxu0
    %v9102 = vadd.f32 %v4054, %v9101
    %v9103 = vpop.f32.mrb[0].mxu0
    %v9104 = vadd.f32 %v4058, %v9103
    %9105 = vmatprep.mubr.bf16.mxu0 %v3490
    %9106 = vmatmul.mubr.bf16.gmra.mrb[0].mxu0 %v3489
    %v9107 = vpop.f32.mrb[0].mxu0
    %v9108 = vadd.f32 %v4054, %v9107
    %v9109 = vpop.f32.mrb[0].mxu0
    %v9110 = vadd.f32 %v4058, %v9109
    %v9111 = vpop.f32.mrb[0].mxu0
    %v9112 = vadd.f32 %v4054, %v9111
    %v9113 = vpop.f32.mrb[0].mxu0
    %v9114 = vadd.f32 %v4058, %v9113
    %9115 = vmatprep.mubr.bf16.mxu0 %v3498
    %9116 = vmatmul.mubr.bf16.gmra.mrb[0].mxu0 %v3497
    %v9117 = vpop.f32.mrb[0].mxu0
    %v9118 = vadd.f32 %v4054, %v9117
    %v9119 = vpop.f32.mrb[0].mxu0
    %v9120 = vadd.f32 %v4058, %v9119
    %v9121 = vpop.f32.mrb[0].mxu0
    %v9122 = vadd.f32 %v4054, %v9121
    %v9123 = vpop.f32.mrb[0].mxu0
    %v9124 = vadd.f32 %v4058, %v9123
    %9125 = vmatprep.mubr.bf16.mxu0 %v3506
    %9126 = vmatmul.mubr.bf16.gmra.mrb[0].mxu0 %v3505
    %v9127 = vpop.f32.mrb[0].mxu0
    %v9128 = vadd.f32 %v4054, %v9127
    %v9129 = vpop.f32.mrb[0].mxu0
    %v9130 = vadd.f32 %v4058, %v9129
    %v9131 = vpop.f32.mrb[0].mxu0
    %v9132 = vadd.f32 %v4054, %v9131
    %v9133 = vpop.f32.mrb[0].mxu0
    %v9134 = vadd.f32 %v4058, %v9133
    %9135 = vdwg.mxu0
    %9136 = vmatprep.subr.bf16.mxu0 %v5738
    %9137 = vmatpush1.bf16.msra.mxu0 %v5737
    %9138 = vmatprep.subr.bf16.mxu0 %v5746
    %9139 = vmatpush1.bf16.msra.mxu0 %v5745
    %9140 = vmatprep.subr.bf16.mxu0 %v5754
    %9141 = vmatpush1.bf16.msra.mxu0 %v5753
    %9142 = vmatprep.subr.bf16.mxu0 %v5762
    %9143 = vmatpush1.bf16.msra.mxu0 %v5761
    %9144 = vmatprep.subr.bf16.mxu0 %v5770
    %9145 = vmatpush1.bf16.msra.mxu0 %v5769
    %9146 = vmatprep.subr.bf16.mxu0 %v5778
    %9147 = vmatpush1.bf16.msra.mxu0 %v5777
    %9148 = vmatprep.subr.bf16.mxu0 %v5786
    %9149 = vmatpush1.bf16.msra.mxu0 %v5785
    %9150 = vmatprep.subr.bf16.mxu0 %v5794
    %9151 = vmatpush1.bf16.msra.mxu0 %v5793
    %9152 = vmatprep.subr.bf16.mxu0 %v5802
    %9153 = vmatpush1.bf16.msra.mxu0 %v5801
    %9154 = vmatprep.subr.bf16.mxu0 %v5810
    %9155 = vmatpush1.bf16.msra.mxu0 %v5809
    %9156 = vmatprep.subr.bf16.mxu0 %v5818
    %9157 = vmatpush1.bf16.msra.mxu0 %v5817
    %9158 = vmatprep.subr.bf16.mxu0 %v5826
    %9159 = vmatpush1.bf16.msra.mxu0 %v5825
    %9160 = vmatprep.subr.bf16.mxu0 %v5834
    %9161 = vmatpush1.bf16.msra.mxu0 %v5833
    %9162 = vmatprep.subr.bf16.mxu0 %v5842
    %9163 = vmatpush1.bf16.msra.mxu0 %v5841
    %9164 = vmatprep.subr.bf16.mxu0 %v5850
    %9165 = vmatpush1.bf16.msra.mxu0 %v5849
    %9166 = vmatprep.subr.bf16.mxu0 %v5858
    %9167 = vmatpush1.bf16.msra.mxu0 %v5857
    %9168 = vmatprep.mubr.bf16.mxu0 %v3388
    %9169 = vmatmul.mubr.bf16.gmra.mrb[0].mxu0 %v3387
    %v9170 = vpop.f32.mrb[0].mxu0
    %v9171 = vadd.f32 %v8978, %v9170
    %v9172 = vpop.f32.mrb[0].mxu0
    %v9173 = vadd.f32 %v8980, %v9172
    %v9174 = vpop.f32.mrb[0].mxu0
    %v9175 = vadd.f32 %v8982, %v9174
    %v9176 = vpop.f32.mrb[0].mxu0
    %v9177 = vadd.f32 %v8984, %v9176
    %9178 = vmatprep.mubr.bf16.mxu0 %v3396
    %9179 = vmatmul.mubr.bf16.gmra.mrb[0].mxu0 %v3395
    %v9180 = vpop.f32.mrb[0].mxu0
    %v9181 = vadd.f32 %v8988, %v9180
    %v9182 = vpop.f32.mrb[0].mxu0
    %v9183 = vadd.f32 %v8990, %v9182
    %v9184 = vpop.f32.mrb[0].mxu0
    %v9185 = vadd.f32 %v8992, %v9184
    %v9186 = vpop.f32.mrb[0].mxu0
    %v9187 = vadd.f32 %v8994, %v9186
    %9188 = vmatprep.mubr.bf16.mxu0 %v3404
    %9189 = vmatmul.mubr.bf16.gmra.mrb[0].mxu0 %v3403
    %v9190 = vpop.f32.mrb[0].mxu0
    %v9191 = vadd.f32 %v8998, %v9190
    %v9192 = vpop.f32.mrb[0].mxu0
    %v9193 = vadd.f32 %v9000, %v9192
    %v9194 = vpop.f32.mrb[0].mxu0
    %v9195 = vadd.f32 %v9002, %v9194
    %v9196 = vpop.f32.mrb[0].mxu0
    %v9197 = vadd.f32 %v9004, %v9196
    %9198 = vmatprep.mubr.bf16.mxu0 %v3412
    %9199 = vmatmul.mubr.bf16.gmra.mrb[0].mxu0 %v3411
    %v9200 = vpop.f32.mrb[0].mxu0
    %v9201 = vadd.f32 %v9008, %v9200
    %v9202 = vpop.f32.mrb[0].mxu0
    %v9203 = vadd.f32 %v9010, %v9202
    %v9204 = vpop.f32.mrb[0].mxu0
    %v9205 = vadd.f32 %v9012, %v9204
    %v9206 = vpop.f32.mrb[0].mxu0
    %v9207 = vadd.f32 %v9014, %v9206
    %9208 = vmatprep.mubr.bf16.mxu0 %v3420
    %9209 = vmatmul.mubr.bf16.gmra.mrb[0].mxu0 %v3419
    %v9210 = vpop.f32.mrb[0].mxu0
    %v9211 = vadd.f32 %v9018, %v9210
    %v9212 = vpop.f32.mrb[0].mxu0
    %v9213 = vadd.f32 %v9020, %v9212
    %v9214 = vpop.f32.mrb[0].mxu0
    %v9215 = vadd.f32 %v9022, %v9214
    %v9216 = vpop.f32.mrb[0].mxu0
    %v9217 = vadd.f32 %v9024, %v9216
    %9218 = vmatprep.mubr.bf16.mxu0 %v3428
    %9219 = vmatmul.mubr.bf16.gmra.mrb[0].mxu0 %v3427
    %v9220 = vpop.f32.mrb[0].mxu0
    %v9221 = vadd.f32 %v9028, %v9220
    %v9222 = vpop.f32.mrb[0].mxu0
    %v9223 = vadd.f32 %v9030, %v9222
    %v9224 = vpop.f32.mrb[0].mxu0
    %v9225 = vadd.f32 %v9032, %v9224
    %v9226 = vpop.f32.mrb[0].mxu0
    %v9227 = vadd.f32 %v9034, %v9226
    %9228 = vmatprep.mubr.bf16.mxu0 %v3436
    %9229 = vmatmul.mubr.bf16.gmra.mrb[0].mxu0 %v3435
    %v9230 = vpop.f32.mrb[0].mxu0
    %v9231 = vadd.f32 %v9038, %v9230
    %v9232 = vpop.f32.mrb[0].mxu0
    %v9233 = vadd.f32 %v9040, %v9232
    %v9234 = vpop.f32.mrb[0].mxu0
    %v9235 = vadd.f32 %v9042, %v9234
    %v9236 = vpop.f32.mrb[0].mxu0
    %v9237 = vadd.f32 %v9044, %v9236
    %9238 = vmatprep.mubr.bf16.mxu0 %v3444
    %9239 = vmatmul.mubr.bf16.gmra.mrb[0].mxu0 %v3443
    %v9240 = vpop.f32.mrb[0].mxu0
    %v9241 = vadd.f32 %v9048, %v9240
    %v9242 = vpop.f32.mrb[0].mxu0
    %v9243 = vadd.f32 %v9050, %v9242
    %v9244 = vpop.f32.mrb[0].mxu0
    %v9245 = vadd.f32 %v9052, %v9244
    %v9246 = vpop.f32.mrb[0].mxu0
    %v9247 = vadd.f32 %v9054, %v9246
    %9248 = vmatprep.mubr.bf16.mxu0 %v3452
    %9249 = vmatmul.mubr.bf16.gmra.mrb[0].mxu0 %v3451
    %v9250 = vpop.f32.mrb[0].mxu0
    %v9251 = vadd.f32 %v9058, %v9250
    %v9252 = vpop.f32.mrb[0].mxu0
    %v9253 = vadd.f32 %v9060, %v9252
    %v9254 = vpop.f32.mrb[0].mxu0
    %v9255 = vadd.f32 %v9062, %v9254
    %v9256 = vpop.f32.mrb[0].mxu0
    %v9257 = vadd.f32 %v9064, %v9256
    %9258 = vmatprep.mubr.bf16.mxu0 %v3460
    %9259 = vmatmul.mubr.bf16.gmra.mrb[0].mxu0 %v3459
    %v9260 = vpop.f32.mrb[0].mxu0
    %v9261 = vadd.f32 %v9068, %v9260
    %v9262 = vpop.f32.mrb[0].mxu0
    %v9263 = vadd.f32 %v9070, %v9262
    %v9264 = vpop.f32.mrb[0].mxu0
    %v9265 = vadd.f32 %v9072, %v9264
    %v9266 = vpop.f32.mrb[0].mxu0
    %v9267 = vadd.f32 %v9074, %v9266
    %9268 = vmatprep.mubr.bf16.mxu0 %v3468
    %9269 = vmatmul.mubr.bf16.gmra.mrb[0].mxu0 %v3467
    %v9270 = vpop.f32.mrb[0].mxu0
    %v9271 = vadd.f32 %v9078, %v9270
    %v9272 = vpop.f32.mrb[0].mxu0
    %v9273 = vadd.f32 %v9080, %v9272
    %v9274 = vpop.f32.mrb[0].mxu0
    %v9275 = vadd.f32 %v9082, %v9274
    %v9276 = vpop.f32.mrb[0].mxu0
    %v9277 = vadd.f32 %v9084, %v9276
    %9278 = vmatprep.mubr.bf16.mxu0 %v3476
    %9279 = vmatmul.mubr.bf16.gmra.mrb[0].mxu0 %v3475
    %v9280 = vpop.f32.mrb[0].mxu0
    %v9281 = vadd.f32 %v9088, %v9280
    %v9282 = vpop.f32.mrb[0].mxu0
    %v9283 = vadd.f32 %v9090, %v9282
    %v9284 = vpop.f32.mrb[0].mxu0
    %v9285 = vadd.f32 %v9092, %v9284
    %v9286 = vpop.f32.mrb[0].mxu0
    %v9287 = vadd.f32 %v9094, %v9286
    %9288 = vmatprep.mubr.bf16.mxu0 %v3484
    %9289 = vmatmul.mubr.bf16.gmra.mrb[0].mxu0 %v3483
    %v9290 = vpop.f32.mrb[0].mxu0
    %v9291 = vadd.f32 %v9098, %v9290
    %v9292 = vpop.f32.mrb[0].mxu0
    %v9293 = vadd.f32 %v9100, %v9292
    %v9294 = vpop.f32.mrb[0].mxu0
    %v9295 = vadd.f32 %v9102, %v9294
    %v9296 = vpop.f32.mrb[0].mxu0
    %v9297 = vadd.f32 %v9104, %v9296
    %9298 = vmatprep.mubr.bf16.mxu0 %v3492
    %9299 = vmatmul.mubr.bf16.gmra.mrb[0].mxu0 %v3491
    %v9300 = vpop.f32.mrb[0].mxu0
    %v9301 = vadd.f32 %v9108, %v9300
    %v9302 = vpop.f32.mrb[0].mxu0
    %v9303 = vadd.f32 %v9110, %v9302
    %v9304 = vpop.f32.mrb[0].mxu0
    %v9305 = vadd.f32 %v9112, %v9304
    %v9306 = vpop.f32.mrb[0].mxu0
    %v9307 = vadd.f32 %v9114, %v9306
    %9308 = vmatprep.mubr.bf16.mxu0 %v3500
    %9309 = vmatmul.mubr.bf16.gmra.mrb[0].mxu0 %v3499
    %v9310 = vpop.f32.mrb[0].mxu0
    %v9311 = vadd.f32 %v9118, %v9310
    %v9312 = vpop.f32.mrb[0].mxu0
    %v9313 = vadd.f32 %v9120, %v9312
    %v9314 = vpop.f32.mrb[0].mxu0
    %v9315 = vadd.f32 %v9122, %v9314
    %v9316 = vpop.f32.mrb[0].mxu0
    %v9317 = vadd.f32 %v9124, %v9316
    %9318 = vmatprep.mubr.bf16.mxu0 %v3508
    %9319 = vmatmul.mubr.bf16.gmra.mrb[0].mxu0 %v3507
    %v9320 = vpop.f32.mrb[0].mxu0
    %v9321 = vadd.f32 %v9128, %v9320
    %v9322 = vpop.f32.mrb[0].mxu0
    %v9323 = vadd.f32 %v9130, %v9322
    %v9324 = vpop.f32.mrb[0].mxu0
    %v9325 = vadd.f32 %v9132, %v9324
    %v9326 = vpop.f32.mrb[0].mxu0
    %v9327 = vadd.f32 %v9134, %v9326
    %9328 = vdwg.mxu0
    %9329 = vmatprep.subr.bf16.mxu0 %v5866
    %9330 = vmatpush1.bf16.msra.mxu0 %v5865
    %9331 = vmatprep.subr.bf16.mxu0 %v5874
    %9332 = vmatpush1.bf16.msra.mxu0 %v5873
    %9333 = vmatprep.subr.bf16.mxu0 %v5882
    %9334 = vmatpush1.bf16.msra.mxu0 %v5881
    %9335 = vmatprep.subr.bf16.mxu0 %v5890
    %9336 = vmatpush1.bf16.msra.mxu0 %v5889
    %9337 = vmatprep.subr.bf16.mxu0 %v5898
    %9338 = vmatpush1.bf16.msra.mxu0 %v5897
    %9339 = vmatprep.subr.bf16.mxu0 %v5906
    %9340 = vmatpush1.bf16.msra.mxu0 %v5905
    %9341 = vmatprep.subr.bf16.mxu0 %v5914
    %9342 = vmatpush1.bf16.msra.mxu0 %v5913
    %9343 = vmatprep.subr.bf16.mxu0 %v5922
    %9344 = vmatpush1.bf16.msra.mxu0 %v5921
    %9345 = vmatprep.subr.bf16.mxu0 %v5930
    %9346 = vmatpush1.bf16.msra.mxu0 %v5929
    %9347 = vmatprep.subr.bf16.mxu0 %v5938
    %9348 = vmatpush1.bf16.msra.mxu0 %v5937
    %9349 = vmatprep.subr.bf16.mxu0 %v5946
    %9350 = vmatpush1.bf16.msra.mxu0 %v5945
    %9351 = vmatprep.subr.bf16.mxu0 %v5954
    %9352 = vmatpush1.bf16.msra.mxu0 %v5953
    %9353 = vmatprep.subr.bf16.mxu0 %v5962
    %9354 = vmatpush1.bf16.msra.mxu0 %v5961
    %9355 = vmatprep.subr.bf16.mxu0 %v5970
    %9356 = vmatpush1.bf16.msra.mxu0 %v5969
    %9357 = vmatprep.subr.bf16.mxu0 %v5978
    %9358 = vmatpush1.bf16.msra.mxu0 %v5977
    %9359 = vmatprep.subr.bf16.mxu0 %v5986
    %9360 = vmatpush1.bf16.msra.mxu0 %v5985
    %9361 = vmatprep.mubr.bf16.mxu0 %v3390
    %9362 = vmatmul.mubr.bf16.gmra.mrb[0].mxu0 %v3389
    %v9363 = vpop.f32.mrb[0].mxu0
    %v9364 = vadd.f32 %v9171, %v9363
    %v9365 = vpop.f32.mrb[0].mxu0
    %v9366 = vadd.f32 %v9173, %v9365
    %v9367 = vpop.f32.mrb[0].mxu0
    %v9368 = vadd.f32 %v9175, %v9367
    %v9369 = vpop.f32.mrb[0].mxu0
    %v9370 = vadd.f32 %v9177, %v9369
    %9371 = vmatprep.mubr.bf16.mxu0 %v3398
    %9372 = vmatmul.mubr.bf16.gmra.mrb[0].mxu0 %v3397
    %v9373 = vpop.f32.mrb[0].mxu0
    %v9374 = vadd.f32 %v9181, %v9373
    %v9375 = vpop.f32.mrb[0].mxu0
    %v9376 = vadd.f32 %v9183, %v9375
    %v9377 = vpop.f32.mrb[0].mxu0
    %v9378 = vadd.f32 %v9185, %v9377
    %v9379 = vpop.f32.mrb[0].mxu0
    %v9380 = vadd.f32 %v9187, %v9379
    %9381 = vmatprep.mubr.bf16.mxu0 %v3406
    %9382 = vmatmul.mubr.bf16.gmra.mrb[0].mxu0 %v3405
    %v9383 = vpop.f32.mrb[0].mxu0
    %v9384 = vadd.f32 %v9191, %v9383
    %v9385 = vpop.f32.mrb[0].mxu0
    %v9386 = vadd.f32 %v9193, %v9385
    %v9387 = vpop.f32.mrb[0].mxu0
    %v9388 = vadd.f32 %v9195, %v9387
    %v9389 = vpop.f32.mrb[0].mxu0
    %v9390 = vadd.f32 %v9197, %v9389
    %9391 = vmatprep.mubr.bf16.mxu0 %v3414
    %9392 = vmatmul.mubr.bf16.gmra.mrb[0].mxu0 %v3413
    %v9393 = vpop.f32.mrb[0].mxu0
    %v9394 = vadd.f32 %v9201, %v9393
    %v9395 = vpop.f32.mrb[0].mxu0
    %v9396 = vadd.f32 %v9203, %v9395
    %v9397 = vpop.f32.mrb[0].mxu0
    %v9398 = vadd.f32 %v9205, %v9397
    %v9399 = vpop.f32.mrb[0].mxu0
    %v9400 = vadd.f32 %v9207, %v9399
    %9401 = vmatprep.mubr.bf16.mxu0 %v3422
    %9402 = vmatmul.mubr.bf16.gmra.mrb[0].mxu0 %v3421
    %v9403 = vpop.f32.mrb[0].mxu0
    %v9404 = vadd.f32 %v9211, %v9403
    %v9405 = vpop.f32.mrb[0].mxu0
    %v9406 = vadd.f32 %v9213, %v9405
    %v9407 = vpop.f32.mrb[0].mxu0
    %v9408 = vadd.f32 %v9215, %v9407
    %v9409 = vpop.f32.mrb[0].mxu0
    %v9410 = vadd.f32 %v9217, %v9409
    %9411 = vmatprep.mubr.bf16.mxu0 %v3430
    %9412 = vmatmul.mubr.bf16.gmra.mrb[0].mxu0 %v3429
    %v9413 = vpop.f32.mrb[0].mxu0
    %v9414 = vadd.f32 %v9221, %v9413
    %v9415 = vpop.f32.mrb[0].mxu0
    %v9416 = vadd.f32 %v9223, %v9415
    %v9417 = vpop.f32.mrb[0].mxu0
    %v9418 = vadd.f32 %v9225, %v9417
    %v9419 = vpop.f32.mrb[0].mxu0
    %v9420 = vadd.f32 %v9227, %v9419
    %9421 = vmatprep.mubr.bf16.mxu0 %v3438
    %9422 = vmatmul.mubr.bf16.gmra.mrb[0].mxu0 %v3437
    %v9423 = vpop.f32.mrb[0].mxu0
    %v9424 = vadd.f32 %v9231, %v9423
    %v9425 = vpop.f32.mrb[0].mxu0
    %v9426 = vadd.f32 %v9233, %v9425
    %v9427 = vpop.f32.mrb[0].mxu0
    %v9428 = vadd.f32 %v9235, %v9427
    %v9429 = vpop.f32.mrb[0].mxu0
    %v9430 = vadd.f32 %v9237, %v9429
    %9431 = vmatprep.mubr.bf16.mxu0 %v3446
    %9432 = vmatmul.mubr.bf16.gmra.mrb[0].mxu0 %v3445
    %v9433 = vpop.f32.mrb[0].mxu0
    %v9434 = vadd.f32 %v9241, %v9433
    %v9435 = vpop.f32.mrb[0].mxu0
    %v9436 = vadd.f32 %v9243, %v9435
    %v9437 = vpop.f32.mrb[0].mxu0
    %v9438 = vadd.f32 %v9245, %v9437
    %v9439 = vpop.f32.mrb[0].mxu0
    %v9440 = vadd.f32 %v9247, %v9439
    %9441 = vmatprep.mubr.bf16.mxu0 %v3454
    %9442 = vmatmul.mubr.bf16.gmra.mrb[0].mxu0 %v3453
    %v9443 = vpop.f32.mrb[0].mxu0
    %v9444 = vadd.f32 %v9251, %v9443
    %v9445 = vpop.f32.mrb[0].mxu0
    %v9446 = vadd.f32 %v9253, %v9445
    %v9447 = vpop.f32.mrb[0].mxu0
    %v9448 = vadd.f32 %v9255, %v9447
    %v9449 = vpop.f32.mrb[0].mxu0
    %v9450 = vadd.f32 %v9257, %v9449
    %9451 = vmatprep.mubr.bf16.mxu0 %v3462
    %9452 = vmatmul.mubr.bf16.gmra.mrb[0].mxu0 %v3461
    %v9453 = vpop.f32.mrb[0].mxu0
    %v9454 = vadd.f32 %v9261, %v9453
    %v9455 = vpop.f32.mrb[0].mxu0
    %v9456 = vadd.f32 %v9263, %v9455
    %v9457 = vpop.f32.mrb[0].mxu0
    %v9458 = vadd.f32 %v9265, %v9457
    %v9459 = vpop.f32.mrb[0].mxu0
    %v9460 = vadd.f32 %v9267, %v9459
    %9461 = vmatprep.mubr.bf16.mxu0 %v3470
    %9462 = vmatmul.mubr.bf16.gmra.mrb[0].mxu0 %v3469
    %v9463 = vpop.f32.mrb[0].mxu0
    %v9464 = vadd.f32 %v9271, %v9463
    %v9465 = vpop.f32.mrb[0].mxu0
    %v9466 = vadd.f32 %v9273, %v9465
    %v9467 = vpop.f32.mrb[0].mxu0
    %v9468 = vadd.f32 %v9275, %v9467
    %v9469 = vpop.f32.mrb[0].mxu0
    %v9470 = vadd.f32 %v9277, %v9469
    %9471 = vmatprep.mubr.bf16.mxu0 %v3478
    %9472 = vmatmul.mubr.bf16.gmra.mrb[0].mxu0 %v3477
    %v9473 = vpop.f32.mrb[0].mxu0
    %v9474 = vadd.f32 %v9281, %v9473
    %v9475 = vpop.f32.mrb[0].mxu0
    %v9476 = vadd.f32 %v9283, %v9475
    %v9477 = vpop.f32.mrb[0].mxu0
    %v9478 = vadd.f32 %v9285, %v9477
    %v9479 = vpop.f32.mrb[0].mxu0
    %v9480 = vadd.f32 %v9287, %v9479
    %9481 = vmatprep.mubr.bf16.mxu0 %v3486
    %9482 = vmatmul.mubr.bf16.gmra.mrb[0].mxu0 %v3485
    %v9483 = vpop.f32.mrb[0].mxu0
    %v9484 = vadd.f32 %v9291, %v9483
    %v9485 = vpop.f32.mrb[0].mxu0
    %v9486 = vadd.f32 %v9293, %v9485
    %v9487 = vpop.f32.mrb[0].mxu0
    %v9488 = vadd.f32 %v9295, %v9487
    %v9489 = vpop.f32.mrb[0].mxu0
    %v9490 = vadd.f32 %v9297, %v9489
    %9491 = vmatprep.mubr.bf16.mxu0 %v3494
    %9492 = vmatmul.mubr.bf16.gmra.mrb[0].mxu0 %v3493
    %v9493 = vpop.f32.mrb[0].mxu0
    %v9494 = vadd.f32 %v9301, %v9493
    %v9495 = vpop.f32.mrb[0].mxu0
    %v9496 = vadd.f32 %v9303, %v9495
    %v9497 = vpop.f32.mrb[0].mxu0
    %v9498 = vadd.f32 %v9305, %v9497
    %v9499 = vpop.f32.mrb[0].mxu0
    %v9500 = vadd.f32 %v9307, %v9499
    %9501 = vmatprep.mubr.bf16.mxu0 %v3502
    %9502 = vmatmul.mubr.bf16.gmra.mrb[0].mxu0 %v3501
    %v9503 = vpop.f32.mrb[0].mxu0
    %v9504 = vadd.f32 %v9311, %v9503
    %v9505 = vpop.f32.mrb[0].mxu0
    %v9506 = vadd.f32 %v9313, %v9505
    %v9507 = vpop.f32.mrb[0].mxu0
    %v9508 = vadd.f32 %v9315, %v9507
    %v9509 = vpop.f32.mrb[0].mxu0
    %v9510 = vadd.f32 %v9317, %v9509
    %9511 = vmatprep.mubr.bf16.mxu0 %v3510
    %9512 = vmatmul.mubr.bf16.gmra.mrb[0].mxu0 %v3509
    %v9513 = vpop.f32.mrb[0].mxu0
    %v9514 = vadd.f32 %v9321, %v9513
    %v9515 = vpop.f32.mrb[0].mxu0
    %v9516 = vadd.f32 %v9323, %v9515
    %v9517 = vpop.f32.mrb[0].mxu0
    %v9518 = vadd.f32 %v9325, %v9517
    %v9519 = vpop.f32.mrb[0].mxu0
    %v9520 = vadd.f32 %v9327, %v9519
    %9521 = vdwg.mxu0
    %9522 = vmatprep.subr.bf16.mxu0 %v5994
    %9523 = vmatpush1.bf16.msra.mxu0 %v5993
    %9524 = vmatprep.subr.bf16.mxu0 %v6002
    %9525 = vmatpush1.bf16.msra.mxu0 %v6001
    %9526 = vmatprep.subr.bf16.mxu0 %v6010
    %9527 = vmatpush1.bf16.msra.mxu0 %v6009
    %9528 = vmatprep.subr.bf16.mxu0 %v6018
    %9529 = vmatpush1.bf16.msra.mxu0 %v6017
    %9530 = vmatprep.subr.bf16.mxu0 %v6026
    %9531 = vmatpush1.bf16.msra.mxu0 %v6025
    %9532 = vmatprep.subr.bf16.mxu0 %v6034
    %9533 = vmatpush1.bf16.msra.mxu0 %v6033
    %9534 = vmatprep.subr.bf16.mxu0 %v6042
    %9535 = vmatpush1.bf16.msra.mxu0 %v6041
    %9536 = vmatprep.subr.bf16.mxu0 %v6050
    %9537 = vmatpush1.bf16.msra.mxu0 %v6049
    %9538 = vmatprep.subr.bf16.mxu0 %v6058
    %9539 = vmatpush1.bf16.msra.mxu0 %v6057
    %9540 = vmatprep.subr.bf16.mxu0 %v6066
    %9541 = vmatpush1.bf16.msra.mxu0 %v6065
    %9542 = vmatprep.subr.bf16.mxu0 %v6074
    %9543 = vmatpush1.bf16.msra.mxu0 %v6073
    %9544 = vmatprep.subr.bf16.mxu0 %v6082
    %9545 = vmatpush1.bf16.msra.mxu0 %v6081
    %9546 = vmatprep.subr.bf16.mxu0 %v6090
    %9547 = vmatpush1.bf16.msra.mxu0 %v6089
    %9548 = vmatprep.subr.bf16.mxu0 %v6098
    %9549 = vmatpush1.bf16.msra.mxu0 %v6097
    %9550 = vmatprep.subr.bf16.mxu0 %v6106
    %9551 = vmatpush1.bf16.msra.mxu0 %v6105
    %9552 = vmatprep.subr.bf16.mxu0 %v6114
    %9553 = vmatpush1.bf16.msra.mxu0 %v6113
    %9554 = vmatprep.mubr.bf16.mxu0 %v3392
    %9555 = vmatmul.mubr.bf16.gmra.mrb[0].mxu0 %v3391
    %v9556 = vpop.f32.mrb[0].mxu0
    %v9557 = vadd.f32 %v9364, %v9556
    %v9558 = vpop.f32.mrb[0].mxu0
    %v9559 = vadd.f32 %v9366, %v9558
    %v9560 = vpop.f32.mrb[0].mxu0
    %v9561 = vadd.f32 %v9368, %v9560
    %v9562 = vpop.f32.mrb[0].mxu0
    %v9563 = vadd.f32 %v9370, %v9562
    %9564 = vmatprep.mubr.bf16.mxu0 %v3400
    %9565 = vmatmul.mubr.bf16.gmra.mrb[0].mxu0 %v3399
    %v9566 = vpop.f32.mrb[0].mxu0
    %v9567 = vadd.f32 %v9374, %v9566
    %v9568 = vpop.f32.mrb[0].mxu0
    %v9569 = vadd.f32 %v9376, %v9568
    %v9570 = vpop.f32.mrb[0].mxu0
    %v9571 = vadd.f32 %v9378, %v9570
    %v9572 = vpop.f32.mrb[0].mxu0
    %v9573 = vadd.f32 %v9380, %v9572
    %9574 = vmatprep.mubr.bf16.mxu0 %v3408
    %9575 = vmatmul.mubr.bf16.gmra.mrb[0].mxu0 %v3407
    %v9576 = vpop.f32.mrb[0].mxu0
    %v9577 = vadd.f32 %v9384, %v9576
    %v9578 = vpop.f32.mrb[0].mxu0
    %v9579 = vadd.f32 %v9386, %v9578
    %v9580 = vpop.f32.mrb[0].mxu0
    %v9581 = vadd.f32 %v9388, %v9580
    %v9582 = vpop.f32.mrb[0].mxu0
    %v9583 = vadd.f32 %v9390, %v9582
    %9584 = vmatprep.mubr.bf16.mxu0 %v3416
    %9585 = vmatmul.mubr.bf16.gmra.mrb[0].mxu0 %v3415
    %v9586 = vpop.f32.mrb[0].mxu0
    %v9587 = vadd.f32 %v9394, %v9586
    %v9588 = vpop.f32.mrb[0].mxu0
    %v9589 = vadd.f32 %v9396, %v9588
    %v9590 = vpop.f32.mrb[0].mxu0
    %v9591 = vadd.f32 %v9398, %v9590
    %v9592 = vpop.f32.mrb[0].mxu0
    %v9593 = vadd.f32 %v9400, %v9592
    %9594 = vmatprep.mubr.bf16.mxu0 %v3424
    %9595 = vmatmul.mubr.bf16.gmra.mrb[0].mxu0 %v3423
    %v9596 = vpop.f32.mrb[0].mxu0
    %v9597 = vadd.f32 %v9404, %v9596
    %v9598 = vpop.f32.mrb[0].mxu0
    %v9599 = vadd.f32 %v9406, %v9598
    %v9600 = vpop.f32.mrb[0].mxu0
    %v9601 = vadd.f32 %v9408, %v9600
    %v9602 = vpop.f32.mrb[0].mxu0
    %v9603 = vadd.f32 %v9410, %v9602
    %9604 = vmatprep.mubr.bf16.mxu0 %v3432
    %9605 = vmatmul.mubr.bf16.gmra.mrb[0].mxu0 %v3431
    %v9606 = vpop.f32.mrb[0].mxu0
    %v9607 = vadd.f32 %v9414, %v9606
    %v9608 = vpop.f32.mrb[0].mxu0
    %v9609 = vadd.f32 %v9416, %v9608
    %v9610 = vpop.f32.mrb[0].mxu0
    %v9611 = vadd.f32 %v9418, %v9610
    %v9612 = vpop.f32.mrb[0].mxu0
    %v9613 = vadd.f32 %v9420, %v9612
    %9614 = vmatprep.mubr.bf16.mxu0 %v3440
    %9615 = vmatmul.mubr.bf16.gmra.mrb[0].mxu0 %v3439
    %v9616 = vpop.f32.mrb[0].mxu0
    %v9617 = vadd.f32 %v9424, %v9616
    %v9618 = vpop.f32.mrb[0].mxu0
    %v9619 = vadd.f32 %v9426, %v9618
    %v9620 = vpop.f32.mrb[0].mxu0
    %v9621 = vadd.f32 %v9428, %v9620
    %v9622 = vpop.f32.mrb[0].mxu0
    %v9623 = vadd.f32 %v9430, %v9622
    %9624 = vmatprep.mubr.bf16.mxu0 %v3448
    %9625 = vmatmul.mubr.bf16.gmra.mrb[0].mxu0 %v3447
    %v9626 = vpop.f32.mrb[0].mxu0
    %v9627 = vadd.f32 %v9434, %v9626
    %v9628 = vpop.f32.mrb[0].mxu0
    %v9629 = vadd.f32 %v9436, %v9628
    %v9630 = vpop.f32.mrb[0].mxu0
    %v9631 = vadd.f32 %v9438, %v9630
    %v9632 = vpop.f32.mrb[0].mxu0
    %v9633 = vadd.f32 %v9440, %v9632
    %9634 = vmatprep.mubr.bf16.mxu0 %v3456
    %9635 = vmatmul.mubr.bf16.gmra.mrb[0].mxu0 %v3455
    %v9636 = vpop.f32.mrb[0].mxu0
    %v9637 = vadd.f32 %v9444, %v9636
    %v9638 = vpop.f32.mrb[0].mxu0
    %v9639 = vadd.f32 %v9446, %v9638
    %v9640 = vpop.f32.mrb[0].mxu0
    %v9641 = vadd.f32 %v9448, %v9640
    %v9642 = vpop.f32.mrb[0].mxu0
    %v9643 = vadd.f32 %v9450, %v9642
    %9644 = vmatprep.mubr.bf16.mxu0 %v3464
    %9645 = vmatmul.mubr.bf16.gmra.mrb[0].mxu0 %v3463
    %v9646 = vpop.f32.mrb[0].mxu0
    %v9647 = vadd.f32 %v9454, %v9646
    %v9648 = vpop.f32.mrb[0].mxu0
    %v9649 = vadd.f32 %v9456, %v9648
    %v9650 = vpop.f32.mrb[0].mxu0
    %v9651 = vadd.f32 %v9458, %v9650
    %v9652 = vpop.f32.mrb[0].mxu0
    %v9653 = vadd.f32 %v9460, %v9652
    %9654 = vmatprep.mubr.bf16.mxu0 %v3472
    %9655 = vmatmul.mubr.bf16.gmra.mrb[0].mxu0 %v3471
    %v9656 = vpop.f32.mrb[0].mxu0
    %v9657 = vadd.f32 %v9464, %v9656
    %v9658 = vpop.f32.mrb[0].mxu0
    %v9659 = vadd.f32 %v9466, %v9658
    %v9660 = vpop.f32.mrb[0].mxu0
    %v9661 = vadd.f32 %v9468, %v9660
    %v9662 = vpop.f32.mrb[0].mxu0
    %v9663 = vadd.f32 %v9470, %v9662
    %9664 = vmatprep.mubr.bf16.mxu0 %v3480
    %9665 = vmatmul.mubr.bf16.gmra.mrb[0].mxu0 %v3479
    %v9666 = vpop.f32.mrb[0].mxu0
    %v9667 = vadd.f32 %v9474, %v9666
    %v9668 = vpop.f32.mrb[0].mxu0
    %v9669 = vadd.f32 %v9476, %v9668
    %v9670 = vpop.f32.mrb[0].mxu0
    %v9671 = vadd.f32 %v9478, %v9670
    %v9672 = vpop.f32.mrb[0].mxu0
    %v9673 = vadd.f32 %v9480, %v9672
    %9674 = vmatprep.mubr.bf16.mxu0 %v3488
    %9675 = vmatmul.mubr.bf16.gmra.mrb[0].mxu0 %v3487
    %v9676 = vpop.f32.mrb[0].mxu0
    %v9677 = vadd.f32 %v9484, %v9676
    %v9678 = vpop.f32.mrb[0].mxu0
    %v9679 = vadd.f32 %v9486, %v9678
    %v9680 = vpop.f32.mrb[0].mxu0
    %v9681 = vadd.f32 %v9488, %v9680
    %v9682 = vpop.f32.mrb[0].mxu0
    %v9683 = vadd.f32 %v9490, %v9682
    %9684 = vmatprep.mubr.bf16.mxu0 %v3496
    %9685 = vmatmul.mubr.bf16.gmra.mrb[0].mxu0 %v3495
    %v9686 = vpop.f32.mrb[0].mxu0
    %v9687 = vadd.f32 %v9494, %v9686
    %v9688 = vpop.f32.mrb[0].mxu0
    %v9689 = vadd.f32 %v9496, %v9688
    %v9690 = vpop.f32.mrb[0].mxu0
    %v9691 = vadd.f32 %v9498, %v9690
    %v9692 = vpop.f32.mrb[0].mxu0
    %v9693 = vadd.f32 %v9500, %v9692
    %9694 = vmatprep.mubr.bf16.mxu0 %v3504
    %9695 = vmatmul.mubr.bf16.gmra.mrb[0].mxu0 %v3503
    %v9696 = vpop.f32.mrb[0].mxu0
    %v9697 = vadd.f32 %v9504, %v9696
    %v9698 = vpop.f32.mrb[0].mxu0
    %v9699 = vadd.f32 %v9506, %v9698
    %v9700 = vpop.f32.mrb[0].mxu0
    %v9701 = vadd.f32 %v9508, %v9700
    %v9702 = vpop.f32.mrb[0].mxu0
    %v9703 = vadd.f32 %v9510, %v9702
    %9704 = vmatprep.mubr.bf16.mxu0 %v3512
    %9705 = vmatmul.mubr.bf16.gmra.mrb[0].mxu0 %v3511
    %v9706 = vpop.f32.mrb[0].mxu0
    %v9707 = vadd.f32 %v9514, %v9706
    %v9708 = vpop.f32.mrb[0].mxu0
    %v9709 = vadd.f32 %v9516, %v9708
    %v9710 = vpop.f32.mrb[0].mxu0
    %v9711 = vadd.f32 %v9518, %v9710
    %v9712 = vpop.f32.mrb[0].mxu0
    %v9713 = vadd.f32 %v9520, %v9712
    %9714 = vdwg.mxu0
    %v9715 = vmax.f32 %v7241, 0.0
    %v9716 = vmax.f32 %v7243, 0.0
    %v9717 = vmax.f32 %v8013, 0.0
    %v9718 = vmax.f32 %v8015, 0.0
    %v9719 = vmax.f32 %v8785, 0.0
    %v9720 = vmax.f32 %v8787, 0.0
    %v9721 = vmax.f32 %v9557, 0.0
    %v9722 = vmax.f32 %v9559, 0.0
    %v9723 = vmax.f32 %v7245, 0.0
    %v9724 = vmax.f32 %v7247, 0.0
    %v9725 = vmax.f32 %v8017, 0.0
    %v9726 = vmax.f32 %v8019, 0.0
    %v9727 = vmax.f32 %v8789, 0.0
    %v9728 = vmax.f32 %v8791, 0.0
    %v9729 = vmax.f32 %v9561, 0.0
    %v9730 = vmax.f32 %v9563, 0.0
    %v9731 = vmax.f32 %v7251, 0.0
    %v9732 = vmax.f32 %v7253, 0.0
    %v9733 = vmax.f32 %v8023, 0.0
    %v9734 = vmax.f32 %v8025, 0.0
    %v9735 = vmax.f32 %v8795, 0.0
    %v9736 = vmax.f32 %v8797, 0.0
    %v9737 = vmax.f32 %v9567, 0.0
    %v9738 = vmax.f32 %v9569, 0.0
    %v9739 = vmax.f32 %v7255, 0.0
    %v9740 = vmax.f32 %v7257, 0.0
    %v9741 = vmax.f32 %v8027, 0.0
    %v9742 = vmax.f32 %v8029, 0.0
    %v9743 = vmax.f32 %v8799, 0.0
    %v9744 = vmax.f32 %v8801, 0.0
    %v9745 = vmax.f32 %v9571, 0.0
    %v9746 = vmax.f32 %v9573, 0.0
    %v9747 = vmax.f32 %v7261, 0.0
    %v9748 = vmax.f32 %v7263, 0.0
    %v9749 = vmax.f32 %v8033, 0.0
    %v9750 = vmax.f32 %v8035, 0.0
    %v9751 = vmax.f32 %v8805, 0.0
    %v9752 = vmax.f32 %v8807, 0.0
    %v9753 = vmax.f32 %v9577, 0.0
    %v9754 = vmax.f32 %v9579, 0.0
    %v9755 = vmax.f32 %v7265, 0.0
    %v9756 = vmax.f32 %v7267, 0.0
    %v9757 = vmax.f32 %v8037, 0.0
    %v9758 = vmax.f32 %v8039, 0.0
    %v9759 = vmax.f32 %v8809, 0.0
    %v9760 = vmax.f32 %v8811, 0.0
    %v9761 = vmax.f32 %v9581, 0.0
    %v9762 = vmax.f32 %v9583, 0.0
    %v9763 = vmax.f32 %v7271, 0.0
    %v9764 = vmax.f32 %v7273, 0.0
    %v9765 = vmax.f32 %v8043, 0.0
    %v9766 = vmax.f32 %v8045, 0.0
    %v9767 = vmax.f32 %v8815, 0.0
    %v9768 = vmax.f32 %v8817, 0.0
    %v9769 = vmax.f32 %v9587, 0.0
    %v9770 = vmax.f32 %v9589, 0.0
    %v9771 = vmax.f32 %v7275, 0.0
    %v9772 = vmax.f32 %v7277, 0.0
    %v9773 = vmax.f32 %v8047, 0.0
    %v9774 = vmax.f32 %v8049, 0.0
    %v9775 = vmax.f32 %v8819, 0.0
    %v9776 = vmax.f32 %v8821, 0.0
    %v9777 = vmax.f32 %v9591, 0.0
    %v9778 = vmax.f32 %v9593, 0.0
    %v9779 = vmax.f32 %v7281, 0.0
    %v9780 = vmax.f32 %v7283, 0.0
    %v9781 = vmax.f32 %v8053, 0.0
    %v9782 = vmax.f32 %v8055, 0.0
    %v9783 = vmax.f32 %v8825, 0.0
    %v9784 = vmax.f32 %v8827, 0.0
    %v9785 = vmax.f32 %v9597, 0.0
    %v9786 = vmax.f32 %v9599, 0.0
    %v9787 = vmax.f32 %v7285, 0.0
    %v9788 = vmax.f32 %v7287, 0.0
    %v9789 = vmax.f32 %v8057, 0.0
    %v9790 = vmax.f32 %v8059, 0.0
    %v9791 = vmax.f32 %v8829, 0.0
    %v9792 = vmax.f32 %v8831, 0.0
    %v9793 = vmax.f32 %v9601, 0.0
    %v9794 = vmax.f32 %v9603, 0.0
    %v9795 = vmax.f32 %v7291, 0.0
    %v9796 = vmax.f32 %v7293, 0.0
    %v9797 = vmax.f32 %v8063, 0.0
    %v9798 = vmax.f32 %v8065, 0.0
    %v9799 = vmax.f32 %v8835, 0.0
    %v9800 = vmax.f32 %v8837, 0.0
    %v9801 = vmax.f32 %v9607, 0.0
    %v9802 = vmax.f32 %v9609, 0.0
    %v9803 = vmax.f32 %v7295, 0.0
    %v9804 = vmax.f32 %v7297, 0.0
    %v9805 = vmax.f32 %v8067, 0.0
    %v9806 = vmax.f32 %v8069, 0.0
    %v9807 = vmax.f32 %v8839, 0.0
    %v9808 = vmax.f32 %v8841, 0.0
    %v9809 = vmax.f32 %v9611, 0.0
    %v9810 = vmax.f32 %v9613, 0.0
    %v9811 = vmax.f32 %v7301, 0.0
    %v9812 = vmax.f32 %v7303, 0.0
    %v9813 = vmax.f32 %v8073, 0.0
    %v9814 = vmax.f32 %v8075, 0.0
    %v9815 = vmax.f32 %v8845, 0.0
    %v9816 = vmax.f32 %v8847, 0.0
    %v9817 = vmax.f32 %v9617, 0.0
    %v9818 = vmax.f32 %v9619, 0.0
    %v9819 = vmax.f32 %v7305, 0.0
    %v9820 = vmax.f32 %v7307, 0.0
    %v9821 = vmax.f32 %v8077, 0.0
    %v9822 = vmax.f32 %v8079, 0.0
    %v9823 = vmax.f32 %v8849, 0.0
    %v9824 = vmax.f32 %v8851, 0.0
    %v9825 = vmax.f32 %v9621, 0.0
    %v9826 = vmax.f32 %v9623, 0.0
    %v9827 = vmax.f32 %v7311, 0.0
    %v9828 = vmax.f32 %v7313, 0.0
    %v9829 = vmax.f32 %v8083, 0.0
    %v9830 = vmax.f32 %v8085, 0.0
    %v9831 = vmax.f32 %v8855, 0.0
    %v9832 = vmax.f32 %v8857, 0.0
    %v9833 = vmax.f32 %v9627, 0.0
    %v9834 = vmax.f32 %v9629, 0.0
    %v9835 = vmax.f32 %v7315, 0.0
    %v9836 = vmax.f32 %v7317, 0.0
    %v9837 = vmax.f32 %v8087, 0.0
    %v9838 = vmax.f32 %v8089, 0.0
    %v9839 = vmax.f32 %v8859, 0.0
    %v9840 = vmax.f32 %v8861, 0.0
    %v9841 = vmax.f32 %v9631, 0.0
    %v9842 = vmax.f32 %v9633, 0.0
    %v9843 = vmax.f32 %v7321, 0.0
    %v9844 = vmax.f32 %v7323, 0.0
    %v9845 = vmax.f32 %v8093, 0.0
    %v9846 = vmax.f32 %v8095, 0.0
    %v9847 = vmax.f32 %v8865, 0.0
    %v9848 = vmax.f32 %v8867, 0.0
    %v9849 = vmax.f32 %v9637, 0.0
    %v9850 = vmax.f32 %v9639, 0.0
    %v9851 = vmax.f32 %v7325, 0.0
    %v9852 = vmax.f32 %v7327, 0.0
    %v9853 = vmax.f32 %v8097, 0.0
    %v9854 = vmax.f32 %v8099, 0.0
    %v9855 = vmax.f32 %v8869, 0.0
    %v9856 = vmax.f32 %v8871, 0.0
    %v9857 = vmax.f32 %v9641, 0.0
    %v9858 = vmax.f32 %v9643, 0.0
    %v9859 = vmax.f32 %v7331, 0.0
    %v9860 = vmax.f32 %v7333, 0.0
    %v9861 = vmax.f32 %v8103, 0.0
    %v9862 = vmax.f32 %v8105, 0.0
    %v9863 = vmax.f32 %v8875, 0.0
    %v9864 = vmax.f32 %v8877, 0.0
    %v9865 = vmax.f32 %v9647, 0.0
    %v9866 = vmax.f32 %v9649, 0.0
    %v9867 = vmax.f32 %v7335, 0.0
    %v9868 = vmax.f32 %v7337, 0.0
    %v9869 = vmax.f32 %v8107, 0.0
    %v9870 = vmax.f32 %v8109, 0.0
    %v9871 = vmax.f32 %v8879, 0.0
    %v9872 = vmax.f32 %v8881, 0.0
    %v9873 = vmax.f32 %v9651, 0.0
    %v9874 = vmax.f32 %v9653, 0.0
    %v9875 = vmax.f32 %v7341, 0.0
    %v9876 = vmax.f32 %v7343, 0.0
    %v9877 = vmax.f32 %v8113, 0.0
    %v9878 = vmax.f32 %v8115, 0.0
    %v9879 = vmax.f32 %v8885, 0.0
    %v9880 = vmax.f32 %v8887, 0.0
    %v9881 = vmax.f32 %v9657, 0.0
    %v9882 = vmax.f32 %v9659, 0.0
    %v9883 = vmax.f32 %v7345, 0.0
    %v9884 = vmax.f32 %v7347, 0.0
    %v9885 = vmax.f32 %v8117, 0.0
    %v9886 = vmax.f32 %v8119, 0.0
    %v9887 = vmax.f32 %v8889, 0.0
    %v9888 = vmax.f32 %v8891, 0.0
    %v9889 = vmax.f32 %v9661, 0.0
    %v9890 = vmax.f32 %v9663, 0.0
    %v9891 = vmax.f32 %v7351, 0.0
    %v9892 = vmax.f32 %v7353, 0.0
    %v9893 = vmax.f32 %v8123, 0.0
    %v9894 = vmax.f32 %v8125, 0.0
    %v9895 = vmax.f32 %v8895, 0.0
    %v9896 = vmax.f32 %v8897, 0.0
    %v9897 = vmax.f32 %v9667, 0.0
    %v9898 = vmax.f32 %v9669, 0.0
    %v9899 = vmax.f32 %v7355, 0.0
    %v9900 = vmax.f32 %v7357, 0.0
    %v9901 = vmax.f32 %v8127, 0.0
    %v9902 = vmax.f32 %v8129, 0.0
    %v9903 = vmax.f32 %v8899, 0.0
    %v9904 = vmax.f32 %v8901, 0.0
    %v9905 = vmax.f32 %v9671, 0.0
    %v9906 = vmax.f32 %v9673, 0.0
    %v9907 = vmax.f32 %v7361, 0.0
    %v9908 = vmax.f32 %v7363, 0.0
    %v9909 = vmax.f32 %v8133, 0.0
    %v9910 = vmax.f32 %v8135, 0.0
    %v9911 = vmax.f32 %v8905, 0.0
    %v9912 = vmax.f32 %v8907, 0.0
    %v9913 = vmax.f32 %v9677, 0.0
    %v9914 = vmax.f32 %v9679, 0.0
    %v9915 = vmax.f32 %v7365, 0.0
    %v9916 = vmax.f32 %v7367, 0.0
    %v9917 = vmax.f32 %v8137, 0.0
    %v9918 = vmax.f32 %v8139, 0.0
    %v9919 = vmax.f32 %v8909, 0.0
    %v9920 = vmax.f32 %v8911, 0.0
    %v9921 = vmax.f32 %v9681, 0.0
    %v9922 = vmax.f32 %v9683, 0.0
    %v9923 = vmax.f32 %v7371, 0.0
    %v9924 = vmax.f32 %v7373, 0.0
    %v9925 = vmax.f32 %v8143, 0.0
    %v9926 = vmax.f32 %v8145, 0.0
    %v9927 = vmax.f32 %v8915, 0.0
    %v9928 = vmax.f32 %v8917, 0.0
    %v9929 = vmax.f32 %v9687, 0.0
    %v9930 = vmax.f32 %v9689, 0.0
    %v9931 = vmax.f32 %v7375, 0.0
    %v9932 = vmax.f32 %v7377, 0.0
    %v9933 = vmax.f32 %v8147, 0.0
    %v9934 = vmax.f32 %v8149, 0.0
    %v9935 = vmax.f32 %v8919, 0.0
    %v9936 = vmax.f32 %v8921, 0.0
    %v9937 = vmax.f32 %v9691, 0.0
    %v9938 = vmax.f32 %v9693, 0.0
    %v9939 = vmax.f32 %v7381, 0.0
    %v9940 = vmax.f32 %v7383, 0.0
    %v9941 = vmax.f32 %v8153, 0.0
    %v9942 = vmax.f32 %v8155, 0.0
    %v9943 = vmax.f32 %v8925, 0.0
    %v9944 = vmax.f32 %v8927, 0.0
    %v9945 = vmax.f32 %v9697, 0.0
    %v9946 = vmax.f32 %v9699, 0.0
    %v9947 = vmax.f32 %v7385, 0.0
    %v9948 = vmax.f32 %v7387, 0.0
    %v9949 = vmax.f32 %v8157, 0.0
    %v9950 = vmax.f32 %v8159, 0.0
    %v9951 = vmax.f32 %v8929, 0.0
    %v9952 = vmax.f32 %v8931, 0.0
    %v9953 = vmax.f32 %v9701, 0.0
    %v9954 = vmax.f32 %v9703, 0.0
    %v9955 = vmax.f32 %v7391, 0.0
    %v9956 = vmax.f32 %v7393, 0.0
    %v9957 = vmax.f32 %v8163, 0.0
    %v9958 = vmax.f32 %v8165, 0.0
    %v9959 = vmax.f32 %v8935, 0.0
    %v9960 = vmax.f32 %v8937, 0.0
    %v9961 = vmax.f32 %v9707, 0.0
    %v9962 = vmax.f32 %v9709, 0.0
    %v9963 = vmax.f32 %v7395, 0.0
    %v9964 = vmax.f32 %v7397, 0.0
    %v9965 = vmax.f32 %v8167, 0.0
    %v9966 = vmax.f32 %v8169, 0.0
    %v9967 = vmax.f32 %v8939, 0.0
    %v9968 = vmax.f32 %v8941, 0.0
    %v9969 = vmax.f32 %v9711, 0.0
    %v9970 = vmax.f32 %v9713, 0.0
    %v9971 = vpack.c.bf16 %v9723, %v9715
    %v9972 = vpack.c.bf16 %v9724, %v9716
    %v9973 = vpack.c.bf16 %v9725, %v9717
    %v9974 = vpack.c.bf16 %v9726, %v9718
    %v9975 = vpack.c.bf16 %v9727, %v9719
    %v9976 = vpack.c.bf16 %v9728, %v9720
    %v9977 = vpack.c.bf16 %v9729, %v9721
    %v9978 = vpack.c.bf16 %v9730, %v9722
    %v9979 = vpack.c.bf16 %v9739, %v9731
    %v9980 = vpack.c.bf16 %v9740, %v9732
    %v9981 = vpack.c.bf16 %v9741, %v9733
    %v9982 = vpack.c.bf16 %v9742, %v9734
    %v9983 = vpack.c.bf16 %v9743, %v9735
    %v9984 = vpack.c.bf16 %v9744, %v9736
    %v9985 = vpack.c.bf16 %v9745, %v9737
    %v9986 = vpack.c.bf16 %v9746, %v9738
    %v9987 = vpack.c.bf16 %v9755, %v9747
    %v9988 = vpack.c.bf16 %v9756, %v9748
    %v9989 = vpack.c.bf16 %v9757, %v9749
    %v9990 = vpack.c.bf16 %v9758, %v9750
    %v9991 = vpack.c.bf16 %v9759, %v9751
    %v9992 = vpack.c.bf16 %v9760, %v9752
    %v9993 = vpack.c.bf16 %v9761, %v9753
    %v9994 = vpack.c.bf16 %v9762, %v9754
    %v9995 = vpack.c.bf16 %v9771, %v9763
    %v9996 = vpack.c.bf16 %v9772, %v9764
    %v9997 = vpack.c.bf16 %v9773, %v9765
    %v9998 = vpack.c.bf16 %v9774, %v9766
    %v9999 = vpack.c.bf16 %v9775, %v9767
    %v10000 = vpack.c.bf16 %v9776, %v9768
    %v10001 = vpack.c.bf16 %v9777, %v9769
    %v10002 = vpack.c.bf16 %v9778, %v9770
    %v10003 = vpack.c.bf16 %v9787, %v9779
    %v10004 = vpack.c.bf16 %v9788, %v9780
    %v10005 = vpack.c.bf16 %v9789, %v9781
    %v10006 = vpack.c.bf16 %v9790, %v9782
    %v10007 = vpack.c.bf16 %v9791, %v9783
    %v10008 = vpack.c.bf16 %v9792, %v9784
    %v10009 = vpack.c.bf16 %v9793, %v9785
    %v10010 = vpack.c.bf16 %v9794, %v9786
    %v10011 = vpack.c.bf16 %v9803, %v9795
    %v10012 = vpack.c.bf16 %v9804, %v9796
    %v10013 = vpack.c.bf16 %v9805, %v9797
    %v10014 = vpack.c.bf16 %v9806, %v9798
    %v10015 = vpack.c.bf16 %v9807, %v9799
    %v10016 = vpack.c.bf16 %v9808, %v9800
    %v10017 = vpack.c.bf16 %v9809, %v9801
    %v10018 = vpack.c.bf16 %v9810, %v9802
    %v10019 = vpack.c.bf16 %v9819, %v9811
    %v10020 = vpack.c.bf16 %v9820, %v9812
    %v10021 = vpack.c.bf16 %v9821, %v9813
    %v10022 = vpack.c.bf16 %v9822, %v9814
    %v10023 = vpack.c.bf16 %v9823, %v9815
    %v10024 = vpack.c.bf16 %v9824, %v9816
    %v10025 = vpack.c.bf16 %v9825, %v9817
    %v10026 = vpack.c.bf16 %v9826, %v9818
    %v10027 = vpack.c.bf16 %v9835, %v9827
    %v10028 = vpack.c.bf16 %v9836, %v9828
    %v10029 = vpack.c.bf16 %v9837, %v9829
    %v10030 = vpack.c.bf16 %v9838, %v9830
    %v10031 = vpack.c.bf16 %v9839, %v9831
    %v10032 = vpack.c.bf16 %v9840, %v9832
    %v10033 = vpack.c.bf16 %v9841, %v9833
    %v10034 = vpack.c.bf16 %v9842, %v9834
    %v10035 = vpack.c.bf16 %v9851, %v9843
    %v10036 = vpack.c.bf16 %v9852, %v9844
    %v10037 = vpack.c.bf16 %v9853, %v9845
    %v10038 = vpack.c.bf16 %v9854, %v9846
    %v10039 = vpack.c.bf16 %v9855, %v9847
    %v10040 = vpack.c.bf16 %v9856, %v9848
    %v10041 = vpack.c.bf16 %v9857, %v9849
    %v10042 = vpack.c.bf16 %v9858, %v9850
    %v10043 = vpack.c.bf16 %v9867, %v9859
    %v10044 = vpack.c.bf16 %v9868, %v9860
    %v10045 = vpack.c.bf16 %v9869, %v9861
    %v10046 = vpack.c.bf16 %v9870, %v9862
    %v10047 = vpack.c.bf16 %v9871, %v9863
    %v10048 = vpack.c.bf16 %v9872, %v9864
    %v10049 = vpack.c.bf16 %v9873, %v9865
    %v10050 = vpack.c.bf16 %v9874, %v9866
    %v10051 = vpack.c.bf16 %v9883, %v9875
    %v10052 = vpack.c.bf16 %v9884, %v9876
    %v10053 = vpack.c.bf16 %v9885, %v9877
    %v10054 = vpack.c.bf16 %v9886, %v9878
    %v10055 = vpack.c.bf16 %v9887, %v9879
    %v10056 = vpack.c.bf16 %v9888, %v9880
    %v10057 = vpack.c.bf16 %v9889, %v9881
    %v10058 = vpack.c.bf16 %v9890, %v9882
    %v10059 = vpack.c.bf16 %v9899, %v9891
    %v10060 = vpack.c.bf16 %v9900, %v9892
    %v10061 = vpack.c.bf16 %v9901, %v9893
    %v10062 = vpack.c.bf16 %v9902, %v9894
    %v10063 = vpack.c.bf16 %v9903, %v9895
    %v10064 = vpack.c.bf16 %v9904, %v9896
    %v10065 = vpack.c.bf16 %v9905, %v9897
    %v10066 = vpack.c.bf16 %v9906, %v9898
    %v10067 = vpack.c.bf16 %v9915, %v9907
    %v10068 = vpack.c.bf16 %v9916, %v9908
    %v10069 = vpack.c.bf16 %v9917, %v9909
    %v10070 = vpack.c.bf16 %v9918, %v9910
    %v10071 = vpack.c.bf16 %v9919, %v9911
    %v10072 = vpack.c.bf16 %v9920, %v9912
    %v10073 = vpack.c.bf16 %v9921, %v9913
    %v10074 = vpack.c.bf16 %v9922, %v9914
    %v10075 = vpack.c.bf16 %v9931, %v9923
    %v10076 = vpack.c.bf16 %v9932, %v9924
    %v10077 = vpack.c.bf16 %v9933, %v9925
    %v10078 = vpack.c.bf16 %v9934, %v9926
    %v10079 = vpack.c.bf16 %v9935, %v9927
    %v10080 = vpack.c.bf16 %v9936, %v9928
    %v10081 = vpack.c.bf16 %v9937, %v9929
    %v10082 = vpack.c.bf16 %v9938, %v9930
    %v10083 = vpack.c.bf16 %v9947, %v9939
    %v10084 = vpack.c.bf16 %v9948, %v9940
    %v10085 = vpack.c.bf16 %v9949, %v9941
    %v10086 = vpack.c.bf16 %v9950, %v9942
    %v10087 = vpack.c.bf16 %v9951, %v9943
    %v10088 = vpack.c.bf16 %v9952, %v9944
    %v10089 = vpack.c.bf16 %v9953, %v9945
    %v10090 = vpack.c.bf16 %v9954, %v9946
    %v10091 = vpack.c.bf16 %v9963, %v9955
    %v10092 = vpack.c.bf16 %v9964, %v9956
    %v10093 = vpack.c.bf16 %v9965, %v9957
    %v10094 = vpack.c.bf16 %v9966, %v9958
    %v10095 = vpack.c.bf16 %v9967, %v9959
    %v10096 = vpack.c.bf16 %v9968, %v9960
    %v10097 = vpack.c.bf16 %v9969, %v9961
    %v10098 = vpack.c.bf16 %v9970, %v9962
    %v10099 = vld [vmem:[#allocation9] sm:$0xf]
    %v10100 = vld [vmem:[#allocation9 + $0x4] sm:$0xf]
    %v10101 = vld [vmem:[#allocation9 + $0x8] sm:$0xf]
    %v10102 = vld [vmem:[#allocation9 + $0xc] sm:$0xf]
    %v10103 = vld [vmem:[#allocation9 + $0x10] sm:$0xf]
    %v10104 = vld [vmem:[#allocation9 + $0x14] sm:$0xf]
    %v10105 = vld [vmem:[#allocation9 + $0x18] sm:$0xf]
    %v10106 = vld [vmem:[#allocation9 + $0x1c] sm:$0xf]
    %v10107 = vld [vmem:[#allocation9 + $0x20] sm:$0xf]
    %v10108 = vld [vmem:[#allocation9 + $0x24] sm:$0xf]
    %v10109 = vld [vmem:[#allocation9 + $0x28] sm:$0xf]
    %v10110 = vld [vmem:[#allocation9 + $0x2c] sm:$0xf]
    %v10111 = vld [vmem:[#allocation9 + $0x30] sm:$0xf]
    %v10112 = vld [vmem:[#allocation9 + $0x34] sm:$0xf]
    %v10113 = vld [vmem:[#allocation9 + $0x38] sm:$0xf]
    %v10114 = vld [vmem:[#allocation9 + $0x3c] sm:$0xf]
    %v10115 = vld [vmem:[#allocation9 + $0x40] sm:$0xf]
    %v10116 = vld [vmem:[#allocation9 + $0x44] sm:$0xf]
    %v10117 = vld [vmem:[#allocation9 + $0x48] sm:$0xf]
    %v10118 = vld [vmem:[#allocation9 + $0x4c] sm:$0xf]
    %v10119 = vld [vmem:[#allocation9 + $0x50] sm:$0xf]
    %v10120 = vld [vmem:[#allocation9 + $0x54] sm:$0xf]
    %v10121 = vld [vmem:[#allocation9 + $0x58] sm:$0xf]
    %v10122 = vld [vmem:[#allocation9 + $0x5c] sm:$0xf]
    %v10123 = vld [vmem:[#allocation9 + $0x60] sm:$0xf]
    %v10124 = vld [vmem:[#allocation9 + $0x64] sm:$0xf]
    %v10125 = vld [vmem:[#allocation9 + $0x68] sm:$0xf]
    %v10126 = vld [vmem:[#allocation9 + $0x6c] sm:$0xf]
    %v10127 = vld [vmem:[#allocation9 + $0x70] sm:$0xf]
    %v10128 = vld [vmem:[#allocation9 + $0x74] sm:$0xf]
    %v10129 = vld [vmem:[#allocation9 + $0x78] sm:$0xf]
    %v10130 = vld [vmem:[#allocation9 + $0x7c] sm:$0xf]
    %v10131 = vld [vmem:[#allocation9 + $0x80] sm:$0xf]
    %v10132 = vld [vmem:[#allocation9 + $0x84] sm:$0xf]
    %v10133 = vld [vmem:[#allocation9 + $0x88] sm:$0xf]
    %v10134 = vld [vmem:[#allocation9 + $0x8c] sm:$0xf]
    %v10135 = vld [vmem:[#allocation9 + $0x90] sm:$0xf]
    %v10136 = vld [vmem:[#allocation9 + $0x94] sm:$0xf]
    %v10137 = vld [vmem:[#allocation9 + $0x98] sm:$0xf]
    %v10138 = vld [vmem:[#allocation9 + $0x9c] sm:$0xf]
    %v10139 = vld [vmem:[#allocation9 + $0xa0] sm:$0xf]
    %v10140 = vld [vmem:[#allocation9 + $0xa4] sm:$0xf]
    %v10141 = vld [vmem:[#allocation9 + $0xa8] sm:$0xf]
    %v10142 = vld [vmem:[#allocation9 + $0xac] sm:$0xf]
    %v10143 = vld [vmem:[#allocation9 + $0xb0] sm:$0xf]
    %v10144 = vld [vmem:[#allocation9 + $0xb4] sm:$0xf]
    %v10145 = vld [vmem:[#allocation9 + $0xb8] sm:$0xf]
    %v10146 = vld [vmem:[#allocation9 + $0xbc] sm:$0xf]
    %v10147 = vld [vmem:[#allocation9 + $0xc0] sm:$0xf]
    %v10148 = vld [vmem:[#allocation9 + $0xc4] sm:$0xf]
    %v10149 = vld [vmem:[#allocation9 + $0xc8] sm:$0xf]
    %v10150 = vld [vmem:[#allocation9 + $0xcc] sm:$0xf]
    %v10151 = vld [vmem:[#allocation9 + $0xd0] sm:$0xf]
    %v10152 = vld [vmem:[#allocation9 + $0xd4] sm:$0xf]
    %v10153 = vld [vmem:[#allocation9 + $0xd8] sm:$0xf]
    %v10154 = vld [vmem:[#allocation9 + $0xdc] sm:$0xf]
    %v10155 = vld [vmem:[#allocation9 + $0xe0] sm:$0xf]
    %v10156 = vld [vmem:[#allocation9 + $0xe4] sm:$0xf]
    %v10157 = vld [vmem:[#allocation9 + $0xe8] sm:$0xf]
    %v10158 = vld [vmem:[#allocation9 + $0xec] sm:$0xf]
    %v10159 = vld [vmem:[#allocation9 + $0xf0] sm:$0xf]
    %v10160 = vld [vmem:[#allocation9 + $0xf4] sm:$0xf]
    %v10161 = vld [vmem:[#allocation9 + $0xf8] sm:$0xf]
    %v10162 = vld [vmem:[#allocation9 + $0xfc] sm:$0xf]
    %v10163 = vld [vmem:[#allocation9 + $0x100] sm:$0xf]
    %v10164 = vld [vmem:[#allocation9 + $0x104] sm:$0xf]
    %v10165 = vld [vmem:[#allocation9 + $0x108] sm:$0xf]
    %v10166 = vld [vmem:[#allocation9 + $0x10c] sm:$0xf]
    %v10167 = vld [vmem:[#allocation9 + $0x110] sm:$0xf]
    %v10168 = vld [vmem:[#allocation9 + $0x114] sm:$0xf]
    %v10169 = vld [vmem:[#allocation9 + $0x118] sm:$0xf]
    %v10170 = vld [vmem:[#allocation9 + $0x11c] sm:$0xf]
    %v10171 = vld [vmem:[#allocation9 + $0x120] sm:$0xf]
    %v10172 = vld [vmem:[#allocation9 + $0x124] sm:$0xf]
    %v10173 = vld [vmem:[#allocation9 + $0x128] sm:$0xf]
    %v10174 = vld [vmem:[#allocation9 + $0x12c] sm:$0xf]
    %v10175 = vld [vmem:[#allocation9 + $0x130] sm:$0xf]
    %v10176 = vld [vmem:[#allocation9 + $0x134] sm:$0xf]
    %v10177 = vld [vmem:[#allocation9 + $0x138] sm:$0xf]
    %v10178 = vld [vmem:[#allocation9 + $0x13c] sm:$0xf]
    %v10179 = vld [vmem:[#allocation9 + $0x140] sm:$0xf]
    %v10180 = vld [vmem:[#allocation9 + $0x144] sm:$0xf]
    %v10181 = vld [vmem:[#allocation9 + $0x148] sm:$0xf]
    %v10182 = vld [vmem:[#allocation9 + $0x14c] sm:$0xf]
    %v10183 = vld [vmem:[#allocation9 + $0x150] sm:$0xf]
    %v10184 = vld [vmem:[#allocation9 + $0x154] sm:$0xf]
    %v10185 = vld [vmem:[#allocation9 + $0x158] sm:$0xf]
    %v10186 = vld [vmem:[#allocation9 + $0x15c] sm:$0xf]
    %v10187 = vld [vmem:[#allocation9 + $0x160] sm:$0xf]
    %v10188 = vld [vmem:[#allocation9 + $0x164] sm:$0xf]
    %v10189 = vld [vmem:[#allocation9 + $0x168] sm:$0xf]
    %v10190 = vld [vmem:[#allocation9 + $0x16c] sm:$0xf]
    %v10191 = vld [vmem:[#allocation9 + $0x170] sm:$0xf]
    %v10192 = vld [vmem:[#allocation9 + $0x174] sm:$0xf]
    %v10193 = vld [vmem:[#allocation9 + $0x178] sm:$0xf]
    %v10194 = vld [vmem:[#allocation9 + $0x17c] sm:$0xf]
    %v10195 = vld [vmem:[#allocation9 + $0x180] sm:$0xf]
    %v10196 = vld [vmem:[#allocation9 + $0x184] sm:$0xf]
    %v10197 = vld [vmem:[#allocation9 + $0x188] sm:$0xf]
    %v10198 = vld [vmem:[#allocation9 + $0x18c] sm:$0xf]
    %v10199 = vld [vmem:[#allocation9 + $0x190] sm:$0xf]
    %v10200 = vld [vmem:[#allocation9 + $0x194] sm:$0xf]
    %v10201 = vld [vmem:[#allocation9 + $0x198] sm:$0xf]
    %v10202 = vld [vmem:[#allocation9 + $0x19c] sm:$0xf]
    %v10203 = vld [vmem:[#allocation9 + $0x1a0] sm:$0xf]
    %v10204 = vld [vmem:[#allocation9 + $0x1a4] sm:$0xf]
    %v10205 = vld [vmem:[#allocation9 + $0x1a8] sm:$0xf]
    %v10206 = vld [vmem:[#allocation9 + $0x1ac] sm:$0xf]
    %v10207 = vld [vmem:[#allocation9 + $0x1b0] sm:$0xf]
    %v10208 = vld [vmem:[#allocation9 + $0x1b4] sm:$0xf]
    %v10209 = vld [vmem:[#allocation9 + $0x1b8] sm:$0xf]
    %v10210 = vld [vmem:[#allocation9 + $0x1bc] sm:$0xf]
    %v10211 = vld [vmem:[#allocation9 + $0x1c0] sm:$0xf]
    %v10212 = vld [vmem:[#allocation9 + $0x1c4] sm:$0xf]
    %v10213 = vld [vmem:[#allocation9 + $0x1c8] sm:$0xf]
    %v10214 = vld [vmem:[#allocation9 + $0x1cc] sm:$0xf]
    %v10215 = vld [vmem:[#allocation9 + $0x1d0] sm:$0xf]
    %v10216 = vld [vmem:[#allocation9 + $0x1d4] sm:$0xf]
    %v10217 = vld [vmem:[#allocation9 + $0x1d8] sm:$0xf]
    %v10218 = vld [vmem:[#allocation9 + $0x1dc] sm:$0xf]
    %v10219 = vld [vmem:[#allocation9 + $0x1e0] sm:$0xf]
    %v10220 = vld [vmem:[#allocation9 + $0x1e4] sm:$0xf]
    %v10221 = vld [vmem:[#allocation9 + $0x1e8] sm:$0xf]
    %v10222 = vld [vmem:[#allocation9 + $0x1ec] sm:$0xf]
    %v10223 = vld [vmem:[#allocation9 + $0x1f0] sm:$0xf]
    %v10224 = vld [vmem:[#allocation9 + $0x1f4] sm:$0xf]
    %v10225 = vld [vmem:[#allocation9 + $0x1f8] sm:$0xf]
    %v10226 = vld [vmem:[#allocation9 + $0x1fc] sm:$0xf]
    %v10227 = vld [vmem:[#allocation10] sm:$0x1]
    %v10229 = vlaneseq
    %v10230 = vshrl.u32 %v10229, 7
    %v10231 = vsub.s32 0, %v10230
    %v10232 = vrot.slane %v10227, %v10231
    %v10362 = vunpack.c.l.b16 %v10099
    %v10363 = vunpack.c.l.b16 %v10100
    %v10364 = vunpack.c.l.b16 %v10101
    %v10365 = vunpack.c.l.b16 %v10102
    %v10366 = vunpack.c.l.b16 %v10103
    %v10367 = vunpack.c.l.b16 %v10104
    %v10368 = vunpack.c.l.b16 %v10105
    %v10369 = vunpack.c.l.b16 %v10106
    %v10370 = vunpack.c.l.b16 %v10107
    %v10371 = vunpack.c.l.b16 %v10108
    %v10372 = vunpack.c.l.b16 %v10109
    %v10373 = vunpack.c.l.b16 %v10110
    %v10374 = vunpack.c.l.b16 %v10111
    %v10375 = vunpack.c.l.b16 %v10112
    %v10376 = vunpack.c.l.b16 %v10113
    %v10377 = vunpack.c.l.b16 %v10114
    %v10378 = vunpack.c.l.b16 %v10115
    %v10379 = vunpack.c.l.b16 %v10116
    %v10380 = vunpack.c.l.b16 %v10117
    %v10381 = vunpack.c.l.b16 %v10118
    %v10382 = vunpack.c.l.b16 %v10119
    %v10383 = vunpack.c.l.b16 %v10120
    %v10384 = vunpack.c.l.b16 %v10121
    %v10385 = vunpack.c.l.b16 %v10122
    %v10386 = vunpack.c.l.b16 %v10123
    %v10387 = vunpack.c.l.b16 %v10124
    %v10388 = vunpack.c.l.b16 %v10125
    %v10389 = vunpack.c.l.b16 %v10126
    %v10390 = vunpack.c.l.b16 %v10127
    %v10391 = vunpack.c.l.b16 %v10128
    %v10392 = vunpack.c.l.b16 %v10129
    %v10393 = vunpack.c.l.b16 %v10130
    %v10394 = vunpack.c.l.b16 %v10131
    %v10395 = vunpack.c.l.b16 %v10132
    %v10396 = vunpack.c.l.b16 %v10133
    %v10397 = vunpack.c.l.b16 %v10134
    %v10398 = vunpack.c.l.b16 %v10135
    %v10399 = vunpack.c.l.b16 %v10136
    %v10400 = vunpack.c.l.b16 %v10137
    %v10401 = vunpack.c.l.b16 %v10138
    %v10402 = vunpack.c.l.b16 %v10139
    %v10403 = vunpack.c.l.b16 %v10140
    %v10404 = vunpack.c.l.b16 %v10141
    %v10405 = vunpack.c.l.b16 %v10142
    %v10406 = vunpack.c.l.b16 %v10143
    %v10407 = vunpack.c.l.b16 %v10144
    %v10408 = vunpack.c.l.b16 %v10145
    %v10409 = vunpack.c.l.b16 %v10146
    %v10410 = vunpack.c.l.b16 %v10147
    %v10411 = vunpack.c.l.b16 %v10148
    %v10412 = vunpack.c.l.b16 %v10149
    %v10413 = vunpack.c.l.b16 %v10150
    %v10414 = vunpack.c.l.b16 %v10151
    %v10415 = vunpack.c.l.b16 %v10152
    %v10416 = vunpack.c.l.b16 %v10153
    %v10417 = vunpack.c.l.b16 %v10154
    %v10418 = vunpack.c.l.b16 %v10155
    %v10419 = vunpack.c.l.b16 %v10156
    %v10420 = vunpack.c.l.b16 %v10157
    %v10421 = vunpack.c.l.b16 %v10158
    %v10422 = vunpack.c.l.b16 %v10159
    %v10423 = vunpack.c.l.b16 %v10160
    %v10424 = vunpack.c.l.b16 %v10161
    %v10425 = vunpack.c.l.b16 %v10162
    %v10426 = vunpack.c.l.b16 %v10163
    %v10427 = vunpack.c.l.b16 %v10164
    %v10428 = vunpack.c.l.b16 %v10165
    %v10429 = vunpack.c.l.b16 %v10166
    %v10430 = vunpack.c.l.b16 %v10167
    %v10431 = vunpack.c.l.b16 %v10168
    %v10432 = vunpack.c.l.b16 %v10169
    %v10433 = vunpack.c.l.b16 %v10170
    %v10434 = vunpack.c.l.b16 %v10171
    %v10435 = vunpack.c.l.b16 %v10172
    %v10436 = vunpack.c.l.b16 %v10173
    %v10437 = vunpack.c.l.b16 %v10174
    %v10438 = vunpack.c.l.b16 %v10175
    %v10439 = vunpack.c.l.b16 %v10176
    %v10440 = vunpack.c.l.b16 %v10177
    %v10441 = vunpack.c.l.b16 %v10178
    %v10442 = vunpack.c.l.b16 %v10179
    %v10443 = vunpack.c.l.b16 %v10180
    %v10444 = vunpack.c.l.b16 %v10181
    %v10445 = vunpack.c.l.b16 %v10182
    %v10446 = vunpack.c.l.b16 %v10183
    %v10447 = vunpack.c.l.b16 %v10184
    %v10448 = vunpack.c.l.b16 %v10185
    %v10449 = vunpack.c.l.b16 %v10186
    %v10450 = vunpack.c.l.b16 %v10187
    %v10451 = vunpack.c.l.b16 %v10188
    %v10452 = vunpack.c.l.b16 %v10189
    %v10453 = vunpack.c.l.b16 %v10190
    %v10454 = vunpack.c.l.b16 %v10191
    %v10455 = vunpack.c.l.b16 %v10192
    %v10456 = vunpack.c.l.b16 %v10193
    %v10457 = vunpack.c.l.b16 %v10194
    %v10458 = vunpack.c.l.b16 %v10195
    %v10459 = vunpack.c.l.b16 %v10196
    %v10460 = vunpack.c.l.b16 %v10197
    %v10461 = vunpack.c.l.b16 %v10198
    %v10462 = vunpack.c.l.b16 %v10199
    %v10463 = vunpack.c.l.b16 %v10200
    %v10464 = vunpack.c.l.b16 %v10201
    %v10465 = vunpack.c.l.b16 %v10202
    %v10466 = vunpack.c.l.b16 %v10203
    %v10467 = vunpack.c.l.b16 %v10204
    %v10468 = vunpack.c.l.b16 %v10205
    %v10469 = vunpack.c.l.b16 %v10206
    %v10470 = vunpack.c.l.b16 %v10207
    %v10471 = vunpack.c.l.b16 %v10208
    %v10472 = vunpack.c.l.b16 %v10209
    %v10473 = vunpack.c.l.b16 %v10210
    %v10474 = vunpack.c.l.b16 %v10211
    %v10475 = vunpack.c.l.b16 %v10212
    %v10476 = vunpack.c.l.b16 %v10213
    %v10477 = vunpack.c.l.b16 %v10214
    %v10478 = vunpack.c.l.b16 %v10215
    %v10479 = vunpack.c.l.b16 %v10216
    %v10480 = vunpack.c.l.b16 %v10217
    %v10481 = vunpack.c.l.b16 %v10218
    %v10482 = vunpack.c.l.b16 %v10219
    %v10483 = vunpack.c.l.b16 %v10220
    %v10484 = vunpack.c.l.b16 %v10221
    %v10485 = vunpack.c.l.b16 %v10222
    %v10486 = vunpack.c.l.b16 %v10223
    %v10487 = vunpack.c.l.b16 %v10224
    %v10488 = vunpack.c.l.b16 %v10225
    %v10489 = vunpack.c.l.b16 %v10226
    %v10490 = vpack.c.b16 %v10363, %v10362
    %v10491 = vpack.c.b16 %v10365, %v10364
    %v10492 = vpack.c.b16 %v10367, %v10366
    %v10493 = vpack.c.b16 %v10369, %v10368
    %v10494 = vpack.c.b16 %v10371, %v10370
    %v10495 = vpack.c.b16 %v10373, %v10372
    %v10496 = vpack.c.b16 %v10375, %v10374
    %v10497 = vpack.c.b16 %v10377, %v10376
    %v10498 = vpack.c.b16 %v10379, %v10378
    %v10499 = vpack.c.b16 %v10381, %v10380
    %v10500 = vpack.c.b16 %v10383, %v10382
    %v10501 = vpack.c.b16 %v10385, %v10384
    %v10502 = vpack.c.b16 %v10387, %v10386
    %v10503 = vpack.c.b16 %v10389, %v10388
    %v10504 = vpack.c.b16 %v10391, %v10390
    %v10505 = vpack.c.b16 %v10393, %v10392
    %v10506 = vpack.c.b16 %v10395, %v10394
    %v10507 = vpack.c.b16 %v10397, %v10396
    %v10508 = vpack.c.b16 %v10399, %v10398
    %v10509 = vpack.c.b16 %v10401, %v10400
    %v10510 = vpack.c.b16 %v10403, %v10402
    %v10511 = vpack.c.b16 %v10405, %v10404
    %v10512 = vpack.c.b16 %v10407, %v10406
    %v10513 = vpack.c.b16 %v10409, %v10408
    %v10514 = vpack.c.b16 %v10411, %v10410
    %v10515 = vpack.c.b16 %v10413, %v10412
    %v10516 = vpack.c.b16 %v10415, %v10414
    %v10517 = vpack.c.b16 %v10417, %v10416
    %v10518 = vpack.c.b16 %v10419, %v10418
    %v10519 = vpack.c.b16 %v10421, %v10420
    %v10520 = vpack.c.b16 %v10423, %v10422
    %v10521 = vpack.c.b16 %v10425, %v10424
    %v10522 = vpack.c.b16 %v10427, %v10426
    %v10523 = vpack.c.b16 %v10429, %v10428
    %v10524 = vpack.c.b16 %v10431, %v10430
    %v10525 = vpack.c.b16 %v10433, %v10432
    %v10526 = vpack.c.b16 %v10435, %v10434
    %v10527 = vpack.c.b16 %v10437, %v10436
    %v10528 = vpack.c.b16 %v10439, %v10438
    %v10529 = vpack.c.b16 %v10441, %v10440
    %v10530 = vpack.c.b16 %v10443, %v10442
    %v10531 = vpack.c.b16 %v10445, %v10444
    %v10532 = vpack.c.b16 %v10447, %v10446
    %v10533 = vpack.c.b16 %v10449, %v10448
    %v10534 = vpack.c.b16 %v10451, %v10450
    %v10535 = vpack.c.b16 %v10453, %v10452
    %v10536 = vpack.c.b16 %v10455, %v10454
    %v10537 = vpack.c.b16 %v10457, %v10456
    %v10538 = vpack.c.b16 %v10459, %v10458
    %v10539 = vpack.c.b16 %v10461, %v10460
    %v10540 = vpack.c.b16 %v10463, %v10462
    %v10541 = vpack.c.b16 %v10465, %v10464
    %v10542 = vpack.c.b16 %v10467, %v10466
    %v10543 = vpack.c.b16 %v10469, %v10468
    %v10544 = vpack.c.b16 %v10471, %v10470
    %v10545 = vpack.c.b16 %v10473, %v10472
    %v10546 = vpack.c.b16 %v10475, %v10474
    %v10547 = vpack.c.b16 %v10477, %v10476
    %v10548 = vpack.c.b16 %v10479, %v10478
    %v10549 = vpack.c.b16 %v10481, %v10480
    %v10550 = vpack.c.b16 %v10483, %v10482
    %v10551 = vpack.c.b16 %v10485, %v10484
    %v10552 = vpack.c.b16 %v10487, %v10486
    %v10553 = vpack.c.b16 %v10489, %v10488
    %10618 = vmatprep.subr.bf16.mxu0 0
    %10619 = vmatpush1.bf16.msra.mxu0 %v10490
    %10620 = vmatprep.subr.bf16.mxu0 0
    %10621 = vmatpush1.bf16.msra.mxu0 %v10491
    %10622 = vmatprep.subr.bf16.mxu0 0
    %10623 = vmatpush1.bf16.msra.mxu0 %v10492
    %10624 = vmatprep.subr.bf16.mxu0 0
    %10625 = vmatpush1.bf16.msra.mxu0 %v10493
    %10626 = vmatprep.subr.bf16.mxu0 0
    %10627 = vmatpush1.bf16.msra.mxu0 %v10494
    %10628 = vmatprep.subr.bf16.mxu0 0
    %10629 = vmatpush1.bf16.msra.mxu0 %v10495
    %10630 = vmatprep.subr.bf16.mxu0 0
    %10631 = vmatpush1.bf16.msra.mxu0 %v10496
    %10632 = vmatprep.subr.bf16.mxu0 0
    %10633 = vmatpush1.bf16.msra.mxu0 %v10497
    %10634 = vmatprep.subr.bf16.mxu0 0
    %10635 = vmatpush1.bf16.msra.mxu0 %v10498
    %10636 = vmatprep.subr.bf16.mxu0 0
    %10637 = vmatpush1.bf16.msra.mxu0 %v10499
    %10638 = vmatprep.subr.bf16.mxu0 0
    %10639 = vmatpush1.bf16.msra.mxu0 %v10500
    %10640 = vmatprep.subr.bf16.mxu0 0
    %10641 = vmatpush1.bf16.msra.mxu0 %v10501
    %10642 = vmatprep.subr.bf16.mxu0 0
    %10643 = vmatpush1.bf16.msra.mxu0 %v10502
    %10644 = vmatprep.subr.bf16.mxu0 0
    %10645 = vmatpush1.bf16.msra.mxu0 %v10503
    %10646 = vmatprep.subr.bf16.mxu0 0
    %10647 = vmatpush1.bf16.msra.mxu0 %v10504
    %10648 = vmatprep.subr.bf16.mxu0 0
    %10649 = vmatpush1.bf16.msra.mxu0 %v10505
    %10650 = vmatprep.mubr.bf16.mxu0 %v9972
    %10651 = vmatmul.mubr.bf16.gmra.mrb[0].mxu0 %v9971
    %v10652 = vpop.f32.mrb[0].mxu0
    %v10653 = vadd.f32 %v10232, %v10652
    %v10654 = vpop.f32.mrb[0].mxu0
    %v10655 = vpop.f32.mrb[0].mxu0
    %v10656 = vadd.f32 %v10232, %v10655
    %v10657 = vpop.f32.mrb[0].mxu0
    %10658 = vmatprep.mubr.bf16.mxu0 %v9980
    %10659 = vmatmul.mubr.bf16.gmra.mrb[0].mxu0 %v9979
    %v10660 = vpop.f32.mrb[0].mxu0
    %v10661 = vadd.f32 %v10232, %v10660
    %v10662 = vpop.f32.mrb[0].mxu0
    %v10663 = vpop.f32.mrb[0].mxu0
    %v10664 = vadd.f32 %v10232, %v10663
    %v10665 = vpop.f32.mrb[0].mxu0
    %10666 = vmatprep.mubr.bf16.mxu0 %v9988
    %10667 = vmatmul.mubr.bf16.gmra.mrb[0].mxu0 %v9987
    %v10668 = vpop.f32.mrb[0].mxu0
    %v10669 = vadd.f32 %v10232, %v10668
    %v10670 = vpop.f32.mrb[0].mxu0
    %v10671 = vpop.f32.mrb[0].mxu0
    %v10672 = vadd.f32 %v10232, %v10671
    %v10673 = vpop.f32.mrb[0].mxu0
    %10674 = vmatprep.mubr.bf16.mxu0 %v9996
    %10675 = vmatmul.mubr.bf16.gmra.mrb[0].mxu0 %v9995
    %v10676 = vpop.f32.mrb[0].mxu0
    %v10677 = vadd.f32 %v10232, %v10676
    %v10678 = vpop.f32.mrb[0].mxu0
    %v10679 = vpop.f32.mrb[0].mxu0
    %v10680 = vadd.f32 %v10232, %v10679
    %v10681 = vpop.f32.mrb[0].mxu0
    %10682 = vmatprep.mubr.bf16.mxu0 %v10004
    %10683 = vmatmul.mubr.bf16.gmra.mrb[0].mxu0 %v10003
    %v10684 = vpop.f32.mrb[0].mxu0
    %v10685 = vadd.f32 %v10232, %v10684
    %v10686 = vpop.f32.mrb[0].mxu0
    %v10687 = vpop.f32.mrb[0].mxu0
    %v10688 = vadd.f32 %v10232, %v10687
    %v10689 = vpop.f32.mrb[0].mxu0
    %10690 = vmatprep.mubr.bf16.mxu0 %v10012
    %10691 = vmatmul.mubr.bf16.gmra.mrb[0].mxu0 %v10011
    %v10692 = vpop.f32.mrb[0].mxu0
    %v10693 = vadd.f32 %v10232, %v10692
    %v10694 = vpop.f32.mrb[0].mxu0
    %v10695 = vpop.f32.mrb[0].mxu0
    %v10696 = vadd.f32 %v10232, %v10695
    %v10697 = vpop.f32.mrb[0].mxu0
    %10698 = vmatprep.mubr.bf16.mxu0 %v10020
    %10699 = vmatmul.mubr.bf16.gmra.mrb[0].mxu0 %v10019
    %v10700 = vpop.f32.mrb[0].mxu0
    %v10701 = vadd.f32 %v10232, %v10700
    %v10702 = vpop.f32.mrb[0].mxu0
    %v10703 = vpop.f32.mrb[0].mxu0
    %v10704 = vadd.f32 %v10232, %v10703
    %v10705 = vpop.f32.mrb[0].mxu0
    %10706 = vmatprep.mubr.bf16.mxu0 %v10028
    %10707 = vmatmul.mubr.bf16.gmra.mrb[0].mxu0 %v10027
    %v10708 = vpop.f32.mrb[0].mxu0
    %v10709 = vadd.f32 %v10232, %v10708
    %v10710 = vpop.f32.mrb[0].mxu0
    %v10711 = vpop.f32.mrb[0].mxu0
    %v10712 = vadd.f32 %v10232, %v10711
    %v10713 = vpop.f32.mrb[0].mxu0
    %10714 = vmatprep.mubr.bf16.mxu0 %v10036
    %10715 = vmatmul.mubr.bf16.gmra.mrb[0].mxu0 %v10035
    %v10716 = vpop.f32.mrb[0].mxu0
    %v10717 = vadd.f32 %v10232, %v10716
    %v10718 = vpop.f32.mrb[0].mxu0
    %v10719 = vpop.f32.mrb[0].mxu0
    %v10720 = vadd.f32 %v10232, %v10719
    %v10721 = vpop.f32.mrb[0].mxu0
    %10722 = vmatprep.mubr.bf16.mxu0 %v10044
    %10723 = vmatmul.mubr.bf16.gmra.mrb[0].mxu0 %v10043
    %v10724 = vpop.f32.mrb[0].mxu0
    %v10725 = vadd.f32 %v10232, %v10724
    %v10726 = vpop.f32.mrb[0].mxu0
    %v10727 = vpop.f32.mrb[0].mxu0
    %v10728 = vadd.f32 %v10232, %v10727
    %v10729 = vpop.f32.mrb[0].mxu0
    %10730 = vmatprep.mubr.bf16.mxu0 %v10052
    %10731 = vmatmul.mubr.bf16.gmra.mrb[0].mxu0 %v10051
    %v10732 = vpop.f32.mrb[0].mxu0
    %v10733 = vadd.f32 %v10232, %v10732
    %v10734 = vpop.f32.mrb[0].mxu0
    %v10735 = vpop.f32.mrb[0].mxu0
    %v10736 = vadd.f32 %v10232, %v10735
    %v10737 = vpop.f32.mrb[0].mxu0
    %10738 = vmatprep.mubr.bf16.mxu0 %v10060
    %10739 = vmatmul.mubr.bf16.gmra.mrb[0].mxu0 %v10059
    %v10740 = vpop.f32.mrb[0].mxu0
    %v10741 = vadd.f32 %v10232, %v10740
    %v10742 = vpop.f32.mrb[0].mxu0
    %v10743 = vpop.f32.mrb[0].mxu0
    %v10744 = vadd.f32 %v10232, %v10743
    %v10745 = vpop.f32.mrb[0].mxu0
    %10746 = vmatprep.mubr.bf16.mxu0 %v10068
    %10747 = vmatmul.mubr.bf16.gmra.mrb[0].mxu0 %v10067
    %v10748 = vpop.f32.mrb[0].mxu0
    %v10749 = vadd.f32 %v10232, %v10748
    %v10750 = vpop.f32.mrb[0].mxu0
    %v10751 = vpop.f32.mrb[0].mxu0
    %v10752 = vadd.f32 %v10232, %v10751
    %v10753 = vpop.f32.mrb[0].mxu0
    %10754 = vmatprep.mubr.bf16.mxu0 %v10076
    %10755 = vmatmul.mubr.bf16.gmra.mrb[0].mxu0 %v10075
    %v10756 = vpop.f32.mrb[0].mxu0
    %v10757 = vadd.f32 %v10232, %v10756
    %v10758 = vpop.f32.mrb[0].mxu0
    %v10759 = vpop.f32.mrb[0].mxu0
    %v10760 = vadd.f32 %v10232, %v10759
    %v10761 = vpop.f32.mrb[0].mxu0
    %10762 = vmatprep.mubr.bf16.mxu0 %v10084
    %10763 = vmatmul.mubr.bf16.gmra.mrb[0].mxu0 %v10083
    %v10764 = vpop.f32.mrb[0].mxu0
    %v10765 = vadd.f32 %v10232, %v10764
    %v10766 = vpop.f32.mrb[0].mxu0
    %v10767 = vpop.f32.mrb[0].mxu0
    %v10768 = vadd.f32 %v10232, %v10767
    %v10769 = vpop.f32.mrb[0].mxu0
    %10770 = vmatprep.mubr.bf16.mxu0 %v10092
    %10771 = vmatmul.mubr.bf16.gmra.mrb[0].mxu0 %v10091
    %v10772 = vpop.f32.mrb[0].mxu0
    %v10773 = vadd.f32 %v10232, %v10772
    %v10774 = vpop.f32.mrb[0].mxu0
    %v10775 = vpop.f32.mrb[0].mxu0
    %v10776 = vadd.f32 %v10232, %v10775
    %v10777 = vpop.f32.mrb[0].mxu0
    %10778 = vdwg.mxu0
    %10779 = vmatprep.subr.bf16.mxu0 0
    %10780 = vmatpush1.bf16.msra.mxu0 %v10506
    %10781 = vmatprep.subr.bf16.mxu0 0
    %10782 = vmatpush1.bf16.msra.mxu0 %v10507
    %10783 = vmatprep.subr.bf16.mxu0 0
    %10784 = vmatpush1.bf16.msra.mxu0 %v10508
    %10785 = vmatprep.subr.bf16.mxu0 0
    %10786 = vmatpush1.bf16.msra.mxu0 %v10509
    %10787 = vmatprep.subr.bf16.mxu0 0
    %10788 = vmatpush1.bf16.msra.mxu0 %v10510
    %10789 = vmatprep.subr.bf16.mxu0 0
    %10790 = vmatpush1.bf16.msra.mxu0 %v10511
    %10791 = vmatprep.subr.bf16.mxu0 0
    %10792 = vmatpush1.bf16.msra.mxu0 %v10512
    %10793 = vmatprep.subr.bf16.mxu0 0
    %10794 = vmatpush1.bf16.msra.mxu0 %v10513
    %10795 = vmatprep.subr.bf16.mxu0 0
    %10796 = vmatpush1.bf16.msra.mxu0 %v10514
    %10797 = vmatprep.subr.bf16.mxu0 0
    %10798 = vmatpush1.bf16.msra.mxu0 %v10515
    %10799 = vmatprep.subr.bf16.mxu0 0
    %10800 = vmatpush1.bf16.msra.mxu0 %v10516
    %10801 = vmatprep.subr.bf16.mxu0 0
    %10802 = vmatpush1.bf16.msra.mxu0 %v10517
    %10803 = vmatprep.subr.bf16.mxu0 0
    %10804 = vmatpush1.bf16.msra.mxu0 %v10518
    %10805 = vmatprep.subr.bf16.mxu0 0
    %10806 = vmatpush1.bf16.msra.mxu0 %v10519
    %10807 = vmatprep.subr.bf16.mxu0 0
    %10808 = vmatpush1.bf16.msra.mxu0 %v10520
    %10809 = vmatprep.subr.bf16.mxu0 0
    %10810 = vmatpush1.bf16.msra.mxu0 %v10521
    %10811 = vmatprep.mubr.bf16.mxu0 %v9974
    %10812 = vmatmul.mubr.bf16.gmra.mrb[0].mxu0 %v9973
    %v10813 = vpop.f32.mrb[0].mxu0
    %v10814 = vadd.f32 %v10653, %v10813
    %v10815 = vpop.f32.mrb[0].mxu0
    %v10816 = vpop.f32.mrb[0].mxu0
    %v10817 = vadd.f32 %v10656, %v10816
    %v10818 = vpop.f32.mrb[0].mxu0
    %10819 = vmatprep.mubr.bf16.mxu0 %v9982
    %10820 = vmatmul.mubr.bf16.gmra.mrb[0].mxu0 %v9981
    %v10821 = vpop.f32.mrb[0].mxu0
    %v10822 = vadd.f32 %v10661, %v10821
    %v10823 = vpop.f32.mrb[0].mxu0
    %v10824 = vpop.f32.mrb[0].mxu0
    %v10825 = vadd.f32 %v10664, %v10824
    %v10826 = vpop.f32.mrb[0].mxu0
    %10827 = vmatprep.mubr.bf16.mxu0 %v9990
    %10828 = vmatmul.mubr.bf16.gmra.mrb[0].mxu0 %v9989
    %v10829 = vpop.f32.mrb[0].mxu0
    %v10830 = vadd.f32 %v10669, %v10829
    %v10831 = vpop.f32.mrb[0].mxu0
    %v10832 = vpop.f32.mrb[0].mxu0
    %v10833 = vadd.f32 %v10672, %v10832
    %v10834 = vpop.f32.mrb[0].mxu0
    %10835 = vmatprep.mubr.bf16.mxu0 %v9998
    %10836 = vmatmul.mubr.bf16.gmra.mrb[0].mxu0 %v9997
    %v10837 = vpop.f32.mrb[0].mxu0
    %v10838 = vadd.f32 %v10677, %v10837
    %v10839 = vpop.f32.mrb[0].mxu0
    %v10840 = vpop.f32.mrb[0].mxu0
    %v10841 = vadd.f32 %v10680, %v10840
    %v10842 = vpop.f32.mrb[0].mxu0
    %10843 = vmatprep.mubr.bf16.mxu0 %v10006
    %10844 = vmatmul.mubr.bf16.gmra.mrb[0].mxu0 %v10005
    %v10845 = vpop.f32.mrb[0].mxu0
    %v10846 = vadd.f32 %v10685, %v10845
    %v10847 = vpop.f32.mrb[0].mxu0
    %v10848 = vpop.f32.mrb[0].mxu0
    %v10849 = vadd.f32 %v10688, %v10848
    %v10850 = vpop.f32.mrb[0].mxu0
    %10851 = vmatprep.mubr.bf16.mxu0 %v10014
    %10852 = vmatmul.mubr.bf16.gmra.mrb[0].mxu0 %v10013
    %v10853 = vpop.f32.mrb[0].mxu0
    %v10854 = vadd.f32 %v10693, %v10853
    %v10855 = vpop.f32.mrb[0].mxu0
    %v10856 = vpop.f32.mrb[0].mxu0
    %v10857 = vadd.f32 %v10696, %v10856
    %v10858 = vpop.f32.mrb[0].mxu0
    %10859 = vmatprep.mubr.bf16.mxu0 %v10022
    %10860 = vmatmul.mubr.bf16.gmra.mrb[0].mxu0 %v10021
    %v10861 = vpop.f32.mrb[0].mxu0
    %v10862 = vadd.f32 %v10701, %v10861
    %v10863 = vpop.f32.mrb[0].mxu0
    %v10864 = vpop.f32.mrb[0].mxu0
    %v10865 = vadd.f32 %v10704, %v10864
    %v10866 = vpop.f32.mrb[0].mxu0
    %10867 = vmatprep.mubr.bf16.mxu0 %v10030
    %10868 = vmatmul.mubr.bf16.gmra.mrb[0].mxu0 %v10029
    %v10869 = vpop.f32.mrb[0].mxu0
    %v10870 = vadd.f32 %v10709, %v10869
    %v10871 = vpop.f32.mrb[0].mxu0
    %v10872 = vpop.f32.mrb[0].mxu0
    %v10873 = vadd.f32 %v10712, %v10872
    %v10874 = vpop.f32.mrb[0].mxu0
    %10875 = vmatprep.mubr.bf16.mxu0 %v10038
    %10876 = vmatmul.mubr.bf16.gmra.mrb[0].mxu0 %v10037
    %v10877 = vpop.f32.mrb[0].mxu0
    %v10878 = vadd.f32 %v10717, %v10877
    %v10879 = vpop.f32.mrb[0].mxu0
    %v10880 = vpop.f32.mrb[0].mxu0
    %v10881 = vadd.f32 %v10720, %v10880
    %v10882 = vpop.f32.mrb[0].mxu0
    %10883 = vmatprep.mubr.bf16.mxu0 %v10046
    %10884 = vmatmul.mubr.bf16.gmra.mrb[0].mxu0 %v10045
    %v10885 = vpop.f32.mrb[0].mxu0
    %v10886 = vadd.f32 %v10725, %v10885
    %v10887 = vpop.f32.mrb[0].mxu0
    %v10888 = vpop.f32.mrb[0].mxu0
    %v10889 = vadd.f32 %v10728, %v10888
    %v10890 = vpop.f32.mrb[0].mxu0
    %10891 = vmatprep.mubr.bf16.mxu0 %v10054
    %10892 = vmatmul.mubr.bf16.gmra.mrb[0].mxu0 %v10053
    %v10893 = vpop.f32.mrb[0].mxu0
    %v10894 = vadd.f32 %v10733, %v10893
    %v10895 = vpop.f32.mrb[0].mxu0
    %v10896 = vpop.f32.mrb[0].mxu0
    %v10897 = vadd.f32 %v10736, %v10896
    %v10898 = vpop.f32.mrb[0].mxu0
    %10899 = vmatprep.mubr.bf16.mxu0 %v10062
    %10900 = vmatmul.mubr.bf16.gmra.mrb[0].mxu0 %v10061
    %v10901 = vpop.f32.mrb[0].mxu0
    %v10902 = vadd.f32 %v10741, %v10901
    %v10903 = vpop.f32.mrb[0].mxu0
    %v10904 = vpop.f32.mrb[0].mxu0
    %v10905 = vadd.f32 %v10744, %v10904
    %v10906 = vpop.f32.mrb[0].mxu0
    %10907 = vmatprep.mubr.bf16.mxu0 %v10070
    %10908 = vmatmul.mubr.bf16.gmra.mrb[0].mxu0 %v10069
    %v10909 = vpop.f32.mrb[0].mxu0
    %v10910 = vadd.f32 %v10749, %v10909
    %v10911 = vpop.f32.mrb[0].mxu0
    %v10912 = vpop.f32.mrb[0].mxu0
    %v10913 = vadd.f32 %v10752, %v10912
    %v10914 = vpop.f32.mrb[0].mxu0
    %10915 = vmatprep.mubr.bf16.mxu0 %v10078
    %10916 = vmatmul.mubr.bf16.gmra.mrb[0].mxu0 %v10077
    %v10917 = vpop.f32.mrb[0].mxu0
    %v10918 = vadd.f32 %v10757, %v10917
    %v10919 = vpop.f32.mrb[0].mxu0
    %v10920 = vpop.f32.mrb[0].mxu0
    %v10921 = vadd.f32 %v10760, %v10920
    %v10922 = vpop.f32.mrb[0].mxu0
    %10923 = vmatprep.mubr.bf16.mxu0 %v10086
    %10924 = vmatmul.mubr.bf16.gmra.mrb[0].mxu0 %v10085
    %v10925 = vpop.f32.mrb[0].mxu0
    %v10926 = vadd.f32 %v10765, %v10925
    %v10927 = vpop.f32.mrb[0].mxu0
    %v10928 = vpop.f32.mrb[0].mxu0
    %v10929 = vadd.f32 %v10768, %v10928
    %v10930 = vpop.f32.mrb[0].mxu0
    %10931 = vmatprep.mubr.bf16.mxu0 %v10094
    %10932 = vmatmul.mubr.bf16.gmra.mrb[0].mxu0 %v10093
    %v10933 = vpop.f32.mrb[0].mxu0
    %v10934 = vadd.f32 %v10773, %v10933
    %v10935 = vpop.f32.mrb[0].mxu0
    %v10936 = vpop.f32.mrb[0].mxu0
    %v10937 = vadd.f32 %v10776, %v10936
    %v10938 = vpop.f32.mrb[0].mxu0
    %10939 = vdwg.mxu0
    %10940 = vmatprep.subr.bf16.mxu0 0
    %10941 = vmatpush1.bf16.msra.mxu0 %v10522
    %10942 = vmatprep.subr.bf16.mxu0 0
    %10943 = vmatpush1.bf16.msra.mxu0 %v10523
    %10944 = vmatprep.subr.bf16.mxu0 0
    %10945 = vmatpush1.bf16.msra.mxu0 %v10524
    %10946 = vmatprep.subr.bf16.mxu0 0
    %10947 = vmatpush1.bf16.msra.mxu0 %v10525
    %10948 = vmatprep.subr.bf16.mxu0 0
    %10949 = vmatpush1.bf16.msra.mxu0 %v10526
    %10950 = vmatprep.subr.bf16.mxu0 0
    %10951 = vmatpush1.bf16.msra.mxu0 %v10527
    %10952 = vmatprep.subr.bf16.mxu0 0
    %10953 = vmatpush1.bf16.msra.mxu0 %v10528
    %10954 = vmatprep.subr.bf16.mxu0 0
    %10955 = vmatpush1.bf16.msra.mxu0 %v10529
    %10956 = vmatprep.subr.bf16.mxu0 0
    %10957 = vmatpush1.bf16.msra.mxu0 %v10530
    %10958 = vmatprep.subr.bf16.mxu0 0
    %10959 = vmatpush1.bf16.msra.mxu0 %v10531
    %10960 = vmatprep.subr.bf16.mxu0 0
    %10961 = vmatpush1.bf16.msra.mxu0 %v10532
    %10962 = vmatprep.subr.bf16.mxu0 0
    %10963 = vmatpush1.bf16.msra.mxu0 %v10533
    %10964 = vmatprep.subr.bf16.mxu0 0
    %10965 = vmatpush1.bf16.msra.mxu0 %v10534
    %10966 = vmatprep.subr.bf16.mxu0 0
    %10967 = vmatpush1.bf16.msra.mxu0 %v10535
    %10968 = vmatprep.subr.bf16.mxu0 0
    %10969 = vmatpush1.bf16.msra.mxu0 %v10536
    %10970 = vmatprep.subr.bf16.mxu0 0
    %10971 = vmatpush1.bf16.msra.mxu0 %v10537
    %10972 = vmatprep.mubr.bf16.mxu0 %v9976
    %10973 = vmatmul.mubr.bf16.gmra.mrb[0].mxu0 %v9975
    %v10974 = vpop.f32.mrb[0].mxu0
    %v10975 = vadd.f32 %v10814, %v10974
    %v10976 = vpop.f32.mrb[0].mxu0
    %v10977 = vpop.f32.mrb[0].mxu0
    %v10978 = vadd.f32 %v10817, %v10977
    %v10979 = vpop.f32.mrb[0].mxu0
    %10980 = vmatprep.mubr.bf16.mxu0 %v9984
    %10981 = vmatmul.mubr.bf16.gmra.mrb[0].mxu0 %v9983
    %v10982 = vpop.f32.mrb[0].mxu0
    %v10983 = vadd.f32 %v10822, %v10982
    %v10984 = vpop.f32.mrb[0].mxu0
    %v10985 = vpop.f32.mrb[0].mxu0
    %v10986 = vadd.f32 %v10825, %v10985
    %v10987 = vpop.f32.mrb[0].mxu0
    %10988 = vmatprep.mubr.bf16.mxu0 %v9992
    %10989 = vmatmul.mubr.bf16.gmra.mrb[0].mxu0 %v9991
    %v10990 = vpop.f32.mrb[0].mxu0
    %v10991 = vadd.f32 %v10830, %v10990
    %v10992 = vpop.f32.mrb[0].mxu0
    %v10993 = vpop.f32.mrb[0].mxu0
    %v10994 = vadd.f32 %v10833, %v10993
    %v10995 = vpop.f32.mrb[0].mxu0
    %10996 = vmatprep.mubr.bf16.mxu0 %v10000
    %10997 = vmatmul.mubr.bf16.gmra.mrb[0].mxu0 %v9999
    %v10998 = vpop.f32.mrb[0].mxu0
    %v10999 = vadd.f32 %v10838, %v10998
    %v11000 = vpop.f32.mrb[0].mxu0
    %v11001 = vpop.f32.mrb[0].mxu0
    %v11002 = vadd.f32 %v10841, %v11001
    %v11003 = vpop.f32.mrb[0].mxu0
    %11004 = vmatprep.mubr.bf16.mxu0 %v10008
    %11005 = vmatmul.mubr.bf16.gmra.mrb[0].mxu0 %v10007
    %v11006 = vpop.f32.mrb[0].mxu0
    %v11007 = vadd.f32 %v10846, %v11006
    %v11008 = vpop.f32.mrb[0].mxu0
    %v11009 = vpop.f32.mrb[0].mxu0
    %v11010 = vadd.f32 %v10849, %v11009
    %v11011 = vpop.f32.mrb[0].mxu0
    %11012 = vmatprep.mubr.bf16.mxu0 %v10016
    %11013 = vmatmul.mubr.bf16.gmra.mrb[0].mxu0 %v10015
    %v11014 = vpop.f32.mrb[0].mxu0
    %v11015 = vadd.f32 %v10854, %v11014
    %v11016 = vpop.f32.mrb[0].mxu0
    %v11017 = vpop.f32.mrb[0].mxu0
    %v11018 = vadd.f32 %v10857, %v11017
    %v11019 = vpop.f32.mrb[0].mxu0
    %11020 = vmatprep.mubr.bf16.mxu0 %v10024
    %11021 = vmatmul.mubr.bf16.gmra.mrb[0].mxu0 %v10023
    %v11022 = vpop.f32.mrb[0].mxu0
    %v11023 = vadd.f32 %v10862, %v11022
    %v11024 = vpop.f32.mrb[0].mxu0
    %v11025 = vpop.f32.mrb[0].mxu0
    %v11026 = vadd.f32 %v10865, %v11025
    %v11027 = vpop.f32.mrb[0].mxu0
    %11028 = vmatprep.mubr.bf16.mxu0 %v10032
    %11029 = vmatmul.mubr.bf16.gmra.mrb[0].mxu0 %v10031
    %v11030 = vpop.f32.mrb[0].mxu0
    %v11031 = vadd.f32 %v10870, %v11030
    %v11032 = vpop.f32.mrb[0].mxu0
    %v11033 = vpop.f32.mrb[0].mxu0
    %v11034 = vadd.f32 %v10873, %v11033
    %v11035 = vpop.f32.mrb[0].mxu0
    %11036 = vmatprep.mubr.bf16.mxu0 %v10040
    %11037 = vmatmul.mubr.bf16.gmra.mrb[0].mxu0 %v10039
    %v11038 = vpop.f32.mrb[0].mxu0
    %v11039 = vadd.f32 %v10878, %v11038
    %v11040 = vpop.f32.mrb[0].mxu0
    %v11041 = vpop.f32.mrb[0].mxu0
    %v11042 = vadd.f32 %v10881, %v11041
    %v11043 = vpop.f32.mrb[0].mxu0
    %11044 = vmatprep.mubr.bf16.mxu0 %v10048
    %11045 = vmatmul.mubr.bf16.gmra.mrb[0].mxu0 %v10047
    %v11046 = vpop.f32.mrb[0].mxu0
    %v11047 = vadd.f32 %v10886, %v11046
    %v11048 = vpop.f32.mrb[0].mxu0
    %v11049 = vpop.f32.mrb[0].mxu0
    %v11050 = vadd.f32 %v10889, %v11049
    %v11051 = vpop.f32.mrb[0].mxu0
    %11052 = vmatprep.mubr.bf16.mxu0 %v10056
    %11053 = vmatmul.mubr.bf16.gmra.mrb[0].mxu0 %v10055
    %v11054 = vpop.f32.mrb[0].mxu0
    %v11055 = vadd.f32 %v10894, %v11054
    %v11056 = vpop.f32.mrb[0].mxu0
    %v11057 = vpop.f32.mrb[0].mxu0
    %v11058 = vadd.f32 %v10897, %v11057
    %v11059 = vpop.f32.mrb[0].mxu0
    %11060 = vmatprep.mubr.bf16.mxu0 %v10064
    %11061 = vmatmul.mubr.bf16.gmra.mrb[0].mxu0 %v10063
    %v11062 = vpop.f32.mrb[0].mxu0
    %v11063 = vadd.f32 %v10902, %v11062
    %v11064 = vpop.f32.mrb[0].mxu0
    %v11065 = vpop.f32.mrb[0].mxu0
    %v11066 = vadd.f32 %v10905, %v11065
    %v11067 = vpop.f32.mrb[0].mxu0
    %11068 = vmatprep.mubr.bf16.mxu0 %v10072
    %11069 = vmatmul.mubr.bf16.gmra.mrb[0].mxu0 %v10071
    %v11070 = vpop.f32.mrb[0].mxu0
    %v11071 = vadd.f32 %v10910, %v11070
    %v11072 = vpop.f32.mrb[0].mxu0
    %v11073 = vpop.f32.mrb[0].mxu0
    %v11074 = vadd.f32 %v10913, %v11073
    %v11075 = vpop.f32.mrb[0].mxu0
    %11076 = vmatprep.mubr.bf16.mxu0 %v10080
    %11077 = vmatmul.mubr.bf16.gmra.mrb[0].mxu0 %v10079
    %v11078 = vpop.f32.mrb[0].mxu0
    %v11079 = vadd.f32 %v10918, %v11078
    %v11080 = vpop.f32.mrb[0].mxu0
    %v11081 = vpop.f32.mrb[0].mxu0
    %v11082 = vadd.f32 %v10921, %v11081
    %v11083 = vpop.f32.mrb[0].mxu0
    %11084 = vmatprep.mubr.bf16.mxu0 %v10088
    %11085 = vmatmul.mubr.bf16.gmra.mrb[0].mxu0 %v10087
    %v11086 = vpop.f32.mrb[0].mxu0
    %v11087 = vadd.f32 %v10926, %v11086
    %v11088 = vpop.f32.mrb[0].mxu0
    %v11089 = vpop.f32.mrb[0].mxu0
    %v11090 = vadd.f32 %v10929, %v11089
    %v11091 = vpop.f32.mrb[0].mxu0
    %11092 = vmatprep.mubr.bf16.mxu0 %v10096
    %11093 = vmatmul.mubr.bf16.gmra.mrb[0].mxu0 %v10095
    %v11094 = vpop.f32.mrb[0].mxu0
    %v11095 = vadd.f32 %v10934, %v11094
    %v11096 = vpop.f32.mrb[0].mxu0
    %v11097 = vpop.f32.mrb[0].mxu0
    %v11098 = vadd.f32 %v10937, %v11097
    %v11099 = vpop.f32.mrb[0].mxu0
    %11100 = vdwg.mxu0
    %11101 = vmatprep.subr.bf16.mxu0 0
    %11102 = vmatpush1.bf16.msra.mxu0 %v10538
    %11103 = vmatprep.subr.bf16.mxu0 0
    %11104 = vmatpush1.bf16.msra.mxu0 %v10539
    %11105 = vmatprep.subr.bf16.mxu0 0
    %11106 = vmatpush1.bf16.msra.mxu0 %v10540
    %11107 = vmatprep.subr.bf16.mxu0 0
    %11108 = vmatpush1.bf16.msra.mxu0 %v10541
    %11109 = vmatprep.subr.bf16.mxu0 0
    %11110 = vmatpush1.bf16.msra.mxu0 %v10542
    %11111 = vmatprep.subr.bf16.mxu0 0
    %11112 = vmatpush1.bf16.msra.mxu0 %v10543
    %11113 = vmatprep.subr.bf16.mxu0 0
    %11114 = vmatpush1.bf16.msra.mxu0 %v10544
    %11115 = vmatprep.subr.bf16.mxu0 0
    %11116 = vmatpush1.bf16.msra.mxu0 %v10545
    %11117 = vmatprep.subr.bf16.mxu0 0
    %11118 = vmatpush1.bf16.msra.mxu0 %v10546
    %11119 = vmatprep.subr.bf16.mxu0 0
    %11120 = vmatpush1.bf16.msra.mxu0 %v10547
    %11121 = vmatprep.subr.bf16.mxu0 0
    %11122 = vmatpush1.bf16.msra.mxu0 %v10548
    %11123 = vmatprep.subr.bf16.mxu0 0
    %11124 = vmatpush1.bf16.msra.mxu0 %v10549
    %11125 = vmatprep.subr.bf16.mxu0 0
    %11126 = vmatpush1.bf16.msra.mxu0 %v10550
    %11127 = vmatprep.subr.bf16.mxu0 0
    %11128 = vmatpush1.bf16.msra.mxu0 %v10551
    %11129 = vmatprep.subr.bf16.mxu0 0
    %11130 = vmatpush1.bf16.msra.mxu0 %v10552
    %11131 = vmatprep.subr.bf16.mxu0 0
    %11132 = vmatpush1.bf16.msra.mxu0 %v10553
    %11133 = vmatprep.mubr.bf16.mxu0 %v9978
    %11134 = vmatmul.mubr.bf16.gmra.mrb[0].mxu0 %v9977
    %v11135 = vpop.f32.mrb[0].mxu0
    %v11136 = vadd.f32 %v10975, %v11135
    %v11137 = vpop.f32.mrb[0].mxu0
    %v11138 = vpop.f32.mrb[0].mxu0
    %v11139 = vadd.f32 %v10978, %v11138
    %v11140 = vpop.f32.mrb[0].mxu0
    %11141 = vmatprep.mubr.bf16.mxu0 %v9986
    %11142 = vmatmul.mubr.bf16.gmra.mrb[0].mxu0 %v9985
    %v11143 = vpop.f32.mrb[0].mxu0
    %v11144 = vadd.f32 %v10983, %v11143
    %v11145 = vpop.f32.mrb[0].mxu0
    %v11146 = vpop.f32.mrb[0].mxu0
    %v11147 = vadd.f32 %v10986, %v11146
    %v11148 = vpop.f32.mrb[0].mxu0
    %11149 = vmatprep.mubr.bf16.mxu0 %v9994
    %11150 = vmatmul.mubr.bf16.gmra.mrb[0].mxu0 %v9993
    %v11151 = vpop.f32.mrb[0].mxu0
    %v11152 = vadd.f32 %v10991, %v11151
    %v11153 = vpop.f32.mrb[0].mxu0
    %v11154 = vpop.f32.mrb[0].mxu0
    %v11155 = vadd.f32 %v10994, %v11154
    %v11156 = vpop.f32.mrb[0].mxu0
    %11157 = vmatprep.mubr.bf16.mxu0 %v10002
    %11158 = vmatmul.mubr.bf16.gmra.mrb[0].mxu0 %v10001
    %v11159 = vpop.f32.mrb[0].mxu0
    %v11160 = vadd.f32 %v10999, %v11159
    %v11161 = vpop.f32.mrb[0].mxu0
    %v11162 = vpop.f32.mrb[0].mxu0
    %v11163 = vadd.f32 %v11002, %v11162
    %v11164 = vpop.f32.mrb[0].mxu0
    %11165 = vmatprep.mubr.bf16.mxu0 %v10010
    %11166 = vmatmul.mubr.bf16.gmra.mrb[0].mxu0 %v10009
    %v11167 = vpop.f32.mrb[0].mxu0
    %v11168 = vadd.f32 %v11007, %v11167
    %v11169 = vpop.f32.mrb[0].mxu0
    %v11170 = vpop.f32.mrb[0].mxu0
    %v11171 = vadd.f32 %v11010, %v11170
    %v11172 = vpop.f32.mrb[0].mxu0
    %11173 = vmatprep.mubr.bf16.mxu0 %v10018
    %11174 = vmatmul.mubr.bf16.gmra.mrb[0].mxu0 %v10017
    %v11175 = vpop.f32.mrb[0].mxu0
    %v11176 = vadd.f32 %v11015, %v11175
    %v11177 = vpop.f32.mrb[0].mxu0
    %v11178 = vpop.f32.mrb[0].mxu0
    %v11179 = vadd.f32 %v11018, %v11178
    %v11180 = vpop.f32.mrb[0].mxu0
    %11181 = vmatprep.mubr.bf16.mxu0 %v10026
    %11182 = vmatmul.mubr.bf16.gmra.mrb[0].mxu0 %v10025
    %v11183 = vpop.f32.mrb[0].mxu0
    %v11184 = vadd.f32 %v11023, %v11183
    %v11185 = vpop.f32.mrb[0].mxu0
    %v11186 = vpop.f32.mrb[0].mxu0
    %v11187 = vadd.f32 %v11026, %v11186
    %v11188 = vpop.f32.mrb[0].mxu0
    %11189 = vmatprep.mubr.bf16.mxu0 %v10034
    %11190 = vmatmul.mubr.bf16.gmra.mrb[0].mxu0 %v10033
    %v11191 = vpop.f32.mrb[0].mxu0
    %v11192 = vadd.f32 %v11031, %v11191
    %v11193 = vpop.f32.mrb[0].mxu0
    %v11194 = vpop.f32.mrb[0].mxu0
    %v11195 = vadd.f32 %v11034, %v11194
    %v11196 = vpop.f32.mrb[0].mxu0
    %11197 = vmatprep.mubr.bf16.mxu0 %v10042
    %11198 = vmatmul.mubr.bf16.gmra.mrb[0].mxu0 %v10041
    %v11199 = vpop.f32.mrb[0].mxu0
    %v11200 = vadd.f32 %v11039, %v11199
    %v11201 = vpop.f32.mrb[0].mxu0
    %v11202 = vpop.f32.mrb[0].mxu0
    %v11203 = vadd.f32 %v11042, %v11202
    %v11204 = vpop.f32.mrb[0].mxu0
    %11205 = vmatprep.mubr.bf16.mxu0 %v10050
    %11206 = vmatmul.mubr.bf16.gmra.mrb[0].mxu0 %v10049
    %v11207 = vpop.f32.mrb[0].mxu0
    %v11208 = vadd.f32 %v11047, %v11207
    %v11209 = vpop.f32.mrb[0].mxu0
    %v11210 = vpop.f32.mrb[0].mxu0
    %v11211 = vadd.f32 %v11050, %v11210
    %v11212 = vpop.f32.mrb[0].mxu0
    %11213 = vmatprep.mubr.bf16.mxu0 %v10058
    %11214 = vmatmul.mubr.bf16.gmra.mrb[0].mxu0 %v10057
    %v11215 = vpop.f32.mrb[0].mxu0
    %v11216 = vadd.f32 %v11055, %v11215
    %v11217 = vpop.f32.mrb[0].mxu0
    %v11218 = vpop.f32.mrb[0].mxu0
    %v11219 = vadd.f32 %v11058, %v11218
    %v11220 = vpop.f32.mrb[0].mxu0
    %11221 = vmatprep.mubr.bf16.mxu0 %v10066
    %11222 = vmatmul.mubr.bf16.gmra.mrb[0].mxu0 %v10065
    %v11223 = vpop.f32.mrb[0].mxu0
    %v11224 = vadd.f32 %v11063, %v11223
    %v11225 = vpop.f32.mrb[0].mxu0
    %v11226 = vpop.f32.mrb[0].mxu0
    %v11227 = vadd.f32 %v11066, %v11226
    %v11228 = vpop.f32.mrb[0].mxu0
    %11229 = vmatprep.mubr.bf16.mxu0 %v10074
    %11230 = vmatmul.mubr.bf16.gmra.mrb[0].mxu0 %v10073
    %v11231 = vpop.f32.mrb[0].mxu0
    %v11232 = vadd.f32 %v11071, %v11231
    %v11233 = vpop.f32.mrb[0].mxu0
    %v11234 = vpop.f32.mrb[0].mxu0
    %v11235 = vadd.f32 %v11074, %v11234
    %v11236 = vpop.f32.mrb[0].mxu0
    %11237 = vmatprep.mubr.bf16.mxu0 %v10082
    %11238 = vmatmul.mubr.bf16.gmra.mrb[0].mxu0 %v10081
    %v11239 = vpop.f32.mrb[0].mxu0
    %v11240 = vadd.f32 %v11079, %v11239
    %v11241 = vpop.f32.mrb[0].mxu0
    %v11242 = vpop.f32.mrb[0].mxu0
    %v11243 = vadd.f32 %v11082, %v11242
    %v11244 = vpop.f32.mrb[0].mxu0
    %11245 = vmatprep.mubr.bf16.mxu0 %v10090
    %11246 = vmatmul.mubr.bf16.gmra.mrb[0].mxu0 %v10089
    %v11247 = vpop.f32.mrb[0].mxu0
    %v11248 = vadd.f32 %v11087, %v11247
    %v11249 = vpop.f32.mrb[0].mxu0
    %v11250 = vpop.f32.mrb[0].mxu0
    %v11251 = vadd.f32 %v11090, %v11250
    %v11252 = vpop.f32.mrb[0].mxu0
    %11253 = vmatprep.mubr.bf16.mxu0 %v10098
    %11254 = vmatmul.mubr.bf16.gmra.mrb[0].mxu0 %v10097
    %v11255 = vpop.f32.mrb[0].mxu0
    %v11256 = vadd.f32 %v11095, %v11255
    %v11257 = vpop.f32.mrb[0].mxu0
    %v11258 = vpop.f32.mrb[0].mxu0
    %v11259 = vadd.f32 %v11098, %v11258
    %v11260 = vpop.f32.mrb[0].mxu0
    %11261 = vdwg.mxu0
    %v11262 = vmax.f32 %v11136, 0.0
    %v11263 = vmax.f32 %v11139, 0.0
    %v11264 = vmax.f32 %v11144, 0.0
    %v11265 = vmax.f32 %v11147, 0.0
    %v11266 = vmax.f32 %v11152, 0.0
    %v11267 = vmax.f32 %v11155, 0.0
    %v11268 = vmax.f32 %v11160, 0.0
    %v11269 = vmax.f32 %v11163, 0.0
    %v11270 = vmax.f32 %v11168, 0.0
    %v11271 = vmax.f32 %v11171, 0.0
    %v11272 = vmax.f32 %v11176, 0.0
    %v11273 = vmax.f32 %v11179, 0.0
    %v11274 = vmax.f32 %v11184, 0.0
    %v11275 = vmax.f32 %v11187, 0.0
    %v11276 = vmax.f32 %v11192, 0.0
    %v11277 = vmax.f32 %v11195, 0.0
    %v11278 = vmax.f32 %v11200, 0.0
    %v11279 = vmax.f32 %v11203, 0.0
    %v11280 = vmax.f32 %v11208, 0.0
    %v11281 = vmax.f32 %v11211, 0.0
    %v11282 = vmax.f32 %v11216, 0.0
    %v11283 = vmax.f32 %v11219, 0.0
    %v11284 = vmax.f32 %v11224, 0.0
    %v11285 = vmax.f32 %v11227, 0.0
    %v11286 = vmax.f32 %v11232, 0.0
    %v11287 = vmax.f32 %v11235, 0.0
    %v11288 = vmax.f32 %v11240, 0.0
    %v11289 = vmax.f32 %v11243, 0.0
    %v11290 = vmax.f32 %v11248, 0.0
    %v11291 = vmax.f32 %v11251, 0.0
    %v11292 = vmax.f32 %v11256, 0.0
    %v11293 = vmax.f32 %v11259, 0.0
    %v11294 = vpack.c.bf16 %v11263, %v11262
    %v11295 = vpack.c.bf16 %v11265, %v11264
    %v11296 = vpack.c.bf16 %v11267, %v11266
    %v11297 = vpack.c.bf16 %v11269, %v11268
    %v11298 = vpack.c.bf16 %v11271, %v11270
    %v11299 = vpack.c.bf16 %v11273, %v11272
    %v11300 = vpack.c.bf16 %v11275, %v11274
    %v11301 = vpack.c.bf16 %v11277, %v11276
    %v11302 = vpack.c.bf16 %v11279, %v11278
    %v11303 = vpack.c.bf16 %v11281, %v11280
    %v11304 = vpack.c.bf16 %v11283, %v11282
    %v11305 = vpack.c.bf16 %v11285, %v11284
    %v11306 = vpack.c.bf16 %v11287, %v11286
    %v11307 = vpack.c.bf16 %v11289, %v11288
    %v11308 = vpack.c.bf16 %v11291, %v11290
    %v11309 = vpack.c.bf16 %v11293, %v11292
    %v11310 = vld [vmem:[#allocation12] sm:$0xf]
    %v11311 = vld [vmem:[#allocation12 + $0x4] sm:$0xf]
    %v11312 = vld [vmem:[#allocation12 + $0x8] sm:$0xf]
    %v11313 = vld [vmem:[#allocation12 + $0xc] sm:$0xf]
    %v11314 = vld [vmem:[#allocation12 + $0x10] sm:$0xf]
    %v11315 = vld [vmem:[#allocation12 + $0x14] sm:$0xf]
    %v11316 = vld [vmem:[#allocation12 + $0x18] sm:$0xf]
    %v11317 = vld [vmem:[#allocation12 + $0x1c] sm:$0xf]
    %v11318 = vld [vmem:[#allocation12 + $0x20] sm:$0xf]
    %v11319 = vld [vmem:[#allocation12 + $0x24] sm:$0xf]
    %v11320 = vld [vmem:[#allocation12 + $0x28] sm:$0xf]
    %v11321 = vld [vmem:[#allocation12 + $0x2c] sm:$0xf]
    %v11322 = vld [vmem:[#allocation12 + $0x30] sm:$0xf]
    %v11323 = vld [vmem:[#allocation12 + $0x34] sm:$0xf]
    %v11324 = vld [vmem:[#allocation12 + $0x38] sm:$0xf]
    %v11325 = vld [vmem:[#allocation12 + $0x3c] sm:$0xf]
    %v11326 = vld [vmem:[#allocation13] sm:$0x1]
    %v11328 = vlaneseq
    %v11329 = vshrl.u32 %v11328, 7
    %v11330 = vsub.s32 0, %v11329
    %v11331 = vrot.slane %v11326, %v11330
    %v11349 = vunpack.c.l.b16 %v11310
    %v11350 = vunpack.c.l.b16 %v11311
    %v11351 = vunpack.c.l.b16 %v11312
    %v11352 = vunpack.c.l.b16 %v11313
    %v11353 = vunpack.c.l.b16 %v11314
    %v11354 = vunpack.c.l.b16 %v11315
    %v11355 = vunpack.c.l.b16 %v11316
    %v11356 = vunpack.c.l.b16 %v11317
    %v11357 = vunpack.c.l.b16 %v11318
    %v11358 = vunpack.c.l.b16 %v11319
    %v11359 = vunpack.c.l.b16 %v11320
    %v11360 = vunpack.c.l.b16 %v11321
    %v11361 = vunpack.c.l.b16 %v11322
    %v11362 = vunpack.c.l.b16 %v11323
    %v11363 = vunpack.c.l.b16 %v11324
    %v11364 = vunpack.c.l.b16 %v11325
    %v11365 = vpack.c.b16 %v11350, %v11349
    %v11366 = vpack.c.b16 %v11352, %v11351
    %v11367 = vpack.c.b16 %v11354, %v11353
    %v11368 = vpack.c.b16 %v11356, %v11355
    %v11369 = vpack.c.b16 %v11358, %v11357
    %v11370 = vpack.c.b16 %v11360, %v11359
    %v11371 = vpack.c.b16 %v11362, %v11361
    %v11372 = vpack.c.b16 %v11364, %v11363
    %11381 = vmatprep.subr.bf16.mxu0 0
    %11382 = vmatpush1.bf16.msra.mxu0 %v11365
    %11383 = vmatprep.subr.bf16.mxu0 0
    %11384 = vmatpush1.bf16.msra.mxu0 %v11366
    %11385 = vmatprep.subr.bf16.mxu0 0
    %11386 = vmatpush1.bf16.msra.mxu0 %v11367
    %11387 = vmatprep.subr.bf16.mxu0 0
    %11388 = vmatpush1.bf16.msra.mxu0 %v11368
    %11389 = vmatprep.subr.bf16.mxu0 0
    %11390 = vmatpush1.bf16.msra.mxu0 %v11369
    %11391 = vmatprep.subr.bf16.mxu0 0
    %11392 = vmatpush1.bf16.msra.mxu0 %v11370
    %11393 = vmatprep.subr.bf16.mxu0 0
    %11394 = vmatpush1.bf16.msra.mxu0 %v11371
    %11395 = vmatprep.subr.bf16.mxu0 0
    %11396 = vmatpush1.bf16.msra.mxu0 %v11372
    %11397 = vmatprep.subr.bf16.mxu0 0
    %11398 = vmatpush1.bf16.msra.mxu0 0
    %11399 = vmatprep.subr.bf16.mxu0 0
    %11400 = vmatpush1.bf16.msra.mxu0 0
    %11401 = vmatprep.subr.bf16.mxu0 0
    %11402 = vmatpush1.bf16.msra.mxu0 0
    %11403 = vmatprep.subr.bf16.mxu0 0
    %11404 = vmatpush1.bf16.msra.mxu0 0
    %11405 = vmatprep.subr.bf16.mxu0 0
    %11406 = vmatpush1.bf16.msra.mxu0 0
    %11407 = vmatprep.subr.bf16.mxu0 0
    %11408 = vmatpush1.bf16.msra.mxu0 0
    %11409 = vmatprep.subr.bf16.mxu0 0
    %11410 = vmatpush1.bf16.msra.mxu0 0
    %11411 = vmatprep.subr.bf16.mxu0 0
    %11412 = vmatpush1.bf16.msra.mxu0 0
    %11413 = vmatprep.mubr.bf16.mxu0 0
    %11414 = vmatmul.mubr.bf16.gmra.mrb[0].mxu0 %v11294
    %v11415 = vpop.f32.mrb[0].mxu0
    %v11416 = vadd.f32 %v11331, %v11415
    %v11417 = vpop.f32.mrb[0].mxu0
    %v11418 = vpop.f32.mrb[0].mxu0
    %v11419 = vadd.f32 %v11331, %v11418
    %v11420 = vpop.f32.mrb[0].mxu0
    %11421 = vmatprep.mubr.bf16.mxu0 0
    %11422 = vmatmul.mubr.bf16.gmra.mrb[0].mxu0 %v11295
    %v11423 = vpop.f32.mrb[0].mxu0
    %v11424 = vadd.f32 %v11331, %v11423
    %v11425 = vpop.f32.mrb[0].mxu0
    %v11426 = vpop.f32.mrb[0].mxu0
    %v11427 = vadd.f32 %v11331, %v11426
    %v11428 = vpop.f32.mrb[0].mxu0
    %11429 = vmatprep.mubr.bf16.mxu0 0
    %11430 = vmatmul.mubr.bf16.gmra.mrb[0].mxu0 %v11296
    %v11431 = vpop.f32.mrb[0].mxu0
    %v11432 = vadd.f32 %v11331, %v11431
    %v11433 = vpop.f32.mrb[0].mxu0
    %v11434 = vpop.f32.mrb[0].mxu0
    %v11435 = vadd.f32 %v11331, %v11434
    %v11436 = vpop.f32.mrb[0].mxu0
    %11437 = vmatprep.mubr.bf16.mxu0 0
    %11438 = vmatmul.mubr.bf16.gmra.mrb[0].mxu0 %v11297
    %v11439 = vpop.f32.mrb[0].mxu0
    %v11440 = vadd.f32 %v11331, %v11439
    %v11441 = vpop.f32.mrb[0].mxu0
    %v11442 = vpop.f32.mrb[0].mxu0
    %v11443 = vadd.f32 %v11331, %v11442
    %v11444 = vpop.f32.mrb[0].mxu0
    %11445 = vmatprep.mubr.bf16.mxu0 0
    %11446 = vmatmul.mubr.bf16.gmra.mrb[0].mxu0 %v11298
    %v11447 = vpop.f32.mrb[0].mxu0
    %v11448 = vadd.f32 %v11331, %v11447
    %v11449 = vpop.f32.mrb[0].mxu0
    %v11450 = vpop.f32.mrb[0].mxu0
    %v11451 = vadd.f32 %v11331, %v11450
    %v11452 = vpop.f32.mrb[0].mxu0
    %11453 = vmatprep.mubr.bf16.mxu0 0
    %11454 = vmatmul.mubr.bf16.gmra.mrb[0].mxu0 %v11299
    %v11455 = vpop.f32.mrb[0].mxu0
    %v11456 = vadd.f32 %v11331, %v11455
    %v11457 = vpop.f32.mrb[0].mxu0
    %v11458 = vpop.f32.mrb[0].mxu0
    %v11459 = vadd.f32 %v11331, %v11458
    %v11460 = vpop.f32.mrb[0].mxu0
    %11461 = vmatprep.mubr.bf16.mxu0 0
    %11462 = vmatmul.mubr.bf16.gmra.mrb[0].mxu0 %v11300
    %v11463 = vpop.f32.mrb[0].mxu0
    %v11464 = vadd.f32 %v11331, %v11463
    %v11465 = vpop.f32.mrb[0].mxu0
    %v11466 = vpop.f32.mrb[0].mxu0
    %v11467 = vadd.f32 %v11331, %v11466
    %v11468 = vpop.f32.mrb[0].mxu0
    %11469 = vmatprep.mubr.bf16.mxu0 0
    %11470 = vmatmul.mubr.bf16.gmra.mrb[0].mxu0 %v11301
    %v11471 = vpop.f32.mrb[0].mxu0
    %v11472 = vadd.f32 %v11331, %v11471
    %v11473 = vpop.f32.mrb[0].mxu0
    %v11474 = vpop.f32.mrb[0].mxu0
    %v11475 = vadd.f32 %v11331, %v11474
    %v11476 = vpop.f32.mrb[0].mxu0
    %11477 = vmatprep.mubr.bf16.mxu0 0
    %11478 = vmatmul.mubr.bf16.gmra.mrb[0].mxu0 %v11302
    %v11479 = vpop.f32.mrb[0].mxu0
    %v11480 = vadd.f32 %v11331, %v11479
    %v11481 = vpop.f32.mrb[0].mxu0
    %v11482 = vpop.f32.mrb[0].mxu0
    %v11483 = vadd.f32 %v11331, %v11482
    %v11484 = vpop.f32.mrb[0].mxu0
    %11485 = vmatprep.mubr.bf16.mxu0 0
    %11486 = vmatmul.mubr.bf16.gmra.mrb[0].mxu0 %v11303
    %v11487 = vpop.f32.mrb[0].mxu0
    %v11488 = vadd.f32 %v11331, %v11487
    %v11489 = vpop.f32.mrb[0].mxu0
    %v11490 = vpop.f32.mrb[0].mxu0
    %v11491 = vadd.f32 %v11331, %v11490
    %v11492 = vpop.f32.mrb[0].mxu0
    %11493 = vmatprep.mubr.bf16.mxu0 0
    %11494 = vmatmul.mubr.bf16.gmra.mrb[0].mxu0 %v11304
    %v11495 = vpop.f32.mrb[0].mxu0
    %v11496 = vadd.f32 %v11331, %v11495
    %v11497 = vpop.f32.mrb[0].mxu0
    %v11498 = vpop.f32.mrb[0].mxu0
    %v11499 = vadd.f32 %v11331, %v11498
    %v11500 = vpop.f32.mrb[0].mxu0
    %11501 = vmatprep.mubr.bf16.mxu0 0
    %11502 = vmatmul.mubr.bf16.gmra.mrb[0].mxu0 %v11305
    %v11503 = vpop.f32.mrb[0].mxu0
    %v11504 = vadd.f32 %v11331, %v11503
    %v11505 = vpop.f32.mrb[0].mxu0
    %v11506 = vpop.f32.mrb[0].mxu0
    %v11507 = vadd.f32 %v11331, %v11506
    %v11508 = vpop.f32.mrb[0].mxu0
    %11509 = vmatprep.mubr.bf16.mxu0 0
    %11510 = vmatmul.mubr.bf16.gmra.mrb[0].mxu0 %v11306
    %v11511 = vpop.f32.mrb[0].mxu0
    %v11512 = vadd.f32 %v11331, %v11511
    %v11513 = vpop.f32.mrb[0].mxu0
    %v11514 = vpop.f32.mrb[0].mxu0
    %v11515 = vadd.f32 %v11331, %v11514
    %v11516 = vpop.f32.mrb[0].mxu0
    %11517 = vmatprep.mubr.bf16.mxu0 0
    %11518 = vmatmul.mubr.bf16.gmra.mrb[0].mxu0 %v11307
    %v11519 = vpop.f32.mrb[0].mxu0
    %v11520 = vadd.f32 %v11331, %v11519
    %v11521 = vpop.f32.mrb[0].mxu0
    %v11522 = vpop.f32.mrb[0].mxu0
    %v11523 = vadd.f32 %v11331, %v11522
    %v11524 = vpop.f32.mrb[0].mxu0
    %11525 = vmatprep.mubr.bf16.mxu0 0
    %11526 = vmatmul.mubr.bf16.gmra.mrb[0].mxu0 %v11308
    %v11527 = vpop.f32.mrb[0].mxu0
    %v11528 = vadd.f32 %v11331, %v11527
    %v11529 = vpop.f32.mrb[0].mxu0
    %v11530 = vpop.f32.mrb[0].mxu0
    %v11531 = vadd.f32 %v11331, %v11530
    %v11532 = vpop.f32.mrb[0].mxu0
    %11533 = vmatprep.mubr.bf16.mxu0 0
    %11534 = vmatmul.mubr.bf16.gmra.mrb[0].mxu0 %v11309
    %v11535 = vpop.f32.mrb[0].mxu0
    %v11536 = vadd.f32 %v11331, %v11535
    %v11537 = vpop.f32.mrb[0].mxu0
    %v11538 = vpop.f32.mrb[0].mxu0
    %v11539 = vadd.f32 %v11331, %v11538
    %v11540 = vpop.f32.mrb[0].mxu0
    %11541 = vdwg.mxu0
    %11542 = vst [vmem:[%s9] sm:$0xff] %v11416
    %11543 = vst [vmem:[%s9 + $0x8] sm:$0xff] %v11419
    %11544 = vst [vmem:[%s9 + $0x10] sm:$0xff] %v11424
    %11545 = vst [vmem:[%s9 + $0x18] sm:$0xff] %v11427
    %11546 = vst [vmem:[%s9 + $0x20] sm:$0xff] %v11432
    %11547 = vst [vmem:[%s9 + $0x28] sm:$0xff] %v11435
    %11548 = vst [vmem:[%s9 + $0x30] sm:$0xff] %v11440
    %11549 = vst [vmem:[%s9 + $0x38] sm:$0xff] %v11443
    %11550 = vst [vmem:[%s9 + $0x40] sm:$0xff] %v11448
    %11551 = vst [vmem:[%s9 + $0x48] sm:$0xff] %v11451
    %11552 = vst [vmem:[%s9 + $0x50] sm:$0xff] %v11456
    %11553 = vst [vmem:[%s9 + $0x58] sm:$0xff] %v11459
    %11554 = vst [vmem:[%s9 + $0x60] sm:$0xff] %v11464
    %11555 = vst [vmem:[%s9 + $0x68] sm:$0xff] %v11467
    %11556 = vst [vmem:[%s9 + $0x70] sm:$0xff] %v11472
    %11557 = vst [vmem:[%s9 + $0x78] sm:$0xff] %v11475
    %11558 = vst [vmem:[%s9 + $0x80] sm:$0xff] %v11480
    %11559 = vst [vmem:[%s9 + $0x88] sm:$0xff] %v11483
    %11560 = vst [vmem:[%s9 + $0x90] sm:$0xff] %v11488
    %11561 = vst [vmem:[%s9 + $0x98] sm:$0xff] %v11491
    %11562 = vst [vmem:[%s9 + $0xa0] sm:$0xff] %v11496
    %11563 = vst [vmem:[%s9 + $0xa8] sm:$0xff] %v11499
    %11564 = vst [vmem:[%s9 + $0xb0] sm:$0xff] %v11504
    %11565 = vst [vmem:[%s9 + $0xb8] sm:$0xff] %v11507
    %11566 = vst [vmem:[%s9 + $0xc0] sm:$0xff] %v11512
    %11567 = vst [vmem:[%s9 + $0xc8] sm:$0xff] %v11515
    %11568 = vst [vmem:[%s9 + $0xd0] sm:$0xff] %v11520
    %11569 = vst [vmem:[%s9 + $0xd8] sm:$0xff] %v11523
    %11570 = vst [vmem:[%s9 + $0xe0] sm:$0xff] %v11528
    %11571 = vst [vmem:[%s9 + $0xe8] sm:$0xff] %v11531
    %11572 = vst [vmem:[%s9 + $0xf0] sm:$0xff] %v11536
    %11573 = vst [vmem:[%s9 + $0xf8] sm:$0xff] %v11539
    // Predicated region
    $region70: #{big_chi_player_forward.1} parent=1 // pred_check
      _
    $region71: #{big_chi_player_forward.1} parent=1 // pred_check_branch
      %11575 = sbr.rel (0) target = $region73
    $region72: #{big_chi_player_forward.1} parent=1 // pred_region
      _
    $region73: #{big_chi_player_forward.1} parent=1 // pred_fallthru
      _
    // Predicated region
    $region74: #{big_chi_player_forward.1} parent=1 // pred_check
      _
    $region75: #{big_chi_player_forward.1} parent=1 // pred_check_branch
      %11577 = sbr.rel (0) target = $region77
    $region76: #{big_chi_player_forward.1} parent=1 // pred_region
      _
    $region77: #{big_chi_player_forward.1} parent=1 // pred_fallthru
      _
    %11578 = vsyncpa [#allocation3], 1
    %11579 = vsyncpa [#allocation5], 1
    %11580 = vsyncpa [#allocation8], 1
    %11581 = vsyncpa [#allocation11], 1
    %11582 = vsyncpa [#allocation14], 1

</llo_original>
